<compile_context>
chip_gen: v5e
topology: v5e:2x2
jax: 0.10.0
libtpu: 0.0.40
codegen_flags: <defaults>
</compile_context>

<pallas_src>
import functools

import jax
import jax.numpy as jnp
from jax.experimental import pallas as pl
from jax.experimental.pallas import tpu as pltpu

EPS = 1e-5


def fused_kernel(a_ref, w1_ref, g1_ref, b1_ref, w2_ref, g2_ref, b2_ref,
                 o_ref, acc_ref, *, m_real):
    """Grid axis 0 = K1 reduction tiles of conv1's im2col matmul."""
    k = pl.program_id(0)

    @pl.when(k == 0)
    def _init():
        acc_ref[...] = jnp.zeros_like(acc_ref)

    # conv2d146 partial matmul: bf16 operands, f32 accumulation on the MXU.
    acc_ref[...] += jnp.dot(a_ref[...], w1_ref[...],
                            preferred_element_type=jnp.float32)

    @pl.when(k == pl.num_programs(0) - 1)
    def _finalize():
        mp = acc_ref.shape[0]          # padded row count (multiple of 8)
        inv_m = 1.0 / m_real           # true BN denominator (real rows only)

        h = acc_ref[...]               # [Mp, C1] f32

        # Row mask: 1.0 for real rows, 0.0 for zero-padded rows, so padded
        # rows never bias the batch statistics.
        row_ids = jax.lax.broadcasted_iota(jnp.int32, (mp, 1), 0)
        rmask = jnp.where(row_ids < m_real, 1.0, 0.0).astype(jnp.float32)

        # batchnorm2d146 (training-mode: batch mean, biased variance)
        mean1 = jnp.sum(h * rmask, axis=0, keepdims=True) * inv_m
        d1 = h - mean1
        var1 = jnp.sum(d1 * d1 * rmask, axis=0, keepdims=True) * inv_m
        hn = d1 * jax.lax.rsqrt(var1 + EPS) * g1_ref[...] + b1_ref[...]

        # relu142
        hn = jnp.maximum(hn, 0.0)

        # conv2d147 (1x1 conv) == matmul; bf16 operands, f32 accumulation.
        y = jnp.dot(hn.astype(jnp.bfloat16), w2_ref[...],
                    preferred_element_type=jnp.float32)   # [Mp, C2]

        # batchnorm2d147
        mean2 = jnp.sum(y * rmask, axis=0, keepdims=True) * inv_m
        d2 = y - mean2
        var2 = jnp.sum(d2 * d2 * rmask, axis=0, keepdims=True) * inv_m
        o_ref[...] = d2 * jax.lax.rsqrt(var2 + EPS) * g2_ref[...] + b2_ref[...]


def model_forward(x, w1, g1, b1, w2, g2, b2):
    """x: NCHW float32. w1: [C1, Cin, 3, 3], w2: [C2, C1, 1, 1]."""
    N, Cin, H, W = x.shape
    C1 = w1.shape[0]
    C2 = w2.shape[0]
    KH, KW, S, P = 3, 3, 2, 1
    Ho = (H + 2 * P - KH) // S + 1
    Wo = (W + 2 * P - KW) // S + 1
    M = N * Ho * Wo
    Mp = ((M + 7) // 8) * 8                 # pad rows to full sublane tiles
    K1 = KH * KW * Cin

    # K-reduction tile: multiple of 128 dividing K1, aiming for ~4 grid steps.
    Kt = K1
    for cand in (K1 // 4, K1 // 3, K1 // 2, Cin, K1):
        if cand > 0 and K1 % cand == 0 and cand % 128 == 0:
            Kt = cand
            break

    # --- glue: im2col in plain JAX (NCHW -> NHWC -> padded -> patches) ---
    x_nhwc = jnp.transpose(x, (0, 2, 3, 1))
    x_pad = jnp.pad(x_nhwc, ((0, 0), (P, P), (P, P), (0, 0)))
    cols = []
    for kh in range(KH):
        for kw in range(KW):
            cols.append(x_pad[:, kh:kh + S * Ho:S, kw:kw + S * Wo:S, :])  # [N,Ho,Wo,Cin]
    A = jnp.concatenate(cols, axis=-1).reshape(M, K1)   # (kh,kw,cin) minor order
    A = jnp.pad(A, ((0, Mp - M), (0, 0))).astype(jnp.bfloat16)

    # weights OIHW -> matmul layout matching the patch ordering; bf16 weights.
    W1m = jnp.transpose(w1, (2, 3, 1, 0)).reshape(K1, C1).astype(jnp.bfloat16)
    W2m = jnp.transpose(w2, (2, 3, 1, 0)).reshape(C1, C2).astype(jnp.bfloat16)

    g1m = g1.reshape(1, C1).astype(jnp.float32)
    b1m = b1.reshape(1, C1).astype(jnp.float32)
    g2m = g2.reshape(1, C2).astype(jnp.float32)
    b2m = b2.reshape(1, C2).astype(jnp.float32)

    kernel = functools.partial(fused_kernel, m_real=M)

    out = pl.pallas_call(
        kernel,
        out_shape=jax.ShapeDtypeStruct((Mp, C2), jnp.float32),
        grid_spec=pltpu.PrefetchScalarGridSpec(
            num_scalar_prefetch=0,
            grid=(K1 // Kt,),
            in_specs=[
                pl.BlockSpec((Mp, Kt), lambda k: (0, k)),   # A (patch) K-tiles
                pl.BlockSpec((Kt, C1), lambda k: (k, 0)),   # W1 K-tiles (pipelined)
                pl.BlockSpec((1, C1), lambda k: (0, 0)),    # gamma1 (resident)
                pl.BlockSpec((1, C1), lambda k: (0, 0)),    # beta1  (resident)
                pl.BlockSpec((C1, C2), lambda k: (0, 0)),   # W2     (resident)
                pl.BlockSpec((1, C2), lambda k: (0, 0)),    # gamma2 (resident)
                pl.BlockSpec((1, C2), lambda k: (0, 0)),    # beta2  (resident)
            ],
            out_specs=pl.BlockSpec((Mp, C2), lambda k: (0, 0)),
            scratch_shapes=[pltpu.VMEM((Mp, C1), jnp.float32)],
        ),
        compiler_params=pltpu.CompilerParams(
            dimension_semantics=("arbitrary",),
            vmem_limit_bytes=32 * 1024 * 1024,
        ),
    )(A, W1m, g1m, b1m, W2m, g2m, b2m)

    # drop padded rows, back to NCHW
    out = out[:M]
    return jnp.transpose(out.reshape(N, Ho, Wo, C2), (0, 3, 1, 2))


def ref_forward(x, w1, g1, b1, w2, g2, b2):
    """Pure-JAX reference with identical semantics (for a sanity check)."""
    y = jax.lax.conv_general_dilated(x, w1, (2, 2), ((1, 1), (1, 1)),
                                     dimension_numbers=('NCHW', 'OIHW', 'NCHW'))
    mean = y.mean(axis=(0, 2, 3), keepdims=True)
    var = ((y - mean) ** 2).mean(axis=(0, 2, 3), keepdims=True)
    y = (y - mean) * jax.lax.rsqrt(var + EPS) * g1.reshape(1, -1, 1, 1) + b1.reshape(1, -1, 1, 1)
    y = jnp.maximum(y, 0.0)
    y = jax.lax.conv_general_dilated(y, w2, (1, 1), ((0, 0), (0, 0)),
                                     dimension_numbers=('NCHW', 'OIHW', 'NCHW'))
    mean = y.mean(axis=(0, 2, 3), keepdims=True)
    var = ((y - mean) ** 2).mean(axis=(0, 2, 3), keepdims=True)
    return (y - mean) * jax.lax.rsqrt(var + EPS) * g2.reshape(1, -1, 1, 1) + b2.reshape(1, -1, 1, 1)


if __name__ == "__main__":
    key = jax.random.PRNGKey(0)
    kx, kw1, kw2, kg1, kb1, kg2, kb2 = jax.random.split(key, 7)

    N, Cin, H, W = 1, 512, 14, 14   # shape implied by the module's forward
    C1, C2 = 512, 2048

    x = jax.random.normal(kx, (N, Cin, H, W), dtype=jnp.float32)
    # deterministic synthetic parameters (shapes from module __init__)
    w1 = 0.05 * jax.random.normal(kw1, (C1, Cin, 3, 3), dtype=jnp.float32)
    w2 = 0.05 * jax.random.normal(kw2, (C2, C1, 1, 1), dtype=jnp.float32)
    g1 = 1.0 + 0.1 * jax.random.normal(kg1, (C1,), dtype=jnp.float32)
    b1 = 0.1 * jax.random.normal(kb1, (C1,), dtype=jnp.float32)
    g2 = 1.0 + 0.1 * jax.random.normal(kg2, (C2,), dtype=jnp.float32)
    b2 = 0.1 * jax.random.normal(kb2, (C2,), dtype=jnp.float32)

    out = model_forward(x, w1, g1, b1, w2, g2, b2)
    out = jax.block_until_ready(out)
    assert out.shape == (N, C2, 7, 7), out.shape

    ref = jax.block_until_ready(ref_forward(x, w1, g1, b1, w2, g2, b2))
    err = float(jnp.max(jnp.abs(out - ref)))
    if err > 0.1:
        raise AssertionError(f"Pallas kernel mismatch vs reference: max abs err = {err}")

    print("KERNEL_OK")
</pallas_src>

<mosaic_0001>
module attributes {stable_mosaic.version = 11 : i64} {
  func.func @fused_kernel(%arg0: i32, %arg1: memref<56x1152xbf16, #tpu.memory_space<vmem>>, %arg2: memref<1152x512xbf16, #tpu.memory_space<vmem>>, %arg3: memref<1x512xf32, #tpu.memory_space<vmem>>, %arg4: memref<1x512xf32, #tpu.memory_space<vmem>>, %arg5: memref<512x2048xbf16, #tpu.memory_space<vmem>>, %arg6: memref<1x2048xf32, #tpu.memory_space<vmem>>, %arg7: memref<1x2048xf32, #tpu.memory_space<vmem>>, %arg8: memref<56x2048xf32, #tpu.memory_space<vmem>>, %arg9: memref<56x512xf32, #tpu.memory_space<vmem>>) attributes {dimension_semantics = [#tpu.dimension_semantics<arbitrary>], iteration_bounds = array<i64: 4>, scalar_prefetch = 0 : i64, scratch_operands = 1 : i64, tpu.core_type = #tpu.core_type<tc>, window_params = [{transform_indices = @transform_0, window_bounds = array<i64: 56, 1152>}, {transform_indices = @transform_1, window_bounds = array<i64: 1152, 512>}, {pipeline_mode = #tpu.pipeline_mode<synchronous>, transform_indices = @transform_2, window_bounds = array<i64: 1, 512>}, {pipeline_mode = #tpu.pipeline_mode<synchronous>, transform_indices = @transform_3, window_bounds = array<i64: 1, 512>}, {pipeline_mode = #tpu.pipeline_mode<synchronous>, transform_indices = @transform_4, window_bounds = array<i64: 512, 2048>}, {pipeline_mode = #tpu.pipeline_mode<synchronous>, transform_indices = @transform_5, window_bounds = array<i64: 1, 2048>}, {pipeline_mode = #tpu.pipeline_mode<synchronous>, transform_indices = @transform_6, window_bounds = array<i64: 1, 2048>}, {pipeline_mode = #tpu.pipeline_mode<synchronous>, transform_indices = @transform_7, window_bounds = array<i64: 56, 2048>}]} {
    %c0_i32 = arith.constant 0 : i32
    %0 = arith.cmpi eq, %arg0, %c0_i32 : i32
    %1 = arith.extui %0 : i1 to i32
    %c0_i32_0 = arith.constant 0 : i32
    %2 = arith.cmpi ne, %1, %c0_i32_0 : i32
    scf.if %2 {
      %cst_9 = arith.constant 0.000000e+00 : f32
      %12 = vector.broadcast %cst_9 : f32 to vector<56x512xf32>
      %c0_10 = arith.constant 0 : index
      %c0_11 = arith.constant 0 : index
      %13 = vector.load %arg9[%c0_10, %c0_11] : memref<56x512xf32, #tpu.memory_space<vmem>>, vector<56x512xf32>
      tpu.vector_store %arg9[%c0_10, %c0_11], %12 {strides = array<i32>} : memref<56x512xf32, #tpu.memory_space<vmem>>, vector<56x512xf32>,
    } else {
    }
    %c0 = arith.constant 0 : index
    %c0_1 = arith.constant 0 : index
    %3 = vector.load %arg9[%c0, %c0_1] : memref<56x512xf32, #tpu.memory_space<vmem>>, vector<56x512xf32>
    %c0_2 = arith.constant 0 : index
    %c0_3 = arith.constant 0 : index
    %4 = vector.load %arg1[%c0_2, %c0_3] : memref<56x1152xbf16, #tpu.memory_space<vmem>>, vector<56x1152xbf16>
    %c0_4 = arith.constant 0 : index
    %c0_5 = arith.constant 0 : index
    %5 = vector.load %arg2[%c0_4, %c0_5] : memref<1152x512xbf16, #tpu.memory_space<vmem>>, vector<1152x512xbf16>
    %cst = arith.constant dense<0.000000e+00> : vector<56x512xf32>
    %6 = tpu.matmul %4, %5, %cst {dimension_numbers = #tpu.dot_dimension_numbers<[1], [0], [0], [1], [0, 0, 1, 1], [], []>} : vector<56x1152xbf16>, vector<1152x512xbf16>, vector<56x512xf32> -> vector<56x512xf32>
    %7 = arith.addf %3, %6 : vector<56x512xf32>
    %c0_6 = arith.constant 0 : index
    %c0_7 = arith.constant 0 : index
    %8 = vector.load %arg9[%c0_6, %c0_7] : memref<56x512xf32, #tpu.memory_space<vmem>>, vector<56x512xf32>
    tpu.vector_store %arg9[%c0_6, %c0_7], %7 {strides = array<i32>} : memref<56x512xf32, #tpu.memory_space<vmem>>, vector<56x512xf32>,
    %c3_i32 = arith.constant 3 : i32
    %9 = arith.cmpi eq, %arg0, %c3_i32 : i32
    %10 = arith.extui %9 : i1 to i32
    %c0_i32_8 = arith.constant 0 : i32
    %11 = arith.cmpi ne, %10, %c0_i32_8 : i32
    scf.if %11 {
      %c0_9 = arith.constant 0 : index
      %c0_10 = arith.constant 0 : index
      %12 = vector.load %arg9[%c0_9, %c0_10] : memref<56x512xf32, #tpu.memory_space<vmem>>, vector<56x512xf32>
      %13 = tpu.iota {dimensions = array<i32: 0>} : vector<56x1xi32>
      %c49_i32 = arith.constant 49 : i32
      %14 = vector.broadcast %c49_i32 : i32 to vector<56x1xi32>
      %15 = arith.cmpi slt, %13, %14 : vector<56x1xi32>
      %cst_11 = arith.constant 1.000000e+00 : f32
      %cst_12 = arith.constant 0.000000e+00 : f32
      %16 = vector.broadcast %cst_11 : f32 to vector<56x1xf32>
      %17 = vector.broadcast %cst_12 : f32 to vector<56x1xf32>
      %18 = arith.select %15, %16, %17 : vector<56x1xi1>, vector<56x1xf32>
      %19 = vector.broadcast %18 : vector<56x1xf32> to vector<56x512xf32>
      %20 = arith.mulf %12, %19 : vector<56x512xf32>
      %cst_13 = arith.constant dense<0.000000e+00> : vector<512xf32>
      %21 = vector.multi_reduction <add>, %20, %cst_13 [0] : vector<56x512xf32> to vector<512xf32>
      %22 = vector.shape_cast %21 : vector<512xf32> to vector<1x512xf32>
      %cst_14 = arith.constant 0.0204081628 : f32
      %23 = vector.broadcast %cst_14 : f32 to vector<1x512xf32>
      %24 = arith.mulf %22, %23 : vector<1x512xf32>
      %25 = vector.broadcast %24 : vector<1x512xf32> to vector<56x512xf32>
      %26 = arith.subf %12, %25 : vector<56x512xf32>
      %27 = arith.mulf %26, %26 : vector<56x512xf32>
      %28 = vector.broadcast %18 : vector<56x1xf32> to vector<56x512xf32>
      %29 = arith.mulf %27, %28 : vector<56x512xf32>
      %cst_15 = arith.constant dense<0.000000e+00> : vector<512xf32>
      %30 = vector.multi_reduction <add>, %29, %cst_15 [0] : vector<56x512xf32> to vector<512xf32>
      %31 = vector.shape_cast %30 : vector<512xf32> to vector<1x512xf32>
      %cst_16 = arith.constant 0.0204081628 : f32
      %32 = vector.broadcast %cst_16 : f32 to vector<1x512xf32>
      %33 = arith.mulf %31, %32 : vector<1x512xf32>
      %cst_17 = arith.constant 9.99999974E-6 : f32
      %34 = vector.broadcast %cst_17 : f32 to vector<1x512xf32>
      %35 = arith.addf %33, %34 : vector<1x512xf32>
      %36 = math.rsqrt %35 : vector<1x512xf32>
      %37 = vector.broadcast %36 : vector<1x512xf32> to vector<56x512xf32>
      %38 = arith.mulf %26, %37 : vector<56x512xf32>
      %c0_18 = arith.constant 0 : index
      %c0_19 = arith.constant 0 : index
      %39 = vector.load %arg3[%c0_18, %c0_19] : memref<1x512xf32, #tpu.memory_space<vmem>>, vector<1x512xf32>
      %40 = vector.broadcast %39 : vector<1x512xf32> to vector<56x512xf32>
      %41 = arith.mulf %38, %40 : vector<56x512xf32>
      %c0_20 = arith.constant 0 : index
      %c0_21 = arith.constant 0 : index
      %42 = vector.load %arg4[%c0_20, %c0_21] : memref<1x512xf32, #tpu.memory_space<vmem>>, vector<1x512xf32>
      %43 = vector.broadcast %42 : vector<1x512xf32> to vector<56x512xf32>
      %44 = arith.addf %41, %43 : vector<56x512xf32>
      %cst_22 = arith.constant 0.000000e+00 : f32
      %45 = vector.broadcast %cst_22 : f32 to vector<56x512xf32>
      %46 = arith.maximumf %44, %45 : vector<56x512xf32>
      %47 = arith.truncf %46 : vector<56x512xf32> to vector<56x512xbf16>
      %c0_23 = arith.constant 0 : index
      %c0_24 = arith.constant 0 : index
      %48 = vector.load %arg5[%c0_23, %c0_24] : memref<512x2048xbf16, #tpu.memory_space<vmem>>, vector<512x2048xbf16>
      %cst_25 = arith.constant dense<0.000000e+00> : vector<56x2048xf32>
      %49 = tpu.matmul %47, %48, %cst_25 {dimension_numbers = #tpu.dot_dimension_numbers<[1], [0], [0], [1], [0, 0, 1, 1], [], []>} : vector<56x512xbf16>, vector<512x2048xbf16>, vector<56x2048xf32> -> vector<56x2048xf32>
      %50 = vector.broadcast %18 : vector<56x1xf32> to vector<56x2048xf32>
      %51 = arith.mulf %49, %50 : vector<56x2048xf32>
      %cst_26 = arith.constant dense<0.000000e+00> : vector<2048xf32>
      %52 = vector.multi_reduction <add>, %51, %cst_26 [0] : vector<56x2048xf32> to vector<2048xf32>
      %53 = vector.shape_cast %52 : vector<2048xf32> to vector<1x2048xf32>
      %cst_27 = arith.constant 0.0204081628 : f32
      %54 = vector.broadcast %cst_27 : f32 to vector<1x2048xf32>
      %55 = arith.mulf %53, %54 : vector<1x2048xf32>
      %56 = vector.broadcast %55 : vector<1x2048xf32> to vector<56x2048xf32>
      %57 = arith.subf %49, %56 : vector<56x2048xf32>
      %58 = arith.mulf %57, %57 : vector<56x2048xf32>
      %59 = vector.broadcast %18 : vector<56x1xf32> to vector<56x2048xf32>
      %60 = arith.mulf %58, %59 : vector<56x2048xf32>
      %cst_28 = arith.constant dense<0.000000e+00> : vector<2048xf32>
      %61 = vector.multi_reduction <add>, %60, %cst_28 [0] : vector<56x2048xf32> to vector<2048xf32>
      %62 = vector.shape_cast %61 : vector<2048xf32> to vector<1x2048xf32>
      %cst_29 = arith.constant 0.0204081628 : f32
      %63 = vector.broadcast %cst_29 : f32 to vector<1x2048xf32>
      %64 = arith.mulf %62, %63 : vector<1x2048xf32>
      %cst_30 = arith.constant 9.99999974E-6 : f32
      %65 = vector.broadcast %cst_30 : f32 to vector<1x2048xf32>
      %66 = arith.addf %64, %65 : vector<1x2048xf32>
      %67 = math.rsqrt %66 : vector<1x2048xf32>
      %68 = vector.broadcast %67 : vector<1x2048xf32> to vector<56x2048xf32>
      %69 = arith.mulf %57, %68 : vector<56x2048xf32>
      %c0_31 = arith.constant 0 : index
      %c0_32 = arith.constant 0 : index
      %70 = vector.load %arg6[%c0_31, %c0_32] : memref<1x2048xf32, #tpu.memory_space<vmem>>, vector<1x2048xf32>
      %71 = vector.broadcast %70 : vector<1x2048xf32> to vector<56x2048xf32>
      %72 = arith.mulf %69, %71 : vector<56x2048xf32>
      %c0_33 = arith.constant 0 : index
      %c0_34 = arith.constant 0 : index
      %73 = vector.load %arg7[%c0_33, %c0_34] : memref<1x2048xf32, #tpu.memory_space<vmem>>, vector<1x2048xf32>
      %74 = vector.broadcast %73 : vector<1x2048xf32> to vector<56x2048xf32>
      %75 = arith.addf %72, %74 : vector<56x2048xf32>
      %c0_35 = arith.constant 0 : index
      %c0_36 = arith.constant 0 : index
      %76 = vector.load %arg8[%c0_35, %c0_36] : memref<56x2048xf32, #tpu.memory_space<vmem>>, vector<56x2048xf32>
      tpu.vector_store %arg8[%c0_35, %c0_36], %75 {strides = array<i32>} : memref<56x2048xf32, #tpu.memory_space<vmem>>, vector<56x2048xf32>,
    } else {
    }
    return
  }
  func.func @transform_0(%arg0: i32) -> (i32, i32) {
    %c0_i32 = arith.constant 0 : i32
    %c0_i32_0 = arith.constant 0 : i32
    return %c0_i32, %arg0 : i32, i32
  }
  func.func @transform_1(%arg0: i32) -> (i32, i32) {
    %c0_i32 = arith.constant 0 : i32
    %c0_i32_0 = arith.constant 0 : i32
    return %arg0, %c0_i32 : i32, i32
  }
  func.func @transform_2(%arg0: i32) -> (i32, i32) {
    %c0_i32 = arith.constant 0 : i32
    %c0_i32_0 = arith.constant 0 : i32
    %c0_i32_1 = arith.constant 0 : i32
    return %c0_i32, %c0_i32_0 : i32, i32
  }
  func.func @transform_3(%arg0: i32) -> (i32, i32) {
    %c0_i32 = arith.constant 0 : i32
    %c0_i32_0 = arith.constant 0 : i32
    %c0_i32_1 = arith.constant 0 : i32
    return %c0_i32, %c0_i32_0 : i32, i32
  }
  func.func @transform_4(%arg0: i32) -> (i32, i32) {
    %c0_i32 = arith.constant 0 : i32
    %c0_i32_0 = arith.constant 0 : i32
    %c0_i32_1 = arith.constant 0 : i32
    return %c0_i32, %c0_i32_0 : i32, i32
  }
  func.func @transform_5(%arg0: i32) -> (i32, i32) {
    %c0_i32 = arith.constant 0 : i32
    %c0_i32_0 = arith.constant 0 : i32
    %c0_i32_1 = arith.constant 0 : i32
    return %c0_i32, %c0_i32_0 : i32, i32
  }
  func.func @transform_6(%arg0: i32) -> (i32, i32) {
    %c0_i32 = arith.constant 0 : i32
    %c0_i32_0 = arith.constant 0 : i32
    %c0_i32_1 = arith.constant 0 : i32
    return %c0_i32, %c0_i32_0 : i32, i32
  }
  func.func @transform_7(%arg0: i32) -> (i32, i32) {
    %c0_i32 = arith.constant 0 : i32
    %c0_i32_0 = arith.constant 0 : i32
    %c0_i32_1 = arith.constant 0 : i32
    return %c0_i32, %c0_i32_0 : i32, i32
  }
}

</mosaic_0001>

<llo_original>
// kernel: tpu_custom_call.1
$region0: #{tpu_custom_call.1}
  #allocation0 [shape = 'u32[]', space=smem, size = 0x4, offset = 0x4, fixed_abs, tag = 'smem constant byte address 0x4 - core index']
  #allocation1 [shape = 'u32[72,128]{1,0:T(1,128)}', space=vmem, size = 0x9000, scoped, tag = 'internal scratch']
  #allocation2 [shape = 'f32[56,512]{1,0:T(8,128)}', space=vmem, size = 0x1c000, scoped, tag = 'scratch operand']
  %s0 = inlined_call_operand.hbm [shape: bf16[56,4608], index: 0, kind: input, shape index: {}]
  %s1 = inlined_call_operand.hbm [shape: bf16[4608,512], index: 1, kind: input, shape index: {}]
  %s2 = inlined_call_operand.hbm [shape: f32[1,512], index: 2, kind: input, shape index: {}]
  %s3 = inlined_call_operand.hbm [shape: f32[1,512], index: 3, kind: input, shape index: {}]
  %s4 = inlined_call_operand.hbm [shape: bf16[512,2048], index: 4, kind: input, shape index: {}]
  %s5 = inlined_call_operand.hbm [shape: f32[1,2048], index: 5, kind: input, shape index: {}]
  %s6 = inlined_call_operand.hbm [shape: f32[1,2048], index: 6, kind: input, shape index: {}]
  %s7 = inlined_call_operand.hbm [shape: f32[56,2048], index: 7, kind: output, shape index: {}]
  %s8 = sld [smem:[#allocation0]]
  $region97: #{tpu_custom_call.1} parent=0
    _
  %s10 = ssub.s32 1, %s8
  %s11 = scalar_select 0, %s10, %s8
  $region1: #{tpu_custom_call.1} parent=0
    #allocation3 [shape = 'u8[258048]{0}', space=vmem, size = 0x3f000, scoped, tag = 'input window, operand 0']
    #allocation4 [shape = 's32[2]{0}', space=sflag, size = 0x8, scoped, tag = 'scoped memory for tpu_custom_call.1']
    #allocation5 [shape = 's32[2]{0}', space=sflag, size = 0x8, scoped, tag = 'scoped memory for tpu_custom_call.1']
    #allocation6 [shape = 'u8[2359296]{0}', space=vmem, size = 0x240000, scoped, tag = 'input window, operand 1']
    #allocation7 [shape = 's32[2]{0}', space=sflag, size = 0x8, scoped, tag = 'scoped memory for tpu_custom_call.1']
    #allocation8 [shape = 'u8[2048]{0}', space=vmem, size = 0x800, scoped, tag = 'input window, operand 2, single buffered']
    #allocation9 [shape = 'u8[2048]{0}', space=vmem, size = 0x800, scoped, tag = 'input window, operand 3, single buffered']
    #allocation10 [shape = 's32[1]{0}', space=sflag, size = 0x4, scoped, tag = 'scoped memory for tpu_custom_call.1']
    #allocation11 [shape = 'u8[2097152]{0}', space=vmem, size = 0x200000, scoped, tag = 'input window, operand 4, single buffered']
    #allocation12 [shape = 'u8[8192]{0}', space=vmem, size = 0x2000, scoped, tag = 'input window, operand 5, single buffered']
    #allocation13 [shape = 's32[1]{0}', space=sflag, size = 0x4, scoped, tag = 'scoped memory for tpu_custom_call.1']
    #allocation14 [shape = 'u8[8192]{0}', space=vmem, size = 0x2000, scoped, tag = 'input window, operand 6, single buffered']
    #allocation15 [shape = 'u8[458752]{0}', space=vmem, size = 0x70000, scoped, tag = 'output window, operand 0, single buffered']
    %12 = vsyncpa [#allocation4], 0
    %s13 = scalar_lea.sflag [#allocation4], 1
    %14 = vsyncpa %s13, 0
    %15 = vsyncpa [#allocation7], 0
    %s16 = scalar_lea.sflag [#allocation7], 1
    %17 = vsyncpa %s16, 0
    %18 = vsyncpa [#allocation10], 0
    %19 = vsyncpa [#allocation13], 0
    %20 = vsyncpa [#allocation5], 0
    loop: start=0, step=1, limit=6
    $region2: #{tpu_custom_call.1} parent=1 // loop_pre_header
      _
    $region3: #{tpu_custom_call.1} parent=1 // loop_header
      %s22 = sphi 0, %s26
      %p23 = scmp.ge.s32.totalorder %s22, 6
      %s32 = sphi 0, %s34
      %s35 = sphi 0, %s32
      %s36 = sphi 0, %s35
      %s52 = sphi 0, %s36
      %s58 = sphi 0, %s60
      %s61 = sphi 0, %s58
      %s62 = sphi 0, %s61
      %s78 = sphi 0, %s62
      %s82 = sphi 0, %s82
      %s84 = sphi 0, %s82
      %s85 = sphi 0, %s84
      %s99 = sphi 0, %s85
      %s103 = sphi 0, %s103
      %s105 = sphi 0, %s103
      %s106 = sphi 0, %s105
      %s120 = sphi 0, %s106
      %s124 = sphi 0, %s124
      %s126 = sphi 0, %s124
      %s127 = sphi 0, %s126
      %s141 = sphi 0, %s127
      %s145 = sphi 0, %s145
      %s147 = sphi 0, %s145
      %s148 = sphi 0, %s147
      %s162 = sphi 0, %s148
      %s166 = sphi 0, %s166
      %s168 = sphi 0, %s166
      %s169 = sphi 0, %s168
      %s183 = sphi 0, %s169
      %s187 = sphi 0, %s187
      %s189 = sphi 0, %s187
      %s190 = sphi 0, %s189
      %s204 = sphi 0, %s190
    $region4: #{tpu_custom_call.1} parent=1 // loop_header_branch
      %25 = sbr.rel (%p23) target = $region8
    $region5: #{tpu_custom_call.1} parent=1 // loop_body
      %s27 = ssub.s32 %s22, 1
      %s28 = ssub.s32 %s22, 2
      %s29 = sadd.s32 %s22, 1
      %s30 = ssub.s32 %s22, %s29
      %p31 = scmp.eq.s32.totalorder %s30, 0
      %s33 = sadd.s32 %s32, 1
      %s34 = scalar_select %p31, %s32, %s33
      %p37 = pneg %p31
      %p38 = scmp.eq.s32.totalorder %s22, 3
      %p39 = por %p37, %p38
      %p40 = scmp.ne.s32.totalorder %s32, %s35
      %p41 = scmp.eq.s32.totalorder %s22, 0
      %p42 = por %p40, %p41
      %p43 = scmp.ne.s32.totalorder %s32, %s35
      %p44 = scmp.eq.s32.totalorder %s27, 3
      %p45 = por %p43, %p44
      %p46 = scmp.ne.s32.totalorder %s35, %s36
      %p47 = scmp.eq.s32.totalorder %s27, 0
      %p48 = por %p46, %p47
      %p49 = scmp.ne.s32.totalorder %s35, %s36
      %p50 = scmp.eq.s32.totalorder %s28, 3
      %p51 = por %p49, %p50
      %p53 = scmp.ne.s32.totalorder %s36, %s52
      %p54 = scmp.eq.s32.totalorder %s28, 0
      %p55 = por %p53, %p54
      %s56 = ssub.s32 %s22, %s29
      %p57 = scmp.eq.s32.totalorder %s56, 0
      %s59 = sadd.s32 %s58, 1
      %s60 = scalar_select %p57, %s58, %s59
      %p63 = pneg %p57
      %p64 = scmp.eq.s32.totalorder %s22, 3
      %p65 = por %p63, %p64
      %p66 = scmp.ne.s32.totalorder %s58, %s61
      %p67 = scmp.eq.s32.totalorder %s22, 0
      %p68 = por %p66, %p67
      %p69 = scmp.ne.s32.totalorder %s58, %s61
      %p70 = scmp.eq.s32.totalorder %s27, 3
      %p71 = por %p69, %p70
      %p72 = scmp.ne.s32.totalorder %s61, %s62
      %p73 = scmp.eq.s32.totalorder %s27, 0
      %p74 = por %p72, %p73
      %p75 = scmp.ne.s32.totalorder %s61, %s62
      %p76 = scmp.eq.s32.totalorder %s28, 3
      %p77 = por %p75, %p76
      %p79 = scmp.ne.s32.totalorder %s62, %s78
      %p80 = scmp.eq.s32.totalorder %s28, 0
      %p81 = por %p79, %p80
      %s83 = sadd.s32 %s82, 1
      %p86 = scmp.eq.s32.totalorder %s22, 3
      %p87 = scmp.ne.s32.totalorder %s82, %s84
      %p88 = scmp.eq.s32.totalorder %s22, 0
      %p89 = por %p87, %p88
      %p90 = scmp.ne.s32.totalorder %s82, %s84
      %p91 = scmp.eq.s32.totalorder %s27, 3
      %p92 = por %p90, %p91
      %p93 = scmp.ne.s32.totalorder %s84, %s85
      %p94 = scmp.eq.s32.totalorder %s27, 0
      %p95 = por %p93, %p94
      %p96 = scmp.ne.s32.totalorder %s84, %s85
      %p97 = scmp.eq.s32.totalorder %s28, 3
      %p98 = por %p96, %p97
      %p100 = scmp.ne.s32.totalorder %s85, %s99
      %p101 = scmp.eq.s32.totalorder %s28, 0
      %p102 = por %p100, %p101
      %s104 = sadd.s32 %s103, 1
      %p107 = scmp.eq.s32.totalorder %s22, 3
      %p108 = scmp.ne.s32.totalorder %s103, %s105
      %p109 = scmp.eq.s32.totalorder %s22, 0
      %p110 = por %p108, %p109
      %p111 = scmp.ne.s32.totalorder %s103, %s105
      %p112 = scmp.eq.s32.totalorder %s27, 3
      %p113 = por %p111, %p112
      %p114 = scmp.ne.s32.totalorder %s105, %s106
      %p115 = scmp.eq.s32.totalorder %s27, 0
      %p116 = por %p114, %p115
      %p117 = scmp.ne.s32.totalorder %s105, %s106
      %p118 = scmp.eq.s32.totalorder %s28, 3
      %p119 = por %p117, %p118
      %p121 = scmp.ne.s32.totalorder %s106, %s120
      %p122 = scmp.eq.s32.totalorder %s28, 0
      %p123 = por %p121, %p122
      %s125 = sadd.s32 %s124, 1
      %p128 = scmp.eq.s32.totalorder %s22, 3
      %p129 = scmp.ne.s32.totalorder %s124, %s126
      %p130 = scmp.eq.s32.totalorder %s22, 0
      %p131 = por %p129, %p130
      %p132 = scmp.ne.s32.totalorder %s124, %s126
      %p133 = scmp.eq.s32.totalorder %s27, 3
      %p134 = por %p132, %p133
      %p135 = scmp.ne.s32.totalorder %s126, %s127
      %p136 = scmp.eq.s32.totalorder %s27, 0
      %p137 = por %p135, %p136
      %p138 = scmp.ne.s32.totalorder %s126, %s127
      %p139 = scmp.eq.s32.totalorder %s28, 3
      %p140 = por %p138, %p139
      %p142 = scmp.ne.s32.totalorder %s127, %s141
      %p143 = scmp.eq.s32.totalorder %s28, 0
      %p144 = por %p142, %p143
      %s146 = sadd.s32 %s145, 1
      %p149 = scmp.eq.s32.totalorder %s22, 3
      %p150 = scmp.ne.s32.totalorder %s145, %s147
      %p151 = scmp.eq.s32.totalorder %s22, 0
      %p152 = por %p150, %p151
      %p153 = scmp.ne.s32.totalorder %s145, %s147
      %p154 = scmp.eq.s32.totalorder %s27, 3
      %p155 = por %p153, %p154
      %p156 = scmp.ne.s32.totalorder %s147, %s148
      %p157 = scmp.eq.s32.totalorder %s27, 0
      %p158 = por %p156, %p157
      %p159 = scmp.ne.s32.totalorder %s147, %s148
      %p160 = scmp.eq.s32.totalorder %s28, 3
      %p161 = por %p159, %p160
      %p163 = scmp.ne.s32.totalorder %s148, %s162
      %p164 = scmp.eq.s32.totalorder %s28, 0
      %p165 = por %p163, %p164
      %s167 = sadd.s32 %s166, 1
      %p170 = scmp.eq.s32.totalorder %s22, 3
      %p171 = scmp.ne.s32.totalorder %s166, %s168
      %p172 = scmp.eq.s32.totalorder %s22, 0
      %p173 = por %p171, %p172
      %p174 = scmp.ne.s32.totalorder %s166, %s168
      %p175 = scmp.eq.s32.totalorder %s27, 3
      %p176 = por %p174, %p175
      %p177 = scmp.ne.s32.totalorder %s168, %s169
      %p178 = scmp.eq.s32.totalorder %s27, 0
      %p179 = por %p177, %p178
      %p180 = scmp.ne.s32.totalorder %s168, %s169
      %p181 = scmp.eq.s32.totalorder %s28, 3
      %p182 = por %p180, %p181
      %p184 = scmp.ne.s32.totalorder %s169, %s183
      %p185 = scmp.eq.s32.totalorder %s28, 0
      %p186 = por %p184, %p185
      %s188 = sadd.s32 %s187, 1
      %p191 = scmp.eq.s32.totalorder %s22, 3
      %p192 = scmp.ne.s32.totalorder %s187, %s189
      %p193 = scmp.eq.s32.totalorder %s22, 0
      %p194 = por %p192, %p193
      %p195 = scmp.ne.s32.totalorder %s187, %s189
      %p196 = scmp.eq.s32.totalorder %s27, 3
      %p197 = por %p195, %p196
      %p198 = scmp.ne.s32.totalorder %s189, %s190
      %p199 = scmp.eq.s32.totalorder %s27, 0
      %p200 = por %p198, %p199
      %p201 = scmp.ne.s32.totalorder %s189, %s190
      %p202 = scmp.eq.s32.totalorder %s28, 3
      %p203 = por %p201, %p202
      %p205 = scmp.ne.s32.totalorder %s190, %s204
      %p206 = scmp.eq.s32.totalorder %s28, 0
      %p207 = por %p205, %p206
      %p208 = scmp.le.s32.totalorder 1, %s22
      %p209 = scmp.lt.s32.totalorder %s22, 5
      %p210 = pnand %p208, %p209
      %p211 = pneg %p210
      // Predicated region
      $region9: #{tpu_custom_call.1} parent=5 // pred_check
        _
      $region10: #{tpu_custom_call.1} parent=5 // pred_check_branch
        %213 = sbr.rel (%p210) target = $region12
      $region11: #{tpu_custom_call.1} parent=5 // pred_region
        %s214 = ssub.s32 %s22, 1
        // Predicated region
        $region13: #{tpu_custom_call.1} parent=11 // pred_check
          %p215 = pneg %p95
        $region14: #{tpu_custom_call.1} parent=11 // pred_check_branch
          %217 = sbr.rel (%p215) target = $region16
        $region15: #{tpu_custom_call.1} parent=11 // pred_region
          %219 = vsyncadd [#allocation7], 0
          %s221 = sshll.u32 %s2, 4
          %s222 = int_to_ptr.hbm [resolvable:$true] %s221
          %s223 = sshll.u32 [#allocation8], 4
          %s224 = int_to_ptr.vmem [resolvable:$true] %s223
          %226 = dma.hbm_to_vmem [thread:$0]  %s222, 64, %s224, [#allocation7]
        $region16: #{tpu_custom_call.1} parent=11 // pred_fallthru
          _
        // Predicated region
        $region17: #{tpu_custom_call.1} parent=11 // pred_check
          %p227 = pneg %p116
        $region18: #{tpu_custom_call.1} parent=11 // pred_check_branch
          %229 = sbr.rel (%p227) target = $region20
        $region19: #{tpu_custom_call.1} parent=11 // pred_region
          %231 = vsyncadd [#allocation10], 0
          %s233 = sshll.u32 %s3, 4
          %s234 = int_to_ptr.hbm [resolvable:$true] %s233
          %s235 = sshll.u32 [#allocation9], 4
          %s236 = int_to_ptr.vmem [resolvable:$true] %s235
          %238 = dma.hbm_to_vmem [thread:$0]  %s234, 64, %s236, [#allocation10]
        $region20: #{tpu_custom_call.1} parent=11 // pred_fallthru
          _
        // Predicated region
        $region21: #{tpu_custom_call.1} parent=11 // pred_check
          %p239 = pneg %p137
        $region22: #{tpu_custom_call.1} parent=11 // pred_check_branch
          %241 = sbr.rel (%p239) target = $region24
        $region23: #{tpu_custom_call.1} parent=11 // pred_region
          %243 = vsyncadd [#allocation10], 0
          %s244 = sshll.u32 %s4, 4
          %s245 = int_to_ptr.hbm [resolvable:$true] %s244
          %s246 = sshll.u32 [#allocation11], 4
          %s247 = int_to_ptr.vmem [resolvable:$true] %s246
          %252 = dma.hbm_to_vmem [thread:$0]  %s245, 65536, %s247, [#allocation10], 1024, 1024, 64
        $region24: #{tpu_custom_call.1} parent=11 // pred_fallthru
          _
        // Predicated region
        $region25: #{tpu_custom_call.1} parent=11 // pred_check
          %p253 = pneg %p158
        $region26: #{tpu_custom_call.1} parent=11 // pred_check_branch
          %255 = sbr.rel (%p253) target = $region28
        $region27: #{tpu_custom_call.1} parent=11 // pred_region
          %257 = vsyncadd [#allocation13], 0
          %s259 = sshll.u32 %s5, 4
          %s260 = int_to_ptr.hbm [resolvable:$true] %s259
          %s261 = sshll.u32 [#allocation12], 4
          %s262 = int_to_ptr.vmem [resolvable:$true] %s261
          %264 = dma.hbm_to_vmem [thread:$0]  %s260, 256, %s262, [#allocation13]
        $region28: #{tpu_custom_call.1} parent=11 // pred_fallthru
          _
        // Predicated region
        $region29: #{tpu_custom_call.1} parent=11 // pred_check
          %p265 = pneg %p179
        $region30: #{tpu_custom_call.1} parent=11 // pred_check_branch
          %267 = sbr.rel (%p265) target = $region32
        $region31: #{tpu_custom_call.1} parent=11 // pred_region
          %269 = vsyncadd [#allocation13], 0
          %s271 = sshll.u32 %s6, 4
          %s272 = int_to_ptr.hbm [resolvable:$true] %s271
          %s273 = sshll.u32 [#allocation14], 4
          %s274 = int_to_ptr.vmem [resolvable:$true] %s273
          %276 = dma.hbm_to_vmem [thread:$0]  %s272, 256, %s274, [#allocation13]
        $region32: #{tpu_custom_call.1} parent=11 // pred_fallthru
          _
      $region12: #{tpu_custom_call.1} parent=5 // pred_fallthru
        _
      %p277 = scmp.lt.s32.totalorder %s22, 4
      // Predicated region
      $region33: #{tpu_custom_call.1} parent=5 // pred_check
        %p278 = pneg %p277
      $region34: #{tpu_custom_call.1} parent=5 // pred_check_branch
        %280 = sbr.rel (%p278) target = $region36
      $region35: #{tpu_custom_call.1} parent=5 // pred_region
        // Predicated region
        $region37: #{tpu_custom_call.1} parent=35 // pred_check
          %p281 = pneg %p42
        $region38: #{tpu_custom_call.1} parent=35 // pred_check_branch
          %283 = sbr.rel (%p281) target = $region40
        $region39: #{tpu_custom_call.1} parent=35 // pred_region
          %s284 = sand.u32 %s32, 1
          %s285 = scalar_lea.sflag [#allocation4], %s284
          %s286 = sand.u32 %s32, 1
          %s287 = smul.addr %s286, 252
          %s288 = scalar_lea.vmem [#allocation3], %s287
          %s289 = smul.u32 9, %s22
          %291 = vsyncadd %s285, 0
          %s292 = smul.addr %s289, 4
          %s293 = scalar_lea.hbm %s0, %s292
          %s294 = sshll.u32 %s293, 4
          %s295 = int_to_ptr.hbm [resolvable:$true] %s294
          %s296 = sshll.u32 %s288, 4
          %s297 = int_to_ptr.vmem [resolvable:$true] %s296
          %302 = dma.hbm_to_vmem [thread:$0]  %s295, 4032, %s297, %s285, 2304, 576, 36
        $region40: #{tpu_custom_call.1} parent=35 // pred_fallthru
          _
        // Predicated region
        $region41: #{tpu_custom_call.1} parent=35 // pred_check
          %p303 = pneg %p68
        $region42: #{tpu_custom_call.1} parent=35 // pred_check_branch
          %305 = sbr.rel (%p303) target = $region44
        $region43: #{tpu_custom_call.1} parent=35 // pred_region
          %s306 = sand.u32 %s22, 1
          %s307 = scalar_lea.sflag [#allocation7], %s306
          %s308 = sand.u32 %s58, 1
          %s309 = smul.addr %s308, 2304
          %s310 = scalar_lea.vmem [#allocation6], %s309
          %s311 = smul.u32 144, %s22
          %313 = vsyncadd %s307, 0
          %s314 = smul.addr %s311, 4
          %s315 = smul.addr %s314, 4
          %s316 = scalar_lea.hbm %s1, %s315
          %s317 = sshll.u32 %s316, 4
          %s318 = int_to_ptr.hbm [resolvable:$true] %s317
          %s319 = sshll.u32 %s310, 4
          %s320 = int_to_ptr.vmem [resolvable:$true] %s319
          %325 = dma.hbm_to_vmem [thread:$0]  %s318, 36864, %s320, %s307, 256, 256, 16
        $region44: #{tpu_custom_call.1} parent=35 // pred_fallthru
          _
      $region36: #{tpu_custom_call.1} parent=5 // pred_fallthru
        _
      %p326 = scmp.le.s32.totalorder 1, %s22
      %p327 = scmp.lt.s32.totalorder %s22, 5
      %p328 = pnand %p326, %p327
      %p329 = pneg %p328
      // Predicated region
      $region45: #{tpu_custom_call.1} parent=5 // pred_check
        _
      $region46: #{tpu_custom_call.1} parent=5 // pred_check_branch
        %331 = sbr.rel (%p328) target = $region48
      $region47: #{tpu_custom_call.1} parent=5 // pred_region
        %s332 = ssub.s32 %s22, 1
        %s333 = sand.u32 %s35, 1
        %s334 = scalar_lea.sflag [#allocation4], %s333
        %s335 = sand.u32 %s35, 1
        %s336 = smul.addr %s335, 252
        %s337 = scalar_lea.vmem [#allocation3], %s336
        // Predicated region
        $region49: #{tpu_custom_call.1} parent=47 // pred_check
          %p338 = pneg %p48
        $region50: #{tpu_custom_call.1} parent=47 // pred_check_branch
          %340 = sbr.rel (%p338) target = $region52
        $region51: #{tpu_custom_call.1} parent=47 // pred_region
          %342 = dma.done %s334, 4032
        $region52: #{tpu_custom_call.1} parent=47 // pred_fallthru
          _
        %s343 = sand.u32 %s27, 1
        %s344 = scalar_lea.sflag [#allocation7], %s343
        %s345 = sand.u32 %s61, 1
        %s346 = smul.addr %s345, 2304
        %s347 = scalar_lea.vmem [#allocation6], %s346
        // Predicated region
        $region53: #{tpu_custom_call.1} parent=47 // pred_check
          %p348 = pneg %p74
        $region54: #{tpu_custom_call.1} parent=47 // pred_check_branch
          %350 = sbr.rel (%p348) target = $region56
        $region55: #{tpu_custom_call.1} parent=47 // pred_region
          %352 = dma.done %s344, 36864
        $region56: #{tpu_custom_call.1} parent=47 // pred_fallthru
          _
        // Predicated region
        $region57: #{tpu_custom_call.1} parent=47 // pred_check
          %p353 = pneg %p95
        $region58: #{tpu_custom_call.1} parent=47 // pred_check_branch
          %355 = sbr.rel (%p353) target = $region60
        $region59: #{tpu_custom_call.1} parent=47 // pred_region
          %357 = dma.done [#allocation7], 64
        $region60: #{tpu_custom_call.1} parent=47 // pred_fallthru
          _
        // Predicated region
        $region61: #{tpu_custom_call.1} parent=47 // pred_check
          %p358 = pneg %p116
        $region62: #{tpu_custom_call.1} parent=47 // pred_check_branch
          %360 = sbr.rel (%p358) target = $region64
        $region63: #{tpu_custom_call.1} parent=47 // pred_region
          %362 = dma.done [#allocation10], 64
        $region64: #{tpu_custom_call.1} parent=47 // pred_fallthru
          _
        // Predicated region
        $region65: #{tpu_custom_call.1} parent=47 // pred_check
          %p363 = pneg %p137
        $region66: #{tpu_custom_call.1} parent=47 // pred_check_branch
          %365 = sbr.rel (%p363) target = $region68
        $region67: #{tpu_custom_call.1} parent=47 // pred_region
          %367 = dma.done [#allocation10], 65536
        $region68: #{tpu_custom_call.1} parent=47 // pred_fallthru
          _
        // Predicated region
        $region69: #{tpu_custom_call.1} parent=47 // pred_check
          %p368 = pneg %p158
        $region70: #{tpu_custom_call.1} parent=47 // pred_check_branch
          %370 = sbr.rel (%p368) target = $region72
        $region71: #{tpu_custom_call.1} parent=47 // pred_region
          %372 = dma.done [#allocation13], 256
        $region72: #{tpu_custom_call.1} parent=47 // pred_fallthru
          _
        // Predicated region
        $region73: #{tpu_custom_call.1} parent=47 // pred_check
          %p373 = pneg %p179
        $region74: #{tpu_custom_call.1} parent=47 // pred_check_branch
          %375 = sbr.rel (%p373) target = $region76
        $region75: #{tpu_custom_call.1} parent=47 // pred_region
          %377 = dma.done [#allocation13], 256
        $region76: #{tpu_custom_call.1} parent=47 // pred_fallthru
          _
        %s378 = sand.u32 %s35, 1
        %s379 = scalar_lea.sflag [#allocation4], %s378
        %s380 = sand.u32 %s35, 1
        %s381 = smul.addr %s380, 252
        %s382 = scalar_lea.vmem [#allocation3], %s381
        %p383 = pneg %p48
        %p384 = pneg %p45
        %s385 = sand.u32 %s27, 1
        %s386 = scalar_lea.sflag [#allocation7], %s385
        %s387 = sand.u32 %s61, 1
        %s388 = smul.addr %s387, 2304
        %s389 = scalar_lea.vmem [#allocation6], %s388
        %p390 = pneg %p74
        %p391 = pneg %p71
        %p392 = pneg %p95
        %p393 = pneg %p92
        %p394 = pneg %p116
        %p395 = pneg %p113
        %p396 = pneg %p137
        %p397 = pneg %p134
        %p398 = pneg %p158
        %p399 = pneg %p155
        %p400 = pneg %p179
        %p401 = pneg %p176
        %p402 = pneg %p200
        %p403 = pneg %p197
        %s404 = smul.u32 9, %s27
        %s405 = smul.u32 144, %s27
        %p406 = scmp.eq.s32.totalorder %s27, 0
        // Predicated region
        $region77: #{tpu_custom_call.1} parent=47 // pred_check
          %p407 = pneg %p406
        $region78: #{tpu_custom_call.1} parent=47 // pred_check_branch
          %409 = sbr.rel (%p407) target = $region80
        $region79: #{tpu_custom_call.1} parent=47 // pred_region
          %410 = vst [vmem:[#allocation2] sm:$0xff] 0.0
          %411 = vst [vmem:[#allocation2 + $0x8] sm:$0xff] 0.0
          %412 = vst [vmem:[#allocation2 + $0x10] sm:$0xff] 0.0
          %413 = vst [vmem:[#allocation2 + $0x18] sm:$0xff] 0.0
          %414 = vst [vmem:[#allocation2 + $0x20] sm:$0xff] 0.0
          %415 = vst [vmem:[#allocation2 + $0x28] sm:$0xff] 0.0
          %416 = vst [vmem:[#allocation2 + $0x30] sm:$0xff] 0.0
          %417 = vst [vmem:[#allocation2 + $0x38] sm:$0xff] 0.0
          %418 = vst [vmem:[#allocation2 + $0x40] sm:$0xff] 0.0
          %419 = vst [vmem:[#allocation2 + $0x48] sm:$0xff] 0.0
          %420 = vst [vmem:[#allocation2 + $0x50] sm:$0xff] 0.0
          %421 = vst [vmem:[#allocation2 + $0x58] sm:$0xff] 0.0
          %422 = vst [vmem:[#allocation2 + $0x60] sm:$0xff] 0.0
          %423 = vst [vmem:[#allocation2 + $0x68] sm:$0xff] 0.0
          %424 = vst [vmem:[#allocation2 + $0x70] sm:$0xff] 0.0
          %425 = vst [vmem:[#allocation2 + $0x78] sm:$0xff] 0.0
          %426 = vst [vmem:[#allocation2 + $0x80] sm:$0xff] 0.0
          %427 = vst [vmem:[#allocation2 + $0x88] sm:$0xff] 0.0
          %428 = vst [vmem:[#allocation2 + $0x90] sm:$0xff] 0.0
          %429 = vst [vmem:[#allocation2 + $0x98] sm:$0xff] 0.0
          %430 = vst [vmem:[#allocation2 + $0xa0] sm:$0xff] 0.0
          %431 = vst [vmem:[#allocation2 + $0xa8] sm:$0xff] 0.0
          %432 = vst [vmem:[#allocation2 + $0xb0] sm:$0xff] 0.0
          %433 = vst [vmem:[#allocation2 + $0xb8] sm:$0xff] 0.0
          %434 = vst [vmem:[#allocation2 + $0xc0] sm:$0xff] 0.0
          %435 = vst [vmem:[#allocation2 + $0xc8] sm:$0xff] 0.0
          %436 = vst [vmem:[#allocation2 + $0xd0] sm:$0xff] 0.0
          %437 = vst [vmem:[#allocation2 + $0xd8] sm:$0xff] 0.0
        $region80: #{tpu_custom_call.1} parent=47 // pred_fallthru
          _
        %v438 = vld [vmem:[#allocation2] sm:$0xff]
        %v439 = vld [vmem:[#allocation2 + $0x8] sm:$0xff]
        %v440 = vld [vmem:[#allocation2 + $0x10] sm:$0xff]
        %v441 = vld [vmem:[#allocation2 + $0x18] sm:$0xff]
        %v442 = vld [vmem:[#allocation2 + $0x20] sm:$0xff]
        %v443 = vld [vmem:[#allocation2 + $0x28] sm:$0xff]
        %v444 = vld [vmem:[#allocation2 + $0x30] sm:$0xff]
        %v445 = vld [vmem:[#allocation2 + $0x38] sm:$0xff]
        %v446 = vld [vmem:[#allocation2 + $0x40] sm:$0xff]
        %v447 = vld [vmem:[#allocation2 + $0x48] sm:$0xff]
        %v448 = vld [vmem:[#allocation2 + $0x50] sm:$0xff]
        %v449 = vld [vmem:[#allocation2 + $0x58] sm:$0xff]
        %v450 = vld [vmem:[#allocation2 + $0x60] sm:$0xff]
        %v451 = vld [vmem:[#allocation2 + $0x68] sm:$0xff]
        %v452 = vld [vmem:[#allocation2 + $0x70] sm:$0xff]
        %v453 = vld [vmem:[#allocation2 + $0x78] sm:$0xff]
        %v454 = vld [vmem:[#allocation2 + $0x80] sm:$0xff]
        %v455 = vld [vmem:[#allocation2 + $0x88] sm:$0xff]
        %v456 = vld [vmem:[#allocation2 + $0x90] sm:$0xff]
        %v457 = vld [vmem:[#allocation2 + $0x98] sm:$0xff]
        %v458 = vld [vmem:[#allocation2 + $0xa0] sm:$0xff]
        %v459 = vld [vmem:[#allocation2 + $0xa8] sm:$0xff]
        %v460 = vld [vmem:[#allocation2 + $0xb0] sm:$0xff]
        %v461 = vld [vmem:[#allocation2 + $0xb8] sm:$0xff]
        %v462 = vld [vmem:[#allocation2 + $0xc0] sm:$0xff]
        %v463 = vld [vmem:[#allocation2 + $0xc8] sm:$0xff]
        %v464 = vld [vmem:[#allocation2 + $0xd0] sm:$0xff]
        %v465 = vld [vmem:[#allocation2 + $0xd8] sm:$0xff]
        %v466 = vld [vmem:[%s337] sm:$0xff]
        %v467 = vld [vmem:[%s337 + $0x8] sm:$0xff]
        %v468 = vld [vmem:[%s337 + $0x10] sm:$0xff]
        %v469 = vld [vmem:[%s337 + $0x18] sm:$0xff]
        %v470 = vld [vmem:[%s337 + $0x20] sm:$0xf]
        %v471 = vld [vmem:[%s337 + $0x24] sm:$0xff]
        %v472 = vld [vmem:[%s337 + $0x2c] sm:$0xff]
        %v473 = vld [vmem:[%s337 + $0x34] sm:$0xff]
        %v474 = vld [vmem:[%s337 + $0x3c] sm:$0xff]
        %v475 = vld [vmem:[%s337 + $0x44] sm:$0xf]
        %v476 = vld [vmem:[%s337 + $0x48] sm:$0xff]
        %v477 = vld [vmem:[%s337 + $0x50] sm:$0xff]
        %v478 = vld [vmem:[%s337 + $0x58] sm:$0xff]
        %v479 = vld [vmem:[%s337 + $0x60] sm:$0xff]
        %v480 = vld [vmem:[%s337 + $0x68] sm:$0xf]
        %v481 = vld [vmem:[%s337 + $0x6c] sm:$0xff]
        %v482 = vld [vmem:[%s337 + $0x74] sm:$0xff]
        %v483 = vld [vmem:[%s337 + $0x7c] sm:$0xff]
        %v484 = vld [vmem:[%s337 + $0x84] sm:$0xff]
        %v485 = vld [vmem:[%s337 + $0x8c] sm:$0xf]
        %v486 = vld [vmem:[%s337 + $0x90] sm:$0xff]
        %v487 = vld [vmem:[%s337 + $0x98] sm:$0xff]
        %v488 = vld [vmem:[%s337 + $0xa0] sm:$0xff]
        %v489 = vld [vmem:[%s337 + $0xa8] sm:$0xff]
        %v490 = vld [vmem:[%s337 + $0xb0] sm:$0xf]
        %v491 = vld [vmem:[%s337 + $0xb4] sm:$0xff]
        %v492 = vld [vmem:[%s337 + $0xbc] sm:$0xff]
        %v493 = vld [vmem:[%s337 + $0xc4] sm:$0xff]
        %v494 = vld [vmem:[%s337 + $0xcc] sm:$0xff]
        %v495 = vld [vmem:[%s337 + $0xd4] sm:$0xf]
        %v496 = vld [vmem:[%s337 + $0xd8] sm:$0xff]
        %v497 = vld [vmem:[%s337 + $0xe0] sm:$0xff]
        %v498 = vld [vmem:[%s337 + $0xe8] sm:$0xff]
        %v499 = vld [vmem:[%s337 + $0xf0] sm:$0xff]
        %v500 = vld [vmem:[%s337 + $0xf8] sm:$0xf]
        %v501 = vld [vmem:[%s347] sm:$0xff]
        %v502 = vld [vmem:[%s347 + $0x8] sm:$0xff]
        %v503 = vld [vmem:[%s347 + $0x10] sm:$0xff]
        %v504 = vld [vmem:[%s347 + $0x18] sm:$0xff]
        %v505 = vld [vmem:[%s347 + $0x20] sm:$0xff]
        %v506 = vld [vmem:[%s347 + $0x28] sm:$0xff]
        %v507 = vld [vmem:[%s347 + $0x30] sm:$0xff]
        %v508 = vld [vmem:[%s347 + $0x38] sm:$0xff]
        %v509 = vld [vmem:[%s347 + $0x40] sm:$0xff]
        %v510 = vld [vmem:[%s347 + $0x48] sm:$0xff]
        %v511 = vld [vmem:[%s347 + $0x50] sm:$0xff]
        %v512 = vld [vmem:[%s347 + $0x58] sm:$0xff]
        %v513 = vld [vmem:[%s347 + $0x60] sm:$0xff]
        %v514 = vld [vmem:[%s347 + $0x68] sm:$0xff]
        %v515 = vld [vmem:[%s347 + $0x70] sm:$0xff]
        %v516 = vld [vmem:[%s347 + $0x78] sm:$0xff]
        %v517 = vld [vmem:[%s347 + $0x80] sm:$0xff]
        %v518 = vld [vmem:[%s347 + $0x88] sm:$0xff]
        %v519 = vld [vmem:[%s347 + $0x90] sm:$0xff]
        %v520 = vld [vmem:[%s347 + $0x98] sm:$0xff]
        %v521 = vld [vmem:[%s347 + $0xa0] sm:$0xff]
        %v522 = vld [vmem:[%s347 + $0xa8] sm:$0xff]
        %v523 = vld [vmem:[%s347 + $0xb0] sm:$0xff]
        %v524 = vld [vmem:[%s347 + $0xb8] sm:$0xff]
        %v525 = vld [vmem:[%s347 + $0xc0] sm:$0xff]
        %v526 = vld [vmem:[%s347 + $0xc8] sm:$0xff]
        %v527 = vld [vmem:[%s347 + $0xd0] sm:$0xff]
        %v528 = vld [vmem:[%s347 + $0xd8] sm:$0xff]
        %v529 = vld [vmem:[%s347 + $0xe0] sm:$0xff]
        %v530 = vld [vmem:[%s347 + $0xe8] sm:$0xff]
        %v531 = vld [vmem:[%s347 + $0xf0] sm:$0xff]
        %v532 = vld [vmem:[%s347 + $0xf8] sm:$0xff]
        %v533 = vld [vmem:[%s347 + $0x100] sm:$0xff]
        %v534 = vld [vmem:[%s347 + $0x108] sm:$0xff]
        %v535 = vld [vmem:[%s347 + $0x110] sm:$0xff]
        %v536 = vld [vmem:[%s347 + $0x118] sm:$0xff]
        %v537 = vld [vmem:[%s347 + $0x120] sm:$0xff]
        %v538 = vld [vmem:[%s347 + $0x128] sm:$0xff]
        %v539 = vld [vmem:[%s347 + $0x130] sm:$0xff]
        %v540 = vld [vmem:[%s347 + $0x138] sm:$0xff]
        %v541 = vld [vmem:[%s347 + $0x140] sm:$0xff]
        %v542 = vld [vmem:[%s347 + $0x148] sm:$0xff]
        %v543 = vld [vmem:[%s347 + $0x150] sm:$0xff]
        %v544 = vld [vmem:[%s347 + $0x158] sm:$0xff]
        %v545 = vld [vmem:[%s347 + $0x160] sm:$0xff]
        %v546 = vld [vmem:[%s347 + $0x168] sm:$0xff]
        %v547 = vld [vmem:[%s347 + $0x170] sm:$0xff]
        %v548 = vld [vmem:[%s347 + $0x178] sm:$0xff]
        %v549 = vld [vmem:[%s347 + $0x180] sm:$0xff]
        %v550 = vld [vmem:[%s347 + $0x188] sm:$0xff]
        %v551 = vld [vmem:[%s347 + $0x190] sm:$0xff]
        %v552 = vld [vmem:[%s347 + $0x198] sm:$0xff]
        %v553 = vld [vmem:[%s347 + $0x1a0] sm:$0xff]
        %v554 = vld [vmem:[%s347 + $0x1a8] sm:$0xff]
        %v555 = vld [vmem:[%s347 + $0x1b0] sm:$0xff]
        %v556 = vld [vmem:[%s347 + $0x1b8] sm:$0xff]
        %v557 = vld [vmem:[%s347 + $0x1c0] sm:$0xff]
        %v558 = vld [vmem:[%s347 + $0x1c8] sm:$0xff]
        %v559 = vld [vmem:[%s347 + $0x1d0] sm:$0xff]
        %v560 = vld [vmem:[%s347 + $0x1d8] sm:$0xff]
        %v561 = vld [vmem:[%s347 + $0x1e0] sm:$0xff]
        %v562 = vld [vmem:[%s347 + $0x1e8] sm:$0xff]
        %v563 = vld [vmem:[%s347 + $0x1f0] sm:$0xff]
        %v564 = vld [vmem:[%s347 + $0x1f8] sm:$0xff]
        %v565 = vld [vmem:[%s347 + $0x200] sm:$0xff]
        %v566 = vld [vmem:[%s347 + $0x208] sm:$0xff]
        %v567 = vld [vmem:[%s347 + $0x210] sm:$0xff]
        %v568 = vld [vmem:[%s347 + $0x218] sm:$0xff]
        %v569 = vld [vmem:[%s347 + $0x220] sm:$0xff]
        %v570 = vld [vmem:[%s347 + $0x228] sm:$0xff]
        %v571 = vld [vmem:[%s347 + $0x230] sm:$0xff]
        %v572 = vld [vmem:[%s347 + $0x238] sm:$0xff]
        %v573 = vld [vmem:[%s347 + $0x240] sm:$0xff]
        %v574 = vld [vmem:[%s347 + $0x248] sm:$0xff]
        %v575 = vld [vmem:[%s347 + $0x250] sm:$0xff]
        %v576 = vld [vmem:[%s347 + $0x258] sm:$0xff]
        %v577 = vld [vmem:[%s347 + $0x260] sm:$0xff]
        %v578 = vld [vmem:[%s347 + $0x268] sm:$0xff]
        %v579 = vld [vmem:[%s347 + $0x270] sm:$0xff]
        %v580 = vld [vmem:[%s347 + $0x278] sm:$0xff]
        %v581 = vld [vmem:[%s347 + $0x280] sm:$0xff]
        %v582 = vld [vmem:[%s347 + $0x288] sm:$0xff]
        %v583 = vld [vmem:[%s347 + $0x290] sm:$0xff]
        %v584 = vld [vmem:[%s347 + $0x298] sm:$0xff]
        %v585 = vld [vmem:[%s347 + $0x2a0] sm:$0xff]
        %v586 = vld [vmem:[%s347 + $0x2a8] sm:$0xff]
        %v587 = vld [vmem:[%s347 + $0x2b0] sm:$0xff]
        %v588 = vld [vmem:[%s347 + $0x2b8] sm:$0xff]
        %v589 = vld [vmem:[%s347 + $0x2c0] sm:$0xff]
        %v590 = vld [vmem:[%s347 + $0x2c8] sm:$0xff]
        %v591 = vld [vmem:[%s347 + $0x2d0] sm:$0xff]
        %v592 = vld [vmem:[%s347 + $0x2d8] sm:$0xff]
        %v593 = vld [vmem:[%s347 + $0x2e0] sm:$0xff]
        %v594 = vld [vmem:[%s347 + $0x2e8] sm:$0xff]
        %v595 = vld [vmem:[%s347 + $0x2f0] sm:$0xff]
        %v596 = vld [vmem:[%s347 + $0x2f8] sm:$0xff]
        %v597 = vld [vmem:[%s347 + $0x300] sm:$0xff]
        %v598 = vld [vmem:[%s347 + $0x308] sm:$0xff]
        %v599 = vld [vmem:[%s347 + $0x310] sm:$0xff]
        %v600 = vld [vmem:[%s347 + $0x318] sm:$0xff]
        %v601 = vld [vmem:[%s347 + $0x320] sm:$0xff]
        %v602 = vld [vmem:[%s347 + $0x328] sm:$0xff]
        %v603 = vld [vmem:[%s347 + $0x330] sm:$0xff]
        %v604 = vld [vmem:[%s347 + $0x338] sm:$0xff]
        %v605 = vld [vmem:[%s347 + $0x340] sm:$0xff]
        %v606 = vld [vmem:[%s347 + $0x348] sm:$0xff]
        %v607 = vld [vmem:[%s347 + $0x350] sm:$0xff]
        %v608 = vld [vmem:[%s347 + $0x358] sm:$0xff]
        %v609 = vld [vmem:[%s347 + $0x360] sm:$0xff]
        %v610 = vld [vmem:[%s347 + $0x368] sm:$0xff]
        %v611 = vld [vmem:[%s347 + $0x370] sm:$0xff]
        %v612 = vld [vmem:[%s347 + $0x378] sm:$0xff]
        %v613 = vld [vmem:[%s347 + $0x380] sm:$0xff]
        %v614 = vld [vmem:[%s347 + $0x388] sm:$0xff]
        %v615 = vld [vmem:[%s347 + $0x390] sm:$0xff]
        %v616 = vld [vmem:[%s347 + $0x398] sm:$0xff]
        %v617 = vld [vmem:[%s347 + $0x3a0] sm:$0xff]
        %v618 = vld [vmem:[%s347 + $0x3a8] sm:$0xff]
        %v619 = vld [vmem:[%s347 + $0x3b0] sm:$0xff]
        %v620 = vld [vmem:[%s347 + $0x3b8] sm:$0xff]
        %v621 = vld [vmem:[%s347 + $0x3c0] sm:$0xff]
        %v622 = vld [vmem:[%s347 + $0x3c8] sm:$0xff]
        %v623 = vld [vmem:[%s347 + $0x3d0] sm:$0xff]
        %v624 = vld [vmem:[%s347 + $0x3d8] sm:$0xff]
        %v625 = vld [vmem:[%s347 + $0x3e0] sm:$0xff]
        %v626 = vld [vmem:[%s347 + $0x3e8] sm:$0xff]
        %v627 = vld [vmem:[%s347 + $0x3f0] sm:$0xff]
        %v628 = vld [vmem:[%s347 + $0x3f8] sm:$0xff]
        %v629 = vld [vmem:[%s347 + $0x400] sm:$0xff]
        %v630 = vld [vmem:[%s347 + $0x408] sm:$0xff]
        %v631 = vld [vmem:[%s347 + $0x410] sm:$0xff]
        %v632 = vld [vmem:[%s347 + $0x418] sm:$0xff]
        %v633 = vld [vmem:[%s347 + $0x420] sm:$0xff]
        %v634 = vld [vmem:[%s347 + $0x428] sm:$0xff]
        %v635 = vld [vmem:[%s347 + $0x430] sm:$0xff]
        %v636 = vld [vmem:[%s347 + $0x438] sm:$0xff]
        %v637 = vld [vmem:[%s347 + $0x440] sm:$0xff]
        %v638 = vld [vmem:[%s347 + $0x448] sm:$0xff]
        %v639 = vld [vmem:[%s347 + $0x450] sm:$0xff]
        %v640 = vld [vmem:[%s347 + $0x458] sm:$0xff]
        %v641 = vld [vmem:[%s347 + $0x460] sm:$0xff]
        %v642 = vld [vmem:[%s347 + $0x468] sm:$0xff]
        %v643 = vld [vmem:[%s347 + $0x470] sm:$0xff]
        %v644 = vld [vmem:[%s347 + $0x478] sm:$0xff]
        %v645 = vld [vmem:[%s347 + $0x480] sm:$0xff]
        %v646 = vld [vmem:[%s347 + $0x488] sm:$0xff]
        %v647 = vld [vmem:[%s347 + $0x490] sm:$0xff]
        %v648 = vld [vmem:[%s347 + $0x498] sm:$0xff]
        %v649 = vld [vmem:[%s347 + $0x4a0] sm:$0xff]
        %v650 = vld [vmem:[%s347 + $0x4a8] sm:$0xff]
        %v651 = vld [vmem:[%s347 + $0x4b0] sm:$0xff]
        %v652 = vld [vmem:[%s347 + $0x4b8] sm:$0xff]
        %v653 = vld [vmem:[%s347 + $0x4c0] sm:$0xff]
        %v654 = vld [vmem:[%s347 + $0x4c8] sm:$0xff]
        %v655 = vld [vmem:[%s347 + $0x4d0] sm:$0xff]
        %v656 = vld [vmem:[%s347 + $0x4d8] sm:$0xff]
        %v657 = vld [vmem:[%s347 + $0x4e0] sm:$0xff]
        %v658 = vld [vmem:[%s347 + $0x4e8] sm:$0xff]
        %v659 = vld [vmem:[%s347 + $0x4f0] sm:$0xff]
        %v660 = vld [vmem:[%s347 + $0x4f8] sm:$0xff]
        %v661 = vld [vmem:[%s347 + $0x500] sm:$0xff]
        %v662 = vld [vmem:[%s347 + $0x508] sm:$0xff]
        %v663 = vld [vmem:[%s347 + $0x510] sm:$0xff]
        %v664 = vld [vmem:[%s347 + $0x518] sm:$0xff]
        %v665 = vld [vmem:[%s347 + $0x520] sm:$0xff]
        %v666 = vld [vmem:[%s347 + $0x528] sm:$0xff]
        %v667 = vld [vmem:[%s347 + $0x530] sm:$0xff]
        %v668 = vld [vmem:[%s347 + $0x538] sm:$0xff]
        %v669 = vld [vmem:[%s347 + $0x540] sm:$0xff]
        %v670 = vld [vmem:[%s347 + $0x548] sm:$0xff]
        %v671 = vld [vmem:[%s347 + $0x550] sm:$0xff]
        %v672 = vld [vmem:[%s347 + $0x558] sm:$0xff]
        %v673 = vld [vmem:[%s347 + $0x560] sm:$0xff]
        %v674 = vld [vmem:[%s347 + $0x568] sm:$0xff]
        %v675 = vld [vmem:[%s347 + $0x570] sm:$0xff]
        %v676 = vld [vmem:[%s347 + $0x578] sm:$0xff]
        %v677 = vld [vmem:[%s347 + $0x580] sm:$0xff]
        %v678 = vld [vmem:[%s347 + $0x588] sm:$0xff]
        %v679 = vld [vmem:[%s347 + $0x590] sm:$0xff]
        %v680 = vld [vmem:[%s347 + $0x598] sm:$0xff]
        %v681 = vld [vmem:[%s347 + $0x5a0] sm:$0xff]
        %v682 = vld [vmem:[%s347 + $0x5a8] sm:$0xff]
        %v683 = vld [vmem:[%s347 + $0x5b0] sm:$0xff]
        %v684 = vld [vmem:[%s347 + $0x5b8] sm:$0xff]
        %v685 = vld [vmem:[%s347 + $0x5c0] sm:$0xff]
        %v686 = vld [vmem:[%s347 + $0x5c8] sm:$0xff]
        %v687 = vld [vmem:[%s347 + $0x5d0] sm:$0xff]
        %v688 = vld [vmem:[%s347 + $0x5d8] sm:$0xff]
        %v689 = vld [vmem:[%s347 + $0x5e0] sm:$0xff]
        %v690 = vld [vmem:[%s347 + $0x5e8] sm:$0xff]
        %v691 = vld [vmem:[%s347 + $0x5f0] sm:$0xff]
        %v692 = vld [vmem:[%s347 + $0x5f8] sm:$0xff]
        %v693 = vld [vmem:[%s347 + $0x600] sm:$0xff]
        %v694 = vld [vmem:[%s347 + $0x608] sm:$0xff]
        %v695 = vld [vmem:[%s347 + $0x610] sm:$0xff]
        %v696 = vld [vmem:[%s347 + $0x618] sm:$0xff]
        %v697 = vld [vmem:[%s347 + $0x620] sm:$0xff]
        %v698 = vld [vmem:[%s347 + $0x628] sm:$0xff]
        %v699 = vld [vmem:[%s347 + $0x630] sm:$0xff]
        %v700 = vld [vmem:[%s347 + $0x638] sm:$0xff]
        %v701 = vld [vmem:[%s347 + $0x640] sm:$0xff]
        %v702 = vld [vmem:[%s347 + $0x648] sm:$0xff]
        %v703 = vld [vmem:[%s347 + $0x650] sm:$0xff]
        %v704 = vld [vmem:[%s347 + $0x658] sm:$0xff]
        %v705 = vld [vmem:[%s347 + $0x660] sm:$0xff]
        %v706 = vld [vmem:[%s347 + $0x668] sm:$0xff]
        %v707 = vld [vmem:[%s347 + $0x670] sm:$0xff]
        %v708 = vld [vmem:[%s347 + $0x678] sm:$0xff]
        %v709 = vld [vmem:[%s347 + $0x680] sm:$0xff]
        %v710 = vld [vmem:[%s347 + $0x688] sm:$0xff]
        %v711 = vld [vmem:[%s347 + $0x690] sm:$0xff]
        %v712 = vld [vmem:[%s347 + $0x698] sm:$0xff]
        %v713 = vld [vmem:[%s347 + $0x6a0] sm:$0xff]
        %v714 = vld [vmem:[%s347 + $0x6a8] sm:$0xff]
        %v715 = vld [vmem:[%s347 + $0x6b0] sm:$0xff]
        %v716 = vld [vmem:[%s347 + $0x6b8] sm:$0xff]
        %v717 = vld [vmem:[%s347 + $0x6c0] sm:$0xff]
        %v718 = vld [vmem:[%s347 + $0x6c8] sm:$0xff]
        %v719 = vld [vmem:[%s347 + $0x6d0] sm:$0xff]
        %v720 = vld [vmem:[%s347 + $0x6d8] sm:$0xff]
        %v721 = vld [vmem:[%s347 + $0x6e0] sm:$0xff]
        %v722 = vld [vmem:[%s347 + $0x6e8] sm:$0xff]
        %v723 = vld [vmem:[%s347 + $0x6f0] sm:$0xff]
        %v724 = vld [vmem:[%s347 + $0x6f8] sm:$0xff]
        %v725 = vld [vmem:[%s347 + $0x700] sm:$0xff]
        %v726 = vld [vmem:[%s347 + $0x708] sm:$0xff]
        %v727 = vld [vmem:[%s347 + $0x710] sm:$0xff]
        %v728 = vld [vmem:[%s347 + $0x718] sm:$0xff]
        %v729 = vld [vmem:[%s347 + $0x720] sm:$0xff]
        %v730 = vld [vmem:[%s347 + $0x728] sm:$0xff]
        %v731 = vld [vmem:[%s347 + $0x730] sm:$0xff]
        %v732 = vld [vmem:[%s347 + $0x738] sm:$0xff]
        %v733 = vld [vmem:[%s347 + $0x740] sm:$0xff]
        %v734 = vld [vmem:[%s347 + $0x748] sm:$0xff]
        %v735 = vld [vmem:[%s347 + $0x750] sm:$0xff]
        %v736 = vld [vmem:[%s347 + $0x758] sm:$0xff]
        %v737 = vld [vmem:[%s347 + $0x760] sm:$0xff]
        %v738 = vld [vmem:[%s347 + $0x768] sm:$0xff]
        %v739 = vld [vmem:[%s347 + $0x770] sm:$0xff]
        %v740 = vld [vmem:[%s347 + $0x778] sm:$0xff]
        %v741 = vld [vmem:[%s347 + $0x780] sm:$0xff]
        %v742 = vld [vmem:[%s347 + $0x788] sm:$0xff]
        %v743 = vld [vmem:[%s347 + $0x790] sm:$0xff]
        %v744 = vld [vmem:[%s347 + $0x798] sm:$0xff]
        %v745 = vld [vmem:[%s347 + $0x7a0] sm:$0xff]
        %v746 = vld [vmem:[%s347 + $0x7a8] sm:$0xff]
        %v747 = vld [vmem:[%s347 + $0x7b0] sm:$0xff]
        %v748 = vld [vmem:[%s347 + $0x7b8] sm:$0xff]
        %v749 = vld [vmem:[%s347 + $0x7c0] sm:$0xff]
        %v750 = vld [vmem:[%s347 + $0x7c8] sm:$0xff]
        %v751 = vld [vmem:[%s347 + $0x7d0] sm:$0xff]
        %v752 = vld [vmem:[%s347 + $0x7d8] sm:$0xff]
        %v753 = vld [vmem:[%s347 + $0x7e0] sm:$0xff]
        %v754 = vld [vmem:[%s347 + $0x7e8] sm:$0xff]
        %v755 = vld [vmem:[%s347 + $0x7f0] sm:$0xff]
        %v756 = vld [vmem:[%s347 + $0x7f8] sm:$0xff]
        %v757 = vld [vmem:[%s347 + $0x800] sm:$0xff]
        %v758 = vld [vmem:[%s347 + $0x808] sm:$0xff]
        %v759 = vld [vmem:[%s347 + $0x810] sm:$0xff]
        %v760 = vld [vmem:[%s347 + $0x818] sm:$0xff]
        %v761 = vld [vmem:[%s347 + $0x820] sm:$0xff]
        %v762 = vld [vmem:[%s347 + $0x828] sm:$0xff]
        %v763 = vld [vmem:[%s347 + $0x830] sm:$0xff]
        %v764 = vld [vmem:[%s347 + $0x838] sm:$0xff]
        %v765 = vld [vmem:[%s347 + $0x840] sm:$0xff]
        %v766 = vld [vmem:[%s347 + $0x848] sm:$0xff]
        %v767 = vld [vmem:[%s347 + $0x850] sm:$0xff]
        %v768 = vld [vmem:[%s347 + $0x858] sm:$0xff]
        %v769 = vld [vmem:[%s347 + $0x860] sm:$0xff]
        %v770 = vld [vmem:[%s347 + $0x868] sm:$0xff]
        %v771 = vld [vmem:[%s347 + $0x870] sm:$0xff]
        %v772 = vld [vmem:[%s347 + $0x878] sm:$0xff]
        %v773 = vld [vmem:[%s347 + $0x880] sm:$0xff]
        %v774 = vld [vmem:[%s347 + $0x888] sm:$0xff]
        %v775 = vld [vmem:[%s347 + $0x890] sm:$0xff]
        %v776 = vld [vmem:[%s347 + $0x898] sm:$0xff]
        %v777 = vld [vmem:[%s347 + $0x8a0] sm:$0xff]
        %v778 = vld [vmem:[%s347 + $0x8a8] sm:$0xff]
        %v779 = vld [vmem:[%s347 + $0x8b0] sm:$0xff]
        %v780 = vld [vmem:[%s347 + $0x8b8] sm:$0xff]
        %v781 = vld [vmem:[%s347 + $0x8c0] sm:$0xff]
        %v782 = vld [vmem:[%s347 + $0x8c8] sm:$0xff]
        %v783 = vld [vmem:[%s347 + $0x8d0] sm:$0xff]
        %v784 = vld [vmem:[%s347 + $0x8d8] sm:$0xff]
        %v785 = vld [vmem:[%s347 + $0x8e0] sm:$0xff]
        %v786 = vld [vmem:[%s347 + $0x8e8] sm:$0xff]
        %v787 = vld [vmem:[%s347 + $0x8f0] sm:$0xff]
        %v788 = vld [vmem:[%s347 + $0x8f8] sm:$0xff]
        %v824 = vunpack.c.l.b16 %v466
        %v825 = vunpack.c.h.b16 %v466
        %v826 = vunpack.c.l.b16 %v467
        %v827 = vunpack.c.h.b16 %v467
        %v828 = vunpack.c.l.b16 %v468
        %v829 = vunpack.c.h.b16 %v468
        %v830 = vunpack.c.l.b16 %v469
        %v831 = vunpack.c.h.b16 %v469
        %v832 = vunpack.c.l.b16 %v470
        %v833 = vunpack.c.l.b16 %v471
        %v834 = vunpack.c.h.b16 %v471
        %v835 = vunpack.c.l.b16 %v472
        %v836 = vunpack.c.h.b16 %v472
        %v837 = vunpack.c.l.b16 %v473
        %v838 = vunpack.c.h.b16 %v473
        %v839 = vunpack.c.l.b16 %v474
        %v840 = vunpack.c.h.b16 %v474
        %v841 = vunpack.c.l.b16 %v475
        %v842 = vunpack.c.l.b16 %v476
        %v843 = vunpack.c.h.b16 %v476
        %v844 = vunpack.c.l.b16 %v477
        %v845 = vunpack.c.h.b16 %v477
        %v846 = vunpack.c.l.b16 %v478
        %v847 = vunpack.c.h.b16 %v478
        %v848 = vunpack.c.l.b16 %v479
        %v849 = vunpack.c.h.b16 %v479
        %v850 = vunpack.c.l.b16 %v480
        %v851 = vunpack.c.l.b16 %v481
        %v852 = vunpack.c.h.b16 %v481
        %v853 = vunpack.c.l.b16 %v482
        %v854 = vunpack.c.h.b16 %v482
        %v855 = vunpack.c.l.b16 %v483
        %v856 = vunpack.c.h.b16 %v483
        %v857 = vunpack.c.l.b16 %v484
        %v858 = vunpack.c.h.b16 %v484
        %v859 = vunpack.c.l.b16 %v485
        %v860 = vunpack.c.l.b16 %v486
        %v861 = vunpack.c.h.b16 %v486
        %v862 = vunpack.c.l.b16 %v487
        %v863 = vunpack.c.h.b16 %v487
        %v864 = vunpack.c.l.b16 %v488
        %v865 = vunpack.c.h.b16 %v488
        %v866 = vunpack.c.l.b16 %v489
        %v867 = vunpack.c.h.b16 %v489
        %v868 = vunpack.c.l.b16 %v490
        %v869 = vunpack.c.l.b16 %v491
        %v870 = vunpack.c.h.b16 %v491
        %v871 = vunpack.c.l.b16 %v492
        %v872 = vunpack.c.h.b16 %v492
        %v873 = vunpack.c.l.b16 %v493
        %v874 = vunpack.c.h.b16 %v493
        %v875 = vunpack.c.l.b16 %v494
        %v876 = vunpack.c.h.b16 %v494
        %v877 = vunpack.c.l.b16 %v495
        %v878 = vunpack.c.l.b16 %v496
        %v879 = vunpack.c.h.b16 %v496
        %v880 = vunpack.c.l.b16 %v497
        %v881 = vunpack.c.h.b16 %v497
        %v882 = vunpack.c.l.b16 %v498
        %v883 = vunpack.c.h.b16 %v498
        %v884 = vunpack.c.l.b16 %v499
        %v885 = vunpack.c.h.b16 %v499
        %v886 = vunpack.c.l.b16 %v500
        %v887 = vpack.c.b16 %v833, %v824
        %v888 = vpack.c.b16 %v834, %v825
        %v889 = vpack.c.b16 %v835, %v826
        %v890 = vpack.c.b16 %v836, %v827
        %v891 = vpack.c.b16 %v837, %v828
        %v892 = vpack.c.b16 %v838, %v829
        %v893 = vpack.c.b16 %v839, %v830
        %v894 = vpack.c.b16 %v840, %v831
        %v895 = vpack.c.b16 %v841, %v832
        %v896 = vpack.c.b16 %v851, %v842
        %v897 = vpack.c.b16 %v852, %v843
        %v898 = vpack.c.b16 %v853, %v844
        %v899 = vpack.c.b16 %v854, %v845
        %v900 = vpack.c.b16 %v855, %v846
        %v901 = vpack.c.b16 %v856, %v847
        %v902 = vpack.c.b16 %v857, %v848
        %v903 = vpack.c.b16 %v858, %v849
        %v904 = vpack.c.b16 %v859, %v850
        %v905 = vpack.c.b16 %v869, %v860
        %v906 = vpack.c.b16 %v870, %v861
        %v907 = vpack.c.b16 %v871, %v862
        %v908 = vpack.c.b16 %v872, %v863
        %v909 = vpack.c.b16 %v873, %v864
        %v910 = vpack.c.b16 %v874, %v865
        %v911 = vpack.c.b16 %v875, %v866
        %v912 = vpack.c.b16 %v876, %v867
        %v913 = vpack.c.b16 %v877, %v868
        %v914 = vpack.c.b16 %v878, %v878
        %v915 = vpack.c.b16 %v879, %v879
        %v916 = vpack.c.b16 %v880, %v880
        %v917 = vpack.c.b16 %v881, %v881
        %v918 = vpack.c.b16 %v882, %v882
        %v919 = vpack.c.b16 %v883, %v883
        %v920 = vpack.c.b16 %v884, %v884
        %v921 = vpack.c.b16 %v885, %v885
        %v922 = vpack.c.b16 %v886, %v886
        %v1247 = vunpack.c.l.b16 %v501
        %v1248 = vunpack.c.h.b16 %v501
        %v1249 = vunpack.c.l.b16 %v502
        %v1250 = vunpack.c.h.b16 %v502
        %v1251 = vunpack.c.l.b16 %v503
        %v1252 = vunpack.c.h.b16 %v503
        %v1253 = vunpack.c.l.b16 %v504
        %v1254 = vunpack.c.h.b16 %v504
        %v1255 = vunpack.c.l.b16 %v505
        %v1256 = vunpack.c.h.b16 %v505
        %v1257 = vunpack.c.l.b16 %v506
        %v1258 = vunpack.c.h.b16 %v506
        %v1259 = vunpack.c.l.b16 %v507
        %v1260 = vunpack.c.h.b16 %v507
        %v1261 = vunpack.c.l.b16 %v508
        %v1262 = vunpack.c.h.b16 %v508
        %v1263 = vunpack.c.l.b16 %v509
        %v1264 = vunpack.c.h.b16 %v509
        %v1265 = vunpack.c.l.b16 %v510
        %v1266 = vunpack.c.h.b16 %v510
        %v1267 = vunpack.c.l.b16 %v511
        %v1268 = vunpack.c.h.b16 %v511
        %v1269 = vunpack.c.l.b16 %v512
        %v1270 = vunpack.c.h.b16 %v512
        %v1271 = vunpack.c.l.b16 %v513
        %v1272 = vunpack.c.h.b16 %v513
        %v1273 = vunpack.c.l.b16 %v514
        %v1274 = vunpack.c.h.b16 %v514
        %v1275 = vunpack.c.l.b16 %v515
        %v1276 = vunpack.c.h.b16 %v515
        %v1277 = vunpack.c.l.b16 %v516
        %v1278 = vunpack.c.h.b16 %v516
        %v1279 = vunpack.c.l.b16 %v517
        %v1280 = vunpack.c.h.b16 %v517
        %v1281 = vunpack.c.l.b16 %v518
        %v1282 = vunpack.c.h.b16 %v518
        %v1283 = vunpack.c.l.b16 %v519
        %v1284 = vunpack.c.h.b16 %v519
        %v1285 = vunpack.c.l.b16 %v520
        %v1286 = vunpack.c.h.b16 %v520
        %v1287 = vunpack.c.l.b16 %v521
        %v1288 = vunpack.c.h.b16 %v521
        %v1289 = vunpack.c.l.b16 %v522
        %v1290 = vunpack.c.h.b16 %v522
        %v1291 = vunpack.c.l.b16 %v523
        %v1292 = vunpack.c.h.b16 %v523
        %v1293 = vunpack.c.l.b16 %v524
        %v1294 = vunpack.c.h.b16 %v524
        %v1295 = vunpack.c.l.b16 %v525
        %v1296 = vunpack.c.h.b16 %v525
        %v1297 = vunpack.c.l.b16 %v526
        %v1298 = vunpack.c.h.b16 %v526
        %v1299 = vunpack.c.l.b16 %v527
        %v1300 = vunpack.c.h.b16 %v527
        %v1301 = vunpack.c.l.b16 %v528
        %v1302 = vunpack.c.h.b16 %v528
        %v1303 = vunpack.c.l.b16 %v529
        %v1304 = vunpack.c.h.b16 %v529
        %v1305 = vunpack.c.l.b16 %v530
        %v1306 = vunpack.c.h.b16 %v530
        %v1307 = vunpack.c.l.b16 %v531
        %v1308 = vunpack.c.h.b16 %v531
        %v1309 = vunpack.c.l.b16 %v532
        %v1310 = vunpack.c.h.b16 %v532
        %v1311 = vunpack.c.l.b16 %v533
        %v1312 = vunpack.c.h.b16 %v533
        %v1313 = vunpack.c.l.b16 %v534
        %v1314 = vunpack.c.h.b16 %v534
        %v1315 = vunpack.c.l.b16 %v535
        %v1316 = vunpack.c.h.b16 %v535
        %v1317 = vunpack.c.l.b16 %v536
        %v1318 = vunpack.c.h.b16 %v536
        %v1319 = vunpack.c.l.b16 %v537
        %v1320 = vunpack.c.h.b16 %v537
        %v1321 = vunpack.c.l.b16 %v538
        %v1322 = vunpack.c.h.b16 %v538
        %v1323 = vunpack.c.l.b16 %v539
        %v1324 = vunpack.c.h.b16 %v539
        %v1325 = vunpack.c.l.b16 %v540
        %v1326 = vunpack.c.h.b16 %v540
        %v1327 = vunpack.c.l.b16 %v541
        %v1328 = vunpack.c.h.b16 %v541
        %v1329 = vunpack.c.l.b16 %v542
        %v1330 = vunpack.c.h.b16 %v542
        %v1331 = vunpack.c.l.b16 %v543
        %v1332 = vunpack.c.h.b16 %v543
        %v1333 = vunpack.c.l.b16 %v544
        %v1334 = vunpack.c.h.b16 %v544
        %v1335 = vunpack.c.l.b16 %v545
        %v1336 = vunpack.c.h.b16 %v545
        %v1337 = vunpack.c.l.b16 %v546
        %v1338 = vunpack.c.h.b16 %v546
        %v1339 = vunpack.c.l.b16 %v547
        %v1340 = vunpack.c.h.b16 %v547
        %v1341 = vunpack.c.l.b16 %v548
        %v1342 = vunpack.c.h.b16 %v548
        %v1343 = vunpack.c.l.b16 %v549
        %v1344 = vunpack.c.h.b16 %v549
        %v1345 = vunpack.c.l.b16 %v550
        %v1346 = vunpack.c.h.b16 %v550
        %v1347 = vunpack.c.l.b16 %v551
        %v1348 = vunpack.c.h.b16 %v551
        %v1349 = vunpack.c.l.b16 %v552
        %v1350 = vunpack.c.h.b16 %v552
        %v1351 = vunpack.c.l.b16 %v553
        %v1352 = vunpack.c.h.b16 %v553
        %v1353 = vunpack.c.l.b16 %v554
        %v1354 = vunpack.c.h.b16 %v554
        %v1355 = vunpack.c.l.b16 %v555
        %v1356 = vunpack.c.h.b16 %v555
        %v1357 = vunpack.c.l.b16 %v556
        %v1358 = vunpack.c.h.b16 %v556
        %v1359 = vunpack.c.l.b16 %v557
        %v1360 = vunpack.c.h.b16 %v557
        %v1361 = vunpack.c.l.b16 %v558
        %v1362 = vunpack.c.h.b16 %v558
        %v1363 = vunpack.c.l.b16 %v559
        %v1364 = vunpack.c.h.b16 %v559
        %v1365 = vunpack.c.l.b16 %v560
        %v1366 = vunpack.c.h.b16 %v560
        %v1367 = vunpack.c.l.b16 %v561
        %v1368 = vunpack.c.h.b16 %v561
        %v1369 = vunpack.c.l.b16 %v562
        %v1370 = vunpack.c.h.b16 %v562
        %v1371 = vunpack.c.l.b16 %v563
        %v1372 = vunpack.c.h.b16 %v563
        %v1373 = vunpack.c.l.b16 %v564
        %v1374 = vunpack.c.h.b16 %v564
        %v1375 = vunpack.c.l.b16 %v565
        %v1376 = vunpack.c.h.b16 %v565
        %v1377 = vunpack.c.l.b16 %v566
        %v1378 = vunpack.c.h.b16 %v566
        %v1379 = vunpack.c.l.b16 %v567
        %v1380 = vunpack.c.h.b16 %v567
        %v1381 = vunpack.c.l.b16 %v568
        %v1382 = vunpack.c.h.b16 %v568
        %v1383 = vunpack.c.l.b16 %v569
        %v1384 = vunpack.c.h.b16 %v569
        %v1385 = vunpack.c.l.b16 %v570
        %v1386 = vunpack.c.h.b16 %v570
        %v1387 = vunpack.c.l.b16 %v571
        %v1388 = vunpack.c.h.b16 %v571
        %v1389 = vunpack.c.l.b16 %v572
        %v1390 = vunpack.c.h.b16 %v572
        %v1391 = vunpack.c.l.b16 %v573
        %v1392 = vunpack.c.h.b16 %v573
        %v1393 = vunpack.c.l.b16 %v574
        %v1394 = vunpack.c.h.b16 %v574
        %v1395 = vunpack.c.l.b16 %v575
        %v1396 = vunpack.c.h.b16 %v575
        %v1397 = vunpack.c.l.b16 %v576
        %v1398 = vunpack.c.h.b16 %v576
        %v1399 = vunpack.c.l.b16 %v577
        %v1400 = vunpack.c.h.b16 %v577
        %v1401 = vunpack.c.l.b16 %v578
        %v1402 = vunpack.c.h.b16 %v578
        %v1403 = vunpack.c.l.b16 %v579
        %v1404 = vunpack.c.h.b16 %v579
        %v1405 = vunpack.c.l.b16 %v580
        %v1406 = vunpack.c.h.b16 %v580
        %v1407 = vunpack.c.l.b16 %v581
        %v1408 = vunpack.c.h.b16 %v581
        %v1409 = vunpack.c.l.b16 %v582
        %v1410 = vunpack.c.h.b16 %v582
        %v1411 = vunpack.c.l.b16 %v583
        %v1412 = vunpack.c.h.b16 %v583
        %v1413 = vunpack.c.l.b16 %v584
        %v1414 = vunpack.c.h.b16 %v584
        %v1415 = vunpack.c.l.b16 %v585
        %v1416 = vunpack.c.h.b16 %v585
        %v1417 = vunpack.c.l.b16 %v586
        %v1418 = vunpack.c.h.b16 %v586
        %v1419 = vunpack.c.l.b16 %v587
        %v1420 = vunpack.c.h.b16 %v587
        %v1421 = vunpack.c.l.b16 %v588
        %v1422 = vunpack.c.h.b16 %v588
        %v1423 = vunpack.c.l.b16 %v589
        %v1424 = vunpack.c.h.b16 %v589
        %v1425 = vunpack.c.l.b16 %v590
        %v1426 = vunpack.c.h.b16 %v590
        %v1427 = vunpack.c.l.b16 %v591
        %v1428 = vunpack.c.h.b16 %v591
        %v1429 = vunpack.c.l.b16 %v592
        %v1430 = vunpack.c.h.b16 %v592
        %v1431 = vunpack.c.l.b16 %v593
        %v1432 = vunpack.c.h.b16 %v593
        %v1433 = vunpack.c.l.b16 %v594
        %v1434 = vunpack.c.h.b16 %v594
        %v1435 = vunpack.c.l.b16 %v595
        %v1436 = vunpack.c.h.b16 %v595
        %v1437 = vunpack.c.l.b16 %v596
        %v1438 = vunpack.c.h.b16 %v596
        %v1439 = vunpack.c.l.b16 %v597
        %v1440 = vunpack.c.h.b16 %v597
        %v1441 = vunpack.c.l.b16 %v598
        %v1442 = vunpack.c.h.b16 %v598
        %v1443 = vunpack.c.l.b16 %v599
        %v1444 = vunpack.c.h.b16 %v599
        %v1445 = vunpack.c.l.b16 %v600
        %v1446 = vunpack.c.h.b16 %v600
        %v1447 = vunpack.c.l.b16 %v601
        %v1448 = vunpack.c.h.b16 %v601
        %v1449 = vunpack.c.l.b16 %v602
        %v1450 = vunpack.c.h.b16 %v602
        %v1451 = vunpack.c.l.b16 %v603
        %v1452 = vunpack.c.h.b16 %v603
        %v1453 = vunpack.c.l.b16 %v604
        %v1454 = vunpack.c.h.b16 %v604
        %v1455 = vunpack.c.l.b16 %v605
        %v1456 = vunpack.c.h.b16 %v605
        %v1457 = vunpack.c.l.b16 %v606
        %v1458 = vunpack.c.h.b16 %v606
        %v1459 = vunpack.c.l.b16 %v607
        %v1460 = vunpack.c.h.b16 %v607
        %v1461 = vunpack.c.l.b16 %v608
        %v1462 = vunpack.c.h.b16 %v608
        %v1463 = vunpack.c.l.b16 %v609
        %v1464 = vunpack.c.h.b16 %v609
        %v1465 = vunpack.c.l.b16 %v610
        %v1466 = vunpack.c.h.b16 %v610
        %v1467 = vunpack.c.l.b16 %v611
        %v1468 = vunpack.c.h.b16 %v611
        %v1469 = vunpack.c.l.b16 %v612
        %v1470 = vunpack.c.h.b16 %v612
        %v1471 = vunpack.c.l.b16 %v613
        %v1472 = vunpack.c.h.b16 %v613
        %v1473 = vunpack.c.l.b16 %v614
        %v1474 = vunpack.c.h.b16 %v614
        %v1475 = vunpack.c.l.b16 %v615
        %v1476 = vunpack.c.h.b16 %v615
        %v1477 = vunpack.c.l.b16 %v616
        %v1478 = vunpack.c.h.b16 %v616
        %v1479 = vunpack.c.l.b16 %v617
        %v1480 = vunpack.c.h.b16 %v617
        %v1481 = vunpack.c.l.b16 %v618
        %v1482 = vunpack.c.h.b16 %v618
        %v1483 = vunpack.c.l.b16 %v619
        %v1484 = vunpack.c.h.b16 %v619
        %v1485 = vunpack.c.l.b16 %v620
        %v1486 = vunpack.c.h.b16 %v620
        %v1487 = vunpack.c.l.b16 %v621
        %v1488 = vunpack.c.h.b16 %v621
        %v1489 = vunpack.c.l.b16 %v622
        %v1490 = vunpack.c.h.b16 %v622
        %v1491 = vunpack.c.l.b16 %v623
        %v1492 = vunpack.c.h.b16 %v623
        %v1493 = vunpack.c.l.b16 %v624
        %v1494 = vunpack.c.h.b16 %v624
        %v1495 = vunpack.c.l.b16 %v625
        %v1496 = vunpack.c.h.b16 %v625
        %v1497 = vunpack.c.l.b16 %v626
        %v1498 = vunpack.c.h.b16 %v626
        %v1499 = vunpack.c.l.b16 %v627
        %v1500 = vunpack.c.h.b16 %v627
        %v1501 = vunpack.c.l.b16 %v628
        %v1502 = vunpack.c.h.b16 %v628
        %v1503 = vunpack.c.l.b16 %v629
        %v1504 = vunpack.c.h.b16 %v629
        %v1505 = vunpack.c.l.b16 %v630
        %v1506 = vunpack.c.h.b16 %v630
        %v1507 = vunpack.c.l.b16 %v631
        %v1508 = vunpack.c.h.b16 %v631
        %v1509 = vunpack.c.l.b16 %v632
        %v1510 = vunpack.c.h.b16 %v632
        %v1511 = vunpack.c.l.b16 %v633
        %v1512 = vunpack.c.h.b16 %v633
        %v1513 = vunpack.c.l.b16 %v634
        %v1514 = vunpack.c.h.b16 %v634
        %v1515 = vunpack.c.l.b16 %v635
        %v1516 = vunpack.c.h.b16 %v635
        %v1517 = vunpack.c.l.b16 %v636
        %v1518 = vunpack.c.h.b16 %v636
        %v1519 = vunpack.c.l.b16 %v637
        %v1520 = vunpack.c.h.b16 %v637
        %v1521 = vunpack.c.l.b16 %v638
        %v1522 = vunpack.c.h.b16 %v638
        %v1523 = vunpack.c.l.b16 %v639
        %v1524 = vunpack.c.h.b16 %v639
        %v1525 = vunpack.c.l.b16 %v640
        %v1526 = vunpack.c.h.b16 %v640
        %v1527 = vunpack.c.l.b16 %v641
        %v1528 = vunpack.c.h.b16 %v641
        %v1529 = vunpack.c.l.b16 %v642
        %v1530 = vunpack.c.h.b16 %v642
        %v1531 = vunpack.c.l.b16 %v643
        %v1532 = vunpack.c.h.b16 %v643
        %v1533 = vunpack.c.l.b16 %v644
        %v1534 = vunpack.c.h.b16 %v644
        %v1535 = vunpack.c.l.b16 %v645
        %v1536 = vunpack.c.h.b16 %v645
        %v1537 = vunpack.c.l.b16 %v646
        %v1538 = vunpack.c.h.b16 %v646
        %v1539 = vunpack.c.l.b16 %v647
        %v1540 = vunpack.c.h.b16 %v647
        %v1541 = vunpack.c.l.b16 %v648
        %v1542 = vunpack.c.h.b16 %v648
        %v1543 = vunpack.c.l.b16 %v649
        %v1544 = vunpack.c.h.b16 %v649
        %v1545 = vunpack.c.l.b16 %v650
        %v1546 = vunpack.c.h.b16 %v650
        %v1547 = vunpack.c.l.b16 %v651
        %v1548 = vunpack.c.h.b16 %v651
        %v1549 = vunpack.c.l.b16 %v652
        %v1550 = vunpack.c.h.b16 %v652
        %v1551 = vunpack.c.l.b16 %v653
        %v1552 = vunpack.c.h.b16 %v653
        %v1553 = vunpack.c.l.b16 %v654
        %v1554 = vunpack.c.h.b16 %v654
        %v1555 = vunpack.c.l.b16 %v655
        %v1556 = vunpack.c.h.b16 %v655
        %v1557 = vunpack.c.l.b16 %v656
        %v1558 = vunpack.c.h.b16 %v656
        %v1559 = vunpack.c.l.b16 %v657
        %v1560 = vunpack.c.h.b16 %v657
        %v1561 = vunpack.c.l.b16 %v658
        %v1562 = vunpack.c.h.b16 %v658
        %v1563 = vunpack.c.l.b16 %v659
        %v1564 = vunpack.c.h.b16 %v659
        %v1565 = vunpack.c.l.b16 %v660
        %v1566 = vunpack.c.h.b16 %v660
        %v1567 = vunpack.c.l.b16 %v661
        %v1568 = vunpack.c.h.b16 %v661
        %v1569 = vunpack.c.l.b16 %v662
        %v1570 = vunpack.c.h.b16 %v662
        %v1571 = vunpack.c.l.b16 %v663
        %v1572 = vunpack.c.h.b16 %v663
        %v1573 = vunpack.c.l.b16 %v664
        %v1574 = vunpack.c.h.b16 %v664
        %v1575 = vunpack.c.l.b16 %v665
        %v1576 = vunpack.c.h.b16 %v665
        %v1577 = vunpack.c.l.b16 %v666
        %v1578 = vunpack.c.h.b16 %v666
        %v1579 = vunpack.c.l.b16 %v667
        %v1580 = vunpack.c.h.b16 %v667
        %v1581 = vunpack.c.l.b16 %v668
        %v1582 = vunpack.c.h.b16 %v668
        %v1583 = vunpack.c.l.b16 %v669
        %v1584 = vunpack.c.h.b16 %v669
        %v1585 = vunpack.c.l.b16 %v670
        %v1586 = vunpack.c.h.b16 %v670
        %v1587 = vunpack.c.l.b16 %v671
        %v1588 = vunpack.c.h.b16 %v671
        %v1589 = vunpack.c.l.b16 %v672
        %v1590 = vunpack.c.h.b16 %v672
        %v1591 = vunpack.c.l.b16 %v673
        %v1592 = vunpack.c.h.b16 %v673
        %v1593 = vunpack.c.l.b16 %v674
        %v1594 = vunpack.c.h.b16 %v674
        %v1595 = vunpack.c.l.b16 %v675
        %v1596 = vunpack.c.h.b16 %v675
        %v1597 = vunpack.c.l.b16 %v676
        %v1598 = vunpack.c.h.b16 %v676
        %v1599 = vunpack.c.l.b16 %v677
        %v1600 = vunpack.c.h.b16 %v677
        %v1601 = vunpack.c.l.b16 %v678
        %v1602 = vunpack.c.h.b16 %v678
        %v1603 = vunpack.c.l.b16 %v679
        %v1604 = vunpack.c.h.b16 %v679
        %v1605 = vunpack.c.l.b16 %v680
        %v1606 = vunpack.c.h.b16 %v680
        %v1607 = vunpack.c.l.b16 %v681
        %v1608 = vunpack.c.h.b16 %v681
        %v1609 = vunpack.c.l.b16 %v682
        %v1610 = vunpack.c.h.b16 %v682
        %v1611 = vunpack.c.l.b16 %v683
        %v1612 = vunpack.c.h.b16 %v683
        %v1613 = vunpack.c.l.b16 %v684
        %v1614 = vunpack.c.h.b16 %v684
        %v1615 = vunpack.c.l.b16 %v685
        %v1616 = vunpack.c.h.b16 %v685
        %v1617 = vunpack.c.l.b16 %v686
        %v1618 = vunpack.c.h.b16 %v686
        %v1619 = vunpack.c.l.b16 %v687
        %v1620 = vunpack.c.h.b16 %v687
        %v1621 = vunpack.c.l.b16 %v688
        %v1622 = vunpack.c.h.b16 %v688
        %v1623 = vunpack.c.l.b16 %v689
        %v1624 = vunpack.c.h.b16 %v689
        %v1625 = vunpack.c.l.b16 %v690
        %v1626 = vunpack.c.h.b16 %v690
        %v1627 = vunpack.c.l.b16 %v691
        %v1628 = vunpack.c.h.b16 %v691
        %v1629 = vunpack.c.l.b16 %v692
        %v1630 = vunpack.c.h.b16 %v692
        %v1631 = vunpack.c.l.b16 %v693
        %v1632 = vunpack.c.h.b16 %v693
        %v1633 = vunpack.c.l.b16 %v694
        %v1634 = vunpack.c.h.b16 %v694
        %v1635 = vunpack.c.l.b16 %v695
        %v1636 = vunpack.c.h.b16 %v695
        %v1637 = vunpack.c.l.b16 %v696
        %v1638 = vunpack.c.h.b16 %v696
        %v1639 = vunpack.c.l.b16 %v697
        %v1640 = vunpack.c.h.b16 %v697
        %v1641 = vunpack.c.l.b16 %v698
        %v1642 = vunpack.c.h.b16 %v698
        %v1643 = vunpack.c.l.b16 %v699
        %v1644 = vunpack.c.h.b16 %v699
        %v1645 = vunpack.c.l.b16 %v700
        %v1646 = vunpack.c.h.b16 %v700
        %v1647 = vunpack.c.l.b16 %v701
        %v1648 = vunpack.c.h.b16 %v701
        %v1649 = vunpack.c.l.b16 %v702
        %v1650 = vunpack.c.h.b16 %v702
        %v1651 = vunpack.c.l.b16 %v703
        %v1652 = vunpack.c.h.b16 %v703
        %v1653 = vunpack.c.l.b16 %v704
        %v1654 = vunpack.c.h.b16 %v704
        %v1655 = vunpack.c.l.b16 %v705
        %v1656 = vunpack.c.h.b16 %v705
        %v1657 = vunpack.c.l.b16 %v706
        %v1658 = vunpack.c.h.b16 %v706
        %v1659 = vunpack.c.l.b16 %v707
        %v1660 = vunpack.c.h.b16 %v707
        %v1661 = vunpack.c.l.b16 %v708
        %v1662 = vunpack.c.h.b16 %v708
        %v1663 = vunpack.c.l.b16 %v709
        %v1664 = vunpack.c.h.b16 %v709
        %v1665 = vunpack.c.l.b16 %v710
        %v1666 = vunpack.c.h.b16 %v710
        %v1667 = vunpack.c.l.b16 %v711
        %v1668 = vunpack.c.h.b16 %v711
        %v1669 = vunpack.c.l.b16 %v712
        %v1670 = vunpack.c.h.b16 %v712
        %v1671 = vunpack.c.l.b16 %v713
        %v1672 = vunpack.c.h.b16 %v713
        %v1673 = vunpack.c.l.b16 %v714
        %v1674 = vunpack.c.h.b16 %v714
        %v1675 = vunpack.c.l.b16 %v715
        %v1676 = vunpack.c.h.b16 %v715
        %v1677 = vunpack.c.l.b16 %v716
        %v1678 = vunpack.c.h.b16 %v716
        %v1679 = vunpack.c.l.b16 %v717
        %v1680 = vunpack.c.h.b16 %v717
        %v1681 = vunpack.c.l.b16 %v718
        %v1682 = vunpack.c.h.b16 %v718
        %v1683 = vunpack.c.l.b16 %v719
        %v1684 = vunpack.c.h.b16 %v719
        %v1685 = vunpack.c.l.b16 %v720
        %v1686 = vunpack.c.h.b16 %v720
        %v1687 = vunpack.c.l.b16 %v721
        %v1688 = vunpack.c.h.b16 %v721
        %v1689 = vunpack.c.l.b16 %v722
        %v1690 = vunpack.c.h.b16 %v722
        %v1691 = vunpack.c.l.b16 %v723
        %v1692 = vunpack.c.h.b16 %v723
        %v1693 = vunpack.c.l.b16 %v724
        %v1694 = vunpack.c.h.b16 %v724
        %v1695 = vunpack.c.l.b16 %v725
        %v1696 = vunpack.c.h.b16 %v725
        %v1697 = vunpack.c.l.b16 %v726
        %v1698 = vunpack.c.h.b16 %v726
        %v1699 = vunpack.c.l.b16 %v727
        %v1700 = vunpack.c.h.b16 %v727
        %v1701 = vunpack.c.l.b16 %v728
        %v1702 = vunpack.c.h.b16 %v728
        %v1703 = vunpack.c.l.b16 %v729
        %v1704 = vunpack.c.h.b16 %v729
        %v1705 = vunpack.c.l.b16 %v730
        %v1706 = vunpack.c.h.b16 %v730
        %v1707 = vunpack.c.l.b16 %v731
        %v1708 = vunpack.c.h.b16 %v731
        %v1709 = vunpack.c.l.b16 %v732
        %v1710 = vunpack.c.h.b16 %v732
        %v1711 = vunpack.c.l.b16 %v733
        %v1712 = vunpack.c.h.b16 %v733
        %v1713 = vunpack.c.l.b16 %v734
        %v1714 = vunpack.c.h.b16 %v734
        %v1715 = vunpack.c.l.b16 %v735
        %v1716 = vunpack.c.h.b16 %v735
        %v1717 = vunpack.c.l.b16 %v736
        %v1718 = vunpack.c.h.b16 %v736
        %v1719 = vunpack.c.l.b16 %v737
        %v1720 = vunpack.c.h.b16 %v737
        %v1721 = vunpack.c.l.b16 %v738
        %v1722 = vunpack.c.h.b16 %v738
        %v1723 = vunpack.c.l.b16 %v739
        %v1724 = vunpack.c.h.b16 %v739
        %v1725 = vunpack.c.l.b16 %v740
        %v1726 = vunpack.c.h.b16 %v740
        %v1727 = vunpack.c.l.b16 %v741
        %v1728 = vunpack.c.h.b16 %v741
        %v1729 = vunpack.c.l.b16 %v742
        %v1730 = vunpack.c.h.b16 %v742
        %v1731 = vunpack.c.l.b16 %v743
        %v1732 = vunpack.c.h.b16 %v743
        %v1733 = vunpack.c.l.b16 %v744
        %v1734 = vunpack.c.h.b16 %v744
        %v1735 = vunpack.c.l.b16 %v745
        %v1736 = vunpack.c.h.b16 %v745
        %v1737 = vunpack.c.l.b16 %v746
        %v1738 = vunpack.c.h.b16 %v746
        %v1739 = vunpack.c.l.b16 %v747
        %v1740 = vunpack.c.h.b16 %v747
        %v1741 = vunpack.c.l.b16 %v748
        %v1742 = vunpack.c.h.b16 %v748
        %v1743 = vunpack.c.l.b16 %v749
        %v1744 = vunpack.c.h.b16 %v749
        %v1745 = vunpack.c.l.b16 %v750
        %v1746 = vunpack.c.h.b16 %v750
        %v1747 = vunpack.c.l.b16 %v751
        %v1748 = vunpack.c.h.b16 %v751
        %v1749 = vunpack.c.l.b16 %v752
        %v1750 = vunpack.c.h.b16 %v752
        %v1751 = vunpack.c.l.b16 %v753
        %v1752 = vunpack.c.h.b16 %v753
        %v1753 = vunpack.c.l.b16 %v754
        %v1754 = vunpack.c.h.b16 %v754
        %v1755 = vunpack.c.l.b16 %v755
        %v1756 = vunpack.c.h.b16 %v755
        %v1757 = vunpack.c.l.b16 %v756
        %v1758 = vunpack.c.h.b16 %v756
        %v1759 = vunpack.c.l.b16 %v757
        %v1760 = vunpack.c.h.b16 %v757
        %v1761 = vunpack.c.l.b16 %v758
        %v1762 = vunpack.c.h.b16 %v758
        %v1763 = vunpack.c.l.b16 %v759
        %v1764 = vunpack.c.h.b16 %v759
        %v1765 = vunpack.c.l.b16 %v760
        %v1766 = vunpack.c.h.b16 %v760
        %v1767 = vunpack.c.l.b16 %v761
        %v1768 = vunpack.c.h.b16 %v761
        %v1769 = vunpack.c.l.b16 %v762
        %v1770 = vunpack.c.h.b16 %v762
        %v1771 = vunpack.c.l.b16 %v763
        %v1772 = vunpack.c.h.b16 %v763
        %v1773 = vunpack.c.l.b16 %v764
        %v1774 = vunpack.c.h.b16 %v764
        %v1775 = vunpack.c.l.b16 %v765
        %v1776 = vunpack.c.h.b16 %v765
        %v1777 = vunpack.c.l.b16 %v766
        %v1778 = vunpack.c.h.b16 %v766
        %v1779 = vunpack.c.l.b16 %v767
        %v1780 = vunpack.c.h.b16 %v767
        %v1781 = vunpack.c.l.b16 %v768
        %v1782 = vunpack.c.h.b16 %v768
        %v1783 = vunpack.c.l.b16 %v769
        %v1784 = vunpack.c.h.b16 %v769
        %v1785 = vunpack.c.l.b16 %v770
        %v1786 = vunpack.c.h.b16 %v770
        %v1787 = vunpack.c.l.b16 %v771
        %v1788 = vunpack.c.h.b16 %v771
        %v1789 = vunpack.c.l.b16 %v772
        %v1790 = vunpack.c.h.b16 %v772
        %v1791 = vunpack.c.l.b16 %v773
        %v1792 = vunpack.c.h.b16 %v773
        %v1793 = vunpack.c.l.b16 %v774
        %v1794 = vunpack.c.h.b16 %v774
        %v1795 = vunpack.c.l.b16 %v775
        %v1796 = vunpack.c.h.b16 %v775
        %v1797 = vunpack.c.l.b16 %v776
        %v1798 = vunpack.c.h.b16 %v776
        %v1799 = vunpack.c.l.b16 %v777
        %v1800 = vunpack.c.h.b16 %v777
        %v1801 = vunpack.c.l.b16 %v778
        %v1802 = vunpack.c.h.b16 %v778
        %v1803 = vunpack.c.l.b16 %v779
        %v1804 = vunpack.c.h.b16 %v779
        %v1805 = vunpack.c.l.b16 %v780
        %v1806 = vunpack.c.h.b16 %v780
        %v1807 = vunpack.c.l.b16 %v781
        %v1808 = vunpack.c.h.b16 %v781
        %v1809 = vunpack.c.l.b16 %v782
        %v1810 = vunpack.c.h.b16 %v782
        %v1811 = vunpack.c.l.b16 %v783
        %v1812 = vunpack.c.h.b16 %v783
        %v1813 = vunpack.c.l.b16 %v784
        %v1814 = vunpack.c.h.b16 %v784
        %v1815 = vunpack.c.l.b16 %v785
        %v1816 = vunpack.c.h.b16 %v785
        %v1817 = vunpack.c.l.b16 %v786
        %v1818 = vunpack.c.h.b16 %v786
        %v1819 = vunpack.c.l.b16 %v787
        %v1820 = vunpack.c.h.b16 %v787
        %v1821 = vunpack.c.l.b16 %v788
        %v1822 = vunpack.c.h.b16 %v788
        %v1823 = vpack.c.b16 %v1251, %v1247
        %v1824 = vpack.c.b16 %v1252, %v1248
        %v1825 = vpack.c.b16 %v1253, %v1249
        %v1826 = vpack.c.b16 %v1254, %v1250
        %v1827 = vpack.c.b16 %v1259, %v1255
        %v1828 = vpack.c.b16 %v1260, %v1256
        %v1829 = vpack.c.b16 %v1261, %v1257
        %v1830 = vpack.c.b16 %v1262, %v1258
        %v1831 = vpack.c.b16 %v1267, %v1263
        %v1832 = vpack.c.b16 %v1268, %v1264
        %v1833 = vpack.c.b16 %v1269, %v1265
        %v1834 = vpack.c.b16 %v1270, %v1266
        %v1835 = vpack.c.b16 %v1275, %v1271
        %v1836 = vpack.c.b16 %v1276, %v1272
        %v1837 = vpack.c.b16 %v1277, %v1273
        %v1838 = vpack.c.b16 %v1278, %v1274
        %v1839 = vpack.c.b16 %v1283, %v1279
        %v1840 = vpack.c.b16 %v1284, %v1280
        %v1841 = vpack.c.b16 %v1285, %v1281
        %v1842 = vpack.c.b16 %v1286, %v1282
        %v1843 = vpack.c.b16 %v1291, %v1287
        %v1844 = vpack.c.b16 %v1292, %v1288
        %v1845 = vpack.c.b16 %v1293, %v1289
        %v1846 = vpack.c.b16 %v1294, %v1290
        %v1847 = vpack.c.b16 %v1299, %v1295
        %v1848 = vpack.c.b16 %v1300, %v1296
        %v1849 = vpack.c.b16 %v1301, %v1297
        %v1850 = vpack.c.b16 %v1302, %v1298
        %v1851 = vpack.c.b16 %v1307, %v1303
        %v1852 = vpack.c.b16 %v1308, %v1304
        %v1853 = vpack.c.b16 %v1309, %v1305
        %v1854 = vpack.c.b16 %v1310, %v1306
        %v1855 = vpack.c.b16 %v1315, %v1311
        %v1856 = vpack.c.b16 %v1316, %v1312
        %v1857 = vpack.c.b16 %v1317, %v1313
        %v1858 = vpack.c.b16 %v1318, %v1314
        %v1859 = vpack.c.b16 %v1323, %v1319
        %v1860 = vpack.c.b16 %v1324, %v1320
        %v1861 = vpack.c.b16 %v1325, %v1321
        %v1862 = vpack.c.b16 %v1326, %v1322
        %v1863 = vpack.c.b16 %v1331, %v1327
        %v1864 = vpack.c.b16 %v1332, %v1328
        %v1865 = vpack.c.b16 %v1333, %v1329
        %v1866 = vpack.c.b16 %v1334, %v1330
        %v1867 = vpack.c.b16 %v1339, %v1335
        %v1868 = vpack.c.b16 %v1340, %v1336
        %v1869 = vpack.c.b16 %v1341, %v1337
        %v1870 = vpack.c.b16 %v1342, %v1338
        %v1871 = vpack.c.b16 %v1347, %v1343
        %v1872 = vpack.c.b16 %v1348, %v1344
        %v1873 = vpack.c.b16 %v1349, %v1345
        %v1874 = vpack.c.b16 %v1350, %v1346
        %v1875 = vpack.c.b16 %v1355, %v1351
        %v1876 = vpack.c.b16 %v1356, %v1352
        %v1877 = vpack.c.b16 %v1357, %v1353
        %v1878 = vpack.c.b16 %v1358, %v1354
        %v1879 = vpack.c.b16 %v1363, %v1359
        %v1880 = vpack.c.b16 %v1364, %v1360
        %v1881 = vpack.c.b16 %v1365, %v1361
        %v1882 = vpack.c.b16 %v1366, %v1362
        %v1883 = vpack.c.b16 %v1371, %v1367
        %v1884 = vpack.c.b16 %v1372, %v1368
        %v1885 = vpack.c.b16 %v1373, %v1369
        %v1886 = vpack.c.b16 %v1374, %v1370
        %v1887 = vpack.c.b16 %v1379, %v1375
        %v1888 = vpack.c.b16 %v1380, %v1376
        %v1889 = vpack.c.b16 %v1381, %v1377
        %v1890 = vpack.c.b16 %v1382, %v1378
        %v1891 = vpack.c.b16 %v1387, %v1383
        %v1892 = vpack.c.b16 %v1388, %v1384
        %v1893 = vpack.c.b16 %v1389, %v1385
        %v1894 = vpack.c.b16 %v1390, %v1386
        %v1895 = vpack.c.b16 %v1395, %v1391
        %v1896 = vpack.c.b16 %v1396, %v1392
        %v1897 = vpack.c.b16 %v1397, %v1393
        %v1898 = vpack.c.b16 %v1398, %v1394
        %v1899 = vpack.c.b16 %v1403, %v1399
        %v1900 = vpack.c.b16 %v1404, %v1400
        %v1901 = vpack.c.b16 %v1405, %v1401
        %v1902 = vpack.c.b16 %v1406, %v1402
        %v1903 = vpack.c.b16 %v1411, %v1407
        %v1904 = vpack.c.b16 %v1412, %v1408
        %v1905 = vpack.c.b16 %v1413, %v1409
        %v1906 = vpack.c.b16 %v1414, %v1410
        %v1907 = vpack.c.b16 %v1419, %v1415
        %v1908 = vpack.c.b16 %v1420, %v1416
        %v1909 = vpack.c.b16 %v1421, %v1417
        %v1910 = vpack.c.b16 %v1422, %v1418
        %v1911 = vpack.c.b16 %v1427, %v1423
        %v1912 = vpack.c.b16 %v1428, %v1424
        %v1913 = vpack.c.b16 %v1429, %v1425
        %v1914 = vpack.c.b16 %v1430, %v1426
        %v1915 = vpack.c.b16 %v1435, %v1431
        %v1916 = vpack.c.b16 %v1436, %v1432
        %v1917 = vpack.c.b16 %v1437, %v1433
        %v1918 = vpack.c.b16 %v1438, %v1434
        %v1919 = vpack.c.b16 %v1443, %v1439
        %v1920 = vpack.c.b16 %v1444, %v1440
        %v1921 = vpack.c.b16 %v1445, %v1441
        %v1922 = vpack.c.b16 %v1446, %v1442
        %v1923 = vpack.c.b16 %v1451, %v1447
        %v1924 = vpack.c.b16 %v1452, %v1448
        %v1925 = vpack.c.b16 %v1453, %v1449
        %v1926 = vpack.c.b16 %v1454, %v1450
        %v1927 = vpack.c.b16 %v1459, %v1455
        %v1928 = vpack.c.b16 %v1460, %v1456
        %v1929 = vpack.c.b16 %v1461, %v1457
        %v1930 = vpack.c.b16 %v1462, %v1458
        %v1931 = vpack.c.b16 %v1467, %v1463
        %v1932 = vpack.c.b16 %v1468, %v1464
        %v1933 = vpack.c.b16 %v1469, %v1465
        %v1934 = vpack.c.b16 %v1470, %v1466
        %v1935 = vpack.c.b16 %v1475, %v1471
        %v1936 = vpack.c.b16 %v1476, %v1472
        %v1937 = vpack.c.b16 %v1477, %v1473
        %v1938 = vpack.c.b16 %v1478, %v1474
        %v1939 = vpack.c.b16 %v1483, %v1479
        %v1940 = vpack.c.b16 %v1484, %v1480
        %v1941 = vpack.c.b16 %v1485, %v1481
        %v1942 = vpack.c.b16 %v1486, %v1482
        %v1943 = vpack.c.b16 %v1491, %v1487
        %v1944 = vpack.c.b16 %v1492, %v1488
        %v1945 = vpack.c.b16 %v1493, %v1489
        %v1946 = vpack.c.b16 %v1494, %v1490
        %v1947 = vpack.c.b16 %v1499, %v1495
        %v1948 = vpack.c.b16 %v1500, %v1496
        %v1949 = vpack.c.b16 %v1501, %v1497
        %v1950 = vpack.c.b16 %v1502, %v1498
        %v1951 = vpack.c.b16 %v1507, %v1503
        %v1952 = vpack.c.b16 %v1508, %v1504
        %v1953 = vpack.c.b16 %v1509, %v1505
        %v1954 = vpack.c.b16 %v1510, %v1506
        %v1955 = vpack.c.b16 %v1515, %v1511
        %v1956 = vpack.c.b16 %v1516, %v1512
        %v1957 = vpack.c.b16 %v1517, %v1513
        %v1958 = vpack.c.b16 %v1518, %v1514
        %v1959 = vpack.c.b16 %v1523, %v1519
        %v1960 = vpack.c.b16 %v1524, %v1520
        %v1961 = vpack.c.b16 %v1525, %v1521
        %v1962 = vpack.c.b16 %v1526, %v1522
        %v1963 = vpack.c.b16 %v1531, %v1527
        %v1964 = vpack.c.b16 %v1532, %v1528
        %v1965 = vpack.c.b16 %v1533, %v1529
        %v1966 = vpack.c.b16 %v1534, %v1530
        %v1967 = vpack.c.b16 %v1539, %v1535
        %v1968 = vpack.c.b16 %v1540, %v1536
        %v1969 = vpack.c.b16 %v1541, %v1537
        %v1970 = vpack.c.b16 %v1542, %v1538
        %v1971 = vpack.c.b16 %v1547, %v1543
        %v1972 = vpack.c.b16 %v1548, %v1544
        %v1973 = vpack.c.b16 %v1549, %v1545
        %v1974 = vpack.c.b16 %v1550, %v1546
        %v1975 = vpack.c.b16 %v1555, %v1551
        %v1976 = vpack.c.b16 %v1556, %v1552
        %v1977 = vpack.c.b16 %v1557, %v1553
        %v1978 = vpack.c.b16 %v1558, %v1554
        %v1979 = vpack.c.b16 %v1563, %v1559
        %v1980 = vpack.c.b16 %v1564, %v1560
        %v1981 = vpack.c.b16 %v1565, %v1561
        %v1982 = vpack.c.b16 %v1566, %v1562
        %v1983 = vpack.c.b16 %v1571, %v1567
        %v1984 = vpack.c.b16 %v1572, %v1568
        %v1985 = vpack.c.b16 %v1573, %v1569
        %v1986 = vpack.c.b16 %v1574, %v1570
        %v1987 = vpack.c.b16 %v1579, %v1575
        %v1988 = vpack.c.b16 %v1580, %v1576
        %v1989 = vpack.c.b16 %v1581, %v1577
        %v1990 = vpack.c.b16 %v1582, %v1578
        %v1991 = vpack.c.b16 %v1587, %v1583
        %v1992 = vpack.c.b16 %v1588, %v1584
        %v1993 = vpack.c.b16 %v1589, %v1585
        %v1994 = vpack.c.b16 %v1590, %v1586
        %v1995 = vpack.c.b16 %v1595, %v1591
        %v1996 = vpack.c.b16 %v1596, %v1592
        %v1997 = vpack.c.b16 %v1597, %v1593
        %v1998 = vpack.c.b16 %v1598, %v1594
        %v1999 = vpack.c.b16 %v1603, %v1599
        %v2000 = vpack.c.b16 %v1604, %v1600
        %v2001 = vpack.c.b16 %v1605, %v1601
        %v2002 = vpack.c.b16 %v1606, %v1602
        %v2003 = vpack.c.b16 %v1611, %v1607
        %v2004 = vpack.c.b16 %v1612, %v1608
        %v2005 = vpack.c.b16 %v1613, %v1609
        %v2006 = vpack.c.b16 %v1614, %v1610
        %v2007 = vpack.c.b16 %v1619, %v1615
        %v2008 = vpack.c.b16 %v1620, %v1616
        %v2009 = vpack.c.b16 %v1621, %v1617
        %v2010 = vpack.c.b16 %v1622, %v1618
        %v2011 = vpack.c.b16 %v1627, %v1623
        %v2012 = vpack.c.b16 %v1628, %v1624
        %v2013 = vpack.c.b16 %v1629, %v1625
        %v2014 = vpack.c.b16 %v1630, %v1626
        %v2015 = vpack.c.b16 %v1635, %v1631
        %v2016 = vpack.c.b16 %v1636, %v1632
        %v2017 = vpack.c.b16 %v1637, %v1633
        %v2018 = vpack.c.b16 %v1638, %v1634
        %v2019 = vpack.c.b16 %v1643, %v1639
        %v2020 = vpack.c.b16 %v1644, %v1640
        %v2021 = vpack.c.b16 %v1645, %v1641
        %v2022 = vpack.c.b16 %v1646, %v1642
        %v2023 = vpack.c.b16 %v1651, %v1647
        %v2024 = vpack.c.b16 %v1652, %v1648
        %v2025 = vpack.c.b16 %v1653, %v1649
        %v2026 = vpack.c.b16 %v1654, %v1650
        %v2027 = vpack.c.b16 %v1659, %v1655
        %v2028 = vpack.c.b16 %v1660, %v1656
        %v2029 = vpack.c.b16 %v1661, %v1657
        %v2030 = vpack.c.b16 %v1662, %v1658
        %v2031 = vpack.c.b16 %v1667, %v1663
        %v2032 = vpack.c.b16 %v1668, %v1664
        %v2033 = vpack.c.b16 %v1669, %v1665
        %v2034 = vpack.c.b16 %v1670, %v1666
        %v2035 = vpack.c.b16 %v1675, %v1671
        %v2036 = vpack.c.b16 %v1676, %v1672
        %v2037 = vpack.c.b16 %v1677, %v1673
        %v2038 = vpack.c.b16 %v1678, %v1674
        %v2039 = vpack.c.b16 %v1683, %v1679
        %v2040 = vpack.c.b16 %v1684, %v1680
        %v2041 = vpack.c.b16 %v1685, %v1681
        %v2042 = vpack.c.b16 %v1686, %v1682
        %v2043 = vpack.c.b16 %v1691, %v1687
        %v2044 = vpack.c.b16 %v1692, %v1688
        %v2045 = vpack.c.b16 %v1693, %v1689
        %v2046 = vpack.c.b16 %v1694, %v1690
        %v2047 = vpack.c.b16 %v1699, %v1695
        %v2048 = vpack.c.b16 %v1700, %v1696
        %v2049 = vpack.c.b16 %v1701, %v1697
        %v2050 = vpack.c.b16 %v1702, %v1698
        %v2051 = vpack.c.b16 %v1707, %v1703
        %v2052 = vpack.c.b16 %v1708, %v1704
        %v2053 = vpack.c.b16 %v1709, %v1705
        %v2054 = vpack.c.b16 %v1710, %v1706
        %v2055 = vpack.c.b16 %v1715, %v1711
        %v2056 = vpack.c.b16 %v1716, %v1712
        %v2057 = vpack.c.b16 %v1717, %v1713
        %v2058 = vpack.c.b16 %v1718, %v1714
        %v2059 = vpack.c.b16 %v1723, %v1719
        %v2060 = vpack.c.b16 %v1724, %v1720
        %v2061 = vpack.c.b16 %v1725, %v1721
        %v2062 = vpack.c.b16 %v1726, %v1722
        %v2063 = vpack.c.b16 %v1731, %v1727
        %v2064 = vpack.c.b16 %v1732, %v1728
        %v2065 = vpack.c.b16 %v1733, %v1729
        %v2066 = vpack.c.b16 %v1734, %v1730
        %v2067 = vpack.c.b16 %v1739, %v1735
        %v2068 = vpack.c.b16 %v1740, %v1736
        %v2069 = vpack.c.b16 %v1741, %v1737
        %v2070 = vpack.c.b16 %v1742, %v1738
        %v2071 = vpack.c.b16 %v1747, %v1743
        %v2072 = vpack.c.b16 %v1748, %v1744
        %v2073 = vpack.c.b16 %v1749, %v1745
        %v2074 = vpack.c.b16 %v1750, %v1746
        %v2075 = vpack.c.b16 %v1755, %v1751
        %v2076 = vpack.c.b16 %v1756, %v1752
        %v2077 = vpack.c.b16 %v1757, %v1753
        %v2078 = vpack.c.b16 %v1758, %v1754
        %v2079 = vpack.c.b16 %v1763, %v1759
        %v2080 = vpack.c.b16 %v1764, %v1760
        %v2081 = vpack.c.b16 %v1765, %v1761
        %v2082 = vpack.c.b16 %v1766, %v1762
        %v2083 = vpack.c.b16 %v1771, %v1767
        %v2084 = vpack.c.b16 %v1772, %v1768
        %v2085 = vpack.c.b16 %v1773, %v1769
        %v2086 = vpack.c.b16 %v1774, %v1770
        %v2087 = vpack.c.b16 %v1779, %v1775
        %v2088 = vpack.c.b16 %v1780, %v1776
        %v2089 = vpack.c.b16 %v1781, %v1777
        %v2090 = vpack.c.b16 %v1782, %v1778
        %v2091 = vpack.c.b16 %v1787, %v1783
        %v2092 = vpack.c.b16 %v1788, %v1784
        %v2093 = vpack.c.b16 %v1789, %v1785
        %v2094 = vpack.c.b16 %v1790, %v1786
        %v2095 = vpack.c.b16 %v1795, %v1791
        %v2096 = vpack.c.b16 %v1796, %v1792
        %v2097 = vpack.c.b16 %v1797, %v1793
        %v2098 = vpack.c.b16 %v1798, %v1794
        %v2099 = vpack.c.b16 %v1803, %v1799
        %v2100 = vpack.c.b16 %v1804, %v1800
        %v2101 = vpack.c.b16 %v1805, %v1801
        %v2102 = vpack.c.b16 %v1806, %v1802
        %v2103 = vpack.c.b16 %v1811, %v1807
        %v2104 = vpack.c.b16 %v1812, %v1808
        %v2105 = vpack.c.b16 %v1813, %v1809
        %v2106 = vpack.c.b16 %v1814, %v1810
        %v2107 = vpack.c.b16 %v1819, %v1815
        %v2108 = vpack.c.b16 %v1820, %v1816
        %v2109 = vpack.c.b16 %v1821, %v1817
        %v2110 = vpack.c.b16 %v1822, %v1818
        %2399 = vmatpush.bf16.msra.mxu0 %v1851
        %2400 = vmatpush.bf16.msra.mxu0 %v1847
        %2401 = vmatpush.bf16.msra.mxu0 %v1843
        %2402 = vmatpush.bf16.msra.mxu0 %v1839
        %2403 = vmatpush.bf16.msra.mxu0 %v1835
        %2404 = vmatpush.bf16.msra.mxu0 %v1831
        %2405 = vmatpush.bf16.msra.mxu0 %v1827
        %2406 = vmatpush.bf16.msra.mxu0 %v1823
        %2407 = vmatmul.bf16.gmra.mxu0 %v887
        %v2408 = vpop.f32.mrf.mxu0
        %v2409 = vadd.f32 0.0, %v2408
        %v2410 = vpop.f32.mrf.mxu0
        %v2411 = vadd.f32 0.0, %v2410
        %2412 = vmatmul.bf16.gmra.mxu0 %v896
        %v2413 = vpop.f32.mrf.mxu0
        %v2414 = vadd.f32 0.0, %v2413
        %v2415 = vpop.f32.mrf.mxu0
        %v2416 = vadd.f32 0.0, %v2415
        %2417 = vmatmul.bf16.gmra.mxu0 %v905
        %v2418 = vpop.f32.mrf.mxu0
        %v2419 = vadd.f32 0.0, %v2418
        %v2420 = vpop.f32.mrf.mxu0
        %v2421 = vadd.f32 0.0, %v2420
        %2422 = vmatmul.bf16.gmra.mxu0 %v914
        %v2423 = vpop.f32.mrf.mxu0
        %v2424 = vadd.f32 0.0, %v2423
        %v2425 = vpop.f32.mrf.mxu0
        %2426 = vdwg.mxu0
        %2427 = vmatpush.bf16.msra.mxu0 %v1883
        %2428 = vmatpush.bf16.msra.mxu0 %v1879
        %2429 = vmatpush.bf16.msra.mxu0 %v1875
        %2430 = vmatpush.bf16.msra.mxu0 %v1871
        %2431 = vmatpush.bf16.msra.mxu0 %v1867
        %2432 = vmatpush.bf16.msra.mxu0 %v1863
        %2433 = vmatpush.bf16.msra.mxu0 %v1859
        %2434 = vmatpush.bf16.msra.mxu0 %v1855
        %2435 = vmatmul.bf16.gmra.mxu0 %v888
        %v2436 = vpop.f32.mrf.mxu0
        %v2437 = vadd.f32 %v2409, %v2436
        %v2438 = vpop.f32.mrf.mxu0
        %v2439 = vadd.f32 %v2411, %v2438
        %2440 = vmatmul.bf16.gmra.mxu0 %v897
        %v2441 = vpop.f32.mrf.mxu0
        %v2442 = vadd.f32 %v2414, %v2441
        %v2443 = vpop.f32.mrf.mxu0
        %v2444 = vadd.f32 %v2416, %v2443
        %2445 = vmatmul.bf16.gmra.mxu0 %v906
        %v2446 = vpop.f32.mrf.mxu0
        %v2447 = vadd.f32 %v2419, %v2446
        %v2448 = vpop.f32.mrf.mxu0
        %v2449 = vadd.f32 %v2421, %v2448
        %2450 = vmatmul.bf16.gmra.mxu0 %v915
        %v2451 = vpop.f32.mrf.mxu0
        %v2452 = vadd.f32 %v2424, %v2451
        %v2453 = vpop.f32.mrf.mxu0
        %2454 = vdwg.mxu0
        %2455 = vmatpush.bf16.msra.mxu0 %v1915
        %2456 = vmatpush.bf16.msra.mxu0 %v1911
        %2457 = vmatpush.bf16.msra.mxu0 %v1907
        %2458 = vmatpush.bf16.msra.mxu0 %v1903
        %2459 = vmatpush.bf16.msra.mxu0 %v1899
        %2460 = vmatpush.bf16.msra.mxu0 %v1895
        %2461 = vmatpush.bf16.msra.mxu0 %v1891
        %2462 = vmatpush.bf16.msra.mxu0 %v1887
        %2463 = vmatmul.bf16.gmra.mxu0 %v889
        %v2464 = vpop.f32.mrf.mxu0
        %v2465 = vadd.f32 %v2437, %v2464
        %v2466 = vpop.f32.mrf.mxu0
        %v2467 = vadd.f32 %v2439, %v2466
        %2468 = vmatmul.bf16.gmra.mxu0 %v898
        %v2469 = vpop.f32.mrf.mxu0
        %v2470 = vadd.f32 %v2442, %v2469
        %v2471 = vpop.f32.mrf.mxu0
        %v2472 = vadd.f32 %v2444, %v2471
        %2473 = vmatmul.bf16.gmra.mxu0 %v907
        %v2474 = vpop.f32.mrf.mxu0
        %v2475 = vadd.f32 %v2447, %v2474
        %v2476 = vpop.f32.mrf.mxu0
        %v2477 = vadd.f32 %v2449, %v2476
        %2478 = vmatmul.bf16.gmra.mxu0 %v916
        %v2479 = vpop.f32.mrf.mxu0
        %v2480 = vadd.f32 %v2452, %v2479
        %v2481 = vpop.f32.mrf.mxu0
        %2482 = vdwg.mxu0
        %2483 = vmatpush.bf16.msra.mxu0 %v1947
        %2484 = vmatpush.bf16.msra.mxu0 %v1943
        %2485 = vmatpush.bf16.msra.mxu0 %v1939
        %2486 = vmatpush.bf16.msra.mxu0 %v1935
        %2487 = vmatpush.bf16.msra.mxu0 %v1931
        %2488 = vmatpush.bf16.msra.mxu0 %v1927
        %2489 = vmatpush.bf16.msra.mxu0 %v1923
        %2490 = vmatpush.bf16.msra.mxu0 %v1919
        %2491 = vmatmul.bf16.gmra.mxu0 %v890
        %v2492 = vpop.f32.mrf.mxu0
        %v2493 = vadd.f32 %v2465, %v2492
        %v2494 = vpop.f32.mrf.mxu0
        %v2495 = vadd.f32 %v2467, %v2494
        %2496 = vmatmul.bf16.gmra.mxu0 %v899
        %v2497 = vpop.f32.mrf.mxu0
        %v2498 = vadd.f32 %v2470, %v2497
        %v2499 = vpop.f32.mrf.mxu0
        %v2500 = vadd.f32 %v2472, %v2499
        %2501 = vmatmul.bf16.gmra.mxu0 %v908
        %v2502 = vpop.f32.mrf.mxu0
        %v2503 = vadd.f32 %v2475, %v2502
        %v2504 = vpop.f32.mrf.mxu0
        %v2505 = vadd.f32 %v2477, %v2504
        %2506 = vmatmul.bf16.gmra.mxu0 %v917
        %v2507 = vpop.f32.mrf.mxu0
        %v2508 = vadd.f32 %v2480, %v2507
        %v2509 = vpop.f32.mrf.mxu0
        %2510 = vdwg.mxu0
        %2511 = vmatpush.bf16.msra.mxu0 %v1979
        %2512 = vmatpush.bf16.msra.mxu0 %v1975
        %2513 = vmatpush.bf16.msra.mxu0 %v1971
        %2514 = vmatpush.bf16.msra.mxu0 %v1967
        %2515 = vmatpush.bf16.msra.mxu0 %v1963
        %2516 = vmatpush.bf16.msra.mxu0 %v1959
        %2517 = vmatpush.bf16.msra.mxu0 %v1955
        %2518 = vmatpush.bf16.msra.mxu0 %v1951
        %2519 = vmatmul.bf16.gmra.mxu0 %v891
        %v2520 = vpop.f32.mrf.mxu0
        %v2521 = vadd.f32 %v2493, %v2520
        %v2522 = vpop.f32.mrf.mxu0
        %v2523 = vadd.f32 %v2495, %v2522
        %2524 = vmatmul.bf16.gmra.mxu0 %v900
        %v2525 = vpop.f32.mrf.mxu0
        %v2526 = vadd.f32 %v2498, %v2525
        %v2527 = vpop.f32.mrf.mxu0
        %v2528 = vadd.f32 %v2500, %v2527
        %2529 = vmatmul.bf16.gmra.mxu0 %v909
        %v2530 = vpop.f32.mrf.mxu0
        %v2531 = vadd.f32 %v2503, %v2530
        %v2532 = vpop.f32.mrf.mxu0
        %v2533 = vadd.f32 %v2505, %v2532
        %2534 = vmatmul.bf16.gmra.mxu0 %v918
        %v2535 = vpop.f32.mrf.mxu0
        %v2536 = vadd.f32 %v2508, %v2535
        %v2537 = vpop.f32.mrf.mxu0
        %2538 = vdwg.mxu0
        %2539 = vmatpush.bf16.msra.mxu0 %v2011
        %2540 = vmatpush.bf16.msra.mxu0 %v2007
        %2541 = vmatpush.bf16.msra.mxu0 %v2003
        %2542 = vmatpush.bf16.msra.mxu0 %v1999
        %2543 = vmatpush.bf16.msra.mxu0 %v1995
        %2544 = vmatpush.bf16.msra.mxu0 %v1991
        %2545 = vmatpush.bf16.msra.mxu0 %v1987
        %2546 = vmatpush.bf16.msra.mxu0 %v1983
        %2547 = vmatmul.bf16.gmra.mxu0 %v892
        %v2548 = vpop.f32.mrf.mxu0
        %v2549 = vadd.f32 %v2521, %v2548
        %v2550 = vpop.f32.mrf.mxu0
        %v2551 = vadd.f32 %v2523, %v2550
        %2552 = vmatmul.bf16.gmra.mxu0 %v901
        %v2553 = vpop.f32.mrf.mxu0
        %v2554 = vadd.f32 %v2526, %v2553
        %v2555 = vpop.f32.mrf.mxu0
        %v2556 = vadd.f32 %v2528, %v2555
        %2557 = vmatmul.bf16.gmra.mxu0 %v910
        %v2558 = vpop.f32.mrf.mxu0
        %v2559 = vadd.f32 %v2531, %v2558
        %v2560 = vpop.f32.mrf.mxu0
        %v2561 = vadd.f32 %v2533, %v2560
        %2562 = vmatmul.bf16.gmra.mxu0 %v919
        %v2563 = vpop.f32.mrf.mxu0
        %v2564 = vadd.f32 %v2536, %v2563
        %v2565 = vpop.f32.mrf.mxu0
        %2566 = vdwg.mxu0
        %2567 = vmatpush.bf16.msra.mxu0 %v2043
        %2568 = vmatpush.bf16.msra.mxu0 %v2039
        %2569 = vmatpush.bf16.msra.mxu0 %v2035
        %2570 = vmatpush.bf16.msra.mxu0 %v2031
        %2571 = vmatpush.bf16.msra.mxu0 %v2027
        %2572 = vmatpush.bf16.msra.mxu0 %v2023
        %2573 = vmatpush.bf16.msra.mxu0 %v2019
        %2574 = vmatpush.bf16.msra.mxu0 %v2015
        %2575 = vmatmul.bf16.gmra.mxu0 %v893
        %v2576 = vpop.f32.mrf.mxu0
        %v2577 = vadd.f32 %v2549, %v2576
        %v2578 = vpop.f32.mrf.mxu0
        %v2579 = vadd.f32 %v2551, %v2578
        %2580 = vmatmul.bf16.gmra.mxu0 %v902
        %v2581 = vpop.f32.mrf.mxu0
        %v2582 = vadd.f32 %v2554, %v2581
        %v2583 = vpop.f32.mrf.mxu0
        %v2584 = vadd.f32 %v2556, %v2583
        %2585 = vmatmul.bf16.gmra.mxu0 %v911
        %v2586 = vpop.f32.mrf.mxu0
        %v2587 = vadd.f32 %v2559, %v2586
        %v2588 = vpop.f32.mrf.mxu0
        %v2589 = vadd.f32 %v2561, %v2588
        %2590 = vmatmul.bf16.gmra.mxu0 %v920
        %v2591 = vpop.f32.mrf.mxu0
        %v2592 = vadd.f32 %v2564, %v2591
        %v2593 = vpop.f32.mrf.mxu0
        %2594 = vdwg.mxu0
        %2595 = vmatpush.bf16.msra.mxu0 %v2075
        %2596 = vmatpush.bf16.msra.mxu0 %v2071
        %2597 = vmatpush.bf16.msra.mxu0 %v2067
        %2598 = vmatpush.bf16.msra.mxu0 %v2063
        %2599 = vmatpush.bf16.msra.mxu0 %v2059
        %2600 = vmatpush.bf16.msra.mxu0 %v2055
        %2601 = vmatpush.bf16.msra.mxu0 %v2051
        %2602 = vmatpush.bf16.msra.mxu0 %v2047
        %2603 = vmatmul.bf16.gmra.mxu0 %v894
        %v2604 = vpop.f32.mrf.mxu0
        %v2605 = vadd.f32 %v2577, %v2604
        %v2606 = vpop.f32.mrf.mxu0
        %v2607 = vadd.f32 %v2579, %v2606
        %2608 = vmatmul.bf16.gmra.mxu0 %v903
        %v2609 = vpop.f32.mrf.mxu0
        %v2610 = vadd.f32 %v2582, %v2609
        %v2611 = vpop.f32.mrf.mxu0
        %v2612 = vadd.f32 %v2584, %v2611
        %2613 = vmatmul.bf16.gmra.mxu0 %v912
        %v2614 = vpop.f32.mrf.mxu0
        %v2615 = vadd.f32 %v2587, %v2614
        %v2616 = vpop.f32.mrf.mxu0
        %v2617 = vadd.f32 %v2589, %v2616
        %2618 = vmatmul.bf16.gmra.mxu0 %v921
        %v2619 = vpop.f32.mrf.mxu0
        %v2620 = vadd.f32 %v2592, %v2619
        %v2621 = vpop.f32.mrf.mxu0
        %2622 = vdwg.mxu0
        %2623 = vmatpush.bf16.msra.mxu0 %v2107
        %2624 = vmatpush.bf16.msra.mxu0 %v2103
        %2625 = vmatpush.bf16.msra.mxu0 %v2099
        %2626 = vmatpush.bf16.msra.mxu0 %v2095
        %2627 = vmatpush.bf16.msra.mxu0 %v2091
        %2628 = vmatpush.bf16.msra.mxu0 %v2087
        %2629 = vmatpush.bf16.msra.mxu0 %v2083
        %2630 = vmatpush.bf16.msra.mxu0 %v2079
        %2631 = vmatmul.bf16.gmra.mxu0 %v895
        %v2632 = vpop.f32.mrf.mxu0
        %v2633 = vadd.f32 %v2605, %v2632
        %v2634 = vpop.f32.mrf.mxu0
        %v2635 = vadd.f32 %v2607, %v2634
        %2636 = vmatmul.bf16.gmra.mxu0 %v904
        %v2637 = vpop.f32.mrf.mxu0
        %v2638 = vadd.f32 %v2610, %v2637
        %v2639 = vpop.f32.mrf.mxu0
        %v2640 = vadd.f32 %v2612, %v2639
        %2641 = vmatmul.bf16.gmra.mxu0 %v913
        %v2642 = vpop.f32.mrf.mxu0
        %v2643 = vadd.f32 %v2615, %v2642
        %v2644 = vpop.f32.mrf.mxu0
        %v2645 = vadd.f32 %v2617, %v2644
        %2646 = vmatmul.bf16.gmra.mxu0 %v922
        %v2647 = vpop.f32.mrf.mxu0
        %v2648 = vadd.f32 %v2620, %v2647
        %v2649 = vpop.f32.mrf.mxu0
        %2650 = vdwg.mxu0
        %2651 = vmatpush.bf16.msra.mxu0 %v1852
        %2652 = vmatpush.bf16.msra.mxu0 %v1848
        %2653 = vmatpush.bf16.msra.mxu0 %v1844
        %2654 = vmatpush.bf16.msra.mxu0 %v1840
        %2655 = vmatpush.bf16.msra.mxu0 %v1836
        %2656 = vmatpush.bf16.msra.mxu0 %v1832
        %2657 = vmatpush.bf16.msra.mxu0 %v1828
        %2658 = vmatpush.bf16.msra.mxu0 %v1824
        %2659 = vmatmul.bf16.gmra.mxu0 %v887
        %v2660 = vpop.f32.mrf.mxu0
        %v2661 = vadd.f32 0.0, %v2660
        %v2662 = vpop.f32.mrf.mxu0
        %v2663 = vadd.f32 0.0, %v2662
        %2664 = vmatmul.bf16.gmra.mxu0 %v896
        %v2665 = vpop.f32.mrf.mxu0
        %v2666 = vadd.f32 0.0, %v2665
        %v2667 = vpop.f32.mrf.mxu0
        %v2668 = vadd.f32 0.0, %v2667
        %2669 = vmatmul.bf16.gmra.mxu0 %v905
        %v2670 = vpop.f32.mrf.mxu0
        %v2671 = vadd.f32 0.0, %v2670
        %v2672 = vpop.f32.mrf.mxu0
        %v2673 = vadd.f32 0.0, %v2672
        %2674 = vmatmul.bf16.gmra.mxu0 %v914
        %v2675 = vpop.f32.mrf.mxu0
        %v2676 = vadd.f32 0.0, %v2675
        %v2677 = vpop.f32.mrf.mxu0
        %2678 = vdwg.mxu0
        %2679 = vmatpush.bf16.msra.mxu0 %v1884
        %2680 = vmatpush.bf16.msra.mxu0 %v1880
        %2681 = vmatpush.bf16.msra.mxu0 %v1876
        %2682 = vmatpush.bf16.msra.mxu0 %v1872
        %2683 = vmatpush.bf16.msra.mxu0 %v1868
        %2684 = vmatpush.bf16.msra.mxu0 %v1864
        %2685 = vmatpush.bf16.msra.mxu0 %v1860
        %2686 = vmatpush.bf16.msra.mxu0 %v1856
        %2687 = vmatmul.bf16.gmra.mxu0 %v888
        %v2688 = vpop.f32.mrf.mxu0
        %v2689 = vadd.f32 %v2661, %v2688
        %v2690 = vpop.f32.mrf.mxu0
        %v2691 = vadd.f32 %v2663, %v2690
        %2692 = vmatmul.bf16.gmra.mxu0 %v897
        %v2693 = vpop.f32.mrf.mxu0
        %v2694 = vadd.f32 %v2666, %v2693
        %v2695 = vpop.f32.mrf.mxu0
        %v2696 = vadd.f32 %v2668, %v2695
        %2697 = vmatmul.bf16.gmra.mxu0 %v906
        %v2698 = vpop.f32.mrf.mxu0
        %v2699 = vadd.f32 %v2671, %v2698
        %v2700 = vpop.f32.mrf.mxu0
        %v2701 = vadd.f32 %v2673, %v2700
        %2702 = vmatmul.bf16.gmra.mxu0 %v915
        %v2703 = vpop.f32.mrf.mxu0
        %v2704 = vadd.f32 %v2676, %v2703
        %v2705 = vpop.f32.mrf.mxu0
        %2706 = vdwg.mxu0
        %2707 = vmatpush.bf16.msra.mxu0 %v1916
        %2708 = vmatpush.bf16.msra.mxu0 %v1912
        %2709 = vmatpush.bf16.msra.mxu0 %v1908
        %2710 = vmatpush.bf16.msra.mxu0 %v1904
        %2711 = vmatpush.bf16.msra.mxu0 %v1900
        %2712 = vmatpush.bf16.msra.mxu0 %v1896
        %2713 = vmatpush.bf16.msra.mxu0 %v1892
        %2714 = vmatpush.bf16.msra.mxu0 %v1888
        %2715 = vmatmul.bf16.gmra.mxu0 %v889
        %v2716 = vpop.f32.mrf.mxu0
        %v2717 = vadd.f32 %v2689, %v2716
        %v2718 = vpop.f32.mrf.mxu0
        %v2719 = vadd.f32 %v2691, %v2718
        %2720 = vmatmul.bf16.gmra.mxu0 %v898
        %v2721 = vpop.f32.mrf.mxu0
        %v2722 = vadd.f32 %v2694, %v2721
        %v2723 = vpop.f32.mrf.mxu0
        %v2724 = vadd.f32 %v2696, %v2723
        %2725 = vmatmul.bf16.gmra.mxu0 %v907
        %v2726 = vpop.f32.mrf.mxu0
        %v2727 = vadd.f32 %v2699, %v2726
        %v2728 = vpop.f32.mrf.mxu0
        %v2729 = vadd.f32 %v2701, %v2728
        %2730 = vmatmul.bf16.gmra.mxu0 %v916
        %v2731 = vpop.f32.mrf.mxu0
        %v2732 = vadd.f32 %v2704, %v2731
        %v2733 = vpop.f32.mrf.mxu0
        %2734 = vdwg.mxu0
        %2735 = vmatpush.bf16.msra.mxu0 %v1948
        %2736 = vmatpush.bf16.msra.mxu0 %v1944
        %2737 = vmatpush.bf16.msra.mxu0 %v1940
        %2738 = vmatpush.bf16.msra.mxu0 %v1936
        %2739 = vmatpush.bf16.msra.mxu0 %v1932
        %2740 = vmatpush.bf16.msra.mxu0 %v1928
        %2741 = vmatpush.bf16.msra.mxu0 %v1924
        %2742 = vmatpush.bf16.msra.mxu0 %v1920
        %2743 = vmatmul.bf16.gmra.mxu0 %v890
        %v2744 = vpop.f32.mrf.mxu0
        %v2745 = vadd.f32 %v2717, %v2744
        %v2746 = vpop.f32.mrf.mxu0
        %v2747 = vadd.f32 %v2719, %v2746
        %2748 = vmatmul.bf16.gmra.mxu0 %v899
        %v2749 = vpop.f32.mrf.mxu0
        %v2750 = vadd.f32 %v2722, %v2749
        %v2751 = vpop.f32.mrf.mxu0
        %v2752 = vadd.f32 %v2724, %v2751
        %2753 = vmatmul.bf16.gmra.mxu0 %v908
        %v2754 = vpop.f32.mrf.mxu0
        %v2755 = vadd.f32 %v2727, %v2754
        %v2756 = vpop.f32.mrf.mxu0
        %v2757 = vadd.f32 %v2729, %v2756
        %2758 = vmatmul.bf16.gmra.mxu0 %v917
        %v2759 = vpop.f32.mrf.mxu0
        %v2760 = vadd.f32 %v2732, %v2759
        %v2761 = vpop.f32.mrf.mxu0
        %2762 = vdwg.mxu0
        %2763 = vmatpush.bf16.msra.mxu0 %v1980
        %2764 = vmatpush.bf16.msra.mxu0 %v1976
        %2765 = vmatpush.bf16.msra.mxu0 %v1972
        %2766 = vmatpush.bf16.msra.mxu0 %v1968
        %2767 = vmatpush.bf16.msra.mxu0 %v1964
        %2768 = vmatpush.bf16.msra.mxu0 %v1960
        %2769 = vmatpush.bf16.msra.mxu0 %v1956
        %2770 = vmatpush.bf16.msra.mxu0 %v1952
        %2771 = vmatmul.bf16.gmra.mxu0 %v891
        %v2772 = vpop.f32.mrf.mxu0
        %v2773 = vadd.f32 %v2745, %v2772
        %v2774 = vpop.f32.mrf.mxu0
        %v2775 = vadd.f32 %v2747, %v2774
        %2776 = vmatmul.bf16.gmra.mxu0 %v900
        %v2777 = vpop.f32.mrf.mxu0
        %v2778 = vadd.f32 %v2750, %v2777
        %v2779 = vpop.f32.mrf.mxu0
        %v2780 = vadd.f32 %v2752, %v2779
        %2781 = vmatmul.bf16.gmra.mxu0 %v909
        %v2782 = vpop.f32.mrf.mxu0
        %v2783 = vadd.f32 %v2755, %v2782
        %v2784 = vpop.f32.mrf.mxu0
        %v2785 = vadd.f32 %v2757, %v2784
        %2786 = vmatmul.bf16.gmra.mxu0 %v918
        %v2787 = vpop.f32.mrf.mxu0
        %v2788 = vadd.f32 %v2760, %v2787
        %v2789 = vpop.f32.mrf.mxu0
        %2790 = vdwg.mxu0
        %2791 = vmatpush.bf16.msra.mxu0 %v2012
        %2792 = vmatpush.bf16.msra.mxu0 %v2008
        %2793 = vmatpush.bf16.msra.mxu0 %v2004
        %2794 = vmatpush.bf16.msra.mxu0 %v2000
        %2795 = vmatpush.bf16.msra.mxu0 %v1996
        %2796 = vmatpush.bf16.msra.mxu0 %v1992
        %2797 = vmatpush.bf16.msra.mxu0 %v1988
        %2798 = vmatpush.bf16.msra.mxu0 %v1984
        %2799 = vmatmul.bf16.gmra.mxu0 %v892
        %v2800 = vpop.f32.mrf.mxu0
        %v2801 = vadd.f32 %v2773, %v2800
        %v2802 = vpop.f32.mrf.mxu0
        %v2803 = vadd.f32 %v2775, %v2802
        %2804 = vmatmul.bf16.gmra.mxu0 %v901
        %v2805 = vpop.f32.mrf.mxu0
        %v2806 = vadd.f32 %v2778, %v2805
        %v2807 = vpop.f32.mrf.mxu0
        %v2808 = vadd.f32 %v2780, %v2807
        %2809 = vmatmul.bf16.gmra.mxu0 %v910
        %v2810 = vpop.f32.mrf.mxu0
        %v2811 = vadd.f32 %v2783, %v2810
        %v2812 = vpop.f32.mrf.mxu0
        %v2813 = vadd.f32 %v2785, %v2812
        %2814 = vmatmul.bf16.gmra.mxu0 %v919
        %v2815 = vpop.f32.mrf.mxu0
        %v2816 = vadd.f32 %v2788, %v2815
        %v2817 = vpop.f32.mrf.mxu0
        %2818 = vdwg.mxu0
        %2819 = vmatpush.bf16.msra.mxu0 %v2044
        %2820 = vmatpush.bf16.msra.mxu0 %v2040
        %2821 = vmatpush.bf16.msra.mxu0 %v2036
        %2822 = vmatpush.bf16.msra.mxu0 %v2032
        %2823 = vmatpush.bf16.msra.mxu0 %v2028
        %2824 = vmatpush.bf16.msra.mxu0 %v2024
        %2825 = vmatpush.bf16.msra.mxu0 %v2020
        %2826 = vmatpush.bf16.msra.mxu0 %v2016
        %2827 = vmatmul.bf16.gmra.mxu0 %v893
        %v2828 = vpop.f32.mrf.mxu0
        %v2829 = vadd.f32 %v2801, %v2828
        %v2830 = vpop.f32.mrf.mxu0
        %v2831 = vadd.f32 %v2803, %v2830
        %2832 = vmatmul.bf16.gmra.mxu0 %v902
        %v2833 = vpop.f32.mrf.mxu0
        %v2834 = vadd.f32 %v2806, %v2833
        %v2835 = vpop.f32.mrf.mxu0
        %v2836 = vadd.f32 %v2808, %v2835
        %2837 = vmatmul.bf16.gmra.mxu0 %v911
        %v2838 = vpop.f32.mrf.mxu0
        %v2839 = vadd.f32 %v2811, %v2838
        %v2840 = vpop.f32.mrf.mxu0
        %v2841 = vadd.f32 %v2813, %v2840
        %2842 = vmatmul.bf16.gmra.mxu0 %v920
        %v2843 = vpop.f32.mrf.mxu0
        %v2844 = vadd.f32 %v2816, %v2843
        %v2845 = vpop.f32.mrf.mxu0
        %2846 = vdwg.mxu0
        %2847 = vmatpush.bf16.msra.mxu0 %v2076
        %2848 = vmatpush.bf16.msra.mxu0 %v2072
        %2849 = vmatpush.bf16.msra.mxu0 %v2068
        %2850 = vmatpush.bf16.msra.mxu0 %v2064
        %2851 = vmatpush.bf16.msra.mxu0 %v2060
        %2852 = vmatpush.bf16.msra.mxu0 %v2056
        %2853 = vmatpush.bf16.msra.mxu0 %v2052
        %2854 = vmatpush.bf16.msra.mxu0 %v2048
        %2855 = vmatmul.bf16.gmra.mxu0 %v894
        %v2856 = vpop.f32.mrf.mxu0
        %v2857 = vadd.f32 %v2829, %v2856
        %v2858 = vpop.f32.mrf.mxu0
        %v2859 = vadd.f32 %v2831, %v2858
        %2860 = vmatmul.bf16.gmra.mxu0 %v903
        %v2861 = vpop.f32.mrf.mxu0
        %v2862 = vadd.f32 %v2834, %v2861
        %v2863 = vpop.f32.mrf.mxu0
        %v2864 = vadd.f32 %v2836, %v2863
        %2865 = vmatmul.bf16.gmra.mxu0 %v912
        %v2866 = vpop.f32.mrf.mxu0
        %v2867 = vadd.f32 %v2839, %v2866
        %v2868 = vpop.f32.mrf.mxu0
        %v2869 = vadd.f32 %v2841, %v2868
        %2870 = vmatmul.bf16.gmra.mxu0 %v921
        %v2871 = vpop.f32.mrf.mxu0
        %v2872 = vadd.f32 %v2844, %v2871
        %v2873 = vpop.f32.mrf.mxu0
        %2874 = vdwg.mxu0
        %2875 = vmatpush.bf16.msra.mxu0 %v2108
        %2876 = vmatpush.bf16.msra.mxu0 %v2104
        %2877 = vmatpush.bf16.msra.mxu0 %v2100
        %2878 = vmatpush.bf16.msra.mxu0 %v2096
        %2879 = vmatpush.bf16.msra.mxu0 %v2092
        %2880 = vmatpush.bf16.msra.mxu0 %v2088
        %2881 = vmatpush.bf16.msra.mxu0 %v2084
        %2882 = vmatpush.bf16.msra.mxu0 %v2080
        %2883 = vmatmul.bf16.gmra.mxu0 %v895
        %v2884 = vpop.f32.mrf.mxu0
        %v2885 = vadd.f32 %v2857, %v2884
        %v2886 = vpop.f32.mrf.mxu0
        %v2887 = vadd.f32 %v2859, %v2886
        %2888 = vmatmul.bf16.gmra.mxu0 %v904
        %v2889 = vpop.f32.mrf.mxu0
        %v2890 = vadd.f32 %v2862, %v2889
        %v2891 = vpop.f32.mrf.mxu0
        %v2892 = vadd.f32 %v2864, %v2891
        %2893 = vmatmul.bf16.gmra.mxu0 %v913
        %v2894 = vpop.f32.mrf.mxu0
        %v2895 = vadd.f32 %v2867, %v2894
        %v2896 = vpop.f32.mrf.mxu0
        %v2897 = vadd.f32 %v2869, %v2896
        %2898 = vmatmul.bf16.gmra.mxu0 %v922
        %v2899 = vpop.f32.mrf.mxu0
        %v2900 = vadd.f32 %v2872, %v2899
        %v2901 = vpop.f32.mrf.mxu0
        %2902 = vdwg.mxu0
        %2903 = vmatpush.bf16.msra.mxu0 %v1853
        %2904 = vmatpush.bf16.msra.mxu0 %v1849
        %2905 = vmatpush.bf16.msra.mxu0 %v1845
        %2906 = vmatpush.bf16.msra.mxu0 %v1841
        %2907 = vmatpush.bf16.msra.mxu0 %v1837
        %2908 = vmatpush.bf16.msra.mxu0 %v1833
        %2909 = vmatpush.bf16.msra.mxu0 %v1829
        %2910 = vmatpush.bf16.msra.mxu0 %v1825
        %2911 = vmatmul.bf16.gmra.mxu0 %v887
        %v2912 = vpop.f32.mrf.mxu0
        %v2913 = vadd.f32 0.0, %v2912
        %v2914 = vpop.f32.mrf.mxu0
        %v2915 = vadd.f32 0.0, %v2914
        %2916 = vmatmul.bf16.gmra.mxu0 %v896
        %v2917 = vpop.f32.mrf.mxu0
        %v2918 = vadd.f32 0.0, %v2917
        %v2919 = vpop.f32.mrf.mxu0
        %v2920 = vadd.f32 0.0, %v2919
        %2921 = vmatmul.bf16.gmra.mxu0 %v905
        %v2922 = vpop.f32.mrf.mxu0
        %v2923 = vadd.f32 0.0, %v2922
        %v2924 = vpop.f32.mrf.mxu0
        %v2925 = vadd.f32 0.0, %v2924
        %2926 = vmatmul.bf16.gmra.mxu0 %v914
        %v2927 = vpop.f32.mrf.mxu0
        %v2928 = vadd.f32 0.0, %v2927
        %v2929 = vpop.f32.mrf.mxu0
        %2930 = vdwg.mxu0
        %2931 = vmatpush.bf16.msra.mxu0 %v1885
        %2932 = vmatpush.bf16.msra.mxu0 %v1881
        %2933 = vmatpush.bf16.msra.mxu0 %v1877
        %2934 = vmatpush.bf16.msra.mxu0 %v1873
        %2935 = vmatpush.bf16.msra.mxu0 %v1869
        %2936 = vmatpush.bf16.msra.mxu0 %v1865
        %2937 = vmatpush.bf16.msra.mxu0 %v1861
        %2938 = vmatpush.bf16.msra.mxu0 %v1857
        %2939 = vmatmul.bf16.gmra.mxu0 %v888
        %v2940 = vpop.f32.mrf.mxu0
        %v2941 = vadd.f32 %v2913, %v2940
        %v2942 = vpop.f32.mrf.mxu0
        %v2943 = vadd.f32 %v2915, %v2942
        %2944 = vmatmul.bf16.gmra.mxu0 %v897
        %v2945 = vpop.f32.mrf.mxu0
        %v2946 = vadd.f32 %v2918, %v2945
        %v2947 = vpop.f32.mrf.mxu0
        %v2948 = vadd.f32 %v2920, %v2947
        %2949 = vmatmul.bf16.gmra.mxu0 %v906
        %v2950 = vpop.f32.mrf.mxu0
        %v2951 = vadd.f32 %v2923, %v2950
        %v2952 = vpop.f32.mrf.mxu0
        %v2953 = vadd.f32 %v2925, %v2952
        %2954 = vmatmul.bf16.gmra.mxu0 %v915
        %v2955 = vpop.f32.mrf.mxu0
        %v2956 = vadd.f32 %v2928, %v2955
        %v2957 = vpop.f32.mrf.mxu0
        %2958 = vdwg.mxu0
        %2959 = vmatpush.bf16.msra.mxu0 %v1917
        %2960 = vmatpush.bf16.msra.mxu0 %v1913
        %2961 = vmatpush.bf16.msra.mxu0 %v1909
        %2962 = vmatpush.bf16.msra.mxu0 %v1905
        %2963 = vmatpush.bf16.msra.mxu0 %v1901
        %2964 = vmatpush.bf16.msra.mxu0 %v1897
        %2965 = vmatpush.bf16.msra.mxu0 %v1893
        %2966 = vmatpush.bf16.msra.mxu0 %v1889
        %2967 = vmatmul.bf16.gmra.mxu0 %v889
        %v2968 = vpop.f32.mrf.mxu0
        %v2969 = vadd.f32 %v2941, %v2968
        %v2970 = vpop.f32.mrf.mxu0
        %v2971 = vadd.f32 %v2943, %v2970
        %2972 = vmatmul.bf16.gmra.mxu0 %v898
        %v2973 = vpop.f32.mrf.mxu0
        %v2974 = vadd.f32 %v2946, %v2973
        %v2975 = vpop.f32.mrf.mxu0
        %v2976 = vadd.f32 %v2948, %v2975
        %2977 = vmatmul.bf16.gmra.mxu0 %v907
        %v2978 = vpop.f32.mrf.mxu0
        %v2979 = vadd.f32 %v2951, %v2978
        %v2980 = vpop.f32.mrf.mxu0
        %v2981 = vadd.f32 %v2953, %v2980
        %2982 = vmatmul.bf16.gmra.mxu0 %v916
        %v2983 = vpop.f32.mrf.mxu0
        %v2984 = vadd.f32 %v2956, %v2983
        %v2985 = vpop.f32.mrf.mxu0
        %2986 = vdwg.mxu0
        %2987 = vmatpush.bf16.msra.mxu0 %v1949
        %2988 = vmatpush.bf16.msra.mxu0 %v1945
        %2989 = vmatpush.bf16.msra.mxu0 %v1941
        %2990 = vmatpush.bf16.msra.mxu0 %v1937
        %2991 = vmatpush.bf16.msra.mxu0 %v1933
        %2992 = vmatpush.bf16.msra.mxu0 %v1929
        %2993 = vmatpush.bf16.msra.mxu0 %v1925
        %2994 = vmatpush.bf16.msra.mxu0 %v1921
        %2995 = vmatmul.bf16.gmra.mxu0 %v890
        %v2996 = vpop.f32.mrf.mxu0
        %v2997 = vadd.f32 %v2969, %v2996
        %v2998 = vpop.f32.mrf.mxu0
        %v2999 = vadd.f32 %v2971, %v2998
        %3000 = vmatmul.bf16.gmra.mxu0 %v899
        %v3001 = vpop.f32.mrf.mxu0
        %v3002 = vadd.f32 %v2974, %v3001
        %v3003 = vpop.f32.mrf.mxu0
        %v3004 = vadd.f32 %v2976, %v3003
        %3005 = vmatmul.bf16.gmra.mxu0 %v908
        %v3006 = vpop.f32.mrf.mxu0
        %v3007 = vadd.f32 %v2979, %v3006
        %v3008 = vpop.f32.mrf.mxu0
        %v3009 = vadd.f32 %v2981, %v3008
        %3010 = vmatmul.bf16.gmra.mxu0 %v917
        %v3011 = vpop.f32.mrf.mxu0
        %v3012 = vadd.f32 %v2984, %v3011
        %v3013 = vpop.f32.mrf.mxu0
        %3014 = vdwg.mxu0
        %3015 = vmatpush.bf16.msra.mxu0 %v1981
        %3016 = vmatpush.bf16.msra.mxu0 %v1977
        %3017 = vmatpush.bf16.msra.mxu0 %v1973
        %3018 = vmatpush.bf16.msra.mxu0 %v1969
        %3019 = vmatpush.bf16.msra.mxu0 %v1965
        %3020 = vmatpush.bf16.msra.mxu0 %v1961
        %3021 = vmatpush.bf16.msra.mxu0 %v1957
        %3022 = vmatpush.bf16.msra.mxu0 %v1953
        %3023 = vmatmul.bf16.gmra.mxu0 %v891
        %v3024 = vpop.f32.mrf.mxu0
        %v3025 = vadd.f32 %v2997, %v3024
        %v3026 = vpop.f32.mrf.mxu0
        %v3027 = vadd.f32 %v2999, %v3026
        %3028 = vmatmul.bf16.gmra.mxu0 %v900
        %v3029 = vpop.f32.mrf.mxu0
        %v3030 = vadd.f32 %v3002, %v3029
        %v3031 = vpop.f32.mrf.mxu0
        %v3032 = vadd.f32 %v3004, %v3031
        %3033 = vmatmul.bf16.gmra.mxu0 %v909
        %v3034 = vpop.f32.mrf.mxu0
        %v3035 = vadd.f32 %v3007, %v3034
        %v3036 = vpop.f32.mrf.mxu0
        %v3037 = vadd.f32 %v3009, %v3036
        %3038 = vmatmul.bf16.gmra.mxu0 %v918
        %v3039 = vpop.f32.mrf.mxu0
        %v3040 = vadd.f32 %v3012, %v3039
        %v3041 = vpop.f32.mrf.mxu0
        %3042 = vdwg.mxu0
        %3043 = vmatpush.bf16.msra.mxu0 %v2013
        %3044 = vmatpush.bf16.msra.mxu0 %v2009
        %3045 = vmatpush.bf16.msra.mxu0 %v2005
        %3046 = vmatpush.bf16.msra.mxu0 %v2001
        %3047 = vmatpush.bf16.msra.mxu0 %v1997
        %3048 = vmatpush.bf16.msra.mxu0 %v1993
        %3049 = vmatpush.bf16.msra.mxu0 %v1989
        %3050 = vmatpush.bf16.msra.mxu0 %v1985
        %3051 = vmatmul.bf16.gmra.mxu0 %v892
        %v3052 = vpop.f32.mrf.mxu0
        %v3053 = vadd.f32 %v3025, %v3052
        %v3054 = vpop.f32.mrf.mxu0
        %v3055 = vadd.f32 %v3027, %v3054
        %3056 = vmatmul.bf16.gmra.mxu0 %v901
        %v3057 = vpop.f32.mrf.mxu0
        %v3058 = vadd.f32 %v3030, %v3057
        %v3059 = vpop.f32.mrf.mxu0
        %v3060 = vadd.f32 %v3032, %v3059
        %3061 = vmatmul.bf16.gmra.mxu0 %v910
        %v3062 = vpop.f32.mrf.mxu0
        %v3063 = vadd.f32 %v3035, %v3062
        %v3064 = vpop.f32.mrf.mxu0
        %v3065 = vadd.f32 %v3037, %v3064
        %3066 = vmatmul.bf16.gmra.mxu0 %v919
        %v3067 = vpop.f32.mrf.mxu0
        %v3068 = vadd.f32 %v3040, %v3067
        %v3069 = vpop.f32.mrf.mxu0
        %3070 = vdwg.mxu0
        %3071 = vmatpush.bf16.msra.mxu0 %v2045
        %3072 = vmatpush.bf16.msra.mxu0 %v2041
        %3073 = vmatpush.bf16.msra.mxu0 %v2037
        %3074 = vmatpush.bf16.msra.mxu0 %v2033
        %3075 = vmatpush.bf16.msra.mxu0 %v2029
        %3076 = vmatpush.bf16.msra.mxu0 %v2025
        %3077 = vmatpush.bf16.msra.mxu0 %v2021
        %3078 = vmatpush.bf16.msra.mxu0 %v2017
        %3079 = vmatmul.bf16.gmra.mxu0 %v893
        %v3080 = vpop.f32.mrf.mxu0
        %v3081 = vadd.f32 %v3053, %v3080
        %v3082 = vpop.f32.mrf.mxu0
        %v3083 = vadd.f32 %v3055, %v3082
        %3084 = vmatmul.bf16.gmra.mxu0 %v902
        %v3085 = vpop.f32.mrf.mxu0
        %v3086 = vadd.f32 %v3058, %v3085
        %v3087 = vpop.f32.mrf.mxu0
        %v3088 = vadd.f32 %v3060, %v3087
        %3089 = vmatmul.bf16.gmra.mxu0 %v911
        %v3090 = vpop.f32.mrf.mxu0
        %v3091 = vadd.f32 %v3063, %v3090
        %v3092 = vpop.f32.mrf.mxu0
        %v3093 = vadd.f32 %v3065, %v3092
        %3094 = vmatmul.bf16.gmra.mxu0 %v920
        %v3095 = vpop.f32.mrf.mxu0
        %v3096 = vadd.f32 %v3068, %v3095
        %v3097 = vpop.f32.mrf.mxu0
        %3098 = vdwg.mxu0
        %3099 = vmatpush.bf16.msra.mxu0 %v2077
        %3100 = vmatpush.bf16.msra.mxu0 %v2073
        %3101 = vmatpush.bf16.msra.mxu0 %v2069
        %3102 = vmatpush.bf16.msra.mxu0 %v2065
        %3103 = vmatpush.bf16.msra.mxu0 %v2061
        %3104 = vmatpush.bf16.msra.mxu0 %v2057
        %3105 = vmatpush.bf16.msra.mxu0 %v2053
        %3106 = vmatpush.bf16.msra.mxu0 %v2049
        %3107 = vmatmul.bf16.gmra.mxu0 %v894
        %v3108 = vpop.f32.mrf.mxu0
        %v3109 = vadd.f32 %v3081, %v3108
        %v3110 = vpop.f32.mrf.mxu0
        %v3111 = vadd.f32 %v3083, %v3110
        %3112 = vmatmul.bf16.gmra.mxu0 %v903
        %v3113 = vpop.f32.mrf.mxu0
        %v3114 = vadd.f32 %v3086, %v3113
        %v3115 = vpop.f32.mrf.mxu0
        %v3116 = vadd.f32 %v3088, %v3115
        %3117 = vmatmul.bf16.gmra.mxu0 %v912
        %v3118 = vpop.f32.mrf.mxu0
        %v3119 = vadd.f32 %v3091, %v3118
        %v3120 = vpop.f32.mrf.mxu0
        %v3121 = vadd.f32 %v3093, %v3120
        %3122 = vmatmul.bf16.gmra.mxu0 %v921
        %v3123 = vpop.f32.mrf.mxu0
        %v3124 = vadd.f32 %v3096, %v3123
        %v3125 = vpop.f32.mrf.mxu0
        %3126 = vdwg.mxu0
        %3127 = vmatpush.bf16.msra.mxu0 %v2109
        %3128 = vmatpush.bf16.msra.mxu0 %v2105
        %3129 = vmatpush.bf16.msra.mxu0 %v2101
        %3130 = vmatpush.bf16.msra.mxu0 %v2097
        %3131 = vmatpush.bf16.msra.mxu0 %v2093
        %3132 = vmatpush.bf16.msra.mxu0 %v2089
        %3133 = vmatpush.bf16.msra.mxu0 %v2085
        %3134 = vmatpush.bf16.msra.mxu0 %v2081
        %3135 = vmatmul.bf16.gmra.mxu0 %v895
        %v3136 = vpop.f32.mrf.mxu0
        %v3137 = vadd.f32 %v3109, %v3136
        %v3138 = vpop.f32.mrf.mxu0
        %v3139 = vadd.f32 %v3111, %v3138
        %3140 = vmatmul.bf16.gmra.mxu0 %v904
        %v3141 = vpop.f32.mrf.mxu0
        %v3142 = vadd.f32 %v3114, %v3141
        %v3143 = vpop.f32.mrf.mxu0
        %v3144 = vadd.f32 %v3116, %v3143
        %3145 = vmatmul.bf16.gmra.mxu0 %v913
        %v3146 = vpop.f32.mrf.mxu0
        %v3147 = vadd.f32 %v3119, %v3146
        %v3148 = vpop.f32.mrf.mxu0
        %v3149 = vadd.f32 %v3121, %v3148
        %3150 = vmatmul.bf16.gmra.mxu0 %v922
        %v3151 = vpop.f32.mrf.mxu0
        %v3152 = vadd.f32 %v3124, %v3151
        %v3153 = vpop.f32.mrf.mxu0
        %3154 = vdwg.mxu0
        %3155 = vmatpush.bf16.msra.mxu0 %v1854
        %3156 = vmatpush.bf16.msra.mxu0 %v1850
        %3157 = vmatpush.bf16.msra.mxu0 %v1846
        %3158 = vmatpush.bf16.msra.mxu0 %v1842
        %3159 = vmatpush.bf16.msra.mxu0 %v1838
        %3160 = vmatpush.bf16.msra.mxu0 %v1834
        %3161 = vmatpush.bf16.msra.mxu0 %v1830
        %3162 = vmatpush.bf16.msra.mxu0 %v1826
        %3163 = vmatmul.bf16.gmra.mxu0 %v887
        %v3164 = vpop.f32.mrf.mxu0
        %v3165 = vadd.f32 0.0, %v3164
        %v3166 = vpop.f32.mrf.mxu0
        %v3167 = vadd.f32 0.0, %v3166
        %3168 = vmatmul.bf16.gmra.mxu0 %v896
        %v3169 = vpop.f32.mrf.mxu0
        %v3170 = vadd.f32 0.0, %v3169
        %v3171 = vpop.f32.mrf.mxu0
        %v3172 = vadd.f32 0.0, %v3171
        %3173 = vmatmul.bf16.gmra.mxu0 %v905
        %v3174 = vpop.f32.mrf.mxu0
        %v3175 = vadd.f32 0.0, %v3174
        %v3176 = vpop.f32.mrf.mxu0
        %v3177 = vadd.f32 0.0, %v3176
        %3178 = vmatmul.bf16.gmra.mxu0 %v914
        %v3179 = vpop.f32.mrf.mxu0
        %v3180 = vadd.f32 0.0, %v3179
        %v3181 = vpop.f32.mrf.mxu0
        %3182 = vdwg.mxu0
        %3183 = vmatpush.bf16.msra.mxu0 %v1886
        %3184 = vmatpush.bf16.msra.mxu0 %v1882
        %3185 = vmatpush.bf16.msra.mxu0 %v1878
        %3186 = vmatpush.bf16.msra.mxu0 %v1874
        %3187 = vmatpush.bf16.msra.mxu0 %v1870
        %3188 = vmatpush.bf16.msra.mxu0 %v1866
        %3189 = vmatpush.bf16.msra.mxu0 %v1862
        %3190 = vmatpush.bf16.msra.mxu0 %v1858
        %3191 = vmatmul.bf16.gmra.mxu0 %v888
        %v3192 = vpop.f32.mrf.mxu0
        %v3193 = vadd.f32 %v3165, %v3192
        %v3194 = vpop.f32.mrf.mxu0
        %v3195 = vadd.f32 %v3167, %v3194
        %3196 = vmatmul.bf16.gmra.mxu0 %v897
        %v3197 = vpop.f32.mrf.mxu0
        %v3198 = vadd.f32 %v3170, %v3197
        %v3199 = vpop.f32.mrf.mxu0
        %v3200 = vadd.f32 %v3172, %v3199
        %3201 = vmatmul.bf16.gmra.mxu0 %v906
        %v3202 = vpop.f32.mrf.mxu0
        %v3203 = vadd.f32 %v3175, %v3202
        %v3204 = vpop.f32.mrf.mxu0
        %v3205 = vadd.f32 %v3177, %v3204
        %3206 = vmatmul.bf16.gmra.mxu0 %v915
        %v3207 = vpop.f32.mrf.mxu0
        %v3208 = vadd.f32 %v3180, %v3207
        %v3209 = vpop.f32.mrf.mxu0
        %3210 = vdwg.mxu0
        %3211 = vmatpush.bf16.msra.mxu0 %v1918
        %3212 = vmatpush.bf16.msra.mxu0 %v1914
        %3213 = vmatpush.bf16.msra.mxu0 %v1910
        %3214 = vmatpush.bf16.msra.mxu0 %v1906
        %3215 = vmatpush.bf16.msra.mxu0 %v1902
        %3216 = vmatpush.bf16.msra.mxu0 %v1898
        %3217 = vmatpush.bf16.msra.mxu0 %v1894
        %3218 = vmatpush.bf16.msra.mxu0 %v1890
        %3219 = vmatmul.bf16.gmra.mxu0 %v889
        %v3220 = vpop.f32.mrf.mxu0
        %v3221 = vadd.f32 %v3193, %v3220
        %v3222 = vpop.f32.mrf.mxu0
        %v3223 = vadd.f32 %v3195, %v3222
        %3224 = vmatmul.bf16.gmra.mxu0 %v898
        %v3225 = vpop.f32.mrf.mxu0
        %v3226 = vadd.f32 %v3198, %v3225
        %v3227 = vpop.f32.mrf.mxu0
        %v3228 = vadd.f32 %v3200, %v3227
        %3229 = vmatmul.bf16.gmra.mxu0 %v907
        %v3230 = vpop.f32.mrf.mxu0
        %v3231 = vadd.f32 %v3203, %v3230
        %v3232 = vpop.f32.mrf.mxu0
        %v3233 = vadd.f32 %v3205, %v3232
        %3234 = vmatmul.bf16.gmra.mxu0 %v916
        %v3235 = vpop.f32.mrf.mxu0
        %v3236 = vadd.f32 %v3208, %v3235
        %v3237 = vpop.f32.mrf.mxu0
        %3238 = vdwg.mxu0
        %3239 = vmatpush.bf16.msra.mxu0 %v1950
        %3240 = vmatpush.bf16.msra.mxu0 %v1946
        %3241 = vmatpush.bf16.msra.mxu0 %v1942
        %3242 = vmatpush.bf16.msra.mxu0 %v1938
        %3243 = vmatpush.bf16.msra.mxu0 %v1934
        %3244 = vmatpush.bf16.msra.mxu0 %v1930
        %3245 = vmatpush.bf16.msra.mxu0 %v1926
        %3246 = vmatpush.bf16.msra.mxu0 %v1922
        %3247 = vmatmul.bf16.gmra.mxu0 %v890
        %v3248 = vpop.f32.mrf.mxu0
        %v3249 = vadd.f32 %v3221, %v3248
        %v3250 = vpop.f32.mrf.mxu0
        %v3251 = vadd.f32 %v3223, %v3250
        %3252 = vmatmul.bf16.gmra.mxu0 %v899
        %v3253 = vpop.f32.mrf.mxu0
        %v3254 = vadd.f32 %v3226, %v3253
        %v3255 = vpop.f32.mrf.mxu0
        %v3256 = vadd.f32 %v3228, %v3255
        %3257 = vmatmul.bf16.gmra.mxu0 %v908
        %v3258 = vpop.f32.mrf.mxu0
        %v3259 = vadd.f32 %v3231, %v3258
        %v3260 = vpop.f32.mrf.mxu0
        %v3261 = vadd.f32 %v3233, %v3260
        %3262 = vmatmul.bf16.gmra.mxu0 %v917
        %v3263 = vpop.f32.mrf.mxu0
        %v3264 = vadd.f32 %v3236, %v3263
        %v3265 = vpop.f32.mrf.mxu0
        %3266 = vdwg.mxu0
        %3267 = vmatpush.bf16.msra.mxu0 %v1982
        %3268 = vmatpush.bf16.msra.mxu0 %v1978
        %3269 = vmatpush.bf16.msra.mxu0 %v1974
        %3270 = vmatpush.bf16.msra.mxu0 %v1970
        %3271 = vmatpush.bf16.msra.mxu0 %v1966
        %3272 = vmatpush.bf16.msra.mxu0 %v1962
        %3273 = vmatpush.bf16.msra.mxu0 %v1958
        %3274 = vmatpush.bf16.msra.mxu0 %v1954
        %3275 = vmatmul.bf16.gmra.mxu0 %v891
        %v3276 = vpop.f32.mrf.mxu0
        %v3277 = vadd.f32 %v3249, %v3276
        %v3278 = vpop.f32.mrf.mxu0
        %v3279 = vadd.f32 %v3251, %v3278
        %3280 = vmatmul.bf16.gmra.mxu0 %v900
        %v3281 = vpop.f32.mrf.mxu0
        %v3282 = vadd.f32 %v3254, %v3281
        %v3283 = vpop.f32.mrf.mxu0
        %v3284 = vadd.f32 %v3256, %v3283
        %3285 = vmatmul.bf16.gmra.mxu0 %v909
        %v3286 = vpop.f32.mrf.mxu0
        %v3287 = vadd.f32 %v3259, %v3286
        %v3288 = vpop.f32.mrf.mxu0
        %v3289 = vadd.f32 %v3261, %v3288
        %3290 = vmatmul.bf16.gmra.mxu0 %v918
        %v3291 = vpop.f32.mrf.mxu0
        %v3292 = vadd.f32 %v3264, %v3291
        %v3293 = vpop.f32.mrf.mxu0
        %3294 = vdwg.mxu0
        %3295 = vmatpush.bf16.msra.mxu0 %v2014
        %3296 = vmatpush.bf16.msra.mxu0 %v2010
        %3297 = vmatpush.bf16.msra.mxu0 %v2006
        %3298 = vmatpush.bf16.msra.mxu0 %v2002
        %3299 = vmatpush.bf16.msra.mxu0 %v1998
        %3300 = vmatpush.bf16.msra.mxu0 %v1994
        %3301 = vmatpush.bf16.msra.mxu0 %v1990
        %3302 = vmatpush.bf16.msra.mxu0 %v1986
        %3303 = vmatmul.bf16.gmra.mxu0 %v892
        %v3304 = vpop.f32.mrf.mxu0
        %v3305 = vadd.f32 %v3277, %v3304
        %v3306 = vpop.f32.mrf.mxu0
        %v3307 = vadd.f32 %v3279, %v3306
        %3308 = vmatmul.bf16.gmra.mxu0 %v901
        %v3309 = vpop.f32.mrf.mxu0
        %v3310 = vadd.f32 %v3282, %v3309
        %v3311 = vpop.f32.mrf.mxu0
        %v3312 = vadd.f32 %v3284, %v3311
        %3313 = vmatmul.bf16.gmra.mxu0 %v910
        %v3314 = vpop.f32.mrf.mxu0
        %v3315 = vadd.f32 %v3287, %v3314
        %v3316 = vpop.f32.mrf.mxu0
        %v3317 = vadd.f32 %v3289, %v3316
        %3318 = vmatmul.bf16.gmra.mxu0 %v919
        %v3319 = vpop.f32.mrf.mxu0
        %v3320 = vadd.f32 %v3292, %v3319
        %v3321 = vpop.f32.mrf.mxu0
        %3322 = vdwg.mxu0
        %3323 = vmatpush.bf16.msra.mxu0 %v2046
        %3324 = vmatpush.bf16.msra.mxu0 %v2042
        %3325 = vmatpush.bf16.msra.mxu0 %v2038
        %3326 = vmatpush.bf16.msra.mxu0 %v2034
        %3327 = vmatpush.bf16.msra.mxu0 %v2030
        %3328 = vmatpush.bf16.msra.mxu0 %v2026
        %3329 = vmatpush.bf16.msra.mxu0 %v2022
        %3330 = vmatpush.bf16.msra.mxu0 %v2018
        %3331 = vmatmul.bf16.gmra.mxu0 %v893
        %v3332 = vpop.f32.mrf.mxu0
        %v3333 = vadd.f32 %v3305, %v3332
        %v3334 = vpop.f32.mrf.mxu0
        %v3335 = vadd.f32 %v3307, %v3334
        %3336 = vmatmul.bf16.gmra.mxu0 %v902
        %v3337 = vpop.f32.mrf.mxu0
        %v3338 = vadd.f32 %v3310, %v3337
        %v3339 = vpop.f32.mrf.mxu0
        %v3340 = vadd.f32 %v3312, %v3339
        %3341 = vmatmul.bf16.gmra.mxu0 %v911
        %v3342 = vpop.f32.mrf.mxu0
        %v3343 = vadd.f32 %v3315, %v3342
        %v3344 = vpop.f32.mrf.mxu0
        %v3345 = vadd.f32 %v3317, %v3344
        %3346 = vmatmul.bf16.gmra.mxu0 %v920
        %v3347 = vpop.f32.mrf.mxu0
        %v3348 = vadd.f32 %v3320, %v3347
        %v3349 = vpop.f32.mrf.mxu0
        %3350 = vdwg.mxu0
        %3351 = vmatpush.bf16.msra.mxu0 %v2078
        %3352 = vmatpush.bf16.msra.mxu0 %v2074
        %3353 = vmatpush.bf16.msra.mxu0 %v2070
        %3354 = vmatpush.bf16.msra.mxu0 %v2066
        %3355 = vmatpush.bf16.msra.mxu0 %v2062
        %3356 = vmatpush.bf16.msra.mxu0 %v2058
        %3357 = vmatpush.bf16.msra.mxu0 %v2054
        %3358 = vmatpush.bf16.msra.mxu0 %v2050
        %3359 = vmatmul.bf16.gmra.mxu0 %v894
        %v3360 = vpop.f32.mrf.mxu0
        %v3361 = vadd.f32 %v3333, %v3360
        %v3362 = vpop.f32.mrf.mxu0
        %v3363 = vadd.f32 %v3335, %v3362
        %3364 = vmatmul.bf16.gmra.mxu0 %v903
        %v3365 = vpop.f32.mrf.mxu0
        %v3366 = vadd.f32 %v3338, %v3365
        %v3367 = vpop.f32.mrf.mxu0
        %v3368 = vadd.f32 %v3340, %v3367
        %3369 = vmatmul.bf16.gmra.mxu0 %v912
        %v3370 = vpop.f32.mrf.mxu0
        %v3371 = vadd.f32 %v3343, %v3370
        %v3372 = vpop.f32.mrf.mxu0
        %v3373 = vadd.f32 %v3345, %v3372
        %3374 = vmatmul.bf16.gmra.mxu0 %v921
        %v3375 = vpop.f32.mrf.mxu0
        %v3376 = vadd.f32 %v3348, %v3375
        %v3377 = vpop.f32.mrf.mxu0
        %3378 = vdwg.mxu0
        %3379 = vmatpush.bf16.msra.mxu0 %v2110
        %3380 = vmatpush.bf16.msra.mxu0 %v2106
        %3381 = vmatpush.bf16.msra.mxu0 %v2102
        %3382 = vmatpush.bf16.msra.mxu0 %v2098
        %3383 = vmatpush.bf16.msra.mxu0 %v2094
        %3384 = vmatpush.bf16.msra.mxu0 %v2090
        %3385 = vmatpush.bf16.msra.mxu0 %v2086
        %3386 = vmatpush.bf16.msra.mxu0 %v2082
        %3387 = vmatmul.bf16.gmra.mxu0 %v895
        %v3388 = vpop.f32.mrf.mxu0
        %v3389 = vadd.f32 %v3361, %v3388
        %v3390 = vpop.f32.mrf.mxu0
        %v3391 = vadd.f32 %v3363, %v3390
        %3392 = vmatmul.bf16.gmra.mxu0 %v904
        %v3393 = vpop.f32.mrf.mxu0
        %v3394 = vadd.f32 %v3366, %v3393
        %v3395 = vpop.f32.mrf.mxu0
        %v3396 = vadd.f32 %v3368, %v3395
        %3397 = vmatmul.bf16.gmra.mxu0 %v913
        %v3398 = vpop.f32.mrf.mxu0
        %v3399 = vadd.f32 %v3371, %v3398
        %v3400 = vpop.f32.mrf.mxu0
        %v3401 = vadd.f32 %v3373, %v3400
        %3402 = vmatmul.bf16.gmra.mxu0 %v922
        %v3403 = vpop.f32.mrf.mxu0
        %v3404 = vadd.f32 %v3376, %v3403
        %v3405 = vpop.f32.mrf.mxu0
        %3406 = vdwg.mxu0
        %v3407 = vadd.f32 %v438, %v2633
        %v3408 = vadd.f32 %v439, %v2885
        %v3409 = vadd.f32 %v440, %v3137
        %v3410 = vadd.f32 %v441, %v3389
        %v3411 = vadd.f32 %v442, %v2635
        %v3412 = vadd.f32 %v443, %v2887
        %v3413 = vadd.f32 %v444, %v3139
        %v3414 = vadd.f32 %v445, %v3391
        %v3415 = vadd.f32 %v446, %v2638
        %v3416 = vadd.f32 %v447, %v2890
        %v3417 = vadd.f32 %v448, %v3142
        %v3418 = vadd.f32 %v449, %v3394
        %v3419 = vadd.f32 %v450, %v2640
        %v3420 = vadd.f32 %v451, %v2892
        %v3421 = vadd.f32 %v452, %v3144
        %v3422 = vadd.f32 %v453, %v3396
        %v3423 = vadd.f32 %v454, %v2643
        %v3424 = vadd.f32 %v455, %v2895
        %v3425 = vadd.f32 %v456, %v3147
        %v3426 = vadd.f32 %v457, %v3399
        %v3427 = vadd.f32 %v458, %v2645
        %v3428 = vadd.f32 %v459, %v2897
        %v3429 = vadd.f32 %v460, %v3149
        %v3430 = vadd.f32 %v461, %v3401
        %v3431 = vadd.f32 %v462, %v2648
        %v3432 = vadd.f32 %v463, %v2900
        %v3433 = vadd.f32 %v464, %v3152
        %v3434 = vadd.f32 %v465, %v3404
        %3435 = vst [vmem:[#allocation2] sm:$0xff] %v3407
        %3436 = vst [vmem:[#allocation2 + $0x8] sm:$0xff] %v3408
        %3437 = vst [vmem:[#allocation2 + $0x10] sm:$0xff] %v3409
        %3438 = vst [vmem:[#allocation2 + $0x18] sm:$0xff] %v3410
        %3439 = vst [vmem:[#allocation2 + $0x20] sm:$0xff] %v3411
        %3440 = vst [vmem:[#allocation2 + $0x28] sm:$0xff] %v3412
        %3441 = vst [vmem:[#allocation2 + $0x30] sm:$0xff] %v3413
        %3442 = vst [vmem:[#allocation2 + $0x38] sm:$0xff] %v3414
        %3443 = vst [vmem:[#allocation2 + $0x40] sm:$0xff] %v3415
        %3444 = vst [vmem:[#allocation2 + $0x48] sm:$0xff] %v3416
        %3445 = vst [vmem:[#allocation2 + $0x50] sm:$0xff] %v3417
        %3446 = vst [vmem:[#allocation2 + $0x58] sm:$0xff] %v3418
        %3447 = vst [vmem:[#allocation2 + $0x60] sm:$0xff] %v3419
        %3448 = vst [vmem:[#allocation2 + $0x68] sm:$0xff] %v3420
        %3449 = vst [vmem:[#allocation2 + $0x70] sm:$0xff] %v3421
        %3450 = vst [vmem:[#allocation2 + $0x78] sm:$0xff] %v3422
        %3451 = vst [vmem:[#allocation2 + $0x80] sm:$0xff] %v3423
        %3452 = vst [vmem:[#allocation2 + $0x88] sm:$0xff] %v3424
        %3453 = vst [vmem:[#allocation2 + $0x90] sm:$0xff] %v3425
        %3454 = vst [vmem:[#allocation2 + $0x98] sm:$0xff] %v3426
        %3455 = vst [vmem:[#allocation2 + $0xa0] sm:$0xff] %v3427
        %3456 = vst [vmem:[#allocation2 + $0xa8] sm:$0xff] %v3428
        %3457 = vst [vmem:[#allocation2 + $0xb0] sm:$0xff] %v3429
        %3458 = vst [vmem:[#allocation2 + $0xb8] sm:$0xff] %v3430
        %3459 = vst [vmem:[#allocation2 + $0xc0] sm:$0xff] %v3431
        %3460 = vst [vmem:[#allocation2 + $0xc8] sm:$0xff] %v3432
        %3461 = vst [vmem:[#allocation2 + $0xd0] sm:$0xff] %v3433
        %3462 = vst [vmem:[#allocation2 + $0xd8] sm:$0xff] %v3434
        %p3463 = scmp.eq.s32.totalorder %s27, 3
        // Predicated region
        $region81: #{tpu_custom_call.1} parent=47 // pred_check
          %p3464 = pneg %p3463
        $region82: #{tpu_custom_call.1} parent=47 // pred_check_branch
          %3466 = sbr.rel (%p3464) target = $region84
        $region83: #{tpu_custom_call.1} parent=47 // pred_region
          %v3467 = vld [vmem:[#allocation2] sm:$0xff]
          %v3468 = vld [vmem:[#allocation2 + $0x8] sm:$0xff]
          %v3469 = vld [vmem:[#allocation2 + $0x10] sm:$0xff]
          %v3470 = vld [vmem:[#allocation2 + $0x18] sm:$0xff]
          %v3471 = vld [vmem:[#allocation2 + $0x20] sm:$0xff]
          %v3472 = vld [vmem:[#allocation2 + $0x28] sm:$0xff]
          %v3473 = vld [vmem:[#allocation2 + $0x30] sm:$0xff]
          %v3474 = vld [vmem:[#allocation2 + $0x38] sm:$0xff]
          %v3475 = vld [vmem:[#allocation2 + $0x40] sm:$0xff]
          %v3476 = vld [vmem:[#allocation2 + $0x48] sm:$0xff]
          %v3477 = vld [vmem:[#allocation2 + $0x50] sm:$0xff]
          %v3478 = vld [vmem:[#allocation2 + $0x58] sm:$0xff]
          %v3479 = vld [vmem:[#allocation2 + $0x60] sm:$0xff]
          %v3480 = vld [vmem:[#allocation2 + $0x68] sm:$0xff]
          %v3481 = vld [vmem:[#allocation2 + $0x70] sm:$0xff]
          %v3482 = vld [vmem:[#allocation2 + $0x78] sm:$0xff]
          %v3483 = vld [vmem:[#allocation2 + $0x80] sm:$0xff]
          %v3484 = vld [vmem:[#allocation2 + $0x88] sm:$0xff]
          %v3485 = vld [vmem:[#allocation2 + $0x90] sm:$0xff]
          %v3486 = vld [vmem:[#allocation2 + $0x98] sm:$0xff]
          %v3487 = vld [vmem:[#allocation2 + $0xa0] sm:$0xff]
          %v3488 = vld [vmem:[#allocation2 + $0xa8] sm:$0xff]
          %v3489 = vld [vmem:[#allocation2 + $0xb0] sm:$0xff]
          %v3490 = vld [vmem:[#allocation2 + $0xb8] sm:$0xff]
          %v3491 = vld [vmem:[#allocation2 + $0xc0] sm:$0xff]
          %v3492 = vld [vmem:[#allocation2 + $0xc8] sm:$0xff]
          %v3493 = vld [vmem:[#allocation2 + $0xd0] sm:$0xff]
          %v3494 = vld [vmem:[#allocation2 + $0xd8] sm:$0xff]
          %v3495 = vlaneseq
          %v3496 = vshrl.u32 %v3495, 7
          %v3497 = vadd.s32 %v3496, 8
          %v3498 = vadd.s32 %v3496, 16
          %v3499 = vadd.s32 %v3496, 24
          %v3500 = vadd.s32 %v3496, 32
          %v3501 = vadd.s32 %v3496, 40
          %v3502 = vadd.s32 %v3496, 48
          %vm3503 = vcmp.lt.s32.totalorder %v3496, 49
          %vm3504 = vcmp.lt.s32.totalorder %v3497, 49
          %vm3505 = vcmp.lt.s32.totalorder %v3498, 49
          %vm3506 = vcmp.lt.s32.totalorder %v3499, 49
          %vm3507 = vcmp.lt.s32.totalorder %v3500, 49
          %vm3508 = vcmp.lt.s32.totalorder %v3501, 49
          %vm3509 = vcmp.lt.s32.totalorder %v3502, 49
          %v3510 = vsel %vm3503, 1.0, 0.0
          %v3511 = vsel %vm3504, 1.0, 0.0
          %v3512 = vsel %vm3505, 1.0, 0.0
          %v3513 = vsel %vm3506, 1.0, 0.0
          %v3514 = vsel %vm3507, 1.0, 0.0
          %v3515 = vsel %vm3508, 1.0, 0.0
          %v3516 = vsel %vm3509, 1.0, 0.0
          %v3517 = vmul.f32 %v3467, %v3510
          %v3518 = vmul.f32 %v3468, %v3510
          %v3519 = vmul.f32 %v3469, %v3510
          %v3520 = vmul.f32 %v3470, %v3510
          %v3521 = vmul.f32 %v3471, %v3511
          %v3522 = vmul.f32 %v3472, %v3511
          %v3523 = vmul.f32 %v3473, %v3511
          %v3524 = vmul.f32 %v3474, %v3511
          %v3525 = vmul.f32 %v3475, %v3512
          %v3526 = vmul.f32 %v3476, %v3512
          %v3527 = vmul.f32 %v3477, %v3512
          %v3528 = vmul.f32 %v3478, %v3512
          %v3529 = vmul.f32 %v3479, %v3513
          %v3530 = vmul.f32 %v3480, %v3513
          %v3531 = vmul.f32 %v3481, %v3513
          %v3532 = vmul.f32 %v3482, %v3513
          %v3533 = vmul.f32 %v3483, %v3514
          %v3534 = vmul.f32 %v3484, %v3514
          %v3535 = vmul.f32 %v3485, %v3514
          %v3536 = vmul.f32 %v3486, %v3514
          %v3537 = vmul.f32 %v3487, %v3515
          %v3538 = vmul.f32 %v3488, %v3515
          %v3539 = vmul.f32 %v3489, %v3515
          %v3540 = vmul.f32 %v3490, %v3515
          %v3541 = vmul.f32 %v3491, %v3516
          %v3542 = vmul.f32 %v3492, %v3516
          %v3543 = vmul.f32 %v3493, %v3516
          %v3544 = vmul.f32 %v3494, %v3516
          %v3545 = vadd.f32 %v3517, %v3521
          %v3546 = vadd.f32 %v3545, %v3525
          %v3547 = vadd.f32 %v3546, %v3529
          %v3548 = vadd.f32 %v3547, %v3533
          %v3549 = vadd.f32 %v3548, %v3537
          %v3550 = vadd.f32 %v3549, %v3541
          %v3551 = vrot.slane %v3550, 4
          %v3552 = vadd.f32 %v3550, %v3551
          %v3553 = vrot.slane %v3552, 2
          %v3554 = vadd.f32 %v3552, %v3553
          %v3555 = vrot.slane %v3554, 1
          %v3556 = vadd.f32 %v3554, %v3555
          %v3557 = vadd.f32 %v3518, %v3522
          %v3558 = vadd.f32 %v3557, %v3526
          %v3559 = vadd.f32 %v3558, %v3530
          %v3560 = vadd.f32 %v3559, %v3534
          %v3561 = vadd.f32 %v3560, %v3538
          %v3562 = vadd.f32 %v3561, %v3542
          %v3563 = vrot.slane %v3562, 4
          %v3564 = vadd.f32 %v3562, %v3563
          %v3565 = vrot.slane %v3564, 2
          %v3566 = vadd.f32 %v3564, %v3565
          %v3567 = vrot.slane %v3566, 1
          %v3568 = vadd.f32 %v3566, %v3567
          %v3569 = vadd.f32 %v3519, %v3523
          %v3570 = vadd.f32 %v3569, %v3527
          %v3571 = vadd.f32 %v3570, %v3531
          %v3572 = vadd.f32 %v3571, %v3535
          %v3573 = vadd.f32 %v3572, %v3539
          %v3574 = vadd.f32 %v3573, %v3543
          %v3575 = vrot.slane %v3574, 4
          %v3576 = vadd.f32 %v3574, %v3575
          %v3577 = vrot.slane %v3576, 2
          %v3578 = vadd.f32 %v3576, %v3577
          %v3579 = vrot.slane %v3578, 1
          %v3580 = vadd.f32 %v3578, %v3579
          %v3581 = vadd.f32 %v3520, %v3524
          %v3582 = vadd.f32 %v3581, %v3528
          %v3583 = vadd.f32 %v3582, %v3532
          %v3584 = vadd.f32 %v3583, %v3536
          %v3585 = vadd.f32 %v3584, %v3540
          %v3586 = vadd.f32 %v3585, %v3544
          %v3587 = vrot.slane %v3586, 4
          %v3588 = vadd.f32 %v3586, %v3587
          %v3589 = vrot.slane %v3588, 2
          %v3590 = vadd.f32 %v3588, %v3589
          %v3591 = vrot.slane %v3590, 1
          %v3592 = vadd.f32 %v3590, %v3591
          %v3593 = vmul.f32 %v3556, 0.020408163
          %v3594 = vmul.f32 %v3568, 0.020408163
          %v3595 = vmul.f32 %v3580, 0.020408163
          %v3596 = vmul.f32 %v3592, 0.020408163
          %v3597 = vsub.f32 %v3467, %v3593
          %v3598 = vsub.f32 %v3468, %v3594
          %v3599 = vsub.f32 %v3469, %v3595
          %v3600 = vsub.f32 %v3470, %v3596
          %v3601 = vsub.f32 %v3471, %v3593
          %v3602 = vsub.f32 %v3472, %v3594
          %v3603 = vsub.f32 %v3473, %v3595
          %v3604 = vsub.f32 %v3474, %v3596
          %v3605 = vsub.f32 %v3475, %v3593
          %v3606 = vsub.f32 %v3476, %v3594
          %v3607 = vsub.f32 %v3477, %v3595
          %v3608 = vsub.f32 %v3478, %v3596
          %v3609 = vsub.f32 %v3479, %v3593
          %v3610 = vsub.f32 %v3480, %v3594
          %v3611 = vsub.f32 %v3481, %v3595
          %v3612 = vsub.f32 %v3482, %v3596
          %v3613 = vsub.f32 %v3483, %v3593
          %v3614 = vsub.f32 %v3484, %v3594
          %v3615 = vsub.f32 %v3485, %v3595
          %v3616 = vsub.f32 %v3486, %v3596
          %v3617 = vsub.f32 %v3487, %v3593
          %v3618 = vsub.f32 %v3488, %v3594
          %v3619 = vsub.f32 %v3489, %v3595
          %v3620 = vsub.f32 %v3490, %v3596
          %v3621 = vsub.f32 %v3491, %v3593
          %v3622 = vsub.f32 %v3492, %v3594
          %v3623 = vsub.f32 %v3493, %v3595
          %v3624 = vsub.f32 %v3494, %v3596
          %v3625 = vmul.f32 %v3597, %v3597
          %v3626 = vmul.f32 %v3598, %v3598
          %v3627 = vmul.f32 %v3599, %v3599
          %v3628 = vmul.f32 %v3600, %v3600
          %v3629 = vmul.f32 %v3601, %v3601
          %v3630 = vmul.f32 %v3602, %v3602
          %v3631 = vmul.f32 %v3603, %v3603
          %v3632 = vmul.f32 %v3604, %v3604
          %v3633 = vmul.f32 %v3605, %v3605
          %v3634 = vmul.f32 %v3606, %v3606
          %v3635 = vmul.f32 %v3607, %v3607
          %v3636 = vmul.f32 %v3608, %v3608
          %v3637 = vmul.f32 %v3609, %v3609
          %v3638 = vmul.f32 %v3610, %v3610
          %v3639 = vmul.f32 %v3611, %v3611
          %v3640 = vmul.f32 %v3612, %v3612
          %v3641 = vmul.f32 %v3613, %v3613
          %v3642 = vmul.f32 %v3614, %v3614
          %v3643 = vmul.f32 %v3615, %v3615
          %v3644 = vmul.f32 %v3616, %v3616
          %v3645 = vmul.f32 %v3617, %v3617
          %v3646 = vmul.f32 %v3618, %v3618
          %v3647 = vmul.f32 %v3619, %v3619
          %v3648 = vmul.f32 %v3620, %v3620
          %v3649 = vmul.f32 %v3621, %v3621
          %v3650 = vmul.f32 %v3622, %v3622
          %v3651 = vmul.f32 %v3623, %v3623
          %v3652 = vmul.f32 %v3624, %v3624
          %v3653 = vmul.f32 %v3625, %v3510
          %v3654 = vmul.f32 %v3626, %v3510
          %v3655 = vmul.f32 %v3627, %v3510
          %v3656 = vmul.f32 %v3628, %v3510
          %v3657 = vmul.f32 %v3629, %v3511
          %v3658 = vmul.f32 %v3630, %v3511
          %v3659 = vmul.f32 %v3631, %v3511
          %v3660 = vmul.f32 %v3632, %v3511
          %v3661 = vmul.f32 %v3633, %v3512
          %v3662 = vmul.f32 %v3634, %v3512
          %v3663 = vmul.f32 %v3635, %v3512
          %v3664 = vmul.f32 %v3636, %v3512
          %v3665 = vmul.f32 %v3637, %v3513
          %v3666 = vmul.f32 %v3638, %v3513
          %v3667 = vmul.f32 %v3639, %v3513
          %v3668 = vmul.f32 %v3640, %v3513
          %v3669 = vmul.f32 %v3641, %v3514
          %v3670 = vmul.f32 %v3642, %v3514
          %v3671 = vmul.f32 %v3643, %v3514
          %v3672 = vmul.f32 %v3644, %v3514
          %v3673 = vmul.f32 %v3645, %v3515
          %v3674 = vmul.f32 %v3646, %v3515
          %v3675 = vmul.f32 %v3647, %v3515
          %v3676 = vmul.f32 %v3648, %v3515
          %v3677 = vmul.f32 %v3649, %v3516
          %v3678 = vmul.f32 %v3650, %v3516
          %v3679 = vmul.f32 %v3651, %v3516
          %v3680 = vmul.f32 %v3652, %v3516
          %v3681 = vadd.f32 %v3653, %v3657
          %v3682 = vadd.f32 %v3681, %v3661
          %v3683 = vadd.f32 %v3682, %v3665
          %v3684 = vadd.f32 %v3683, %v3669
          %v3685 = vadd.f32 %v3684, %v3673
          %v3686 = vadd.f32 %v3685, %v3677
          %v3687 = vrot.slane %v3686, 4
          %v3688 = vadd.f32 %v3686, %v3687
          %v3689 = vrot.slane %v3688, 2
          %v3690 = vadd.f32 %v3688, %v3689
          %v3691 = vrot.slane %v3690, 1
          %v3692 = vadd.f32 %v3690, %v3691
          %v3693 = vadd.f32 %v3654, %v3658
          %v3694 = vadd.f32 %v3693, %v3662
          %v3695 = vadd.f32 %v3694, %v3666
          %v3696 = vadd.f32 %v3695, %v3670
          %v3697 = vadd.f32 %v3696, %v3674
          %v3698 = vadd.f32 %v3697, %v3678
          %v3699 = vrot.slane %v3698, 4
          %v3700 = vadd.f32 %v3698, %v3699
          %v3701 = vrot.slane %v3700, 2
          %v3702 = vadd.f32 %v3700, %v3701
          %v3703 = vrot.slane %v3702, 1
          %v3704 = vadd.f32 %v3702, %v3703
          %v3705 = vadd.f32 %v3655, %v3659
          %v3706 = vadd.f32 %v3705, %v3663
          %v3707 = vadd.f32 %v3706, %v3667
          %v3708 = vadd.f32 %v3707, %v3671
          %v3709 = vadd.f32 %v3708, %v3675
          %v3710 = vadd.f32 %v3709, %v3679
          %v3711 = vrot.slane %v3710, 4
          %v3712 = vadd.f32 %v3710, %v3711
          %v3713 = vrot.slane %v3712, 2
          %v3714 = vadd.f32 %v3712, %v3713
          %v3715 = vrot.slane %v3714, 1
          %v3716 = vadd.f32 %v3714, %v3715
          %v3717 = vadd.f32 %v3656, %v3660
          %v3718 = vadd.f32 %v3717, %v3664
          %v3719 = vadd.f32 %v3718, %v3668
          %v3720 = vadd.f32 %v3719, %v3672
          %v3721 = vadd.f32 %v3720, %v3676
          %v3722 = vadd.f32 %v3721, %v3680
          %v3723 = vrot.slane %v3722, 4
          %v3724 = vadd.f32 %v3722, %v3723
          %v3725 = vrot.slane %v3724, 2
          %v3726 = vadd.f32 %v3724, %v3725
          %v3727 = vrot.slane %v3726, 1
          %v3728 = vadd.f32 %v3726, %v3727
          %v3729 = vmul.f32 %v3692, 0.020408163
          %v3730 = vmul.f32 %v3704, 0.020408163
          %v3731 = vmul.f32 %v3716, 0.020408163
          %v3732 = vmul.f32 %v3728, 0.020408163
          %v3733 = vadd.f32 %v3729, 1e-05
          %v3734 = vadd.f32 %v3730, 1e-05
          %v3735 = vadd.f32 %v3731, 1e-05
          %v3736 = vadd.f32 %v3732, 1e-05
          %v3737 = vrsqrt.pop %v3733
          %v3738 = vmul.f32 %v3737, %v3733
          %v3739 = vmul.f32 %v3738, %v3737
          %v3740 = vmul.f32 0.5, %v3739
          %v3741 = vsub.f32 1.5, %v3740
          %v3742 = vmul.f32 %v3737, %v3741
          %vm3743 = vweird.f32 %v3733
          %vm3744 = vweird.f32 %v3737
          %vm3745 = vmor %vm3743, %vm3744
          %v3746 = vsel %vm3745, %v3737, %v3742
          %v3747 = vrsqrt.pop %v3734
          %v3748 = vmul.f32 %v3747, %v3734
          %v3749 = vmul.f32 %v3748, %v3747
          %v3750 = vmul.f32 0.5, %v3749
          %v3751 = vsub.f32 1.5, %v3750
          %v3752 = vmul.f32 %v3747, %v3751
          %vm3753 = vweird.f32 %v3734
          %vm3754 = vweird.f32 %v3747
          %vm3755 = vmor %vm3753, %vm3754
          %v3756 = vsel %vm3755, %v3747, %v3752
          %v3757 = vrsqrt.pop %v3735
          %v3758 = vmul.f32 %v3757, %v3735
          %v3759 = vmul.f32 %v3758, %v3757
          %v3760 = vmul.f32 0.5, %v3759
          %v3761 = vsub.f32 1.5, %v3760
          %v3762 = vmul.f32 %v3757, %v3761
          %vm3763 = vweird.f32 %v3735
          %vm3764 = vweird.f32 %v3757
          %vm3765 = vmor %vm3763, %vm3764
          %v3766 = vsel %vm3765, %v3757, %v3762
          %v3767 = vrsqrt.pop %v3736
          %v3768 = vmul.f32 %v3767, %v3736
          %v3769 = vmul.f32 %v3768, %v3767
          %v3770 = vmul.f32 0.5, %v3769
          %v3771 = vsub.f32 1.5, %v3770
          %v3772 = vmul.f32 %v3767, %v3771
          %vm3773 = vweird.f32 %v3736
          %vm3774 = vweird.f32 %v3767
          %vm3775 = vmor %vm3773, %vm3774
          %v3776 = vsel %vm3775, %v3767, %v3772
          %v3777 = vmul.f32 %v3597, %v3746
          %v3778 = vmul.f32 %v3598, %v3756
          %v3779 = vmul.f32 %v3599, %v3766
          %v3780 = vmul.f32 %v3600, %v3776
          %v3781 = vmul.f32 %v3601, %v3746
          %v3782 = vmul.f32 %v3602, %v3756
          %v3783 = vmul.f32 %v3603, %v3766
          %v3784 = vmul.f32 %v3604, %v3776
          %v3785 = vmul.f32 %v3605, %v3746
          %v3786 = vmul.f32 %v3606, %v3756
          %v3787 = vmul.f32 %v3607, %v3766
          %v3788 = vmul.f32 %v3608, %v3776
          %v3789 = vmul.f32 %v3609, %v3746
          %v3790 = vmul.f32 %v3610, %v3756
          %v3791 = vmul.f32 %v3611, %v3766
          %v3792 = vmul.f32 %v3612, %v3776
          %v3793 = vmul.f32 %v3613, %v3746
          %v3794 = vmul.f32 %v3614, %v3756
          %v3795 = vmul.f32 %v3615, %v3766
          %v3796 = vmul.f32 %v3616, %v3776
          %v3797 = vmul.f32 %v3617, %v3746
          %v3798 = vmul.f32 %v3618, %v3756
          %v3799 = vmul.f32 %v3619, %v3766
          %v3800 = vmul.f32 %v3620, %v3776
          %v3801 = vmul.f32 %v3621, %v3746
          %v3802 = vmul.f32 %v3622, %v3756
          %v3803 = vmul.f32 %v3623, %v3766
          %v3804 = vmul.f32 %v3624, %v3776
          %v3805 = vld [vmem:[#allocation8] sm:$0xf]
          %v3807 = vperm.slane %v3805, 0
          %v3808 = vperm.slane %v3805, 1
          %v3809 = vperm.slane %v3805, 2
          %v3810 = vperm.slane %v3805, 3
          %v3815 = vmul.f32 %v3777, %v3807
          %v3816 = vmul.f32 %v3778, %v3808
          %v3817 = vmul.f32 %v3779, %v3809
          %v3818 = vmul.f32 %v3780, %v3810
          %v3819 = vmul.f32 %v3781, %v3807
          %v3820 = vmul.f32 %v3782, %v3808
          %v3821 = vmul.f32 %v3783, %v3809
          %v3822 = vmul.f32 %v3784, %v3810
          %v3823 = vmul.f32 %v3785, %v3807
          %v3824 = vmul.f32 %v3786, %v3808
          %v3825 = vmul.f32 %v3787, %v3809
          %v3826 = vmul.f32 %v3788, %v3810
          %v3827 = vmul.f32 %v3789, %v3807
          %v3828 = vmul.f32 %v3790, %v3808
          %v3829 = vmul.f32 %v3791, %v3809
          %v3830 = vmul.f32 %v3792, %v3810
          %v3831 = vmul.f32 %v3793, %v3807
          %v3832 = vmul.f32 %v3794, %v3808
          %v3833 = vmul.f32 %v3795, %v3809
          %v3834 = vmul.f32 %v3796, %v3810
          %v3835 = vmul.f32 %v3797, %v3807
          %v3836 = vmul.f32 %v3798, %v3808
          %v3837 = vmul.f32 %v3799, %v3809
          %v3838 = vmul.f32 %v3800, %v3810
          %v3839 = vmul.f32 %v3801, %v3807
          %v3840 = vmul.f32 %v3802, %v3808
          %v3841 = vmul.f32 %v3803, %v3809
          %v3842 = vmul.f32 %v3804, %v3810
          %v3843 = vld [vmem:[#allocation9] sm:$0xf]
          %v3845 = vperm.slane %v3843, 0
          %v3846 = vperm.slane %v3843, 1
          %v3847 = vperm.slane %v3843, 2
          %v3848 = vperm.slane %v3843, 3
          %v3853 = vadd.f32 %v3815, %v3845
          %v3854 = vadd.f32 %v3816, %v3846
          %v3855 = vadd.f32 %v3817, %v3847
          %v3856 = vadd.f32 %v3818, %v3848
          %v3857 = vadd.f32 %v3819, %v3845
          %v3858 = vadd.f32 %v3820, %v3846
          %v3859 = vadd.f32 %v3821, %v3847
          %v3860 = vadd.f32 %v3822, %v3848
          %v3861 = vadd.f32 %v3823, %v3845
          %v3862 = vadd.f32 %v3824, %v3846
          %v3863 = vadd.f32 %v3825, %v3847
          %v3864 = vadd.f32 %v3826, %v3848
          %v3865 = vadd.f32 %v3827, %v3845
          %v3866 = vadd.f32 %v3828, %v3846
          %v3867 = vadd.f32 %v3829, %v3847
          %v3868 = vadd.f32 %v3830, %v3848
          %v3869 = vadd.f32 %v3831, %v3845
          %v3870 = vadd.f32 %v3832, %v3846
          %v3871 = vadd.f32 %v3833, %v3847
          %v3872 = vadd.f32 %v3834, %v3848
          %v3873 = vadd.f32 %v3835, %v3845
          %v3874 = vadd.f32 %v3836, %v3846
          %v3875 = vadd.f32 %v3837, %v3847
          %v3876 = vadd.f32 %v3838, %v3848
          %v3877 = vadd.f32 %v3839, %v3845
          %v3878 = vadd.f32 %v3840, %v3846
          %v3879 = vadd.f32 %v3841, %v3847
          %v3880 = vadd.f32 %v3842, %v3848
          %v3881 = vmax.f32 %v3853, 0.0
          %v3882 = vmax.f32 %v3854, 0.0
          %v3883 = vmax.f32 %v3855, 0.0
          %v3884 = vmax.f32 %v3856, 0.0
          %v3885 = vmax.f32 %v3857, 0.0
          %v3886 = vmax.f32 %v3858, 0.0
          %v3887 = vmax.f32 %v3859, 0.0
          %v3888 = vmax.f32 %v3860, 0.0
          %v3889 = vmax.f32 %v3861, 0.0
          %v3890 = vmax.f32 %v3862, 0.0
          %v3891 = vmax.f32 %v3863, 0.0
          %v3892 = vmax.f32 %v3864, 0.0
          %v3893 = vmax.f32 %v3865, 0.0
          %v3894 = vmax.f32 %v3866, 0.0
          %v3895 = vmax.f32 %v3867, 0.0
          %v3896 = vmax.f32 %v3868, 0.0
          %v3897 = vmax.f32 %v3869, 0.0
          %v3898 = vmax.f32 %v3870, 0.0
          %v3899 = vmax.f32 %v3871, 0.0
          %v3900 = vmax.f32 %v3872, 0.0
          %v3901 = vmax.f32 %v3873, 0.0
          %v3902 = vmax.f32 %v3874, 0.0
          %v3903 = vmax.f32 %v3875, 0.0
          %v3904 = vmax.f32 %v3876, 0.0
          %v3905 = vmax.f32 %v3877, 0.0
          %v3906 = vmax.f32 %v3878, 0.0
          %v3907 = vmax.f32 %v3879, 0.0
          %v3908 = vmax.f32 %v3880, 0.0
          %v3909 = vpack.c.bf16 %v3885, %v3881
          %v3910 = vpack.c.bf16 %v3886, %v3882
          %v3911 = vpack.c.bf16 %v3887, %v3883
          %v3912 = vpack.c.bf16 %v3888, %v3884
          %v3913 = vpack.c.bf16 %v3893, %v3889
          %v3914 = vpack.c.bf16 %v3894, %v3890
          %v3915 = vpack.c.bf16 %v3895, %v3891
          %v3916 = vpack.c.bf16 %v3896, %v3892
          %v3917 = vpack.c.bf16 %v3901, %v3897
          %v3918 = vpack.c.bf16 %v3902, %v3898
          %v3919 = vpack.c.bf16 %v3903, %v3899
          %v3920 = vpack.c.bf16 %v3904, %v3900
          %v3921 = vpack.c.bf16 %v3905, %v3905
          %v3922 = vpack.c.bf16 %v3906, %v3906
          %v3923 = vpack.c.bf16 %v3907, %v3907
          %v3924 = vpack.c.bf16 %v3908, %v3908
          %v3925 = vld [vmem:[#allocation11] sm:$0xff]
          %v3926 = vld [vmem:[#allocation11 + $0x8] sm:$0xff]
          %v3927 = vld [vmem:[#allocation11 + $0x10] sm:$0xff]
          %v3928 = vld [vmem:[#allocation11 + $0x18] sm:$0xff]
          %v3929 = vld [vmem:[#allocation11 + $0x20] sm:$0xff]
          %v3930 = vld [vmem:[#allocation11 + $0x28] sm:$0xff]
          %v3931 = vld [vmem:[#allocation11 + $0x30] sm:$0xff]
          %v3932 = vld [vmem:[#allocation11 + $0x38] sm:$0xff]
          %v3933 = vld [vmem:[#allocation11 + $0x40] sm:$0xff]
          %v3934 = vld [vmem:[#allocation11 + $0x48] sm:$0xff]
          %v3935 = vld [vmem:[#allocation11 + $0x50] sm:$0xff]
          %v3936 = vld [vmem:[#allocation11 + $0x58] sm:$0xff]
          %v3937 = vld [vmem:[#allocation11 + $0x60] sm:$0xff]
          %v3938 = vld [vmem:[#allocation11 + $0x68] sm:$0xff]
          %v3939 = vld [vmem:[#allocation11 + $0x70] sm:$0xff]
          %v3940 = vld [vmem:[#allocation11 + $0x78] sm:$0xff]
          %v3941 = vld [vmem:[#allocation11 + $0x80] sm:$0xff]
          %v3942 = vld [vmem:[#allocation11 + $0x88] sm:$0xff]
          %v3943 = vld [vmem:[#allocation11 + $0x90] sm:$0xff]
          %v3944 = vld [vmem:[#allocation11 + $0x98] sm:$0xff]
          %v3945 = vld [vmem:[#allocation11 + $0xa0] sm:$0xff]
          %v3946 = vld [vmem:[#allocation11 + $0xa8] sm:$0xff]
          %v3947 = vld [vmem:[#allocation11 + $0xb0] sm:$0xff]
          %v3948 = vld [vmem:[#allocation11 + $0xb8] sm:$0xff]
          %v3949 = vld [vmem:[#allocation11 + $0xc0] sm:$0xff]
          %v3950 = vld [vmem:[#allocation11 + $0xc8] sm:$0xff]
          %v3951 = vld [vmem:[#allocation11 + $0xd0] sm:$0xff]
          %v3952 = vld [vmem:[#allocation11 + $0xd8] sm:$0xff]
          %v3953 = vld [vmem:[#allocation11 + $0xe0] sm:$0xff]
          %v3954 = vld [vmem:[#allocation11 + $0xe8] sm:$0xff]
          %v3955 = vld [vmem:[#allocation11 + $0xf0] sm:$0xff]
          %v3956 = vld [vmem:[#allocation11 + $0xf8] sm:$0xff]
          %v3957 = vld [vmem:[#allocation11 + $0x100] sm:$0xff]
          %v3958 = vld [vmem:[#allocation11 + $0x108] sm:$0xff]
          %v3959 = vld [vmem:[#allocation11 + $0x110] sm:$0xff]
          %v3960 = vld [vmem:[#allocation11 + $0x118] sm:$0xff]
          %v3961 = vld [vmem:[#allocation11 + $0x120] sm:$0xff]
          %v3962 = vld [vmem:[#allocation11 + $0x128] sm:$0xff]
          %v3963 = vld [vmem:[#allocation11 + $0x130] sm:$0xff]
          %v3964 = vld [vmem:[#allocation11 + $0x138] sm:$0xff]
          %v3965 = vld [vmem:[#allocation11 + $0x140] sm:$0xff]
          %v3966 = vld [vmem:[#allocation11 + $0x148] sm:$0xff]
          %v3967 = vld [vmem:[#allocation11 + $0x150] sm:$0xff]
          %v3968 = vld [vmem:[#allocation11 + $0x158] sm:$0xff]
          %v3969 = vld [vmem:[#allocation11 + $0x160] sm:$0xff]
          %v3970 = vld [vmem:[#allocation11 + $0x168] sm:$0xff]
          %v3971 = vld [vmem:[#allocation11 + $0x170] sm:$0xff]
          %v3972 = vld [vmem:[#allocation11 + $0x178] sm:$0xff]
          %v3973 = vld [vmem:[#allocation11 + $0x180] sm:$0xff]
          %v3974 = vld [vmem:[#allocation11 + $0x188] sm:$0xff]
          %v3975 = vld [vmem:[#allocation11 + $0x190] sm:$0xff]
          %v3976 = vld [vmem:[#allocation11 + $0x198] sm:$0xff]
          %v3977 = vld [vmem:[#allocation11 + $0x1a0] sm:$0xff]
          %v3978 = vld [vmem:[#allocation11 + $0x1a8] sm:$0xff]
          %v3979 = vld [vmem:[#allocation11 + $0x1b0] sm:$0xff]
          %v3980 = vld [vmem:[#allocation11 + $0x1b8] sm:$0xff]
          %v3981 = vld [vmem:[#allocation11 + $0x1c0] sm:$0xff]
          %v3982 = vld [vmem:[#allocation11 + $0x1c8] sm:$0xff]
          %v3983 = vld [vmem:[#allocation11 + $0x1d0] sm:$0xff]
          %v3984 = vld [vmem:[#allocation11 + $0x1d8] sm:$0xff]
          %v3985 = vld [vmem:[#allocation11 + $0x1e0] sm:$0xff]
          %v3986 = vld [vmem:[#allocation11 + $0x1e8] sm:$0xff]
          %v3987 = vld [vmem:[#allocation11 + $0x1f0] sm:$0xff]
          %v3988 = vld [vmem:[#allocation11 + $0x1f8] sm:$0xff]
          %v3989 = vld [vmem:[#allocation11 + $0x200] sm:$0xff]
          %v3990 = vld [vmem:[#allocation11 + $0x208] sm:$0xff]
          %v3991 = vld [vmem:[#allocation11 + $0x210] sm:$0xff]
          %v3992 = vld [vmem:[#allocation11 + $0x218] sm:$0xff]
          %v3993 = vld [vmem:[#allocation11 + $0x220] sm:$0xff]
          %v3994 = vld [vmem:[#allocation11 + $0x228] sm:$0xff]
          %v3995 = vld [vmem:[#allocation11 + $0x230] sm:$0xff]
          %v3996 = vld [vmem:[#allocation11 + $0x238] sm:$0xff]
          %v3997 = vld [vmem:[#allocation11 + $0x240] sm:$0xff]
          %v3998 = vld [vmem:[#allocation11 + $0x248] sm:$0xff]
          %v3999 = vld [vmem:[#allocation11 + $0x250] sm:$0xff]
          %v4000 = vld [vmem:[#allocation11 + $0x258] sm:$0xff]
          %v4001 = vld [vmem:[#allocation11 + $0x260] sm:$0xff]
          %v4002 = vld [vmem:[#allocation11 + $0x268] sm:$0xff]
          %v4003 = vld [vmem:[#allocation11 + $0x270] sm:$0xff]
          %v4004 = vld [vmem:[#allocation11 + $0x278] sm:$0xff]
          %v4005 = vld [vmem:[#allocation11 + $0x280] sm:$0xff]
          %v4006 = vld [vmem:[#allocation11 + $0x288] sm:$0xff]
          %v4007 = vld [vmem:[#allocation11 + $0x290] sm:$0xff]
          %v4008 = vld [vmem:[#allocation11 + $0x298] sm:$0xff]
          %v4009 = vld [vmem:[#allocation11 + $0x2a0] sm:$0xff]
          %v4010 = vld [vmem:[#allocation11 + $0x2a8] sm:$0xff]
          %v4011 = vld [vmem:[#allocation11 + $0x2b0] sm:$0xff]
          %v4012 = vld [vmem:[#allocation11 + $0x2b8] sm:$0xff]
          %v4013 = vld [vmem:[#allocation11 + $0x2c0] sm:$0xff]
          %v4014 = vld [vmem:[#allocation11 + $0x2c8] sm:$0xff]
          %v4015 = vld [vmem:[#allocation11 + $0x2d0] sm:$0xff]
          %v4016 = vld [vmem:[#allocation11 + $0x2d8] sm:$0xff]
          %v4017 = vld [vmem:[#allocation11 + $0x2e0] sm:$0xff]
          %v4018 = vld [vmem:[#allocation11 + $0x2e8] sm:$0xff]
          %v4019 = vld [vmem:[#allocation11 + $0x2f0] sm:$0xff]
          %v4020 = vld [vmem:[#allocation11 + $0x2f8] sm:$0xff]
          %v4021 = vld [vmem:[#allocation11 + $0x300] sm:$0xff]
          %v4022 = vld [vmem:[#allocation11 + $0x308] sm:$0xff]
          %v4023 = vld [vmem:[#allocation11 + $0x310] sm:$0xff]
          %v4024 = vld [vmem:[#allocation11 + $0x318] sm:$0xff]
          %v4025 = vld [vmem:[#allocation11 + $0x320] sm:$0xff]
          %v4026 = vld [vmem:[#allocation11 + $0x328] sm:$0xff]
          %v4027 = vld [vmem:[#allocation11 + $0x330] sm:$0xff]
          %v4028 = vld [vmem:[#allocation11 + $0x338] sm:$0xff]
          %v4029 = vld [vmem:[#allocation11 + $0x340] sm:$0xff]
          %v4030 = vld [vmem:[#allocation11 + $0x348] sm:$0xff]
          %v4031 = vld [vmem:[#allocation11 + $0x350] sm:$0xff]
          %v4032 = vld [vmem:[#allocation11 + $0x358] sm:$0xff]
          %v4033 = vld [vmem:[#allocation11 + $0x360] sm:$0xff]
          %v4034 = vld [vmem:[#allocation11 + $0x368] sm:$0xff]
          %v4035 = vld [vmem:[#allocation11 + $0x370] sm:$0xff]
          %v4036 = vld [vmem:[#allocation11 + $0x378] sm:$0xff]
          %v4037 = vld [vmem:[#allocation11 + $0x380] sm:$0xff]
          %v4038 = vld [vmem:[#allocation11 + $0x388] sm:$0xff]
          %v4039 = vld [vmem:[#allocation11 + $0x390] sm:$0xff]
          %v4040 = vld [vmem:[#allocation11 + $0x398] sm:$0xff]
          %v4041 = vld [vmem:[#allocation11 + $0x3a0] sm:$0xff]
          %v4042 = vld [vmem:[#allocation11 + $0x3a8] sm:$0xff]
          %v4043 = vld [vmem:[#allocation11 + $0x3b0] sm:$0xff]
          %v4044 = vld [vmem:[#allocation11 + $0x3b8] sm:$0xff]
          %v4045 = vld [vmem:[#allocation11 + $0x3c0] sm:$0xff]
          %v4046 = vld [vmem:[#allocation11 + $0x3c8] sm:$0xff]
          %v4047 = vld [vmem:[#allocation11 + $0x3d0] sm:$0xff]
          %v4048 = vld [vmem:[#allocation11 + $0x3d8] sm:$0xff]
          %v4049 = vld [vmem:[#allocation11 + $0x3e0] sm:$0xff]
          %v4050 = vld [vmem:[#allocation11 + $0x3e8] sm:$0xff]
          %v4051 = vld [vmem:[#allocation11 + $0x3f0] sm:$0xff]
          %v4052 = vld [vmem:[#allocation11 + $0x3f8] sm:$0xff]
          %v4053 = vld [vmem:[#allocation11 + $0x400] sm:$0xff]
          %v4054 = vld [vmem:[#allocation11 + $0x408] sm:$0xff]
          %v4055 = vld [vmem:[#allocation11 + $0x410] sm:$0xff]
          %v4056 = vld [vmem:[#allocation11 + $0x418] sm:$0xff]
          %v4057 = vld [vmem:[#allocation11 + $0x420] sm:$0xff]
          %v4058 = vld [vmem:[#allocation11 + $0x428] sm:$0xff]
          %v4059 = vld [vmem:[#allocation11 + $0x430] sm:$0xff]
          %v4060 = vld [vmem:[#allocation11 + $0x438] sm:$0xff]
          %v4061 = vld [vmem:[#allocation11 + $0x440] sm:$0xff]
          %v4062 = vld [vmem:[#allocation11 + $0x448] sm:$0xff]
          %v4063 = vld [vmem:[#allocation11 + $0x450] sm:$0xff]
          %v4064 = vld [vmem:[#allocation11 + $0x458] sm:$0xff]
          %v4065 = vld [vmem:[#allocation11 + $0x460] sm:$0xff]
          %v4066 = vld [vmem:[#allocation11 + $0x468] sm:$0xff]
          %v4067 = vld [vmem:[#allocation11 + $0x470] sm:$0xff]
          %v4068 = vld [vmem:[#allocation11 + $0x478] sm:$0xff]
          %v4069 = vld [vmem:[#allocation11 + $0x480] sm:$0xff]
          %v4070 = vld [vmem:[#allocation11 + $0x488] sm:$0xff]
          %v4071 = vld [vmem:[#allocation11 + $0x490] sm:$0xff]
          %v4072 = vld [vmem:[#allocation11 + $0x498] sm:$0xff]
          %v4073 = vld [vmem:[#allocation11 + $0x4a0] sm:$0xff]
          %v4074 = vld [vmem:[#allocation11 + $0x4a8] sm:$0xff]
          %v4075 = vld [vmem:[#allocation11 + $0x4b0] sm:$0xff]
          %v4076 = vld [vmem:[#allocation11 + $0x4b8] sm:$0xff]
          %v4077 = vld [vmem:[#allocation11 + $0x4c0] sm:$0xff]
          %v4078 = vld [vmem:[#allocation11 + $0x4c8] sm:$0xff]
          %v4079 = vld [vmem:[#allocation11 + $0x4d0] sm:$0xff]
          %v4080 = vld [vmem:[#allocation11 + $0x4d8] sm:$0xff]
          %v4081 = vld [vmem:[#allocation11 + $0x4e0] sm:$0xff]
          %v4082 = vld [vmem:[#allocation11 + $0x4e8] sm:$0xff]
          %v4083 = vld [vmem:[#allocation11 + $0x4f0] sm:$0xff]
          %v4084 = vld [vmem:[#allocation11 + $0x4f8] sm:$0xff]
          %v4085 = vld [vmem:[#allocation11 + $0x500] sm:$0xff]
          %v4086 = vld [vmem:[#allocation11 + $0x508] sm:$0xff]
          %v4087 = vld [vmem:[#allocation11 + $0x510] sm:$0xff]
          %v4088 = vld [vmem:[#allocation11 + $0x518] sm:$0xff]
          %v4089 = vld [vmem:[#allocation11 + $0x520] sm:$0xff]
          %v4090 = vld [vmem:[#allocation11 + $0x528] sm:$0xff]
          %v4091 = vld [vmem:[#allocation11 + $0x530] sm:$0xff]
          %v4092 = vld [vmem:[#allocation11 + $0x538] sm:$0xff]
          %v4093 = vld [vmem:[#allocation11 + $0x540] sm:$0xff]
          %v4094 = vld [vmem:[#allocation11 + $0x548] sm:$0xff]
          %v4095 = vld [vmem:[#allocation11 + $0x550] sm:$0xff]
          %v4096 = vld [vmem:[#allocation11 + $0x558] sm:$0xff]
          %v4097 = vld [vmem:[#allocation11 + $0x560] sm:$0xff]
          %v4098 = vld [vmem:[#allocation11 + $0x568] sm:$0xff]
          %v4099 = vld [vmem:[#allocation11 + $0x570] sm:$0xff]
          %v4100 = vld [vmem:[#allocation11 + $0x578] sm:$0xff]
          %v4101 = vld [vmem:[#allocation11 + $0x580] sm:$0xff]
          %v4102 = vld [vmem:[#allocation11 + $0x588] sm:$0xff]
          %v4103 = vld [vmem:[#allocation11 + $0x590] sm:$0xff]
          %v4104 = vld [vmem:[#allocation11 + $0x598] sm:$0xff]
          %v4105 = vld [vmem:[#allocation11 + $0x5a0] sm:$0xff]
          %v4106 = vld [vmem:[#allocation11 + $0x5a8] sm:$0xff]
          %v4107 = vld [vmem:[#allocation11 + $0x5b0] sm:$0xff]
          %v4108 = vld [vmem:[#allocation11 + $0x5b8] sm:$0xff]
          %v4109 = vld [vmem:[#allocation11 + $0x5c0] sm:$0xff]
          %v4110 = vld [vmem:[#allocation11 + $0x5c8] sm:$0xff]
          %v4111 = vld [vmem:[#allocation11 + $0x5d0] sm:$0xff]
          %v4112 = vld [vmem:[#allocation11 + $0x5d8] sm:$0xff]
          %v4113 = vld [vmem:[#allocation11 + $0x5e0] sm:$0xff]
          %v4114 = vld [vmem:[#allocation11 + $0x5e8] sm:$0xff]
          %v4115 = vld [vmem:[#allocation11 + $0x5f0] sm:$0xff]
          %v4116 = vld [vmem:[#allocation11 + $0x5f8] sm:$0xff]
          %v4117 = vld [vmem:[#allocation11 + $0x600] sm:$0xff]
          %v4118 = vld [vmem:[#allocation11 + $0x608] sm:$0xff]
          %v4119 = vld [vmem:[#allocation11 + $0x610] sm:$0xff]
          %v4120 = vld [vmem:[#allocation11 + $0x618] sm:$0xff]
          %v4121 = vld [vmem:[#allocation11 + $0x620] sm:$0xff]
          %v4122 = vld [vmem:[#allocation11 + $0x628] sm:$0xff]
          %v4123 = vld [vmem:[#allocation11 + $0x630] sm:$0xff]
          %v4124 = vld [vmem:[#allocation11 + $0x638] sm:$0xff]
          %v4125 = vld [vmem:[#allocation11 + $0x640] sm:$0xff]
          %v4126 = vld [vmem:[#allocation11 + $0x648] sm:$0xff]
          %v4127 = vld [vmem:[#allocation11 + $0x650] sm:$0xff]
          %v4128 = vld [vmem:[#allocation11 + $0x658] sm:$0xff]
          %v4129 = vld [vmem:[#allocation11 + $0x660] sm:$0xff]
          %v4130 = vld [vmem:[#allocation11 + $0x668] sm:$0xff]
          %v4131 = vld [vmem:[#allocation11 + $0x670] sm:$0xff]
          %v4132 = vld [vmem:[#allocation11 + $0x678] sm:$0xff]
          %v4133 = vld [vmem:[#allocation11 + $0x680] sm:$0xff]
          %v4134 = vld [vmem:[#allocation11 + $0x688] sm:$0xff]
          %v4135 = vld [vmem:[#allocation11 + $0x690] sm:$0xff]
          %v4136 = vld [vmem:[#allocation11 + $0x698] sm:$0xff]
          %v4137 = vld [vmem:[#allocation11 + $0x6a0] sm:$0xff]
          %v4138 = vld [vmem:[#allocation11 + $0x6a8] sm:$0xff]
          %v4139 = vld [vmem:[#allocation11 + $0x6b0] sm:$0xff]
          %v4140 = vld [vmem:[#allocation11 + $0x6b8] sm:$0xff]
          %v4141 = vld [vmem:[#allocation11 + $0x6c0] sm:$0xff]
          %v4142 = vld [vmem:[#allocation11 + $0x6c8] sm:$0xff]
          %v4143 = vld [vmem:[#allocation11 + $0x6d0] sm:$0xff]
          %v4144 = vld [vmem:[#allocation11 + $0x6d8] sm:$0xff]
          %v4145 = vld [vmem:[#allocation11 + $0x6e0] sm:$0xff]
          %v4146 = vld [vmem:[#allocation11 + $0x6e8] sm:$0xff]
          %v4147 = vld [vmem:[#allocation11 + $0x6f0] sm:$0xff]
          %v4148 = vld [vmem:[#allocation11 + $0x6f8] sm:$0xff]
          %v4149 = vld [vmem:[#allocation11 + $0x700] sm:$0xff]
          %v4150 = vld [vmem:[#allocation11 + $0x708] sm:$0xff]
          %v4151 = vld [vmem:[#allocation11 + $0x710] sm:$0xff]
          %v4152 = vld [vmem:[#allocation11 + $0x718] sm:$0xff]
          %v4153 = vld [vmem:[#allocation11 + $0x720] sm:$0xff]
          %v4154 = vld [vmem:[#allocation11 + $0x728] sm:$0xff]
          %v4155 = vld [vmem:[#allocation11 + $0x730] sm:$0xff]
          %v4156 = vld [vmem:[#allocation11 + $0x738] sm:$0xff]
          %v4157 = vld [vmem:[#allocation11 + $0x740] sm:$0xff]
          %v4158 = vld [vmem:[#allocation11 + $0x748] sm:$0xff]
          %v4159 = vld [vmem:[#allocation11 + $0x750] sm:$0xff]
          %v4160 = vld [vmem:[#allocation11 + $0x758] sm:$0xff]
          %v4161 = vld [vmem:[#allocation11 + $0x760] sm:$0xff]
          %v4162 = vld [vmem:[#allocation11 + $0x768] sm:$0xff]
          %v4163 = vld [vmem:[#allocation11 + $0x770] sm:$0xff]
          %v4164 = vld [vmem:[#allocation11 + $0x778] sm:$0xff]
          %v4165 = vld [vmem:[#allocation11 + $0x780] sm:$0xff]
          %v4166 = vld [vmem:[#allocation11 + $0x788] sm:$0xff]
          %v4167 = vld [vmem:[#allocation11 + $0x790] sm:$0xff]
          %v4168 = vld [vmem:[#allocation11 + $0x798] sm:$0xff]
          %v4169 = vld [vmem:[#allocation11 + $0x7a0] sm:$0xff]
          %v4170 = vld [vmem:[#allocation11 + $0x7a8] sm:$0xff]
          %v4171 = vld [vmem:[#allocation11 + $0x7b0] sm:$0xff]
          %v4172 = vld [vmem:[#allocation11 + $0x7b8] sm:$0xff]
          %v4173 = vld [vmem:[#allocation11 + $0x7c0] sm:$0xff]
          %v4174 = vld [vmem:[#allocation11 + $0x7c8] sm:$0xff]
          %v4175 = vld [vmem:[#allocation11 + $0x7d0] sm:$0xff]
          %v4176 = vld [vmem:[#allocation11 + $0x7d8] sm:$0xff]
          %v4177 = vld [vmem:[#allocation11 + $0x7e0] sm:$0xff]
          %v4178 = vld [vmem:[#allocation11 + $0x7e8] sm:$0xff]
          %v4179 = vld [vmem:[#allocation11 + $0x7f0] sm:$0xff]
          %v4180 = vld [vmem:[#allocation11 + $0x7f8] sm:$0xff]
          %v4181 = vld [vmem:[#allocation11 + $0x800] sm:$0xff]
          %v4182 = vld [vmem:[#allocation11 + $0x808] sm:$0xff]
          %v4183 = vld [vmem:[#allocation11 + $0x810] sm:$0xff]
          %v4184 = vld [vmem:[#allocation11 + $0x818] sm:$0xff]
          %v4185 = vld [vmem:[#allocation11 + $0x820] sm:$0xff]
          %v4186 = vld [vmem:[#allocation11 + $0x828] sm:$0xff]
          %v4187 = vld [vmem:[#allocation11 + $0x830] sm:$0xff]
          %v4188 = vld [vmem:[#allocation11 + $0x838] sm:$0xff]
          %v4189 = vld [vmem:[#allocation11 + $0x840] sm:$0xff]
          %v4190 = vld [vmem:[#allocation11 + $0x848] sm:$0xff]
          %v4191 = vld [vmem:[#allocation11 + $0x850] sm:$0xff]
          %v4192 = vld [vmem:[#allocation11 + $0x858] sm:$0xff]
          %v4193 = vld [vmem:[#allocation11 + $0x860] sm:$0xff]
          %v4194 = vld [vmem:[#allocation11 + $0x868] sm:$0xff]
          %v4195 = vld [vmem:[#allocation11 + $0x870] sm:$0xff]
          %v4196 = vld [vmem:[#allocation11 + $0x878] sm:$0xff]
          %v4197 = vld [vmem:[#allocation11 + $0x880] sm:$0xff]
          %v4198 = vld [vmem:[#allocation11 + $0x888] sm:$0xff]
          %v4199 = vld [vmem:[#allocation11 + $0x890] sm:$0xff]
          %v4200 = vld [vmem:[#allocation11 + $0x898] sm:$0xff]
          %v4201 = vld [vmem:[#allocation11 + $0x8a0] sm:$0xff]
          %v4202 = vld [vmem:[#allocation11 + $0x8a8] sm:$0xff]
          %v4203 = vld [vmem:[#allocation11 + $0x8b0] sm:$0xff]
          %v4204 = vld [vmem:[#allocation11 + $0x8b8] sm:$0xff]
          %v4205 = vld [vmem:[#allocation11 + $0x8c0] sm:$0xff]
          %v4206 = vld [vmem:[#allocation11 + $0x8c8] sm:$0xff]
          %v4207 = vld [vmem:[#allocation11 + $0x8d0] sm:$0xff]
          %v4208 = vld [vmem:[#allocation11 + $0x8d8] sm:$0xff]
          %v4209 = vld [vmem:[#allocation11 + $0x8e0] sm:$0xff]
          %v4210 = vld [vmem:[#allocation11 + $0x8e8] sm:$0xff]
          %v4211 = vld [vmem:[#allocation11 + $0x8f0] sm:$0xff]
          %v4212 = vld [vmem:[#allocation11 + $0x8f8] sm:$0xff]
          %v4213 = vld [vmem:[#allocation11 + $0x900] sm:$0xff]
          %v4214 = vld [vmem:[#allocation11 + $0x908] sm:$0xff]
          %v4215 = vld [vmem:[#allocation11 + $0x910] sm:$0xff]
          %v4216 = vld [vmem:[#allocation11 + $0x918] sm:$0xff]
          %v4217 = vld [vmem:[#allocation11 + $0x920] sm:$0xff]
          %v4218 = vld [vmem:[#allocation11 + $0x928] sm:$0xff]
          %v4219 = vld [vmem:[#allocation11 + $0x930] sm:$0xff]
          %v4220 = vld [vmem:[#allocation11 + $0x938] sm:$0xff]
          %v4221 = vld [vmem:[#allocation11 + $0x940] sm:$0xff]
          %v4222 = vld [vmem:[#allocation11 + $0x948] sm:$0xff]
          %v4223 = vld [vmem:[#allocation11 + $0x950] sm:$0xff]
          %v4224 = vld [vmem:[#allocation11 + $0x958] sm:$0xff]
          %v4225 = vld [vmem:[#allocation11 + $0x960] sm:$0xff]
          %v4226 = vld [vmem:[#allocation11 + $0x968] sm:$0xff]
          %v4227 = vld [vmem:[#allocation11 + $0x970] sm:$0xff]
          %v4228 = vld [vmem:[#allocation11 + $0x978] sm:$0xff]
          %v4229 = vld [vmem:[#allocation11 + $0x980] sm:$0xff]
          %v4230 = vld [vmem:[#allocation11 + $0x988] sm:$0xff]
          %v4231 = vld [vmem:[#allocation11 + $0x990] sm:$0xff]
          %v4232 = vld [vmem:[#allocation11 + $0x998] sm:$0xff]
          %v4233 = vld [vmem:[#allocation11 + $0x9a0] sm:$0xff]
          %v4234 = vld [vmem:[#allocation11 + $0x9a8] sm:$0xff]
          %v4235 = vld [vmem:[#allocation11 + $0x9b0] sm:$0xff]
          %v4236 = vld [vmem:[#allocation11 + $0x9b8] sm:$0xff]
          %v4237 = vld [vmem:[#allocation11 + $0x9c0] sm:$0xff]
          %v4238 = vld [vmem:[#allocation11 + $0x9c8] sm:$0xff]
          %v4239 = vld [vmem:[#allocation11 + $0x9d0] sm:$0xff]
          %v4240 = vld [vmem:[#allocation11 + $0x9d8] sm:$0xff]
          %v4241 = vld [vmem:[#allocation11 + $0x9e0] sm:$0xff]
          %v4242 = vld [vmem:[#allocation11 + $0x9e8] sm:$0xff]
          %v4243 = vld [vmem:[#allocation11 + $0x9f0] sm:$0xff]
          %v4244 = vld [vmem:[#allocation11 + $0x9f8] sm:$0xff]
          %v4245 = vld [vmem:[#allocation11 + $0xa00] sm:$0xff]
          %v4246 = vld [vmem:[#allocation11 + $0xa08] sm:$0xff]
          %v4247 = vld [vmem:[#allocation11 + $0xa10] sm:$0xff]
          %v4248 = vld [vmem:[#allocation11 + $0xa18] sm:$0xff]
          %v4249 = vld [vmem:[#allocation11 + $0xa20] sm:$0xff]
          %v4250 = vld [vmem:[#allocation11 + $0xa28] sm:$0xff]
          %v4251 = vld [vmem:[#allocation11 + $0xa30] sm:$0xff]
          %v4252 = vld [vmem:[#allocation11 + $0xa38] sm:$0xff]
          %v4253 = vld [vmem:[#allocation11 + $0xa40] sm:$0xff]
          %v4254 = vld [vmem:[#allocation11 + $0xa48] sm:$0xff]
          %v4255 = vld [vmem:[#allocation11 + $0xa50] sm:$0xff]
          %v4256 = vld [vmem:[#allocation11 + $0xa58] sm:$0xff]
          %v4257 = vld [vmem:[#allocation11 + $0xa60] sm:$0xff]
          %v4258 = vld [vmem:[#allocation11 + $0xa68] sm:$0xff]
          %v4259 = vld [vmem:[#allocation11 + $0xa70] sm:$0xff]
          %v4260 = vld [vmem:[#allocation11 + $0xa78] sm:$0xff]
          %v4261 = vld [vmem:[#allocation11 + $0xa80] sm:$0xff]
          %v4262 = vld [vmem:[#allocation11 + $0xa88] sm:$0xff]
          %v4263 = vld [vmem:[#allocation11 + $0xa90] sm:$0xff]
          %v4264 = vld [vmem:[#allocation11 + $0xa98] sm:$0xff]
          %v4265 = vld [vmem:[#allocation11 + $0xaa0] sm:$0xff]
          %v4266 = vld [vmem:[#allocation11 + $0xaa8] sm:$0xff]
          %v4267 = vld [vmem:[#allocation11 + $0xab0] sm:$0xff]
          %v4268 = vld [vmem:[#allocation11 + $0xab8] sm:$0xff]
          %v4269 = vld [vmem:[#allocation11 + $0xac0] sm:$0xff]
          %v4270 = vld [vmem:[#allocation11 + $0xac8] sm:$0xff]
          %v4271 = vld [vmem:[#allocation11 + $0xad0] sm:$0xff]
          %v4272 = vld [vmem:[#allocation11 + $0xad8] sm:$0xff]
          %v4273 = vld [vmem:[#allocation11 + $0xae0] sm:$0xff]
          %v4274 = vld [vmem:[#allocation11 + $0xae8] sm:$0xff]
          %v4275 = vld [vmem:[#allocation11 + $0xaf0] sm:$0xff]
          %v4276 = vld [vmem:[#allocation11 + $0xaf8] sm:$0xff]
          %v4277 = vld [vmem:[#allocation11 + $0xb00] sm:$0xff]
          %v4278 = vld [vmem:[#allocation11 + $0xb08] sm:$0xff]
          %v4279 = vld [vmem:[#allocation11 + $0xb10] sm:$0xff]
          %v4280 = vld [vmem:[#allocation11 + $0xb18] sm:$0xff]
          %v4281 = vld [vmem:[#allocation11 + $0xb20] sm:$0xff]
          %v4282 = vld [vmem:[#allocation11 + $0xb28] sm:$0xff]
          %v4283 = vld [vmem:[#allocation11 + $0xb30] sm:$0xff]
          %v4284 = vld [vmem:[#allocation11 + $0xb38] sm:$0xff]
          %v4285 = vld [vmem:[#allocation11 + $0xb40] sm:$0xff]
          %v4286 = vld [vmem:[#allocation11 + $0xb48] sm:$0xff]
          %v4287 = vld [vmem:[#allocation11 + $0xb50] sm:$0xff]
          %v4288 = vld [vmem:[#allocation11 + $0xb58] sm:$0xff]
          %v4289 = vld [vmem:[#allocation11 + $0xb60] sm:$0xff]
          %v4290 = vld [vmem:[#allocation11 + $0xb68] sm:$0xff]
          %v4291 = vld [vmem:[#allocation11 + $0xb70] sm:$0xff]
          %v4292 = vld [vmem:[#allocation11 + $0xb78] sm:$0xff]
          %v4293 = vld [vmem:[#allocation11 + $0xb80] sm:$0xff]
          %v4294 = vld [vmem:[#allocation11 + $0xb88] sm:$0xff]
          %v4295 = vld [vmem:[#allocation11 + $0xb90] sm:$0xff]
          %v4296 = vld [vmem:[#allocation11 + $0xb98] sm:$0xff]
          %v4297 = vld [vmem:[#allocation11 + $0xba0] sm:$0xff]
          %v4298 = vld [vmem:[#allocation11 + $0xba8] sm:$0xff]
          %v4299 = vld [vmem:[#allocation11 + $0xbb0] sm:$0xff]
          %v4300 = vld [vmem:[#allocation11 + $0xbb8] sm:$0xff]
          %v4301 = vld [vmem:[#allocation11 + $0xbc0] sm:$0xff]
          %v4302 = vld [vmem:[#allocation11 + $0xbc8] sm:$0xff]
          %v4303 = vld [vmem:[#allocation11 + $0xbd0] sm:$0xff]
          %v4304 = vld [vmem:[#allocation11 + $0xbd8] sm:$0xff]
          %v4305 = vld [vmem:[#allocation11 + $0xbe0] sm:$0xff]
          %v4306 = vld [vmem:[#allocation11 + $0xbe8] sm:$0xff]
          %v4307 = vld [vmem:[#allocation11 + $0xbf0] sm:$0xff]
          %v4308 = vld [vmem:[#allocation11 + $0xbf8] sm:$0xff]
          %v4309 = vld [vmem:[#allocation11 + $0xc00] sm:$0xff]
          %v4310 = vld [vmem:[#allocation11 + $0xc08] sm:$0xff]
          %v4311 = vld [vmem:[#allocation11 + $0xc10] sm:$0xff]
          %v4312 = vld [vmem:[#allocation11 + $0xc18] sm:$0xff]
          %v4313 = vld [vmem:[#allocation11 + $0xc20] sm:$0xff]
          %v4314 = vld [vmem:[#allocation11 + $0xc28] sm:$0xff]
          %v4315 = vld [vmem:[#allocation11 + $0xc30] sm:$0xff]
          %v4316 = vld [vmem:[#allocation11 + $0xc38] sm:$0xff]
          %v4317 = vld [vmem:[#allocation11 + $0xc40] sm:$0xff]
          %v4318 = vld [vmem:[#allocation11 + $0xc48] sm:$0xff]
          %v4319 = vld [vmem:[#allocation11 + $0xc50] sm:$0xff]
          %v4320 = vld [vmem:[#allocation11 + $0xc58] sm:$0xff]
          %v4321 = vld [vmem:[#allocation11 + $0xc60] sm:$0xff]
          %v4322 = vld [vmem:[#allocation11 + $0xc68] sm:$0xff]
          %v4323 = vld [vmem:[#allocation11 + $0xc70] sm:$0xff]
          %v4324 = vld [vmem:[#allocation11 + $0xc78] sm:$0xff]
          %v4325 = vld [vmem:[#allocation11 + $0xc80] sm:$0xff]
          %v4326 = vld [vmem:[#allocation11 + $0xc88] sm:$0xff]
          %v4327 = vld [vmem:[#allocation11 + $0xc90] sm:$0xff]
          %v4328 = vld [vmem:[#allocation11 + $0xc98] sm:$0xff]
          %v4329 = vld [vmem:[#allocation11 + $0xca0] sm:$0xff]
          %v4330 = vld [vmem:[#allocation11 + $0xca8] sm:$0xff]
          %v4331 = vld [vmem:[#allocation11 + $0xcb0] sm:$0xff]
          %v4332 = vld [vmem:[#allocation11 + $0xcb8] sm:$0xff]
          %v4333 = vld [vmem:[#allocation11 + $0xcc0] sm:$0xff]
          %v4334 = vld [vmem:[#allocation11 + $0xcc8] sm:$0xff]
          %v4335 = vld [vmem:[#allocation11 + $0xcd0] sm:$0xff]
          %v4336 = vld [vmem:[#allocation11 + $0xcd8] sm:$0xff]
          %v4337 = vld [vmem:[#allocation11 + $0xce0] sm:$0xff]
          %v4338 = vld [vmem:[#allocation11 + $0xce8] sm:$0xff]
          %v4339 = vld [vmem:[#allocation11 + $0xcf0] sm:$0xff]
          %v4340 = vld [vmem:[#allocation11 + $0xcf8] sm:$0xff]
          %v4341 = vld [vmem:[#allocation11 + $0xd00] sm:$0xff]
          %v4342 = vld [vmem:[#allocation11 + $0xd08] sm:$0xff]
          %v4343 = vld [vmem:[#allocation11 + $0xd10] sm:$0xff]
          %v4344 = vld [vmem:[#allocation11 + $0xd18] sm:$0xff]
          %v4345 = vld [vmem:[#allocation11 + $0xd20] sm:$0xff]
          %v4346 = vld [vmem:[#allocation11 + $0xd28] sm:$0xff]
          %v4347 = vld [vmem:[#allocation11 + $0xd30] sm:$0xff]
          %v4348 = vld [vmem:[#allocation11 + $0xd38] sm:$0xff]
          %v4349 = vld [vmem:[#allocation11 + $0xd40] sm:$0xff]
          %v4350 = vld [vmem:[#allocation11 + $0xd48] sm:$0xff]
          %v4351 = vld [vmem:[#allocation11 + $0xd50] sm:$0xff]
          %v4352 = vld [vmem:[#allocation11 + $0xd58] sm:$0xff]
          %v4353 = vld [vmem:[#allocation11 + $0xd60] sm:$0xff]
          %v4354 = vld [vmem:[#allocation11 + $0xd68] sm:$0xff]
          %v4355 = vld [vmem:[#allocation11 + $0xd70] sm:$0xff]
          %v4356 = vld [vmem:[#allocation11 + $0xd78] sm:$0xff]
          %v4357 = vld [vmem:[#allocation11 + $0xd80] sm:$0xff]
          %v4358 = vld [vmem:[#allocation11 + $0xd88] sm:$0xff]
          %v4359 = vld [vmem:[#allocation11 + $0xd90] sm:$0xff]
          %v4360 = vld [vmem:[#allocation11 + $0xd98] sm:$0xff]
          %v4361 = vld [vmem:[#allocation11 + $0xda0] sm:$0xff]
          %v4362 = vld [vmem:[#allocation11 + $0xda8] sm:$0xff]
          %v4363 = vld [vmem:[#allocation11 + $0xdb0] sm:$0xff]
          %v4364 = vld [vmem:[#allocation11 + $0xdb8] sm:$0xff]
          %v4365 = vld [vmem:[#allocation11 + $0xdc0] sm:$0xff]
          %v4366 = vld [vmem:[#allocation11 + $0xdc8] sm:$0xff]
          %v4367 = vld [vmem:[#allocation11 + $0xdd0] sm:$0xff]
          %v4368 = vld [vmem:[#allocation11 + $0xdd8] sm:$0xff]
          %v4369 = vld [vmem:[#allocation11 + $0xde0] sm:$0xff]
          %v4370 = vld [vmem:[#allocation11 + $0xde8] sm:$0xff]
          %v4371 = vld [vmem:[#allocation11 + $0xdf0] sm:$0xff]
          %v4372 = vld [vmem:[#allocation11 + $0xdf8] sm:$0xff]
          %v4373 = vld [vmem:[#allocation11 + $0xe00] sm:$0xff]
          %v4374 = vld [vmem:[#allocation11 + $0xe08] sm:$0xff]
          %v4375 = vld [vmem:[#allocation11 + $0xe10] sm:$0xff]
          %v4376 = vld [vmem:[#allocation11 + $0xe18] sm:$0xff]
          %v4377 = vld [vmem:[#allocation11 + $0xe20] sm:$0xff]
          %v4378 = vld [vmem:[#allocation11 + $0xe28] sm:$0xff]
          %v4379 = vld [vmem:[#allocation11 + $0xe30] sm:$0xff]
          %v4380 = vld [vmem:[#allocation11 + $0xe38] sm:$0xff]
          %v4381 = vld [vmem:[#allocation11 + $0xe40] sm:$0xff]
          %v4382 = vld [vmem:[#allocation11 + $0xe48] sm:$0xff]
          %v4383 = vld [vmem:[#allocation11 + $0xe50] sm:$0xff]
          %v4384 = vld [vmem:[#allocation11 + $0xe58] sm:$0xff]
          %v4385 = vld [vmem:[#allocation11 + $0xe60] sm:$0xff]
          %v4386 = vld [vmem:[#allocation11 + $0xe68] sm:$0xff]
          %v4387 = vld [vmem:[#allocation11 + $0xe70] sm:$0xff]
          %v4388 = vld [vmem:[#allocation11 + $0xe78] sm:$0xff]
          %v4389 = vld [vmem:[#allocation11 + $0xe80] sm:$0xff]
          %v4390 = vld [vmem:[#allocation11 + $0xe88] sm:$0xff]
          %v4391 = vld [vmem:[#allocation11 + $0xe90] sm:$0xff]
          %v4392 = vld [vmem:[#allocation11 + $0xe98] sm:$0xff]
          %v4393 = vld [vmem:[#allocation11 + $0xea0] sm:$0xff]
          %v4394 = vld [vmem:[#allocation11 + $0xea8] sm:$0xff]
          %v4395 = vld [vmem:[#allocation11 + $0xeb0] sm:$0xff]
          %v4396 = vld [vmem:[#allocation11 + $0xeb8] sm:$0xff]
          %v4397 = vld [vmem:[#allocation11 + $0xec0] sm:$0xff]
          %v4398 = vld [vmem:[#allocation11 + $0xec8] sm:$0xff]
          %v4399 = vld [vmem:[#allocation11 + $0xed0] sm:$0xff]
          %v4400 = vld [vmem:[#allocation11 + $0xed8] sm:$0xff]
          %v4401 = vld [vmem:[#allocation11 + $0xee0] sm:$0xff]
          %v4402 = vld [vmem:[#allocation11 + $0xee8] sm:$0xff]
          %v4403 = vld [vmem:[#allocation11 + $0xef0] sm:$0xff]
          %v4404 = vld [vmem:[#allocation11 + $0xef8] sm:$0xff]
          %v4405 = vld [vmem:[#allocation11 + $0xf00] sm:$0xff]
          %v4406 = vld [vmem:[#allocation11 + $0xf08] sm:$0xff]
          %v4407 = vld [vmem:[#allocation11 + $0xf10] sm:$0xff]
          %v4408 = vld [vmem:[#allocation11 + $0xf18] sm:$0xff]
          %v4409 = vld [vmem:[#allocation11 + $0xf20] sm:$0xff]
          %v4410 = vld [vmem:[#allocation11 + $0xf28] sm:$0xff]
          %v4411 = vld [vmem:[#allocation11 + $0xf30] sm:$0xff]
          %v4412 = vld [vmem:[#allocation11 + $0xf38] sm:$0xff]
          %v4413 = vld [vmem:[#allocation11 + $0xf40] sm:$0xff]
          %v4414 = vld [vmem:[#allocation11 + $0xf48] sm:$0xff]
          %v4415 = vld [vmem:[#allocation11 + $0xf50] sm:$0xff]
          %v4416 = vld [vmem:[#allocation11 + $0xf58] sm:$0xff]
          %v4417 = vld [vmem:[#allocation11 + $0xf60] sm:$0xff]
          %v4418 = vld [vmem:[#allocation11 + $0xf68] sm:$0xff]
          %v4419 = vld [vmem:[#allocation11 + $0xf70] sm:$0xff]
          %v4420 = vld [vmem:[#allocation11 + $0xf78] sm:$0xff]
          %v4421 = vld [vmem:[#allocation11 + $0xf80] sm:$0xff]
          %v4422 = vld [vmem:[#allocation11 + $0xf88] sm:$0xff]
          %v4423 = vld [vmem:[#allocation11 + $0xf90] sm:$0xff]
          %v4424 = vld [vmem:[#allocation11 + $0xf98] sm:$0xff]
          %v4425 = vld [vmem:[#allocation11 + $0xfa0] sm:$0xff]
          %v4426 = vld [vmem:[#allocation11 + $0xfa8] sm:$0xff]
          %v4427 = vld [vmem:[#allocation11 + $0xfb0] sm:$0xff]
          %v4428 = vld [vmem:[#allocation11 + $0xfb8] sm:$0xff]
          %v4429 = vld [vmem:[#allocation11 + $0xfc0] sm:$0xff]
          %v4430 = vld [vmem:[#allocation11 + $0xfc8] sm:$0xff]
          %v4431 = vld [vmem:[#allocation11 + $0xfd0] sm:$0xff]
          %v4432 = vld [vmem:[#allocation11 + $0xfd8] sm:$0xff]
          %v4433 = vld [vmem:[#allocation11 + $0xfe0] sm:$0xff]
          %v4434 = vld [vmem:[#allocation11 + $0xfe8] sm:$0xff]
          %v4435 = vld [vmem:[#allocation11 + $0xff0] sm:$0xff]
          %v4436 = vld [vmem:[#allocation11 + $0xff8] sm:$0xff]
          %v4949 = vunpack.c.l.b16 %v3925
          %v4950 = vunpack.c.h.b16 %v3925
          %v4951 = vunpack.c.l.b16 %v3926
          %v4952 = vunpack.c.h.b16 %v3926
          %v4953 = vunpack.c.l.b16 %v3927
          %v4954 = vunpack.c.h.b16 %v3927
          %v4955 = vunpack.c.l.b16 %v3928
          %v4956 = vunpack.c.h.b16 %v3928
          %v4957 = vunpack.c.l.b16 %v3929
          %v4958 = vunpack.c.h.b16 %v3929
          %v4959 = vunpack.c.l.b16 %v3930
          %v4960 = vunpack.c.h.b16 %v3930
          %v4961 = vunpack.c.l.b16 %v3931
          %v4962 = vunpack.c.h.b16 %v3931
          %v4963 = vunpack.c.l.b16 %v3932
          %v4964 = vunpack.c.h.b16 %v3932
          %v4965 = vunpack.c.l.b16 %v3933
          %v4966 = vunpack.c.h.b16 %v3933
          %v4967 = vunpack.c.l.b16 %v3934
          %v4968 = vunpack.c.h.b16 %v3934
          %v4969 = vunpack.c.l.b16 %v3935
          %v4970 = vunpack.c.h.b16 %v3935
          %v4971 = vunpack.c.l.b16 %v3936
          %v4972 = vunpack.c.h.b16 %v3936
          %v4973 = vunpack.c.l.b16 %v3937
          %v4974 = vunpack.c.h.b16 %v3937
          %v4975 = vunpack.c.l.b16 %v3938
          %v4976 = vunpack.c.h.b16 %v3938
          %v4977 = vunpack.c.l.b16 %v3939
          %v4978 = vunpack.c.h.b16 %v3939
          %v4979 = vunpack.c.l.b16 %v3940
          %v4980 = vunpack.c.h.b16 %v3940
          %v4981 = vunpack.c.l.b16 %v3941
          %v4982 = vunpack.c.h.b16 %v3941
          %v4983 = vunpack.c.l.b16 %v3942
          %v4984 = vunpack.c.h.b16 %v3942
          %v4985 = vunpack.c.l.b16 %v3943
          %v4986 = vunpack.c.h.b16 %v3943
          %v4987 = vunpack.c.l.b16 %v3944
          %v4988 = vunpack.c.h.b16 %v3944
          %v4989 = vunpack.c.l.b16 %v3945
          %v4990 = vunpack.c.h.b16 %v3945
          %v4991 = vunpack.c.l.b16 %v3946
          %v4992 = vunpack.c.h.b16 %v3946
          %v4993 = vunpack.c.l.b16 %v3947
          %v4994 = vunpack.c.h.b16 %v3947
          %v4995 = vunpack.c.l.b16 %v3948
          %v4996 = vunpack.c.h.b16 %v3948
          %v4997 = vunpack.c.l.b16 %v3949
          %v4998 = vunpack.c.h.b16 %v3949
          %v4999 = vunpack.c.l.b16 %v3950
          %v5000 = vunpack.c.h.b16 %v3950
          %v5001 = vunpack.c.l.b16 %v3951
          %v5002 = vunpack.c.h.b16 %v3951
          %v5003 = vunpack.c.l.b16 %v3952
          %v5004 = vunpack.c.h.b16 %v3952
          %v5005 = vunpack.c.l.b16 %v3953
          %v5006 = vunpack.c.h.b16 %v3953
          %v5007 = vunpack.c.l.b16 %v3954
          %v5008 = vunpack.c.h.b16 %v3954
          %v5009 = vunpack.c.l.b16 %v3955
          %v5010 = vunpack.c.h.b16 %v3955
          %v5011 = vunpack.c.l.b16 %v3956
          %v5012 = vunpack.c.h.b16 %v3956
          %v5013 = vunpack.c.l.b16 %v3957
          %v5014 = vunpack.c.h.b16 %v3957
          %v5015 = vunpack.c.l.b16 %v3958
          %v5016 = vunpack.c.h.b16 %v3958
          %v5017 = vunpack.c.l.b16 %v3959
          %v5018 = vunpack.c.h.b16 %v3959
          %v5019 = vunpack.c.l.b16 %v3960
          %v5020 = vunpack.c.h.b16 %v3960
          %v5021 = vunpack.c.l.b16 %v3961
          %v5022 = vunpack.c.h.b16 %v3961
          %v5023 = vunpack.c.l.b16 %v3962
          %v5024 = vunpack.c.h.b16 %v3962
          %v5025 = vunpack.c.l.b16 %v3963
          %v5026 = vunpack.c.h.b16 %v3963
          %v5027 = vunpack.c.l.b16 %v3964
          %v5028 = vunpack.c.h.b16 %v3964
          %v5029 = vunpack.c.l.b16 %v3965
          %v5030 = vunpack.c.h.b16 %v3965
          %v5031 = vunpack.c.l.b16 %v3966
          %v5032 = vunpack.c.h.b16 %v3966
          %v5033 = vunpack.c.l.b16 %v3967
          %v5034 = vunpack.c.h.b16 %v3967
          %v5035 = vunpack.c.l.b16 %v3968
          %v5036 = vunpack.c.h.b16 %v3968
          %v5037 = vunpack.c.l.b16 %v3969
          %v5038 = vunpack.c.h.b16 %v3969
          %v5039 = vunpack.c.l.b16 %v3970
          %v5040 = vunpack.c.h.b16 %v3970
          %v5041 = vunpack.c.l.b16 %v3971
          %v5042 = vunpack.c.h.b16 %v3971
          %v5043 = vunpack.c.l.b16 %v3972
          %v5044 = vunpack.c.h.b16 %v3972
          %v5045 = vunpack.c.l.b16 %v3973
          %v5046 = vunpack.c.h.b16 %v3973
          %v5047 = vunpack.c.l.b16 %v3974
          %v5048 = vunpack.c.h.b16 %v3974
          %v5049 = vunpack.c.l.b16 %v3975
          %v5050 = vunpack.c.h.b16 %v3975
          %v5051 = vunpack.c.l.b16 %v3976
          %v5052 = vunpack.c.h.b16 %v3976
          %v5053 = vunpack.c.l.b16 %v3977
          %v5054 = vunpack.c.h.b16 %v3977
          %v5055 = vunpack.c.l.b16 %v3978
          %v5056 = vunpack.c.h.b16 %v3978
          %v5057 = vunpack.c.l.b16 %v3979
          %v5058 = vunpack.c.h.b16 %v3979
          %v5059 = vunpack.c.l.b16 %v3980
          %v5060 = vunpack.c.h.b16 %v3980
          %v5061 = vunpack.c.l.b16 %v3981
          %v5062 = vunpack.c.h.b16 %v3981
          %v5063 = vunpack.c.l.b16 %v3982
          %v5064 = vunpack.c.h.b16 %v3982
          %v5065 = vunpack.c.l.b16 %v3983
          %v5066 = vunpack.c.h.b16 %v3983
          %v5067 = vunpack.c.l.b16 %v3984
          %v5068 = vunpack.c.h.b16 %v3984
          %v5069 = vunpack.c.l.b16 %v3985
          %v5070 = vunpack.c.h.b16 %v3985
          %v5071 = vunpack.c.l.b16 %v3986
          %v5072 = vunpack.c.h.b16 %v3986
          %v5073 = vunpack.c.l.b16 %v3987
          %v5074 = vunpack.c.h.b16 %v3987
          %v5075 = vunpack.c.l.b16 %v3988
          %v5076 = vunpack.c.h.b16 %v3988
          %v5077 = vunpack.c.l.b16 %v3989
          %v5078 = vunpack.c.h.b16 %v3989
          %v5079 = vunpack.c.l.b16 %v3990
          %v5080 = vunpack.c.h.b16 %v3990
          %v5081 = vunpack.c.l.b16 %v3991
          %v5082 = vunpack.c.h.b16 %v3991
          %v5083 = vunpack.c.l.b16 %v3992
          %v5084 = vunpack.c.h.b16 %v3992
          %v5085 = vunpack.c.l.b16 %v3993
          %v5086 = vunpack.c.h.b16 %v3993
          %v5087 = vunpack.c.l.b16 %v3994
          %v5088 = vunpack.c.h.b16 %v3994
          %v5089 = vunpack.c.l.b16 %v3995
          %v5090 = vunpack.c.h.b16 %v3995
          %v5091 = vunpack.c.l.b16 %v3996
          %v5092 = vunpack.c.h.b16 %v3996
          %v5093 = vunpack.c.l.b16 %v3997
          %v5094 = vunpack.c.h.b16 %v3997
          %v5095 = vunpack.c.l.b16 %v3998
          %v5096 = vunpack.c.h.b16 %v3998
          %v5097 = vunpack.c.l.b16 %v3999
          %v5098 = vunpack.c.h.b16 %v3999
          %v5099 = vunpack.c.l.b16 %v4000
          %v5100 = vunpack.c.h.b16 %v4000
          %v5101 = vunpack.c.l.b16 %v4001
          %v5102 = vunpack.c.h.b16 %v4001
          %v5103 = vunpack.c.l.b16 %v4002
          %v5104 = vunpack.c.h.b16 %v4002
          %v5105 = vunpack.c.l.b16 %v4003
          %v5106 = vunpack.c.h.b16 %v4003
          %v5107 = vunpack.c.l.b16 %v4004
          %v5108 = vunpack.c.h.b16 %v4004
          %v5109 = vunpack.c.l.b16 %v4005
          %v5110 = vunpack.c.h.b16 %v4005
          %v5111 = vunpack.c.l.b16 %v4006
          %v5112 = vunpack.c.h.b16 %v4006
          %v5113 = vunpack.c.l.b16 %v4007
          %v5114 = vunpack.c.h.b16 %v4007
          %v5115 = vunpack.c.l.b16 %v4008
          %v5116 = vunpack.c.h.b16 %v4008
          %v5117 = vunpack.c.l.b16 %v4009
          %v5118 = vunpack.c.h.b16 %v4009
          %v5119 = vunpack.c.l.b16 %v4010
          %v5120 = vunpack.c.h.b16 %v4010
          %v5121 = vunpack.c.l.b16 %v4011
          %v5122 = vunpack.c.h.b16 %v4011
          %v5123 = vunpack.c.l.b16 %v4012
          %v5124 = vunpack.c.h.b16 %v4012
          %v5125 = vunpack.c.l.b16 %v4013
          %v5126 = vunpack.c.h.b16 %v4013
          %v5127 = vunpack.c.l.b16 %v4014
          %v5128 = vunpack.c.h.b16 %v4014
          %v5129 = vunpack.c.l.b16 %v4015
          %v5130 = vunpack.c.h.b16 %v4015
          %v5131 = vunpack.c.l.b16 %v4016
          %v5132 = vunpack.c.h.b16 %v4016
          %v5133 = vunpack.c.l.b16 %v4017
          %v5134 = vunpack.c.h.b16 %v4017
          %v5135 = vunpack.c.l.b16 %v4018
          %v5136 = vunpack.c.h.b16 %v4018
          %v5137 = vunpack.c.l.b16 %v4019
          %v5138 = vunpack.c.h.b16 %v4019
          %v5139 = vunpack.c.l.b16 %v4020
          %v5140 = vunpack.c.h.b16 %v4020
          %v5141 = vunpack.c.l.b16 %v4021
          %v5142 = vunpack.c.h.b16 %v4021
          %v5143 = vunpack.c.l.b16 %v4022
          %v5144 = vunpack.c.h.b16 %v4022
          %v5145 = vunpack.c.l.b16 %v4023
          %v5146 = vunpack.c.h.b16 %v4023
          %v5147 = vunpack.c.l.b16 %v4024
          %v5148 = vunpack.c.h.b16 %v4024
          %v5149 = vunpack.c.l.b16 %v4025
          %v5150 = vunpack.c.h.b16 %v4025
          %v5151 = vunpack.c.l.b16 %v4026
          %v5152 = vunpack.c.h.b16 %v4026
          %v5153 = vunpack.c.l.b16 %v4027
          %v5154 = vunpack.c.h.b16 %v4027
          %v5155 = vunpack.c.l.b16 %v4028
          %v5156 = vunpack.c.h.b16 %v4028
          %v5157 = vunpack.c.l.b16 %v4029
          %v5158 = vunpack.c.h.b16 %v4029
          %v5159 = vunpack.c.l.b16 %v4030
          %v5160 = vunpack.c.h.b16 %v4030
          %v5161 = vunpack.c.l.b16 %v4031
          %v5162 = vunpack.c.h.b16 %v4031
          %v5163 = vunpack.c.l.b16 %v4032
          %v5164 = vunpack.c.h.b16 %v4032
          %v5165 = vunpack.c.l.b16 %v4033
          %v5166 = vunpack.c.h.b16 %v4033
          %v5167 = vunpack.c.l.b16 %v4034
          %v5168 = vunpack.c.h.b16 %v4034
          %v5169 = vunpack.c.l.b16 %v4035
          %v5170 = vunpack.c.h.b16 %v4035
          %v5171 = vunpack.c.l.b16 %v4036
          %v5172 = vunpack.c.h.b16 %v4036
          %v5173 = vunpack.c.l.b16 %v4037
          %v5174 = vunpack.c.h.b16 %v4037
          %v5175 = vunpack.c.l.b16 %v4038
          %v5176 = vunpack.c.h.b16 %v4038
          %v5177 = vunpack.c.l.b16 %v4039
          %v5178 = vunpack.c.h.b16 %v4039
          %v5179 = vunpack.c.l.b16 %v4040
          %v5180 = vunpack.c.h.b16 %v4040
          %v5181 = vunpack.c.l.b16 %v4041
          %v5182 = vunpack.c.h.b16 %v4041
          %v5183 = vunpack.c.l.b16 %v4042
          %v5184 = vunpack.c.h.b16 %v4042
          %v5185 = vunpack.c.l.b16 %v4043
          %v5186 = vunpack.c.h.b16 %v4043
          %v5187 = vunpack.c.l.b16 %v4044
          %v5188 = vunpack.c.h.b16 %v4044
          %v5189 = vunpack.c.l.b16 %v4045
          %v5190 = vunpack.c.h.b16 %v4045
          %v5191 = vunpack.c.l.b16 %v4046
          %v5192 = vunpack.c.h.b16 %v4046
          %v5193 = vunpack.c.l.b16 %v4047
          %v5194 = vunpack.c.h.b16 %v4047
          %v5195 = vunpack.c.l.b16 %v4048
          %v5196 = vunpack.c.h.b16 %v4048
          %v5197 = vunpack.c.l.b16 %v4049
          %v5198 = vunpack.c.h.b16 %v4049
          %v5199 = vunpack.c.l.b16 %v4050
          %v5200 = vunpack.c.h.b16 %v4050
          %v5201 = vunpack.c.l.b16 %v4051
          %v5202 = vunpack.c.h.b16 %v4051
          %v5203 = vunpack.c.l.b16 %v4052
          %v5204 = vunpack.c.h.b16 %v4052
          %v5205 = vunpack.c.l.b16 %v4053
          %v5206 = vunpack.c.h.b16 %v4053
          %v5207 = vunpack.c.l.b16 %v4054
          %v5208 = vunpack.c.h.b16 %v4054
          %v5209 = vunpack.c.l.b16 %v4055
          %v5210 = vunpack.c.h.b16 %v4055
          %v5211 = vunpack.c.l.b16 %v4056
          %v5212 = vunpack.c.h.b16 %v4056
          %v5213 = vunpack.c.l.b16 %v4057
          %v5214 = vunpack.c.h.b16 %v4057
          %v5215 = vunpack.c.l.b16 %v4058
          %v5216 = vunpack.c.h.b16 %v4058
          %v5217 = vunpack.c.l.b16 %v4059
          %v5218 = vunpack.c.h.b16 %v4059
          %v5219 = vunpack.c.l.b16 %v4060
          %v5220 = vunpack.c.h.b16 %v4060
          %v5221 = vunpack.c.l.b16 %v4061
          %v5222 = vunpack.c.h.b16 %v4061
          %v5223 = vunpack.c.l.b16 %v4062
          %v5224 = vunpack.c.h.b16 %v4062
          %v5225 = vunpack.c.l.b16 %v4063
          %v5226 = vunpack.c.h.b16 %v4063
          %v5227 = vunpack.c.l.b16 %v4064
          %v5228 = vunpack.c.h.b16 %v4064
          %v5229 = vunpack.c.l.b16 %v4065
          %v5230 = vunpack.c.h.b16 %v4065
          %v5231 = vunpack.c.l.b16 %v4066
          %v5232 = vunpack.c.h.b16 %v4066
          %v5233 = vunpack.c.l.b16 %v4067
          %v5234 = vunpack.c.h.b16 %v4067
          %v5235 = vunpack.c.l.b16 %v4068
          %v5236 = vunpack.c.h.b16 %v4068
          %v5237 = vunpack.c.l.b16 %v4069
          %v5238 = vunpack.c.h.b16 %v4069
          %v5239 = vunpack.c.l.b16 %v4070
          %v5240 = vunpack.c.h.b16 %v4070
          %v5241 = vunpack.c.l.b16 %v4071
          %v5242 = vunpack.c.h.b16 %v4071
          %v5243 = vunpack.c.l.b16 %v4072
          %v5244 = vunpack.c.h.b16 %v4072
          %v5245 = vunpack.c.l.b16 %v4073
          %v5246 = vunpack.c.h.b16 %v4073
          %v5247 = vunpack.c.l.b16 %v4074
          %v5248 = vunpack.c.h.b16 %v4074
          %v5249 = vunpack.c.l.b16 %v4075
          %v5250 = vunpack.c.h.b16 %v4075
          %v5251 = vunpack.c.l.b16 %v4076
          %v5252 = vunpack.c.h.b16 %v4076
          %v5253 = vunpack.c.l.b16 %v4077
          %v5254 = vunpack.c.h.b16 %v4077
          %v5255 = vunpack.c.l.b16 %v4078
          %v5256 = vunpack.c.h.b16 %v4078
          %v5257 = vunpack.c.l.b16 %v4079
          %v5258 = vunpack.c.h.b16 %v4079
          %v5259 = vunpack.c.l.b16 %v4080
          %v5260 = vunpack.c.h.b16 %v4080
          %v5261 = vunpack.c.l.b16 %v4081
          %v5262 = vunpack.c.h.b16 %v4081
          %v5263 = vunpack.c.l.b16 %v4082
          %v5264 = vunpack.c.h.b16 %v4082
          %v5265 = vunpack.c.l.b16 %v4083
          %v5266 = vunpack.c.h.b16 %v4083
          %v5267 = vunpack.c.l.b16 %v4084
          %v5268 = vunpack.c.h.b16 %v4084
          %v5269 = vunpack.c.l.b16 %v4085
          %v5270 = vunpack.c.h.b16 %v4085
          %v5271 = vunpack.c.l.b16 %v4086
          %v5272 = vunpack.c.h.b16 %v4086
          %v5273 = vunpack.c.l.b16 %v4087
          %v5274 = vunpack.c.h.b16 %v4087
          %v5275 = vunpack.c.l.b16 %v4088
          %v5276 = vunpack.c.h.b16 %v4088
          %v5277 = vunpack.c.l.b16 %v4089
          %v5278 = vunpack.c.h.b16 %v4089
          %v5279 = vunpack.c.l.b16 %v4090
          %v5280 = vunpack.c.h.b16 %v4090
          %v5281 = vunpack.c.l.b16 %v4091
          %v5282 = vunpack.c.h.b16 %v4091
          %v5283 = vunpack.c.l.b16 %v4092
          %v5284 = vunpack.c.h.b16 %v4092
          %v5285 = vunpack.c.l.b16 %v4093
          %v5286 = vunpack.c.h.b16 %v4093
          %v5287 = vunpack.c.l.b16 %v4094
          %v5288 = vunpack.c.h.b16 %v4094
          %v5289 = vunpack.c.l.b16 %v4095
          %v5290 = vunpack.c.h.b16 %v4095
          %v5291 = vunpack.c.l.b16 %v4096
          %v5292 = vunpack.c.h.b16 %v4096
          %v5293 = vunpack.c.l.b16 %v4097
          %v5294 = vunpack.c.h.b16 %v4097
          %v5295 = vunpack.c.l.b16 %v4098
          %v5296 = vunpack.c.h.b16 %v4098
          %v5297 = vunpack.c.l.b16 %v4099
          %v5298 = vunpack.c.h.b16 %v4099
          %v5299 = vunpack.c.l.b16 %v4100
          %v5300 = vunpack.c.h.b16 %v4100
          %v5301 = vunpack.c.l.b16 %v4101
          %v5302 = vunpack.c.h.b16 %v4101
          %v5303 = vunpack.c.l.b16 %v4102
          %v5304 = vunpack.c.h.b16 %v4102
          %v5305 = vunpack.c.l.b16 %v4103
          %v5306 = vunpack.c.h.b16 %v4103
          %v5307 = vunpack.c.l.b16 %v4104
          %v5308 = vunpack.c.h.b16 %v4104
          %v5309 = vunpack.c.l.b16 %v4105
          %v5310 = vunpack.c.h.b16 %v4105
          %v5311 = vunpack.c.l.b16 %v4106
          %v5312 = vunpack.c.h.b16 %v4106
          %v5313 = vunpack.c.l.b16 %v4107
          %v5314 = vunpack.c.h.b16 %v4107
          %v5315 = vunpack.c.l.b16 %v4108
          %v5316 = vunpack.c.h.b16 %v4108
          %v5317 = vunpack.c.l.b16 %v4109
          %v5318 = vunpack.c.h.b16 %v4109
          %v5319 = vunpack.c.l.b16 %v4110
          %v5320 = vunpack.c.h.b16 %v4110
          %v5321 = vunpack.c.l.b16 %v4111
          %v5322 = vunpack.c.h.b16 %v4111
          %v5323 = vunpack.c.l.b16 %v4112
          %v5324 = vunpack.c.h.b16 %v4112
          %v5325 = vunpack.c.l.b16 %v4113
          %v5326 = vunpack.c.h.b16 %v4113
          %v5327 = vunpack.c.l.b16 %v4114
          %v5328 = vunpack.c.h.b16 %v4114
          %v5329 = vunpack.c.l.b16 %v4115
          %v5330 = vunpack.c.h.b16 %v4115
          %v5331 = vunpack.c.l.b16 %v4116
          %v5332 = vunpack.c.h.b16 %v4116
          %v5333 = vunpack.c.l.b16 %v4117
          %v5334 = vunpack.c.h.b16 %v4117
          %v5335 = vunpack.c.l.b16 %v4118
          %v5336 = vunpack.c.h.b16 %v4118
          %v5337 = vunpack.c.l.b16 %v4119
          %v5338 = vunpack.c.h.b16 %v4119
          %v5339 = vunpack.c.l.b16 %v4120
          %v5340 = vunpack.c.h.b16 %v4120
          %v5341 = vunpack.c.l.b16 %v4121
          %v5342 = vunpack.c.h.b16 %v4121
          %v5343 = vunpack.c.l.b16 %v4122
          %v5344 = vunpack.c.h.b16 %v4122
          %v5345 = vunpack.c.l.b16 %v4123
          %v5346 = vunpack.c.h.b16 %v4123
          %v5347 = vunpack.c.l.b16 %v4124
          %v5348 = vunpack.c.h.b16 %v4124
          %v5349 = vunpack.c.l.b16 %v4125
          %v5350 = vunpack.c.h.b16 %v4125
          %v5351 = vunpack.c.l.b16 %v4126
          %v5352 = vunpack.c.h.b16 %v4126
          %v5353 = vunpack.c.l.b16 %v4127
          %v5354 = vunpack.c.h.b16 %v4127
          %v5355 = vunpack.c.l.b16 %v4128
          %v5356 = vunpack.c.h.b16 %v4128
          %v5357 = vunpack.c.l.b16 %v4129
          %v5358 = vunpack.c.h.b16 %v4129
          %v5359 = vunpack.c.l.b16 %v4130
          %v5360 = vunpack.c.h.b16 %v4130
          %v5361 = vunpack.c.l.b16 %v4131
          %v5362 = vunpack.c.h.b16 %v4131
          %v5363 = vunpack.c.l.b16 %v4132
          %v5364 = vunpack.c.h.b16 %v4132
          %v5365 = vunpack.c.l.b16 %v4133
          %v5366 = vunpack.c.h.b16 %v4133
          %v5367 = vunpack.c.l.b16 %v4134
          %v5368 = vunpack.c.h.b16 %v4134
          %v5369 = vunpack.c.l.b16 %v4135
          %v5370 = vunpack.c.h.b16 %v4135
          %v5371 = vunpack.c.l.b16 %v4136
          %v5372 = vunpack.c.h.b16 %v4136
          %v5373 = vunpack.c.l.b16 %v4137
          %v5374 = vunpack.c.h.b16 %v4137
          %v5375 = vunpack.c.l.b16 %v4138
          %v5376 = vunpack.c.h.b16 %v4138
          %v5377 = vunpack.c.l.b16 %v4139
          %v5378 = vunpack.c.h.b16 %v4139
          %v5379 = vunpack.c.l.b16 %v4140
          %v5380 = vunpack.c.h.b16 %v4140
          %v5381 = vunpack.c.l.b16 %v4141
          %v5382 = vunpack.c.h.b16 %v4141
          %v5383 = vunpack.c.l.b16 %v4142
          %v5384 = vunpack.c.h.b16 %v4142
          %v5385 = vunpack.c.l.b16 %v4143
          %v5386 = vunpack.c.h.b16 %v4143
          %v5387 = vunpack.c.l.b16 %v4144
          %v5388 = vunpack.c.h.b16 %v4144
          %v5389 = vunpack.c.l.b16 %v4145
          %v5390 = vunpack.c.h.b16 %v4145
          %v5391 = vunpack.c.l.b16 %v4146
          %v5392 = vunpack.c.h.b16 %v4146
          %v5393 = vunpack.c.l.b16 %v4147
          %v5394 = vunpack.c.h.b16 %v4147
          %v5395 = vunpack.c.l.b16 %v4148
          %v5396 = vunpack.c.h.b16 %v4148
          %v5397 = vunpack.c.l.b16 %v4149
          %v5398 = vunpack.c.h.b16 %v4149
          %v5399 = vunpack.c.l.b16 %v4150
          %v5400 = vunpack.c.h.b16 %v4150
          %v5401 = vunpack.c.l.b16 %v4151
          %v5402 = vunpack.c.h.b16 %v4151
          %v5403 = vunpack.c.l.b16 %v4152
          %v5404 = vunpack.c.h.b16 %v4152
          %v5405 = vunpack.c.l.b16 %v4153
          %v5406 = vunpack.c.h.b16 %v4153
          %v5407 = vunpack.c.l.b16 %v4154
          %v5408 = vunpack.c.h.b16 %v4154
          %v5409 = vunpack.c.l.b16 %v4155
          %v5410 = vunpack.c.h.b16 %v4155
          %v5411 = vunpack.c.l.b16 %v4156
          %v5412 = vunpack.c.h.b16 %v4156
          %v5413 = vunpack.c.l.b16 %v4157
          %v5414 = vunpack.c.h.b16 %v4157
          %v5415 = vunpack.c.l.b16 %v4158
          %v5416 = vunpack.c.h.b16 %v4158
          %v5417 = vunpack.c.l.b16 %v4159
          %v5418 = vunpack.c.h.b16 %v4159
          %v5419 = vunpack.c.l.b16 %v4160
          %v5420 = vunpack.c.h.b16 %v4160
          %v5421 = vunpack.c.l.b16 %v4161
          %v5422 = vunpack.c.h.b16 %v4161
          %v5423 = vunpack.c.l.b16 %v4162
          %v5424 = vunpack.c.h.b16 %v4162
          %v5425 = vunpack.c.l.b16 %v4163
          %v5426 = vunpack.c.h.b16 %v4163
          %v5427 = vunpack.c.l.b16 %v4164
          %v5428 = vunpack.c.h.b16 %v4164
          %v5429 = vunpack.c.l.b16 %v4165
          %v5430 = vunpack.c.h.b16 %v4165
          %v5431 = vunpack.c.l.b16 %v4166
          %v5432 = vunpack.c.h.b16 %v4166
          %v5433 = vunpack.c.l.b16 %v4167
          %v5434 = vunpack.c.h.b16 %v4167
          %v5435 = vunpack.c.l.b16 %v4168
          %v5436 = vunpack.c.h.b16 %v4168
          %v5437 = vunpack.c.l.b16 %v4169
          %v5438 = vunpack.c.h.b16 %v4169
          %v5439 = vunpack.c.l.b16 %v4170
          %v5440 = vunpack.c.h.b16 %v4170
          %v5441 = vunpack.c.l.b16 %v4171
          %v5442 = vunpack.c.h.b16 %v4171
          %v5443 = vunpack.c.l.b16 %v4172
          %v5444 = vunpack.c.h.b16 %v4172
          %v5445 = vunpack.c.l.b16 %v4173
          %v5446 = vunpack.c.h.b16 %v4173
          %v5447 = vunpack.c.l.b16 %v4174
          %v5448 = vunpack.c.h.b16 %v4174
          %v5449 = vunpack.c.l.b16 %v4175
          %v5450 = vunpack.c.h.b16 %v4175
          %v5451 = vunpack.c.l.b16 %v4176
          %v5452 = vunpack.c.h.b16 %v4176
          %v5453 = vunpack.c.l.b16 %v4177
          %v5454 = vunpack.c.h.b16 %v4177
          %v5455 = vunpack.c.l.b16 %v4178
          %v5456 = vunpack.c.h.b16 %v4178
          %v5457 = vunpack.c.l.b16 %v4179
          %v5458 = vunpack.c.h.b16 %v4179
          %v5459 = vunpack.c.l.b16 %v4180
          %v5460 = vunpack.c.h.b16 %v4180
          %v5461 = vunpack.c.l.b16 %v4181
          %v5462 = vunpack.c.h.b16 %v4181
          %v5463 = vunpack.c.l.b16 %v4182
          %v5464 = vunpack.c.h.b16 %v4182
          %v5465 = vunpack.c.l.b16 %v4183
          %v5466 = vunpack.c.h.b16 %v4183
          %v5467 = vunpack.c.l.b16 %v4184
          %v5468 = vunpack.c.h.b16 %v4184
          %v5469 = vunpack.c.l.b16 %v4185
          %v5470 = vunpack.c.h.b16 %v4185
          %v5471 = vunpack.c.l.b16 %v4186
          %v5472 = vunpack.c.h.b16 %v4186
          %v5473 = vunpack.c.l.b16 %v4187
          %v5474 = vunpack.c.h.b16 %v4187
          %v5475 = vunpack.c.l.b16 %v4188
          %v5476 = vunpack.c.h.b16 %v4188
          %v5477 = vunpack.c.l.b16 %v4189
          %v5478 = vunpack.c.h.b16 %v4189
          %v5479 = vunpack.c.l.b16 %v4190
          %v5480 = vunpack.c.h.b16 %v4190
          %v5481 = vunpack.c.l.b16 %v4191
          %v5482 = vunpack.c.h.b16 %v4191
          %v5483 = vunpack.c.l.b16 %v4192
          %v5484 = vunpack.c.h.b16 %v4192
          %v5485 = vunpack.c.l.b16 %v4193
          %v5486 = vunpack.c.h.b16 %v4193
          %v5487 = vunpack.c.l.b16 %v4194
          %v5488 = vunpack.c.h.b16 %v4194
          %v5489 = vunpack.c.l.b16 %v4195
          %v5490 = vunpack.c.h.b16 %v4195
          %v5491 = vunpack.c.l.b16 %v4196
          %v5492 = vunpack.c.h.b16 %v4196
          %v5493 = vunpack.c.l.b16 %v4197
          %v5494 = vunpack.c.h.b16 %v4197
          %v5495 = vunpack.c.l.b16 %v4198
          %v5496 = vunpack.c.h.b16 %v4198
          %v5497 = vunpack.c.l.b16 %v4199
          %v5498 = vunpack.c.h.b16 %v4199
          %v5499 = vunpack.c.l.b16 %v4200
          %v5500 = vunpack.c.h.b16 %v4200
          %v5501 = vunpack.c.l.b16 %v4201
          %v5502 = vunpack.c.h.b16 %v4201
          %v5503 = vunpack.c.l.b16 %v4202
          %v5504 = vunpack.c.h.b16 %v4202
          %v5505 = vunpack.c.l.b16 %v4203
          %v5506 = vunpack.c.h.b16 %v4203
          %v5507 = vunpack.c.l.b16 %v4204
          %v5508 = vunpack.c.h.b16 %v4204
          %v5509 = vunpack.c.l.b16 %v4205
          %v5510 = vunpack.c.h.b16 %v4205
          %v5511 = vunpack.c.l.b16 %v4206
          %v5512 = vunpack.c.h.b16 %v4206
          %v5513 = vunpack.c.l.b16 %v4207
          %v5514 = vunpack.c.h.b16 %v4207
          %v5515 = vunpack.c.l.b16 %v4208
          %v5516 = vunpack.c.h.b16 %v4208
          %v5517 = vunpack.c.l.b16 %v4209
          %v5518 = vunpack.c.h.b16 %v4209
          %v5519 = vunpack.c.l.b16 %v4210
          %v5520 = vunpack.c.h.b16 %v4210
          %v5521 = vunpack.c.l.b16 %v4211
          %v5522 = vunpack.c.h.b16 %v4211
          %v5523 = vunpack.c.l.b16 %v4212
          %v5524 = vunpack.c.h.b16 %v4212
          %v5525 = vunpack.c.l.b16 %v4213
          %v5526 = vunpack.c.h.b16 %v4213
          %v5527 = vunpack.c.l.b16 %v4214
          %v5528 = vunpack.c.h.b16 %v4214
          %v5529 = vunpack.c.l.b16 %v4215
          %v5530 = vunpack.c.h.b16 %v4215
          %v5531 = vunpack.c.l.b16 %v4216
          %v5532 = vunpack.c.h.b16 %v4216
          %v5533 = vunpack.c.l.b16 %v4217
          %v5534 = vunpack.c.h.b16 %v4217
          %v5535 = vunpack.c.l.b16 %v4218
          %v5536 = vunpack.c.h.b16 %v4218
          %v5537 = vunpack.c.l.b16 %v4219
          %v5538 = vunpack.c.h.b16 %v4219
          %v5539 = vunpack.c.l.b16 %v4220
          %v5540 = vunpack.c.h.b16 %v4220
          %v5541 = vunpack.c.l.b16 %v4221
          %v5542 = vunpack.c.h.b16 %v4221
          %v5543 = vunpack.c.l.b16 %v4222
          %v5544 = vunpack.c.h.b16 %v4222
          %v5545 = vunpack.c.l.b16 %v4223
          %v5546 = vunpack.c.h.b16 %v4223
          %v5547 = vunpack.c.l.b16 %v4224
          %v5548 = vunpack.c.h.b16 %v4224
          %v5549 = vunpack.c.l.b16 %v4225
          %v5550 = vunpack.c.h.b16 %v4225
          %v5551 = vunpack.c.l.b16 %v4226
          %v5552 = vunpack.c.h.b16 %v4226
          %v5553 = vunpack.c.l.b16 %v4227
          %v5554 = vunpack.c.h.b16 %v4227
          %v5555 = vunpack.c.l.b16 %v4228
          %v5556 = vunpack.c.h.b16 %v4228
          %v5557 = vunpack.c.l.b16 %v4229
          %v5558 = vunpack.c.h.b16 %v4229
          %v5559 = vunpack.c.l.b16 %v4230
          %v5560 = vunpack.c.h.b16 %v4230
          %v5561 = vunpack.c.l.b16 %v4231
          %v5562 = vunpack.c.h.b16 %v4231
          %v5563 = vunpack.c.l.b16 %v4232
          %v5564 = vunpack.c.h.b16 %v4232
          %v5565 = vunpack.c.l.b16 %v4233
          %v5566 = vunpack.c.h.b16 %v4233
          %v5567 = vunpack.c.l.b16 %v4234
          %v5568 = vunpack.c.h.b16 %v4234
          %v5569 = vunpack.c.l.b16 %v4235
          %v5570 = vunpack.c.h.b16 %v4235
          %v5571 = vunpack.c.l.b16 %v4236
          %v5572 = vunpack.c.h.b16 %v4236
          %v5573 = vunpack.c.l.b16 %v4237
          %v5574 = vunpack.c.h.b16 %v4237
          %v5575 = vunpack.c.l.b16 %v4238
          %v5576 = vunpack.c.h.b16 %v4238
          %v5577 = vunpack.c.l.b16 %v4239
          %v5578 = vunpack.c.h.b16 %v4239
          %v5579 = vunpack.c.l.b16 %v4240
          %v5580 = vunpack.c.h.b16 %v4240
          %v5581 = vunpack.c.l.b16 %v4241
          %v5582 = vunpack.c.h.b16 %v4241
          %v5583 = vunpack.c.l.b16 %v4242
          %v5584 = vunpack.c.h.b16 %v4242
          %v5585 = vunpack.c.l.b16 %v4243
          %v5586 = vunpack.c.h.b16 %v4243
          %v5587 = vunpack.c.l.b16 %v4244
          %v5588 = vunpack.c.h.b16 %v4244
          %v5589 = vunpack.c.l.b16 %v4245
          %v5590 = vunpack.c.h.b16 %v4245
          %v5591 = vunpack.c.l.b16 %v4246
          %v5592 = vunpack.c.h.b16 %v4246
          %v5593 = vunpack.c.l.b16 %v4247
          %v5594 = vunpack.c.h.b16 %v4247
          %v5595 = vunpack.c.l.b16 %v4248
          %v5596 = vunpack.c.h.b16 %v4248
          %v5597 = vunpack.c.l.b16 %v4249
          %v5598 = vunpack.c.h.b16 %v4249
          %v5599 = vunpack.c.l.b16 %v4250
          %v5600 = vunpack.c.h.b16 %v4250
          %v5601 = vunpack.c.l.b16 %v4251
          %v5602 = vunpack.c.h.b16 %v4251
          %v5603 = vunpack.c.l.b16 %v4252
          %v5604 = vunpack.c.h.b16 %v4252
          %v5605 = vunpack.c.l.b16 %v4253
          %v5606 = vunpack.c.h.b16 %v4253
          %v5607 = vunpack.c.l.b16 %v4254
          %v5608 = vunpack.c.h.b16 %v4254
          %v5609 = vunpack.c.l.b16 %v4255
          %v5610 = vunpack.c.h.b16 %v4255
          %v5611 = vunpack.c.l.b16 %v4256
          %v5612 = vunpack.c.h.b16 %v4256
          %v5613 = vunpack.c.l.b16 %v4257
          %v5614 = vunpack.c.h.b16 %v4257
          %v5615 = vunpack.c.l.b16 %v4258
          %v5616 = vunpack.c.h.b16 %v4258
          %v5617 = vunpack.c.l.b16 %v4259
          %v5618 = vunpack.c.h.b16 %v4259
          %v5619 = vunpack.c.l.b16 %v4260
          %v5620 = vunpack.c.h.b16 %v4260
          %v5621 = vunpack.c.l.b16 %v4261
          %v5622 = vunpack.c.h.b16 %v4261
          %v5623 = vunpack.c.l.b16 %v4262
          %v5624 = vunpack.c.h.b16 %v4262
          %v5625 = vunpack.c.l.b16 %v4263
          %v5626 = vunpack.c.h.b16 %v4263
          %v5627 = vunpack.c.l.b16 %v4264
          %v5628 = vunpack.c.h.b16 %v4264
          %v5629 = vunpack.c.l.b16 %v4265
          %v5630 = vunpack.c.h.b16 %v4265
          %v5631 = vunpack.c.l.b16 %v4266
          %v5632 = vunpack.c.h.b16 %v4266
          %v5633 = vunpack.c.l.b16 %v4267
          %v5634 = vunpack.c.h.b16 %v4267
          %v5635 = vunpack.c.l.b16 %v4268
          %v5636 = vunpack.c.h.b16 %v4268
          %v5637 = vunpack.c.l.b16 %v4269
          %v5638 = vunpack.c.h.b16 %v4269
          %v5639 = vunpack.c.l.b16 %v4270
          %v5640 = vunpack.c.h.b16 %v4270
          %v5641 = vunpack.c.l.b16 %v4271
          %v5642 = vunpack.c.h.b16 %v4271
          %v5643 = vunpack.c.l.b16 %v4272
          %v5644 = vunpack.c.h.b16 %v4272
          %v5645 = vunpack.c.l.b16 %v4273
          %v5646 = vunpack.c.h.b16 %v4273
          %v5647 = vunpack.c.l.b16 %v4274
          %v5648 = vunpack.c.h.b16 %v4274
          %v5649 = vunpack.c.l.b16 %v4275
          %v5650 = vunpack.c.h.b16 %v4275
          %v5651 = vunpack.c.l.b16 %v4276
          %v5652 = vunpack.c.h.b16 %v4276
          %v5653 = vunpack.c.l.b16 %v4277
          %v5654 = vunpack.c.h.b16 %v4277
          %v5655 = vunpack.c.l.b16 %v4278
          %v5656 = vunpack.c.h.b16 %v4278
          %v5657 = vunpack.c.l.b16 %v4279
          %v5658 = vunpack.c.h.b16 %v4279
          %v5659 = vunpack.c.l.b16 %v4280
          %v5660 = vunpack.c.h.b16 %v4280
          %v5661 = vunpack.c.l.b16 %v4281
          %v5662 = vunpack.c.h.b16 %v4281
          %v5663 = vunpack.c.l.b16 %v4282
          %v5664 = vunpack.c.h.b16 %v4282
          %v5665 = vunpack.c.l.b16 %v4283
          %v5666 = vunpack.c.h.b16 %v4283
          %v5667 = vunpack.c.l.b16 %v4284
          %v5668 = vunpack.c.h.b16 %v4284
          %v5669 = vunpack.c.l.b16 %v4285
          %v5670 = vunpack.c.h.b16 %v4285
          %v5671 = vunpack.c.l.b16 %v4286
          %v5672 = vunpack.c.h.b16 %v4286
          %v5673 = vunpack.c.l.b16 %v4287
          %v5674 = vunpack.c.h.b16 %v4287
          %v5675 = vunpack.c.l.b16 %v4288
          %v5676 = vunpack.c.h.b16 %v4288
          %v5677 = vunpack.c.l.b16 %v4289
          %v5678 = vunpack.c.h.b16 %v4289
          %v5679 = vunpack.c.l.b16 %v4290
          %v5680 = vunpack.c.h.b16 %v4290
          %v5681 = vunpack.c.l.b16 %v4291
          %v5682 = vunpack.c.h.b16 %v4291
          %v5683 = vunpack.c.l.b16 %v4292
          %v5684 = vunpack.c.h.b16 %v4292
          %v5685 = vunpack.c.l.b16 %v4293
          %v5686 = vunpack.c.h.b16 %v4293
          %v5687 = vunpack.c.l.b16 %v4294
          %v5688 = vunpack.c.h.b16 %v4294
          %v5689 = vunpack.c.l.b16 %v4295
          %v5690 = vunpack.c.h.b16 %v4295
          %v5691 = vunpack.c.l.b16 %v4296
          %v5692 = vunpack.c.h.b16 %v4296
          %v5693 = vunpack.c.l.b16 %v4297
          %v5694 = vunpack.c.h.b16 %v4297
          %v5695 = vunpack.c.l.b16 %v4298
          %v5696 = vunpack.c.h.b16 %v4298
          %v5697 = vunpack.c.l.b16 %v4299
          %v5698 = vunpack.c.h.b16 %v4299
          %v5699 = vunpack.c.l.b16 %v4300
          %v5700 = vunpack.c.h.b16 %v4300
          %v5701 = vunpack.c.l.b16 %v4301
          %v5702 = vunpack.c.h.b16 %v4301
          %v5703 = vunpack.c.l.b16 %v4302
          %v5704 = vunpack.c.h.b16 %v4302
          %v5705 = vunpack.c.l.b16 %v4303
          %v5706 = vunpack.c.h.b16 %v4303
          %v5707 = vunpack.c.l.b16 %v4304
          %v5708 = vunpack.c.h.b16 %v4304
          %v5709 = vunpack.c.l.b16 %v4305
          %v5710 = vunpack.c.h.b16 %v4305
          %v5711 = vunpack.c.l.b16 %v4306
          %v5712 = vunpack.c.h.b16 %v4306
          %v5713 = vunpack.c.l.b16 %v4307
          %v5714 = vunpack.c.h.b16 %v4307
          %v5715 = vunpack.c.l.b16 %v4308
          %v5716 = vunpack.c.h.b16 %v4308
          %v5717 = vunpack.c.l.b16 %v4309
          %v5718 = vunpack.c.h.b16 %v4309
          %v5719 = vunpack.c.l.b16 %v4310
          %v5720 = vunpack.c.h.b16 %v4310
          %v5721 = vunpack.c.l.b16 %v4311
          %v5722 = vunpack.c.h.b16 %v4311
          %v5723 = vunpack.c.l.b16 %v4312
          %v5724 = vunpack.c.h.b16 %v4312
          %v5725 = vunpack.c.l.b16 %v4313
          %v5726 = vunpack.c.h.b16 %v4313
          %v5727 = vunpack.c.l.b16 %v4314
          %v5728 = vunpack.c.h.b16 %v4314
          %v5729 = vunpack.c.l.b16 %v4315
          %v5730 = vunpack.c.h.b16 %v4315
          %v5731 = vunpack.c.l.b16 %v4316
          %v5732 = vunpack.c.h.b16 %v4316
          %v5733 = vunpack.c.l.b16 %v4317
          %v5734 = vunpack.c.h.b16 %v4317
          %v5735 = vunpack.c.l.b16 %v4318
          %v5736 = vunpack.c.h.b16 %v4318
          %v5737 = vunpack.c.l.b16 %v4319
          %v5738 = vunpack.c.h.b16 %v4319
          %v5739 = vunpack.c.l.b16 %v4320
          %v5740 = vunpack.c.h.b16 %v4320
          %v5741 = vunpack.c.l.b16 %v4321
          %v5742 = vunpack.c.h.b16 %v4321
          %v5743 = vunpack.c.l.b16 %v4322
          %v5744 = vunpack.c.h.b16 %v4322
          %v5745 = vunpack.c.l.b16 %v4323
          %v5746 = vunpack.c.h.b16 %v4323
          %v5747 = vunpack.c.l.b16 %v4324
          %v5748 = vunpack.c.h.b16 %v4324
          %v5749 = vunpack.c.l.b16 %v4325
          %v5750 = vunpack.c.h.b16 %v4325
          %v5751 = vunpack.c.l.b16 %v4326
          %v5752 = vunpack.c.h.b16 %v4326
          %v5753 = vunpack.c.l.b16 %v4327
          %v5754 = vunpack.c.h.b16 %v4327
          %v5755 = vunpack.c.l.b16 %v4328
          %v5756 = vunpack.c.h.b16 %v4328
          %v5757 = vunpack.c.l.b16 %v4329
          %v5758 = vunpack.c.h.b16 %v4329
          %v5759 = vunpack.c.l.b16 %v4330
          %v5760 = vunpack.c.h.b16 %v4330
          %v5761 = vunpack.c.l.b16 %v4331
          %v5762 = vunpack.c.h.b16 %v4331
          %v5763 = vunpack.c.l.b16 %v4332
          %v5764 = vunpack.c.h.b16 %v4332
          %v5765 = vunpack.c.l.b16 %v4333
          %v5766 = vunpack.c.h.b16 %v4333
          %v5767 = vunpack.c.l.b16 %v4334
          %v5768 = vunpack.c.h.b16 %v4334
          %v5769 = vunpack.c.l.b16 %v4335
          %v5770 = vunpack.c.h.b16 %v4335
          %v5771 = vunpack.c.l.b16 %v4336
          %v5772 = vunpack.c.h.b16 %v4336
          %v5773 = vunpack.c.l.b16 %v4337
          %v5774 = vunpack.c.h.b16 %v4337
          %v5775 = vunpack.c.l.b16 %v4338
          %v5776 = vunpack.c.h.b16 %v4338
          %v5777 = vunpack.c.l.b16 %v4339
          %v5778 = vunpack.c.h.b16 %v4339
          %v5779 = vunpack.c.l.b16 %v4340
          %v5780 = vunpack.c.h.b16 %v4340
          %v5781 = vunpack.c.l.b16 %v4341
          %v5782 = vunpack.c.h.b16 %v4341
          %v5783 = vunpack.c.l.b16 %v4342
          %v5784 = vunpack.c.h.b16 %v4342
          %v5785 = vunpack.c.l.b16 %v4343
          %v5786 = vunpack.c.h.b16 %v4343
          %v5787 = vunpack.c.l.b16 %v4344
          %v5788 = vunpack.c.h.b16 %v4344
          %v5789 = vunpack.c.l.b16 %v4345
          %v5790 = vunpack.c.h.b16 %v4345
          %v5791 = vunpack.c.l.b16 %v4346
          %v5792 = vunpack.c.h.b16 %v4346
          %v5793 = vunpack.c.l.b16 %v4347
          %v5794 = vunpack.c.h.b16 %v4347
          %v5795 = vunpack.c.l.b16 %v4348
          %v5796 = vunpack.c.h.b16 %v4348
          %v5797 = vunpack.c.l.b16 %v4349
          %v5798 = vunpack.c.h.b16 %v4349
          %v5799 = vunpack.c.l.b16 %v4350
          %v5800 = vunpack.c.h.b16 %v4350
          %v5801 = vunpack.c.l.b16 %v4351
          %v5802 = vunpack.c.h.b16 %v4351
          %v5803 = vunpack.c.l.b16 %v4352
          %v5804 = vunpack.c.h.b16 %v4352
          %v5805 = vunpack.c.l.b16 %v4353
          %v5806 = vunpack.c.h.b16 %v4353
          %v5807 = vunpack.c.l.b16 %v4354
          %v5808 = vunpack.c.h.b16 %v4354
          %v5809 = vunpack.c.l.b16 %v4355
          %v5810 = vunpack.c.h.b16 %v4355
          %v5811 = vunpack.c.l.b16 %v4356
          %v5812 = vunpack.c.h.b16 %v4356
          %v5813 = vunpack.c.l.b16 %v4357
          %v5814 = vunpack.c.h.b16 %v4357
          %v5815 = vunpack.c.l.b16 %v4358
          %v5816 = vunpack.c.h.b16 %v4358
          %v5817 = vunpack.c.l.b16 %v4359
          %v5818 = vunpack.c.h.b16 %v4359
          %v5819 = vunpack.c.l.b16 %v4360
          %v5820 = vunpack.c.h.b16 %v4360
          %v5821 = vunpack.c.l.b16 %v4361
          %v5822 = vunpack.c.h.b16 %v4361
          %v5823 = vunpack.c.l.b16 %v4362
          %v5824 = vunpack.c.h.b16 %v4362
          %v5825 = vunpack.c.l.b16 %v4363
          %v5826 = vunpack.c.h.b16 %v4363
          %v5827 = vunpack.c.l.b16 %v4364
          %v5828 = vunpack.c.h.b16 %v4364
          %v5829 = vunpack.c.l.b16 %v4365
          %v5830 = vunpack.c.h.b16 %v4365
          %v5831 = vunpack.c.l.b16 %v4366
          %v5832 = vunpack.c.h.b16 %v4366
          %v5833 = vunpack.c.l.b16 %v4367
          %v5834 = vunpack.c.h.b16 %v4367
          %v5835 = vunpack.c.l.b16 %v4368
          %v5836 = vunpack.c.h.b16 %v4368
          %v5837 = vunpack.c.l.b16 %v4369
          %v5838 = vunpack.c.h.b16 %v4369
          %v5839 = vunpack.c.l.b16 %v4370
          %v5840 = vunpack.c.h.b16 %v4370
          %v5841 = vunpack.c.l.b16 %v4371
          %v5842 = vunpack.c.h.b16 %v4371
          %v5843 = vunpack.c.l.b16 %v4372
          %v5844 = vunpack.c.h.b16 %v4372
          %v5845 = vunpack.c.l.b16 %v4373
          %v5846 = vunpack.c.h.b16 %v4373
          %v5847 = vunpack.c.l.b16 %v4374
          %v5848 = vunpack.c.h.b16 %v4374
          %v5849 = vunpack.c.l.b16 %v4375
          %v5850 = vunpack.c.h.b16 %v4375
          %v5851 = vunpack.c.l.b16 %v4376
          %v5852 = vunpack.c.h.b16 %v4376
          %v5853 = vunpack.c.l.b16 %v4377
          %v5854 = vunpack.c.h.b16 %v4377
          %v5855 = vunpack.c.l.b16 %v4378
          %v5856 = vunpack.c.h.b16 %v4378
          %v5857 = vunpack.c.l.b16 %v4379
          %v5858 = vunpack.c.h.b16 %v4379
          %v5859 = vunpack.c.l.b16 %v4380
          %v5860 = vunpack.c.h.b16 %v4380
          %v5861 = vunpack.c.l.b16 %v4381
          %v5862 = vunpack.c.h.b16 %v4381
          %v5863 = vunpack.c.l.b16 %v4382
          %v5864 = vunpack.c.h.b16 %v4382
          %v5865 = vunpack.c.l.b16 %v4383
          %v5866 = vunpack.c.h.b16 %v4383
          %v5867 = vunpack.c.l.b16 %v4384
          %v5868 = vunpack.c.h.b16 %v4384
          %v5869 = vunpack.c.l.b16 %v4385
          %v5870 = vunpack.c.h.b16 %v4385
          %v5871 = vunpack.c.l.b16 %v4386
          %v5872 = vunpack.c.h.b16 %v4386
          %v5873 = vunpack.c.l.b16 %v4387
          %v5874 = vunpack.c.h.b16 %v4387
          %v5875 = vunpack.c.l.b16 %v4388
          %v5876 = vunpack.c.h.b16 %v4388
          %v5877 = vunpack.c.l.b16 %v4389
          %v5878 = vunpack.c.h.b16 %v4389
          %v5879 = vunpack.c.l.b16 %v4390
          %v5880 = vunpack.c.h.b16 %v4390
          %v5881 = vunpack.c.l.b16 %v4391
          %v5882 = vunpack.c.h.b16 %v4391
          %v5883 = vunpack.c.l.b16 %v4392
          %v5884 = vunpack.c.h.b16 %v4392
          %v5885 = vunpack.c.l.b16 %v4393
          %v5886 = vunpack.c.h.b16 %v4393
          %v5887 = vunpack.c.l.b16 %v4394
          %v5888 = vunpack.c.h.b16 %v4394
          %v5889 = vunpack.c.l.b16 %v4395
          %v5890 = vunpack.c.h.b16 %v4395
          %v5891 = vunpack.c.l.b16 %v4396
          %v5892 = vunpack.c.h.b16 %v4396
          %v5893 = vunpack.c.l.b16 %v4397
          %v5894 = vunpack.c.h.b16 %v4397
          %v5895 = vunpack.c.l.b16 %v4398
          %v5896 = vunpack.c.h.b16 %v4398
          %v5897 = vunpack.c.l.b16 %v4399
          %v5898 = vunpack.c.h.b16 %v4399
          %v5899 = vunpack.c.l.b16 %v4400
          %v5900 = vunpack.c.h.b16 %v4400
          %v5901 = vunpack.c.l.b16 %v4401
          %v5902 = vunpack.c.h.b16 %v4401
          %v5903 = vunpack.c.l.b16 %v4402
          %v5904 = vunpack.c.h.b16 %v4402
          %v5905 = vunpack.c.l.b16 %v4403
          %v5906 = vunpack.c.h.b16 %v4403
          %v5907 = vunpack.c.l.b16 %v4404
          %v5908 = vunpack.c.h.b16 %v4404
          %v5909 = vunpack.c.l.b16 %v4405
          %v5910 = vunpack.c.h.b16 %v4405
          %v5911 = vunpack.c.l.b16 %v4406
          %v5912 = vunpack.c.h.b16 %v4406
          %v5913 = vunpack.c.l.b16 %v4407
          %v5914 = vunpack.c.h.b16 %v4407
          %v5915 = vunpack.c.l.b16 %v4408
          %v5916 = vunpack.c.h.b16 %v4408
          %v5917 = vunpack.c.l.b16 %v4409
          %v5918 = vunpack.c.h.b16 %v4409
          %v5919 = vunpack.c.l.b16 %v4410
          %v5920 = vunpack.c.h.b16 %v4410
          %v5921 = vunpack.c.l.b16 %v4411
          %v5922 = vunpack.c.h.b16 %v4411
          %v5923 = vunpack.c.l.b16 %v4412
          %v5924 = vunpack.c.h.b16 %v4412
          %v5925 = vunpack.c.l.b16 %v4413
          %v5926 = vunpack.c.h.b16 %v4413
          %v5927 = vunpack.c.l.b16 %v4414
          %v5928 = vunpack.c.h.b16 %v4414
          %v5929 = vunpack.c.l.b16 %v4415
          %v5930 = vunpack.c.h.b16 %v4415
          %v5931 = vunpack.c.l.b16 %v4416
          %v5932 = vunpack.c.h.b16 %v4416
          %v5933 = vunpack.c.l.b16 %v4417
          %v5934 = vunpack.c.h.b16 %v4417
          %v5935 = vunpack.c.l.b16 %v4418
          %v5936 = vunpack.c.h.b16 %v4418
          %v5937 = vunpack.c.l.b16 %v4419
          %v5938 = vunpack.c.h.b16 %v4419
          %v5939 = vunpack.c.l.b16 %v4420
          %v5940 = vunpack.c.h.b16 %v4420
          %v5941 = vunpack.c.l.b16 %v4421
          %v5942 = vunpack.c.h.b16 %v4421
          %v5943 = vunpack.c.l.b16 %v4422
          %v5944 = vunpack.c.h.b16 %v4422
          %v5945 = vunpack.c.l.b16 %v4423
          %v5946 = vunpack.c.h.b16 %v4423
          %v5947 = vunpack.c.l.b16 %v4424
          %v5948 = vunpack.c.h.b16 %v4424
          %v5949 = vunpack.c.l.b16 %v4425
          %v5950 = vunpack.c.h.b16 %v4425
          %v5951 = vunpack.c.l.b16 %v4426
          %v5952 = vunpack.c.h.b16 %v4426
          %v5953 = vunpack.c.l.b16 %v4427
          %v5954 = vunpack.c.h.b16 %v4427
          %v5955 = vunpack.c.l.b16 %v4428
          %v5956 = vunpack.c.h.b16 %v4428
          %v5957 = vunpack.c.l.b16 %v4429
          %v5958 = vunpack.c.h.b16 %v4429
          %v5959 = vunpack.c.l.b16 %v4430
          %v5960 = vunpack.c.h.b16 %v4430
          %v5961 = vunpack.c.l.b16 %v4431
          %v5962 = vunpack.c.h.b16 %v4431
          %v5963 = vunpack.c.l.b16 %v4432
          %v5964 = vunpack.c.h.b16 %v4432
          %v5965 = vunpack.c.l.b16 %v4433
          %v5966 = vunpack.c.h.b16 %v4433
          %v5967 = vunpack.c.l.b16 %v4434
          %v5968 = vunpack.c.h.b16 %v4434
          %v5969 = vunpack.c.l.b16 %v4435
          %v5970 = vunpack.c.h.b16 %v4435
          %v5971 = vunpack.c.l.b16 %v4436
          %v5972 = vunpack.c.h.b16 %v4436
          %v5973 = vpack.c.b16 %v4965, %v4949
          %v5974 = vpack.c.b16 %v4966, %v4950
          %v5975 = vpack.c.b16 %v4967, %v4951
          %v5976 = vpack.c.b16 %v4968, %v4952
          %v5977 = vpack.c.b16 %v4969, %v4953
          %v5978 = vpack.c.b16 %v4970, %v4954
          %v5979 = vpack.c.b16 %v4971, %v4955
          %v5980 = vpack.c.b16 %v4972, %v4956
          %v5981 = vpack.c.b16 %v4973, %v4957
          %v5982 = vpack.c.b16 %v4974, %v4958
          %v5983 = vpack.c.b16 %v4975, %v4959
          %v5984 = vpack.c.b16 %v4976, %v4960
          %v5985 = vpack.c.b16 %v4977, %v4961
          %v5986 = vpack.c.b16 %v4978, %v4962
          %v5987 = vpack.c.b16 %v4979, %v4963
          %v5988 = vpack.c.b16 %v4980, %v4964
          %v5989 = vpack.c.b16 %v4997, %v4981
          %v5990 = vpack.c.b16 %v4998, %v4982
          %v5991 = vpack.c.b16 %v4999, %v4983
          %v5992 = vpack.c.b16 %v5000, %v4984
          %v5993 = vpack.c.b16 %v5001, %v4985
          %v5994 = vpack.c.b16 %v5002, %v4986
          %v5995 = vpack.c.b16 %v5003, %v4987
          %v5996 = vpack.c.b16 %v5004, %v4988
          %v5997 = vpack.c.b16 %v5005, %v4989
          %v5998 = vpack.c.b16 %v5006, %v4990
          %v5999 = vpack.c.b16 %v5007, %v4991
          %v6000 = vpack.c.b16 %v5008, %v4992
          %v6001 = vpack.c.b16 %v5009, %v4993
          %v6002 = vpack.c.b16 %v5010, %v4994
          %v6003 = vpack.c.b16 %v5011, %v4995
          %v6004 = vpack.c.b16 %v5012, %v4996
          %v6005 = vpack.c.b16 %v5029, %v5013
          %v6006 = vpack.c.b16 %v5030, %v5014
          %v6007 = vpack.c.b16 %v5031, %v5015
          %v6008 = vpack.c.b16 %v5032, %v5016
          %v6009 = vpack.c.b16 %v5033, %v5017
          %v6010 = vpack.c.b16 %v5034, %v5018
          %v6011 = vpack.c.b16 %v5035, %v5019
          %v6012 = vpack.c.b16 %v5036, %v5020
          %v6013 = vpack.c.b16 %v5037, %v5021
          %v6014 = vpack.c.b16 %v5038, %v5022
          %v6015 = vpack.c.b16 %v5039, %v5023
          %v6016 = vpack.c.b16 %v5040, %v5024
          %v6017 = vpack.c.b16 %v5041, %v5025
          %v6018 = vpack.c.b16 %v5042, %v5026
          %v6019 = vpack.c.b16 %v5043, %v5027
          %v6020 = vpack.c.b16 %v5044, %v5028
          %v6021 = vpack.c.b16 %v5061, %v5045
          %v6022 = vpack.c.b16 %v5062, %v5046
          %v6023 = vpack.c.b16 %v5063, %v5047
          %v6024 = vpack.c.b16 %v5064, %v5048
          %v6025 = vpack.c.b16 %v5065, %v5049
          %v6026 = vpack.c.b16 %v5066, %v5050
          %v6027 = vpack.c.b16 %v5067, %v5051
          %v6028 = vpack.c.b16 %v5068, %v5052
          %v6029 = vpack.c.b16 %v5069, %v5053
          %v6030 = vpack.c.b16 %v5070, %v5054
          %v6031 = vpack.c.b16 %v5071, %v5055
          %v6032 = vpack.c.b16 %v5072, %v5056
          %v6033 = vpack.c.b16 %v5073, %v5057
          %v6034 = vpack.c.b16 %v5074, %v5058
          %v6035 = vpack.c.b16 %v5075, %v5059
          %v6036 = vpack.c.b16 %v5076, %v5060
          %v6037 = vpack.c.b16 %v5093, %v5077
          %v6038 = vpack.c.b16 %v5094, %v5078
          %v6039 = vpack.c.b16 %v5095, %v5079
          %v6040 = vpack.c.b16 %v5096, %v5080
          %v6041 = vpack.c.b16 %v5097, %v5081
          %v6042 = vpack.c.b16 %v5098, %v5082
          %v6043 = vpack.c.b16 %v5099, %v5083
          %v6044 = vpack.c.b16 %v5100, %v5084
          %v6045 = vpack.c.b16 %v5101, %v5085
          %v6046 = vpack.c.b16 %v5102, %v5086
          %v6047 = vpack.c.b16 %v5103, %v5087
          %v6048 = vpack.c.b16 %v5104, %v5088
          %v6049 = vpack.c.b16 %v5105, %v5089
          %v6050 = vpack.c.b16 %v5106, %v5090
          %v6051 = vpack.c.b16 %v5107, %v5091
          %v6052 = vpack.c.b16 %v5108, %v5092
          %v6053 = vpack.c.b16 %v5125, %v5109
          %v6054 = vpack.c.b16 %v5126, %v5110
          %v6055 = vpack.c.b16 %v5127, %v5111
          %v6056 = vpack.c.b16 %v5128, %v5112
          %v6057 = vpack.c.b16 %v5129, %v5113
          %v6058 = vpack.c.b16 %v5130, %v5114
          %v6059 = vpack.c.b16 %v5131, %v5115
          %v6060 = vpack.c.b16 %v5132, %v5116
          %v6061 = vpack.c.b16 %v5133, %v5117
          %v6062 = vpack.c.b16 %v5134, %v5118
          %v6063 = vpack.c.b16 %v5135, %v5119
          %v6064 = vpack.c.b16 %v5136, %v5120
          %v6065 = vpack.c.b16 %v5137, %v5121
          %v6066 = vpack.c.b16 %v5138, %v5122
          %v6067 = vpack.c.b16 %v5139, %v5123
          %v6068 = vpack.c.b16 %v5140, %v5124
          %v6069 = vpack.c.b16 %v5157, %v5141
          %v6070 = vpack.c.b16 %v5158, %v5142
          %v6071 = vpack.c.b16 %v5159, %v5143
          %v6072 = vpack.c.b16 %v5160, %v5144
          %v6073 = vpack.c.b16 %v5161, %v5145
          %v6074 = vpack.c.b16 %v5162, %v5146
          %v6075 = vpack.c.b16 %v5163, %v5147
          %v6076 = vpack.c.b16 %v5164, %v5148
          %v6077 = vpack.c.b16 %v5165, %v5149
          %v6078 = vpack.c.b16 %v5166, %v5150
          %v6079 = vpack.c.b16 %v5167, %v5151
          %v6080 = vpack.c.b16 %v5168, %v5152
          %v6081 = vpack.c.b16 %v5169, %v5153
          %v6082 = vpack.c.b16 %v5170, %v5154
          %v6083 = vpack.c.b16 %v5171, %v5155
          %v6084 = vpack.c.b16 %v5172, %v5156
          %v6085 = vpack.c.b16 %v5189, %v5173
          %v6086 = vpack.c.b16 %v5190, %v5174
          %v6087 = vpack.c.b16 %v5191, %v5175
          %v6088 = vpack.c.b16 %v5192, %v5176
          %v6089 = vpack.c.b16 %v5193, %v5177
          %v6090 = vpack.c.b16 %v5194, %v5178
          %v6091 = vpack.c.b16 %v5195, %v5179
          %v6092 = vpack.c.b16 %v5196, %v5180
          %v6093 = vpack.c.b16 %v5197, %v5181
          %v6094 = vpack.c.b16 %v5198, %v5182
          %v6095 = vpack.c.b16 %v5199, %v5183
          %v6096 = vpack.c.b16 %v5200, %v5184
          %v6097 = vpack.c.b16 %v5201, %v5185
          %v6098 = vpack.c.b16 %v5202, %v5186
          %v6099 = vpack.c.b16 %v5203, %v5187
          %v6100 = vpack.c.b16 %v5204, %v5188
          %v6101 = vpack.c.b16 %v5221, %v5205
          %v6102 = vpack.c.b16 %v5222, %v5206
          %v6103 = vpack.c.b16 %v5223, %v5207
          %v6104 = vpack.c.b16 %v5224, %v5208
          %v6105 = vpack.c.b16 %v5225, %v5209
          %v6106 = vpack.c.b16 %v5226, %v5210
          %v6107 = vpack.c.b16 %v5227, %v5211
          %v6108 = vpack.c.b16 %v5228, %v5212
          %v6109 = vpack.c.b16 %v5229, %v5213
          %v6110 = vpack.c.b16 %v5230, %v5214
          %v6111 = vpack.c.b16 %v5231, %v5215
          %v6112 = vpack.c.b16 %v5232, %v5216
          %v6113 = vpack.c.b16 %v5233, %v5217
          %v6114 = vpack.c.b16 %v5234, %v5218
          %v6115 = vpack.c.b16 %v5235, %v5219
          %v6116 = vpack.c.b16 %v5236, %v5220
          %v6117 = vpack.c.b16 %v5253, %v5237
          %v6118 = vpack.c.b16 %v5254, %v5238
          %v6119 = vpack.c.b16 %v5255, %v5239
          %v6120 = vpack.c.b16 %v5256, %v5240
          %v6121 = vpack.c.b16 %v5257, %v5241
          %v6122 = vpack.c.b16 %v5258, %v5242
          %v6123 = vpack.c.b16 %v5259, %v5243
          %v6124 = vpack.c.b16 %v5260, %v5244
          %v6125 = vpack.c.b16 %v5261, %v5245
          %v6126 = vpack.c.b16 %v5262, %v5246
          %v6127 = vpack.c.b16 %v5263, %v5247
          %v6128 = vpack.c.b16 %v5264, %v5248
          %v6129 = vpack.c.b16 %v5265, %v5249
          %v6130 = vpack.c.b16 %v5266, %v5250
          %v6131 = vpack.c.b16 %v5267, %v5251
          %v6132 = vpack.c.b16 %v5268, %v5252
          %v6133 = vpack.c.b16 %v5285, %v5269
          %v6134 = vpack.c.b16 %v5286, %v5270
          %v6135 = vpack.c.b16 %v5287, %v5271
          %v6136 = vpack.c.b16 %v5288, %v5272
          %v6137 = vpack.c.b16 %v5289, %v5273
          %v6138 = vpack.c.b16 %v5290, %v5274
          %v6139 = vpack.c.b16 %v5291, %v5275
          %v6140 = vpack.c.b16 %v5292, %v5276
          %v6141 = vpack.c.b16 %v5293, %v5277
          %v6142 = vpack.c.b16 %v5294, %v5278
          %v6143 = vpack.c.b16 %v5295, %v5279
          %v6144 = vpack.c.b16 %v5296, %v5280
          %v6145 = vpack.c.b16 %v5297, %v5281
          %v6146 = vpack.c.b16 %v5298, %v5282
          %v6147 = vpack.c.b16 %v5299, %v5283
          %v6148 = vpack.c.b16 %v5300, %v5284
          %v6149 = vpack.c.b16 %v5317, %v5301
          %v6150 = vpack.c.b16 %v5318, %v5302
          %v6151 = vpack.c.b16 %v5319, %v5303
          %v6152 = vpack.c.b16 %v5320, %v5304
          %v6153 = vpack.c.b16 %v5321, %v5305
          %v6154 = vpack.c.b16 %v5322, %v5306
          %v6155 = vpack.c.b16 %v5323, %v5307
          %v6156 = vpack.c.b16 %v5324, %v5308
          %v6157 = vpack.c.b16 %v5325, %v5309
          %v6158 = vpack.c.b16 %v5326, %v5310
          %v6159 = vpack.c.b16 %v5327, %v5311
          %v6160 = vpack.c.b16 %v5328, %v5312
          %v6161 = vpack.c.b16 %v5329, %v5313
          %v6162 = vpack.c.b16 %v5330, %v5314
          %v6163 = vpack.c.b16 %v5331, %v5315
          %v6164 = vpack.c.b16 %v5332, %v5316
          %v6165 = vpack.c.b16 %v5349, %v5333
          %v6166 = vpack.c.b16 %v5350, %v5334
          %v6167 = vpack.c.b16 %v5351, %v5335
          %v6168 = vpack.c.b16 %v5352, %v5336
          %v6169 = vpack.c.b16 %v5353, %v5337
          %v6170 = vpack.c.b16 %v5354, %v5338
          %v6171 = vpack.c.b16 %v5355, %v5339
          %v6172 = vpack.c.b16 %v5356, %v5340
          %v6173 = vpack.c.b16 %v5357, %v5341
          %v6174 = vpack.c.b16 %v5358, %v5342
          %v6175 = vpack.c.b16 %v5359, %v5343
          %v6176 = vpack.c.b16 %v5360, %v5344
          %v6177 = vpack.c.b16 %v5361, %v5345
          %v6178 = vpack.c.b16 %v5362, %v5346
          %v6179 = vpack.c.b16 %v5363, %v5347
          %v6180 = vpack.c.b16 %v5364, %v5348
          %v6181 = vpack.c.b16 %v5381, %v5365
          %v6182 = vpack.c.b16 %v5382, %v5366
          %v6183 = vpack.c.b16 %v5383, %v5367
          %v6184 = vpack.c.b16 %v5384, %v5368
          %v6185 = vpack.c.b16 %v5385, %v5369
          %v6186 = vpack.c.b16 %v5386, %v5370
          %v6187 = vpack.c.b16 %v5387, %v5371
          %v6188 = vpack.c.b16 %v5388, %v5372
          %v6189 = vpack.c.b16 %v5389, %v5373
          %v6190 = vpack.c.b16 %v5390, %v5374
          %v6191 = vpack.c.b16 %v5391, %v5375
          %v6192 = vpack.c.b16 %v5392, %v5376
          %v6193 = vpack.c.b16 %v5393, %v5377
          %v6194 = vpack.c.b16 %v5394, %v5378
          %v6195 = vpack.c.b16 %v5395, %v5379
          %v6196 = vpack.c.b16 %v5396, %v5380
          %v6197 = vpack.c.b16 %v5413, %v5397
          %v6198 = vpack.c.b16 %v5414, %v5398
          %v6199 = vpack.c.b16 %v5415, %v5399
          %v6200 = vpack.c.b16 %v5416, %v5400
          %v6201 = vpack.c.b16 %v5417, %v5401
          %v6202 = vpack.c.b16 %v5418, %v5402
          %v6203 = vpack.c.b16 %v5419, %v5403
          %v6204 = vpack.c.b16 %v5420, %v5404
          %v6205 = vpack.c.b16 %v5421, %v5405
          %v6206 = vpack.c.b16 %v5422, %v5406
          %v6207 = vpack.c.b16 %v5423, %v5407
          %v6208 = vpack.c.b16 %v5424, %v5408
          %v6209 = vpack.c.b16 %v5425, %v5409
          %v6210 = vpack.c.b16 %v5426, %v5410
          %v6211 = vpack.c.b16 %v5427, %v5411
          %v6212 = vpack.c.b16 %v5428, %v5412
          %v6213 = vpack.c.b16 %v5445, %v5429
          %v6214 = vpack.c.b16 %v5446, %v5430
          %v6215 = vpack.c.b16 %v5447, %v5431
          %v6216 = vpack.c.b16 %v5448, %v5432
          %v6217 = vpack.c.b16 %v5449, %v5433
          %v6218 = vpack.c.b16 %v5450, %v5434
          %v6219 = vpack.c.b16 %v5451, %v5435
          %v6220 = vpack.c.b16 %v5452, %v5436
          %v6221 = vpack.c.b16 %v5453, %v5437
          %v6222 = vpack.c.b16 %v5454, %v5438
          %v6223 = vpack.c.b16 %v5455, %v5439
          %v6224 = vpack.c.b16 %v5456, %v5440
          %v6225 = vpack.c.b16 %v5457, %v5441
          %v6226 = vpack.c.b16 %v5458, %v5442
          %v6227 = vpack.c.b16 %v5459, %v5443
          %v6228 = vpack.c.b16 %v5460, %v5444
          %v6229 = vpack.c.b16 %v5477, %v5461
          %v6230 = vpack.c.b16 %v5478, %v5462
          %v6231 = vpack.c.b16 %v5479, %v5463
          %v6232 = vpack.c.b16 %v5480, %v5464
          %v6233 = vpack.c.b16 %v5481, %v5465
          %v6234 = vpack.c.b16 %v5482, %v5466
          %v6235 = vpack.c.b16 %v5483, %v5467
          %v6236 = vpack.c.b16 %v5484, %v5468
          %v6237 = vpack.c.b16 %v5485, %v5469
          %v6238 = vpack.c.b16 %v5486, %v5470
          %v6239 = vpack.c.b16 %v5487, %v5471
          %v6240 = vpack.c.b16 %v5488, %v5472
          %v6241 = vpack.c.b16 %v5489, %v5473
          %v6242 = vpack.c.b16 %v5490, %v5474
          %v6243 = vpack.c.b16 %v5491, %v5475
          %v6244 = vpack.c.b16 %v5492, %v5476
          %v6245 = vpack.c.b16 %v5509, %v5493
          %v6246 = vpack.c.b16 %v5510, %v5494
          %v6247 = vpack.c.b16 %v5511, %v5495
          %v6248 = vpack.c.b16 %v5512, %v5496
          %v6249 = vpack.c.b16 %v5513, %v5497
          %v6250 = vpack.c.b16 %v5514, %v5498
          %v6251 = vpack.c.b16 %v5515, %v5499
          %v6252 = vpack.c.b16 %v5516, %v5500
          %v6253 = vpack.c.b16 %v5517, %v5501
          %v6254 = vpack.c.b16 %v5518, %v5502
          %v6255 = vpack.c.b16 %v5519, %v5503
          %v6256 = vpack.c.b16 %v5520, %v5504
          %v6257 = vpack.c.b16 %v5521, %v5505
          %v6258 = vpack.c.b16 %v5522, %v5506
          %v6259 = vpack.c.b16 %v5523, %v5507
          %v6260 = vpack.c.b16 %v5524, %v5508
          %v6261 = vpack.c.b16 %v5541, %v5525
          %v6262 = vpack.c.b16 %v5542, %v5526
          %v6263 = vpack.c.b16 %v5543, %v5527
          %v6264 = vpack.c.b16 %v5544, %v5528
          %v6265 = vpack.c.b16 %v5545, %v5529
          %v6266 = vpack.c.b16 %v5546, %v5530
          %v6267 = vpack.c.b16 %v5547, %v5531
          %v6268 = vpack.c.b16 %v5548, %v5532
          %v6269 = vpack.c.b16 %v5549, %v5533
          %v6270 = vpack.c.b16 %v5550, %v5534
          %v6271 = vpack.c.b16 %v5551, %v5535
          %v6272 = vpack.c.b16 %v5552, %v5536
          %v6273 = vpack.c.b16 %v5553, %v5537
          %v6274 = vpack.c.b16 %v5554, %v5538
          %v6275 = vpack.c.b16 %v5555, %v5539
          %v6276 = vpack.c.b16 %v5556, %v5540
          %v6277 = vpack.c.b16 %v5573, %v5557
          %v6278 = vpack.c.b16 %v5574, %v5558
          %v6279 = vpack.c.b16 %v5575, %v5559
          %v6280 = vpack.c.b16 %v5576, %v5560
          %v6281 = vpack.c.b16 %v5577, %v5561
          %v6282 = vpack.c.b16 %v5578, %v5562
          %v6283 = vpack.c.b16 %v5579, %v5563
          %v6284 = vpack.c.b16 %v5580, %v5564
          %v6285 = vpack.c.b16 %v5581, %v5565
          %v6286 = vpack.c.b16 %v5582, %v5566
          %v6287 = vpack.c.b16 %v5583, %v5567
          %v6288 = vpack.c.b16 %v5584, %v5568
          %v6289 = vpack.c.b16 %v5585, %v5569
          %v6290 = vpack.c.b16 %v5586, %v5570
          %v6291 = vpack.c.b16 %v5587, %v5571
          %v6292 = vpack.c.b16 %v5588, %v5572
          %v6293 = vpack.c.b16 %v5605, %v5589
          %v6294 = vpack.c.b16 %v5606, %v5590
          %v6295 = vpack.c.b16 %v5607, %v5591
          %v6296 = vpack.c.b16 %v5608, %v5592
          %v6297 = vpack.c.b16 %v5609, %v5593
          %v6298 = vpack.c.b16 %v5610, %v5594
          %v6299 = vpack.c.b16 %v5611, %v5595
          %v6300 = vpack.c.b16 %v5612, %v5596
          %v6301 = vpack.c.b16 %v5613, %v5597
          %v6302 = vpack.c.b16 %v5614, %v5598
          %v6303 = vpack.c.b16 %v5615, %v5599
          %v6304 = vpack.c.b16 %v5616, %v5600
          %v6305 = vpack.c.b16 %v5617, %v5601
          %v6306 = vpack.c.b16 %v5618, %v5602
          %v6307 = vpack.c.b16 %v5619, %v5603
          %v6308 = vpack.c.b16 %v5620, %v5604
          %v6309 = vpack.c.b16 %v5637, %v5621
          %v6310 = vpack.c.b16 %v5638, %v5622
          %v6311 = vpack.c.b16 %v5639, %v5623
          %v6312 = vpack.c.b16 %v5640, %v5624
          %v6313 = vpack.c.b16 %v5641, %v5625
          %v6314 = vpack.c.b16 %v5642, %v5626
          %v6315 = vpack.c.b16 %v5643, %v5627
          %v6316 = vpack.c.b16 %v5644, %v5628
          %v6317 = vpack.c.b16 %v5645, %v5629
          %v6318 = vpack.c.b16 %v5646, %v5630
          %v6319 = vpack.c.b16 %v5647, %v5631
          %v6320 = vpack.c.b16 %v5648, %v5632
          %v6321 = vpack.c.b16 %v5649, %v5633
          %v6322 = vpack.c.b16 %v5650, %v5634
          %v6323 = vpack.c.b16 %v5651, %v5635
          %v6324 = vpack.c.b16 %v5652, %v5636
          %v6325 = vpack.c.b16 %v5669, %v5653
          %v6326 = vpack.c.b16 %v5670, %v5654
          %v6327 = vpack.c.b16 %v5671, %v5655
          %v6328 = vpack.c.b16 %v5672, %v5656
          %v6329 = vpack.c.b16 %v5673, %v5657
          %v6330 = vpack.c.b16 %v5674, %v5658
          %v6331 = vpack.c.b16 %v5675, %v5659
          %v6332 = vpack.c.b16 %v5676, %v5660
          %v6333 = vpack.c.b16 %v5677, %v5661
          %v6334 = vpack.c.b16 %v5678, %v5662
          %v6335 = vpack.c.b16 %v5679, %v5663
          %v6336 = vpack.c.b16 %v5680, %v5664
          %v6337 = vpack.c.b16 %v5681, %v5665
          %v6338 = vpack.c.b16 %v5682, %v5666
          %v6339 = vpack.c.b16 %v5683, %v5667
          %v6340 = vpack.c.b16 %v5684, %v5668
          %v6341 = vpack.c.b16 %v5701, %v5685
          %v6342 = vpack.c.b16 %v5702, %v5686
          %v6343 = vpack.c.b16 %v5703, %v5687
          %v6344 = vpack.c.b16 %v5704, %v5688
          %v6345 = vpack.c.b16 %v5705, %v5689
          %v6346 = vpack.c.b16 %v5706, %v5690
          %v6347 = vpack.c.b16 %v5707, %v5691
          %v6348 = vpack.c.b16 %v5708, %v5692
          %v6349 = vpack.c.b16 %v5709, %v5693
          %v6350 = vpack.c.b16 %v5710, %v5694
          %v6351 = vpack.c.b16 %v5711, %v5695
          %v6352 = vpack.c.b16 %v5712, %v5696
          %v6353 = vpack.c.b16 %v5713, %v5697
          %v6354 = vpack.c.b16 %v5714, %v5698
          %v6355 = vpack.c.b16 %v5715, %v5699
          %v6356 = vpack.c.b16 %v5716, %v5700
          %v6357 = vpack.c.b16 %v5733, %v5717
          %v6358 = vpack.c.b16 %v5734, %v5718
          %v6359 = vpack.c.b16 %v5735, %v5719
          %v6360 = vpack.c.b16 %v5736, %v5720
          %v6361 = vpack.c.b16 %v5737, %v5721
          %v6362 = vpack.c.b16 %v5738, %v5722
          %v6363 = vpack.c.b16 %v5739, %v5723
          %v6364 = vpack.c.b16 %v5740, %v5724
          %v6365 = vpack.c.b16 %v5741, %v5725
          %v6366 = vpack.c.b16 %v5742, %v5726
          %v6367 = vpack.c.b16 %v5743, %v5727
          %v6368 = vpack.c.b16 %v5744, %v5728
          %v6369 = vpack.c.b16 %v5745, %v5729
          %v6370 = vpack.c.b16 %v5746, %v5730
          %v6371 = vpack.c.b16 %v5747, %v5731
          %v6372 = vpack.c.b16 %v5748, %v5732
          %v6373 = vpack.c.b16 %v5765, %v5749
          %v6374 = vpack.c.b16 %v5766, %v5750
          %v6375 = vpack.c.b16 %v5767, %v5751
          %v6376 = vpack.c.b16 %v5768, %v5752
          %v6377 = vpack.c.b16 %v5769, %v5753
          %v6378 = vpack.c.b16 %v5770, %v5754
          %v6379 = vpack.c.b16 %v5771, %v5755
          %v6380 = vpack.c.b16 %v5772, %v5756
          %v6381 = vpack.c.b16 %v5773, %v5757
          %v6382 = vpack.c.b16 %v5774, %v5758
          %v6383 = vpack.c.b16 %v5775, %v5759
          %v6384 = vpack.c.b16 %v5776, %v5760
          %v6385 = vpack.c.b16 %v5777, %v5761
          %v6386 = vpack.c.b16 %v5778, %v5762
          %v6387 = vpack.c.b16 %v5779, %v5763
          %v6388 = vpack.c.b16 %v5780, %v5764
          %v6389 = vpack.c.b16 %v5797, %v5781
          %v6390 = vpack.c.b16 %v5798, %v5782
          %v6391 = vpack.c.b16 %v5799, %v5783
          %v6392 = vpack.c.b16 %v5800, %v5784
          %v6393 = vpack.c.b16 %v5801, %v5785
          %v6394 = vpack.c.b16 %v5802, %v5786
          %v6395 = vpack.c.b16 %v5803, %v5787
          %v6396 = vpack.c.b16 %v5804, %v5788
          %v6397 = vpack.c.b16 %v5805, %v5789
          %v6398 = vpack.c.b16 %v5806, %v5790
          %v6399 = vpack.c.b16 %v5807, %v5791
          %v6400 = vpack.c.b16 %v5808, %v5792
          %v6401 = vpack.c.b16 %v5809, %v5793
          %v6402 = vpack.c.b16 %v5810, %v5794
          %v6403 = vpack.c.b16 %v5811, %v5795
          %v6404 = vpack.c.b16 %v5812, %v5796
          %v6405 = vpack.c.b16 %v5829, %v5813
          %v6406 = vpack.c.b16 %v5830, %v5814
          %v6407 = vpack.c.b16 %v5831, %v5815
          %v6408 = vpack.c.b16 %v5832, %v5816
          %v6409 = vpack.c.b16 %v5833, %v5817
          %v6410 = vpack.c.b16 %v5834, %v5818
          %v6411 = vpack.c.b16 %v5835, %v5819
          %v6412 = vpack.c.b16 %v5836, %v5820
          %v6413 = vpack.c.b16 %v5837, %v5821
          %v6414 = vpack.c.b16 %v5838, %v5822
          %v6415 = vpack.c.b16 %v5839, %v5823
          %v6416 = vpack.c.b16 %v5840, %v5824
          %v6417 = vpack.c.b16 %v5841, %v5825
          %v6418 = vpack.c.b16 %v5842, %v5826
          %v6419 = vpack.c.b16 %v5843, %v5827
          %v6420 = vpack.c.b16 %v5844, %v5828
          %v6421 = vpack.c.b16 %v5861, %v5845
          %v6422 = vpack.c.b16 %v5862, %v5846
          %v6423 = vpack.c.b16 %v5863, %v5847
          %v6424 = vpack.c.b16 %v5864, %v5848
          %v6425 = vpack.c.b16 %v5865, %v5849
          %v6426 = vpack.c.b16 %v5866, %v5850
          %v6427 = vpack.c.b16 %v5867, %v5851
          %v6428 = vpack.c.b16 %v5868, %v5852
          %v6429 = vpack.c.b16 %v5869, %v5853
          %v6430 = vpack.c.b16 %v5870, %v5854
          %v6431 = vpack.c.b16 %v5871, %v5855
          %v6432 = vpack.c.b16 %v5872, %v5856
          %v6433 = vpack.c.b16 %v5873, %v5857
          %v6434 = vpack.c.b16 %v5874, %v5858
          %v6435 = vpack.c.b16 %v5875, %v5859
          %v6436 = vpack.c.b16 %v5876, %v5860
          %v6437 = vpack.c.b16 %v5893, %v5877
          %v6438 = vpack.c.b16 %v5894, %v5878
          %v6439 = vpack.c.b16 %v5895, %v5879
          %v6440 = vpack.c.b16 %v5896, %v5880
          %v6441 = vpack.c.b16 %v5897, %v5881
          %v6442 = vpack.c.b16 %v5898, %v5882
          %v6443 = vpack.c.b16 %v5899, %v5883
          %v6444 = vpack.c.b16 %v5900, %v5884
          %v6445 = vpack.c.b16 %v5901, %v5885
          %v6446 = vpack.c.b16 %v5902, %v5886
          %v6447 = vpack.c.b16 %v5903, %v5887
          %v6448 = vpack.c.b16 %v5904, %v5888
          %v6449 = vpack.c.b16 %v5905, %v5889
          %v6450 = vpack.c.b16 %v5906, %v5890
          %v6451 = vpack.c.b16 %v5907, %v5891
          %v6452 = vpack.c.b16 %v5908, %v5892
          %v6453 = vpack.c.b16 %v5925, %v5909
          %v6454 = vpack.c.b16 %v5926, %v5910
          %v6455 = vpack.c.b16 %v5927, %v5911
          %v6456 = vpack.c.b16 %v5928, %v5912
          %v6457 = vpack.c.b16 %v5929, %v5913
          %v6458 = vpack.c.b16 %v5930, %v5914
          %v6459 = vpack.c.b16 %v5931, %v5915
          %v6460 = vpack.c.b16 %v5932, %v5916
          %v6461 = vpack.c.b16 %v5933, %v5917
          %v6462 = vpack.c.b16 %v5934, %v5918
          %v6463 = vpack.c.b16 %v5935, %v5919
          %v6464 = vpack.c.b16 %v5936, %v5920
          %v6465 = vpack.c.b16 %v5937, %v5921
          %v6466 = vpack.c.b16 %v5938, %v5922
          %v6467 = vpack.c.b16 %v5939, %v5923
          %v6468 = vpack.c.b16 %v5940, %v5924
          %v6469 = vpack.c.b16 %v5957, %v5941
          %v6470 = vpack.c.b16 %v5958, %v5942
          %v6471 = vpack.c.b16 %v5959, %v5943
          %v6472 = vpack.c.b16 %v5960, %v5944
          %v6473 = vpack.c.b16 %v5961, %v5945
          %v6474 = vpack.c.b16 %v5962, %v5946
          %v6475 = vpack.c.b16 %v5963, %v5947
          %v6476 = vpack.c.b16 %v5964, %v5948
          %v6477 = vpack.c.b16 %v5965, %v5949
          %v6478 = vpack.c.b16 %v5966, %v5950
          %v6479 = vpack.c.b16 %v5967, %v5951
          %v6480 = vpack.c.b16 %v5968, %v5952
          %v6481 = vpack.c.b16 %v5969, %v5953
          %v6482 = vpack.c.b16 %v5970, %v5954
          %v6483 = vpack.c.b16 %v5971, %v5955
          %v6484 = vpack.c.b16 %v5972, %v5956
          %6997 = vmatpush.bf16.msra.mxu0 %v6085
          %6998 = vmatpush.bf16.msra.mxu0 %v6069
          %6999 = vmatpush.bf16.msra.mxu0 %v6053
          %7000 = vmatpush.bf16.msra.mxu0 %v6037
          %7001 = vmatpush.bf16.msra.mxu0 %v6021
          %7002 = vmatpush.bf16.msra.mxu0 %v6005
          %7003 = vmatpush.bf16.msra.mxu0 %v5989
          %7004 = vmatpush.bf16.msra.mxu0 %v5973
          %7005 = vmatmul.bf16.gmra.mxu0 %v3909
          %v7006 = vpop.f32.mrf.mxu0
          %v7007 = vadd.f32 0.0, %v7006
          %v7008 = vpop.f32.mrf.mxu0
          %v7009 = vadd.f32 0.0, %v7008
          %7010 = vmatmul.bf16.gmra.mxu0 %v3913
          %v7011 = vpop.f32.mrf.mxu0
          %v7012 = vadd.f32 0.0, %v7011
          %v7013 = vpop.f32.mrf.mxu0
          %v7014 = vadd.f32 0.0, %v7013
          %7015 = vmatmul.bf16.gmra.mxu0 %v3917
          %v7016 = vpop.f32.mrf.mxu0
          %v7017 = vadd.f32 0.0, %v7016
          %v7018 = vpop.f32.mrf.mxu0
          %v7019 = vadd.f32 0.0, %v7018
          %7020 = vmatmul.bf16.gmra.mxu0 %v3921
          %v7021 = vpop.f32.mrf.mxu0
          %v7022 = vadd.f32 0.0, %v7021
          %v7023 = vpop.f32.mrf.mxu0
          %7024 = vdwg.mxu0
          %7025 = vmatpush.bf16.msra.mxu0 %v6213
          %7026 = vmatpush.bf16.msra.mxu0 %v6197
          %7027 = vmatpush.bf16.msra.mxu0 %v6181
          %7028 = vmatpush.bf16.msra.mxu0 %v6165
          %7029 = vmatpush.bf16.msra.mxu0 %v6149
          %7030 = vmatpush.bf16.msra.mxu0 %v6133
          %7031 = vmatpush.bf16.msra.mxu0 %v6117
          %7032 = vmatpush.bf16.msra.mxu0 %v6101
          %7033 = vmatmul.bf16.gmra.mxu0 %v3910
          %v7034 = vpop.f32.mrf.mxu0
          %v7035 = vadd.f32 %v7007, %v7034
          %v7036 = vpop.f32.mrf.mxu0
          %v7037 = vadd.f32 %v7009, %v7036
          %7038 = vmatmul.bf16.gmra.mxu0 %v3914
          %v7039 = vpop.f32.mrf.mxu0
          %v7040 = vadd.f32 %v7012, %v7039
          %v7041 = vpop.f32.mrf.mxu0
          %v7042 = vadd.f32 %v7014, %v7041
          %7043 = vmatmul.bf16.gmra.mxu0 %v3918
          %v7044 = vpop.f32.mrf.mxu0
          %v7045 = vadd.f32 %v7017, %v7044
          %v7046 = vpop.f32.mrf.mxu0
          %v7047 = vadd.f32 %v7019, %v7046
          %7048 = vmatmul.bf16.gmra.mxu0 %v3922
          %v7049 = vpop.f32.mrf.mxu0
          %v7050 = vadd.f32 %v7022, %v7049
          %v7051 = vpop.f32.mrf.mxu0
          %7052 = vdwg.mxu0
          %7053 = vmatpush.bf16.msra.mxu0 %v6341
          %7054 = vmatpush.bf16.msra.mxu0 %v6325
          %7055 = vmatpush.bf16.msra.mxu0 %v6309
          %7056 = vmatpush.bf16.msra.mxu0 %v6293
          %7057 = vmatpush.bf16.msra.mxu0 %v6277
          %7058 = vmatpush.bf16.msra.mxu0 %v6261
          %7059 = vmatpush.bf16.msra.mxu0 %v6245
          %7060 = vmatpush.bf16.msra.mxu0 %v6229
          %7061 = vmatmul.bf16.gmra.mxu0 %v3911
          %v7062 = vpop.f32.mrf.mxu0
          %v7063 = vadd.f32 %v7035, %v7062
          %v7064 = vpop.f32.mrf.mxu0
          %v7065 = vadd.f32 %v7037, %v7064
          %7066 = vmatmul.bf16.gmra.mxu0 %v3915
          %v7067 = vpop.f32.mrf.mxu0
          %v7068 = vadd.f32 %v7040, %v7067
          %v7069 = vpop.f32.mrf.mxu0
          %v7070 = vadd.f32 %v7042, %v7069
          %7071 = vmatmul.bf16.gmra.mxu0 %v3919
          %v7072 = vpop.f32.mrf.mxu0
          %v7073 = vadd.f32 %v7045, %v7072
          %v7074 = vpop.f32.mrf.mxu0
          %v7075 = vadd.f32 %v7047, %v7074
          %7076 = vmatmul.bf16.gmra.mxu0 %v3923
          %v7077 = vpop.f32.mrf.mxu0
          %v7078 = vadd.f32 %v7050, %v7077
          %v7079 = vpop.f32.mrf.mxu0
          %7080 = vdwg.mxu0
          %7081 = vmatpush.bf16.msra.mxu0 %v6469
          %7082 = vmatpush.bf16.msra.mxu0 %v6453
          %7083 = vmatpush.bf16.msra.mxu0 %v6437
          %7084 = vmatpush.bf16.msra.mxu0 %v6421
          %7085 = vmatpush.bf16.msra.mxu0 %v6405
          %7086 = vmatpush.bf16.msra.mxu0 %v6389
          %7087 = vmatpush.bf16.msra.mxu0 %v6373
          %7088 = vmatpush.bf16.msra.mxu0 %v6357
          %7089 = vmatmul.bf16.gmra.mxu0 %v3912
          %v7090 = vpop.f32.mrf.mxu0
          %v7091 = vadd.f32 %v7063, %v7090
          %v7092 = vpop.f32.mrf.mxu0
          %v7093 = vadd.f32 %v7065, %v7092
          %7094 = vmatmul.bf16.gmra.mxu0 %v3916
          %v7095 = vpop.f32.mrf.mxu0
          %v7096 = vadd.f32 %v7068, %v7095
          %v7097 = vpop.f32.mrf.mxu0
          %v7098 = vadd.f32 %v7070, %v7097
          %7099 = vmatmul.bf16.gmra.mxu0 %v3920
          %v7100 = vpop.f32.mrf.mxu0
          %v7101 = vadd.f32 %v7073, %v7100
          %v7102 = vpop.f32.mrf.mxu0
          %v7103 = vadd.f32 %v7075, %v7102
          %7104 = vmatmul.bf16.gmra.mxu0 %v3924
          %v7105 = vpop.f32.mrf.mxu0
          %v7106 = vadd.f32 %v7078, %v7105
          %v7107 = vpop.f32.mrf.mxu0
          %7108 = vdwg.mxu0
          %7109 = vmatpush.bf16.msra.mxu0 %v6086
          %7110 = vmatpush.bf16.msra.mxu0 %v6070
          %7111 = vmatpush.bf16.msra.mxu0 %v6054
          %7112 = vmatpush.bf16.msra.mxu0 %v6038
          %7113 = vmatpush.bf16.msra.mxu0 %v6022
          %7114 = vmatpush.bf16.msra.mxu0 %v6006
          %7115 = vmatpush.bf16.msra.mxu0 %v5990
          %7116 = vmatpush.bf16.msra.mxu0 %v5974
          %7117 = vmatmul.bf16.gmra.mxu0 %v3909
          %v7118 = vpop.f32.mrf.mxu0
          %v7119 = vadd.f32 0.0, %v7118
          %v7120 = vpop.f32.mrf.mxu0
          %v7121 = vadd.f32 0.0, %v7120
          %7122 = vmatmul.bf16.gmra.mxu0 %v3913
          %v7123 = vpop.f32.mrf.mxu0
          %v7124 = vadd.f32 0.0, %v7123
          %v7125 = vpop.f32.mrf.mxu0
          %v7126 = vadd.f32 0.0, %v7125
          %7127 = vmatmul.bf16.gmra.mxu0 %v3917
          %v7128 = vpop.f32.mrf.mxu0
          %v7129 = vadd.f32 0.0, %v7128
          %v7130 = vpop.f32.mrf.mxu0
          %v7131 = vadd.f32 0.0, %v7130
          %7132 = vmatmul.bf16.gmra.mxu0 %v3921
          %v7133 = vpop.f32.mrf.mxu0
          %v7134 = vadd.f32 0.0, %v7133
          %v7135 = vpop.f32.mrf.mxu0
          %7136 = vdwg.mxu0
          %7137 = vmatpush.bf16.msra.mxu0 %v6214
          %7138 = vmatpush.bf16.msra.mxu0 %v6198
          %7139 = vmatpush.bf16.msra.mxu0 %v6182
          %7140 = vmatpush.bf16.msra.mxu0 %v6166
          %7141 = vmatpush.bf16.msra.mxu0 %v6150
          %7142 = vmatpush.bf16.msra.mxu0 %v6134
          %7143 = vmatpush.bf16.msra.mxu0 %v6118
          %7144 = vmatpush.bf16.msra.mxu0 %v6102
          %7145 = vmatmul.bf16.gmra.mxu0 %v3910
          %v7146 = vpop.f32.mrf.mxu0
          %v7147 = vadd.f32 %v7119, %v7146
          %v7148 = vpop.f32.mrf.mxu0
          %v7149 = vadd.f32 %v7121, %v7148
          %7150 = vmatmul.bf16.gmra.mxu0 %v3914
          %v7151 = vpop.f32.mrf.mxu0
          %v7152 = vadd.f32 %v7124, %v7151
          %v7153 = vpop.f32.mrf.mxu0
          %v7154 = vadd.f32 %v7126, %v7153
          %7155 = vmatmul.bf16.gmra.mxu0 %v3918
          %v7156 = vpop.f32.mrf.mxu0
          %v7157 = vadd.f32 %v7129, %v7156
          %v7158 = vpop.f32.mrf.mxu0
          %v7159 = vadd.f32 %v7131, %v7158
          %7160 = vmatmul.bf16.gmra.mxu0 %v3922
          %v7161 = vpop.f32.mrf.mxu0
          %v7162 = vadd.f32 %v7134, %v7161
          %v7163 = vpop.f32.mrf.mxu0
          %7164 = vdwg.mxu0
          %7165 = vmatpush.bf16.msra.mxu0 %v6342
          %7166 = vmatpush.bf16.msra.mxu0 %v6326
          %7167 = vmatpush.bf16.msra.mxu0 %v6310
          %7168 = vmatpush.bf16.msra.mxu0 %v6294
          %7169 = vmatpush.bf16.msra.mxu0 %v6278
          %7170 = vmatpush.bf16.msra.mxu0 %v6262
          %7171 = vmatpush.bf16.msra.mxu0 %v6246
          %7172 = vmatpush.bf16.msra.mxu0 %v6230
          %7173 = vmatmul.bf16.gmra.mxu0 %v3911
          %v7174 = vpop.f32.mrf.mxu0
          %v7175 = vadd.f32 %v7147, %v7174
          %v7176 = vpop.f32.mrf.mxu0
          %v7177 = vadd.f32 %v7149, %v7176
          %7178 = vmatmul.bf16.gmra.mxu0 %v3915
          %v7179 = vpop.f32.mrf.mxu0
          %v7180 = vadd.f32 %v7152, %v7179
          %v7181 = vpop.f32.mrf.mxu0
          %v7182 = vadd.f32 %v7154, %v7181
          %7183 = vmatmul.bf16.gmra.mxu0 %v3919
          %v7184 = vpop.f32.mrf.mxu0
          %v7185 = vadd.f32 %v7157, %v7184
          %v7186 = vpop.f32.mrf.mxu0
          %v7187 = vadd.f32 %v7159, %v7186
          %7188 = vmatmul.bf16.gmra.mxu0 %v3923
          %v7189 = vpop.f32.mrf.mxu0
          %v7190 = vadd.f32 %v7162, %v7189
          %v7191 = vpop.f32.mrf.mxu0
          %7192 = vdwg.mxu0
          %7193 = vmatpush.bf16.msra.mxu0 %v6470
          %7194 = vmatpush.bf16.msra.mxu0 %v6454
          %7195 = vmatpush.bf16.msra.mxu0 %v6438
          %7196 = vmatpush.bf16.msra.mxu0 %v6422
          %7197 = vmatpush.bf16.msra.mxu0 %v6406
          %7198 = vmatpush.bf16.msra.mxu0 %v6390
          %7199 = vmatpush.bf16.msra.mxu0 %v6374
          %7200 = vmatpush.bf16.msra.mxu0 %v6358
          %7201 = vmatmul.bf16.gmra.mxu0 %v3912
          %v7202 = vpop.f32.mrf.mxu0
          %v7203 = vadd.f32 %v7175, %v7202
          %v7204 = vpop.f32.mrf.mxu0
          %v7205 = vadd.f32 %v7177, %v7204
          %7206 = vmatmul.bf16.gmra.mxu0 %v3916
          %v7207 = vpop.f32.mrf.mxu0
          %v7208 = vadd.f32 %v7180, %v7207
          %v7209 = vpop.f32.mrf.mxu0
          %v7210 = vadd.f32 %v7182, %v7209
          %7211 = vmatmul.bf16.gmra.mxu0 %v3920
          %v7212 = vpop.f32.mrf.mxu0
          %v7213 = vadd.f32 %v7185, %v7212
          %v7214 = vpop.f32.mrf.mxu0
          %v7215 = vadd.f32 %v7187, %v7214
          %7216 = vmatmul.bf16.gmra.mxu0 %v3924
          %v7217 = vpop.f32.mrf.mxu0
          %v7218 = vadd.f32 %v7190, %v7217
          %v7219 = vpop.f32.mrf.mxu0
          %7220 = vdwg.mxu0
          %7221 = vmatpush.bf16.msra.mxu0 %v6087
          %7222 = vmatpush.bf16.msra.mxu0 %v6071
          %7223 = vmatpush.bf16.msra.mxu0 %v6055
          %7224 = vmatpush.bf16.msra.mxu0 %v6039
          %7225 = vmatpush.bf16.msra.mxu0 %v6023
          %7226 = vmatpush.bf16.msra.mxu0 %v6007
          %7227 = vmatpush.bf16.msra.mxu0 %v5991
          %7228 = vmatpush.bf16.msra.mxu0 %v5975
          %7229 = vmatmul.bf16.gmra.mxu0 %v3909
          %v7230 = vpop.f32.mrf.mxu0
          %v7231 = vadd.f32 0.0, %v7230
          %v7232 = vpop.f32.mrf.mxu0
          %v7233 = vadd.f32 0.0, %v7232
          %7234 = vmatmul.bf16.gmra.mxu0 %v3913
          %v7235 = vpop.f32.mrf.mxu0
          %v7236 = vadd.f32 0.0, %v7235
          %v7237 = vpop.f32.mrf.mxu0
          %v7238 = vadd.f32 0.0, %v7237
          %7239 = vmatmul.bf16.gmra.mxu0 %v3917
          %v7240 = vpop.f32.mrf.mxu0
          %v7241 = vadd.f32 0.0, %v7240
          %v7242 = vpop.f32.mrf.mxu0
          %v7243 = vadd.f32 0.0, %v7242
          %7244 = vmatmul.bf16.gmra.mxu0 %v3921
          %v7245 = vpop.f32.mrf.mxu0
          %v7246 = vadd.f32 0.0, %v7245
          %v7247 = vpop.f32.mrf.mxu0
          %7248 = vdwg.mxu0
          %7249 = vmatpush.bf16.msra.mxu0 %v6215
          %7250 = vmatpush.bf16.msra.mxu0 %v6199
          %7251 = vmatpush.bf16.msra.mxu0 %v6183
          %7252 = vmatpush.bf16.msra.mxu0 %v6167
          %7253 = vmatpush.bf16.msra.mxu0 %v6151
          %7254 = vmatpush.bf16.msra.mxu0 %v6135
          %7255 = vmatpush.bf16.msra.mxu0 %v6119
          %7256 = vmatpush.bf16.msra.mxu0 %v6103
          %7257 = vmatmul.bf16.gmra.mxu0 %v3910
          %v7258 = vpop.f32.mrf.mxu0
          %v7259 = vadd.f32 %v7231, %v7258
          %v7260 = vpop.f32.mrf.mxu0
          %v7261 = vadd.f32 %v7233, %v7260
          %7262 = vmatmul.bf16.gmra.mxu0 %v3914
          %v7263 = vpop.f32.mrf.mxu0
          %v7264 = vadd.f32 %v7236, %v7263
          %v7265 = vpop.f32.mrf.mxu0
          %v7266 = vadd.f32 %v7238, %v7265
          %7267 = vmatmul.bf16.gmra.mxu0 %v3918
          %v7268 = vpop.f32.mrf.mxu0
          %v7269 = vadd.f32 %v7241, %v7268
          %v7270 = vpop.f32.mrf.mxu0
          %v7271 = vadd.f32 %v7243, %v7270
          %7272 = vmatmul.bf16.gmra.mxu0 %v3922
          %v7273 = vpop.f32.mrf.mxu0
          %v7274 = vadd.f32 %v7246, %v7273
          %v7275 = vpop.f32.mrf.mxu0
          %7276 = vdwg.mxu0
          %7277 = vmatpush.bf16.msra.mxu0 %v6343
          %7278 = vmatpush.bf16.msra.mxu0 %v6327
          %7279 = vmatpush.bf16.msra.mxu0 %v6311
          %7280 = vmatpush.bf16.msra.mxu0 %v6295
          %7281 = vmatpush.bf16.msra.mxu0 %v6279
          %7282 = vmatpush.bf16.msra.mxu0 %v6263
          %7283 = vmatpush.bf16.msra.mxu0 %v6247
          %7284 = vmatpush.bf16.msra.mxu0 %v6231
          %7285 = vmatmul.bf16.gmra.mxu0 %v3911
          %v7286 = vpop.f32.mrf.mxu0
          %v7287 = vadd.f32 %v7259, %v7286
          %v7288 = vpop.f32.mrf.mxu0
          %v7289 = vadd.f32 %v7261, %v7288
          %7290 = vmatmul.bf16.gmra.mxu0 %v3915
          %v7291 = vpop.f32.mrf.mxu0
          %v7292 = vadd.f32 %v7264, %v7291
          %v7293 = vpop.f32.mrf.mxu0
          %v7294 = vadd.f32 %v7266, %v7293
          %7295 = vmatmul.bf16.gmra.mxu0 %v3919
          %v7296 = vpop.f32.mrf.mxu0
          %v7297 = vadd.f32 %v7269, %v7296
          %v7298 = vpop.f32.mrf.mxu0
          %v7299 = vadd.f32 %v7271, %v7298
          %7300 = vmatmul.bf16.gmra.mxu0 %v3923
          %v7301 = vpop.f32.mrf.mxu0
          %v7302 = vadd.f32 %v7274, %v7301
          %v7303 = vpop.f32.mrf.mxu0
          %7304 = vdwg.mxu0
          %7305 = vmatpush.bf16.msra.mxu0 %v6471
          %7306 = vmatpush.bf16.msra.mxu0 %v6455
          %7307 = vmatpush.bf16.msra.mxu0 %v6439
          %7308 = vmatpush.bf16.msra.mxu0 %v6423
          %7309 = vmatpush.bf16.msra.mxu0 %v6407
          %7310 = vmatpush.bf16.msra.mxu0 %v6391
          %7311 = vmatpush.bf16.msra.mxu0 %v6375
          %7312 = vmatpush.bf16.msra.mxu0 %v6359
          %7313 = vmatmul.bf16.gmra.mxu0 %v3912
          %v7314 = vpop.f32.mrf.mxu0
          %v7315 = vadd.f32 %v7287, %v7314
          %v7316 = vpop.f32.mrf.mxu0
          %v7317 = vadd.f32 %v7289, %v7316
          %7318 = vmatmul.bf16.gmra.mxu0 %v3916
          %v7319 = vpop.f32.mrf.mxu0
          %v7320 = vadd.f32 %v7292, %v7319
          %v7321 = vpop.f32.mrf.mxu0
          %v7322 = vadd.f32 %v7294, %v7321
          %7323 = vmatmul.bf16.gmra.mxu0 %v3920
          %v7324 = vpop.f32.mrf.mxu0
          %v7325 = vadd.f32 %v7297, %v7324
          %v7326 = vpop.f32.mrf.mxu0
          %v7327 = vadd.f32 %v7299, %v7326
          %7328 = vmatmul.bf16.gmra.mxu0 %v3924
          %v7329 = vpop.f32.mrf.mxu0
          %v7330 = vadd.f32 %v7302, %v7329
          %v7331 = vpop.f32.mrf.mxu0
          %7332 = vdwg.mxu0
          %7333 = vmatpush.bf16.msra.mxu0 %v6088
          %7334 = vmatpush.bf16.msra.mxu0 %v6072
          %7335 = vmatpush.bf16.msra.mxu0 %v6056
          %7336 = vmatpush.bf16.msra.mxu0 %v6040
          %7337 = vmatpush.bf16.msra.mxu0 %v6024
          %7338 = vmatpush.bf16.msra.mxu0 %v6008
          %7339 = vmatpush.bf16.msra.mxu0 %v5992
          %7340 = vmatpush.bf16.msra.mxu0 %v5976
          %7341 = vmatmul.bf16.gmra.mxu0 %v3909
          %v7342 = vpop.f32.mrf.mxu0
          %v7343 = vadd.f32 0.0, %v7342
          %v7344 = vpop.f32.mrf.mxu0
          %v7345 = vadd.f32 0.0, %v7344
          %7346 = vmatmul.bf16.gmra.mxu0 %v3913
          %v7347 = vpop.f32.mrf.mxu0
          %v7348 = vadd.f32 0.0, %v7347
          %v7349 = vpop.f32.mrf.mxu0
          %v7350 = vadd.f32 0.0, %v7349
          %7351 = vmatmul.bf16.gmra.mxu0 %v3917
          %v7352 = vpop.f32.mrf.mxu0
          %v7353 = vadd.f32 0.0, %v7352
          %v7354 = vpop.f32.mrf.mxu0
          %v7355 = vadd.f32 0.0, %v7354
          %7356 = vmatmul.bf16.gmra.mxu0 %v3921
          %v7357 = vpop.f32.mrf.mxu0
          %v7358 = vadd.f32 0.0, %v7357
          %v7359 = vpop.f32.mrf.mxu0
          %7360 = vdwg.mxu0
          %7361 = vmatpush.bf16.msra.mxu0 %v6216
          %7362 = vmatpush.bf16.msra.mxu0 %v6200
          %7363 = vmatpush.bf16.msra.mxu0 %v6184
          %7364 = vmatpush.bf16.msra.mxu0 %v6168
          %7365 = vmatpush.bf16.msra.mxu0 %v6152
          %7366 = vmatpush.bf16.msra.mxu0 %v6136
          %7367 = vmatpush.bf16.msra.mxu0 %v6120
          %7368 = vmatpush.bf16.msra.mxu0 %v6104
          %7369 = vmatmul.bf16.gmra.mxu0 %v3910
          %v7370 = vpop.f32.mrf.mxu0
          %v7371 = vadd.f32 %v7343, %v7370
          %v7372 = vpop.f32.mrf.mxu0
          %v7373 = vadd.f32 %v7345, %v7372
          %7374 = vmatmul.bf16.gmra.mxu0 %v3914
          %v7375 = vpop.f32.mrf.mxu0
          %v7376 = vadd.f32 %v7348, %v7375
          %v7377 = vpop.f32.mrf.mxu0
          %v7378 = vadd.f32 %v7350, %v7377
          %7379 = vmatmul.bf16.gmra.mxu0 %v3918
          %v7380 = vpop.f32.mrf.mxu0
          %v7381 = vadd.f32 %v7353, %v7380
          %v7382 = vpop.f32.mrf.mxu0
          %v7383 = vadd.f32 %v7355, %v7382
          %7384 = vmatmul.bf16.gmra.mxu0 %v3922
          %v7385 = vpop.f32.mrf.mxu0
          %v7386 = vadd.f32 %v7358, %v7385
          %v7387 = vpop.f32.mrf.mxu0
          %7388 = vdwg.mxu0
          %7389 = vmatpush.bf16.msra.mxu0 %v6344
          %7390 = vmatpush.bf16.msra.mxu0 %v6328
          %7391 = vmatpush.bf16.msra.mxu0 %v6312
          %7392 = vmatpush.bf16.msra.mxu0 %v6296
          %7393 = vmatpush.bf16.msra.mxu0 %v6280
          %7394 = vmatpush.bf16.msra.mxu0 %v6264
          %7395 = vmatpush.bf16.msra.mxu0 %v6248
          %7396 = vmatpush.bf16.msra.mxu0 %v6232
          %7397 = vmatmul.bf16.gmra.mxu0 %v3911
          %v7398 = vpop.f32.mrf.mxu0
          %v7399 = vadd.f32 %v7371, %v7398
          %v7400 = vpop.f32.mrf.mxu0
          %v7401 = vadd.f32 %v7373, %v7400
          %7402 = vmatmul.bf16.gmra.mxu0 %v3915
          %v7403 = vpop.f32.mrf.mxu0
          %v7404 = vadd.f32 %v7376, %v7403
          %v7405 = vpop.f32.mrf.mxu0
          %v7406 = vadd.f32 %v7378, %v7405
          %7407 = vmatmul.bf16.gmra.mxu0 %v3919
          %v7408 = vpop.f32.mrf.mxu0
          %v7409 = vadd.f32 %v7381, %v7408
          %v7410 = vpop.f32.mrf.mxu0
          %v7411 = vadd.f32 %v7383, %v7410
          %7412 = vmatmul.bf16.gmra.mxu0 %v3923
          %v7413 = vpop.f32.mrf.mxu0
          %v7414 = vadd.f32 %v7386, %v7413
          %v7415 = vpop.f32.mrf.mxu0
          %7416 = vdwg.mxu0
          %7417 = vmatpush.bf16.msra.mxu0 %v6472
          %7418 = vmatpush.bf16.msra.mxu0 %v6456
          %7419 = vmatpush.bf16.msra.mxu0 %v6440
          %7420 = vmatpush.bf16.msra.mxu0 %v6424
          %7421 = vmatpush.bf16.msra.mxu0 %v6408
          %7422 = vmatpush.bf16.msra.mxu0 %v6392
          %7423 = vmatpush.bf16.msra.mxu0 %v6376
          %7424 = vmatpush.bf16.msra.mxu0 %v6360
          %7425 = vmatmul.bf16.gmra.mxu0 %v3912
          %v7426 = vpop.f32.mrf.mxu0
          %v7427 = vadd.f32 %v7399, %v7426
          %v7428 = vpop.f32.mrf.mxu0
          %v7429 = vadd.f32 %v7401, %v7428
          %7430 = vmatmul.bf16.gmra.mxu0 %v3916
          %v7431 = vpop.f32.mrf.mxu0
          %v7432 = vadd.f32 %v7404, %v7431
          %v7433 = vpop.f32.mrf.mxu0
          %v7434 = vadd.f32 %v7406, %v7433
          %7435 = vmatmul.bf16.gmra.mxu0 %v3920
          %v7436 = vpop.f32.mrf.mxu0
          %v7437 = vadd.f32 %v7409, %v7436
          %v7438 = vpop.f32.mrf.mxu0
          %v7439 = vadd.f32 %v7411, %v7438
          %7440 = vmatmul.bf16.gmra.mxu0 %v3924
          %v7441 = vpop.f32.mrf.mxu0
          %v7442 = vadd.f32 %v7414, %v7441
          %v7443 = vpop.f32.mrf.mxu0
          %7444 = vdwg.mxu0
          %7445 = vmatpush.bf16.msra.mxu0 %v6089
          %7446 = vmatpush.bf16.msra.mxu0 %v6073
          %7447 = vmatpush.bf16.msra.mxu0 %v6057
          %7448 = vmatpush.bf16.msra.mxu0 %v6041
          %7449 = vmatpush.bf16.msra.mxu0 %v6025
          %7450 = vmatpush.bf16.msra.mxu0 %v6009
          %7451 = vmatpush.bf16.msra.mxu0 %v5993
          %7452 = vmatpush.bf16.msra.mxu0 %v5977
          %7453 = vmatmul.bf16.gmra.mxu0 %v3909
          %v7454 = vpop.f32.mrf.mxu0
          %v7455 = vadd.f32 0.0, %v7454
          %v7456 = vpop.f32.mrf.mxu0
          %v7457 = vadd.f32 0.0, %v7456
          %7458 = vmatmul.bf16.gmra.mxu0 %v3913
          %v7459 = vpop.f32.mrf.mxu0
          %v7460 = vadd.f32 0.0, %v7459
          %v7461 = vpop.f32.mrf.mxu0
          %v7462 = vadd.f32 0.0, %v7461
          %7463 = vmatmul.bf16.gmra.mxu0 %v3917
          %v7464 = vpop.f32.mrf.mxu0
          %v7465 = vadd.f32 0.0, %v7464
          %v7466 = vpop.f32.mrf.mxu0
          %v7467 = vadd.f32 0.0, %v7466
          %7468 = vmatmul.bf16.gmra.mxu0 %v3921
          %v7469 = vpop.f32.mrf.mxu0
          %v7470 = vadd.f32 0.0, %v7469
          %v7471 = vpop.f32.mrf.mxu0
          %7472 = vdwg.mxu0
          %7473 = vmatpush.bf16.msra.mxu0 %v6217
          %7474 = vmatpush.bf16.msra.mxu0 %v6201
          %7475 = vmatpush.bf16.msra.mxu0 %v6185
          %7476 = vmatpush.bf16.msra.mxu0 %v6169
          %7477 = vmatpush.bf16.msra.mxu0 %v6153
          %7478 = vmatpush.bf16.msra.mxu0 %v6137
          %7479 = vmatpush.bf16.msra.mxu0 %v6121
          %7480 = vmatpush.bf16.msra.mxu0 %v6105
          %7481 = vmatmul.bf16.gmra.mxu0 %v3910
          %v7482 = vpop.f32.mrf.mxu0
          %v7483 = vadd.f32 %v7455, %v7482
          %v7484 = vpop.f32.mrf.mxu0
          %v7485 = vadd.f32 %v7457, %v7484
          %7486 = vmatmul.bf16.gmra.mxu0 %v3914
          %v7487 = vpop.f32.mrf.mxu0
          %v7488 = vadd.f32 %v7460, %v7487
          %v7489 = vpop.f32.mrf.mxu0
          %v7490 = vadd.f32 %v7462, %v7489
          %7491 = vmatmul.bf16.gmra.mxu0 %v3918
          %v7492 = vpop.f32.mrf.mxu0
          %v7493 = vadd.f32 %v7465, %v7492
          %v7494 = vpop.f32.mrf.mxu0
          %v7495 = vadd.f32 %v7467, %v7494
          %7496 = vmatmul.bf16.gmra.mxu0 %v3922
          %v7497 = vpop.f32.mrf.mxu0
          %v7498 = vadd.f32 %v7470, %v7497
          %v7499 = vpop.f32.mrf.mxu0
          %7500 = vdwg.mxu0
          %7501 = vmatpush.bf16.msra.mxu0 %v6345
          %7502 = vmatpush.bf16.msra.mxu0 %v6329
          %7503 = vmatpush.bf16.msra.mxu0 %v6313
          %7504 = vmatpush.bf16.msra.mxu0 %v6297
          %7505 = vmatpush.bf16.msra.mxu0 %v6281
          %7506 = vmatpush.bf16.msra.mxu0 %v6265
          %7507 = vmatpush.bf16.msra.mxu0 %v6249
          %7508 = vmatpush.bf16.msra.mxu0 %v6233
          %7509 = vmatmul.bf16.gmra.mxu0 %v3911
          %v7510 = vpop.f32.mrf.mxu0
          %v7511 = vadd.f32 %v7483, %v7510
          %v7512 = vpop.f32.mrf.mxu0
          %v7513 = vadd.f32 %v7485, %v7512
          %7514 = vmatmul.bf16.gmra.mxu0 %v3915
          %v7515 = vpop.f32.mrf.mxu0
          %v7516 = vadd.f32 %v7488, %v7515
          %v7517 = vpop.f32.mrf.mxu0
          %v7518 = vadd.f32 %v7490, %v7517
          %7519 = vmatmul.bf16.gmra.mxu0 %v3919
          %v7520 = vpop.f32.mrf.mxu0
          %v7521 = vadd.f32 %v7493, %v7520
          %v7522 = vpop.f32.mrf.mxu0
          %v7523 = vadd.f32 %v7495, %v7522
          %7524 = vmatmul.bf16.gmra.mxu0 %v3923
          %v7525 = vpop.f32.mrf.mxu0
          %v7526 = vadd.f32 %v7498, %v7525
          %v7527 = vpop.f32.mrf.mxu0
          %7528 = vdwg.mxu0
          %7529 = vmatpush.bf16.msra.mxu0 %v6473
          %7530 = vmatpush.bf16.msra.mxu0 %v6457
          %7531 = vmatpush.bf16.msra.mxu0 %v6441
          %7532 = vmatpush.bf16.msra.mxu0 %v6425
          %7533 = vmatpush.bf16.msra.mxu0 %v6409
          %7534 = vmatpush.bf16.msra.mxu0 %v6393
          %7535 = vmatpush.bf16.msra.mxu0 %v6377
          %7536 = vmatpush.bf16.msra.mxu0 %v6361
          %7537 = vmatmul.bf16.gmra.mxu0 %v3912
          %v7538 = vpop.f32.mrf.mxu0
          %v7539 = vadd.f32 %v7511, %v7538
          %v7540 = vpop.f32.mrf.mxu0
          %v7541 = vadd.f32 %v7513, %v7540
          %7542 = vmatmul.bf16.gmra.mxu0 %v3916
          %v7543 = vpop.f32.mrf.mxu0
          %v7544 = vadd.f32 %v7516, %v7543
          %v7545 = vpop.f32.mrf.mxu0
          %v7546 = vadd.f32 %v7518, %v7545
          %7547 = vmatmul.bf16.gmra.mxu0 %v3920
          %v7548 = vpop.f32.mrf.mxu0
          %v7549 = vadd.f32 %v7521, %v7548
          %v7550 = vpop.f32.mrf.mxu0
          %v7551 = vadd.f32 %v7523, %v7550
          %7552 = vmatmul.bf16.gmra.mxu0 %v3924
          %v7553 = vpop.f32.mrf.mxu0
          %v7554 = vadd.f32 %v7526, %v7553
          %v7555 = vpop.f32.mrf.mxu0
          %7556 = vdwg.mxu0
          %7557 = vmatpush.bf16.msra.mxu0 %v6090
          %7558 = vmatpush.bf16.msra.mxu0 %v6074
          %7559 = vmatpush.bf16.msra.mxu0 %v6058
          %7560 = vmatpush.bf16.msra.mxu0 %v6042
          %7561 = vmatpush.bf16.msra.mxu0 %v6026
          %7562 = vmatpush.bf16.msra.mxu0 %v6010
          %7563 = vmatpush.bf16.msra.mxu0 %v5994
          %7564 = vmatpush.bf16.msra.mxu0 %v5978
          %7565 = vmatmul.bf16.gmra.mxu0 %v3909
          %v7566 = vpop.f32.mrf.mxu0
          %v7567 = vadd.f32 0.0, %v7566
          %v7568 = vpop.f32.mrf.mxu0
          %v7569 = vadd.f32 0.0, %v7568
          %7570 = vmatmul.bf16.gmra.mxu0 %v3913
          %v7571 = vpop.f32.mrf.mxu0
          %v7572 = vadd.f32 0.0, %v7571
          %v7573 = vpop.f32.mrf.mxu0
          %v7574 = vadd.f32 0.0, %v7573
          %7575 = vmatmul.bf16.gmra.mxu0 %v3917
          %v7576 = vpop.f32.mrf.mxu0
          %v7577 = vadd.f32 0.0, %v7576
          %v7578 = vpop.f32.mrf.mxu0
          %v7579 = vadd.f32 0.0, %v7578
          %7580 = vmatmul.bf16.gmra.mxu0 %v3921
          %v7581 = vpop.f32.mrf.mxu0
          %v7582 = vadd.f32 0.0, %v7581
          %v7583 = vpop.f32.mrf.mxu0
          %7584 = vdwg.mxu0
          %7585 = vmatpush.bf16.msra.mxu0 %v6218
          %7586 = vmatpush.bf16.msra.mxu0 %v6202
          %7587 = vmatpush.bf16.msra.mxu0 %v6186
          %7588 = vmatpush.bf16.msra.mxu0 %v6170
          %7589 = vmatpush.bf16.msra.mxu0 %v6154
          %7590 = vmatpush.bf16.msra.mxu0 %v6138
          %7591 = vmatpush.bf16.msra.mxu0 %v6122
          %7592 = vmatpush.bf16.msra.mxu0 %v6106
          %7593 = vmatmul.bf16.gmra.mxu0 %v3910
          %v7594 = vpop.f32.mrf.mxu0
          %v7595 = vadd.f32 %v7567, %v7594
          %v7596 = vpop.f32.mrf.mxu0
          %v7597 = vadd.f32 %v7569, %v7596
          %7598 = vmatmul.bf16.gmra.mxu0 %v3914
          %v7599 = vpop.f32.mrf.mxu0
          %v7600 = vadd.f32 %v7572, %v7599
          %v7601 = vpop.f32.mrf.mxu0
          %v7602 = vadd.f32 %v7574, %v7601
          %7603 = vmatmul.bf16.gmra.mxu0 %v3918
          %v7604 = vpop.f32.mrf.mxu0
          %v7605 = vadd.f32 %v7577, %v7604
          %v7606 = vpop.f32.mrf.mxu0
          %v7607 = vadd.f32 %v7579, %v7606
          %7608 = vmatmul.bf16.gmra.mxu0 %v3922
          %v7609 = vpop.f32.mrf.mxu0
          %v7610 = vadd.f32 %v7582, %v7609
          %v7611 = vpop.f32.mrf.mxu0
          %7612 = vdwg.mxu0
          %7613 = vmatpush.bf16.msra.mxu0 %v6346
          %7614 = vmatpush.bf16.msra.mxu0 %v6330
          %7615 = vmatpush.bf16.msra.mxu0 %v6314
          %7616 = vmatpush.bf16.msra.mxu0 %v6298
          %7617 = vmatpush.bf16.msra.mxu0 %v6282
          %7618 = vmatpush.bf16.msra.mxu0 %v6266
          %7619 = vmatpush.bf16.msra.mxu0 %v6250
          %7620 = vmatpush.bf16.msra.mxu0 %v6234
          %7621 = vmatmul.bf16.gmra.mxu0 %v3911
          %v7622 = vpop.f32.mrf.mxu0
          %v7623 = vadd.f32 %v7595, %v7622
          %v7624 = vpop.f32.mrf.mxu0
          %v7625 = vadd.f32 %v7597, %v7624
          %7626 = vmatmul.bf16.gmra.mxu0 %v3915
          %v7627 = vpop.f32.mrf.mxu0
          %v7628 = vadd.f32 %v7600, %v7627
          %v7629 = vpop.f32.mrf.mxu0
          %v7630 = vadd.f32 %v7602, %v7629
          %7631 = vmatmul.bf16.gmra.mxu0 %v3919
          %v7632 = vpop.f32.mrf.mxu0
          %v7633 = vadd.f32 %v7605, %v7632
          %v7634 = vpop.f32.mrf.mxu0
          %v7635 = vadd.f32 %v7607, %v7634
          %7636 = vmatmul.bf16.gmra.mxu0 %v3923
          %v7637 = vpop.f32.mrf.mxu0
          %v7638 = vadd.f32 %v7610, %v7637
          %v7639 = vpop.f32.mrf.mxu0
          %7640 = vdwg.mxu0
          %7641 = vmatpush.bf16.msra.mxu0 %v6474
          %7642 = vmatpush.bf16.msra.mxu0 %v6458
          %7643 = vmatpush.bf16.msra.mxu0 %v6442
          %7644 = vmatpush.bf16.msra.mxu0 %v6426
          %7645 = vmatpush.bf16.msra.mxu0 %v6410
          %7646 = vmatpush.bf16.msra.mxu0 %v6394
          %7647 = vmatpush.bf16.msra.mxu0 %v6378
          %7648 = vmatpush.bf16.msra.mxu0 %v6362
          %7649 = vmatmul.bf16.gmra.mxu0 %v3912
          %v7650 = vpop.f32.mrf.mxu0
          %v7651 = vadd.f32 %v7623, %v7650
          %v7652 = vpop.f32.mrf.mxu0
          %v7653 = vadd.f32 %v7625, %v7652
          %7654 = vmatmul.bf16.gmra.mxu0 %v3916
          %v7655 = vpop.f32.mrf.mxu0
          %v7656 = vadd.f32 %v7628, %v7655
          %v7657 = vpop.f32.mrf.mxu0
          %v7658 = vadd.f32 %v7630, %v7657
          %7659 = vmatmul.bf16.gmra.mxu0 %v3920
          %v7660 = vpop.f32.mrf.mxu0
          %v7661 = vadd.f32 %v7633, %v7660
          %v7662 = vpop.f32.mrf.mxu0
          %v7663 = vadd.f32 %v7635, %v7662
          %7664 = vmatmul.bf16.gmra.mxu0 %v3924
          %v7665 = vpop.f32.mrf.mxu0
          %v7666 = vadd.f32 %v7638, %v7665
          %v7667 = vpop.f32.mrf.mxu0
          %7668 = vdwg.mxu0
          %7669 = vmatpush.bf16.msra.mxu0 %v6091
          %7670 = vmatpush.bf16.msra.mxu0 %v6075
          %7671 = vmatpush.bf16.msra.mxu0 %v6059
          %7672 = vmatpush.bf16.msra.mxu0 %v6043
          %7673 = vmatpush.bf16.msra.mxu0 %v6027
          %7674 = vmatpush.bf16.msra.mxu0 %v6011
          %7675 = vmatpush.bf16.msra.mxu0 %v5995
          %7676 = vmatpush.bf16.msra.mxu0 %v5979
          %7677 = vmatmul.bf16.gmra.mxu0 %v3909
          %v7678 = vpop.f32.mrf.mxu0
          %v7679 = vadd.f32 0.0, %v7678
          %v7680 = vpop.f32.mrf.mxu0
          %v7681 = vadd.f32 0.0, %v7680
          %7682 = vmatmul.bf16.gmra.mxu0 %v3913
          %v7683 = vpop.f32.mrf.mxu0
          %v7684 = vadd.f32 0.0, %v7683
          %v7685 = vpop.f32.mrf.mxu0
          %v7686 = vadd.f32 0.0, %v7685
          %7687 = vmatmul.bf16.gmra.mxu0 %v3917
          %v7688 = vpop.f32.mrf.mxu0
          %v7689 = vadd.f32 0.0, %v7688
          %v7690 = vpop.f32.mrf.mxu0
          %v7691 = vadd.f32 0.0, %v7690
          %7692 = vmatmul.bf16.gmra.mxu0 %v3921
          %v7693 = vpop.f32.mrf.mxu0
          %v7694 = vadd.f32 0.0, %v7693
          %v7695 = vpop.f32.mrf.mxu0
          %7696 = vdwg.mxu0
          %7697 = vmatpush.bf16.msra.mxu0 %v6219
          %7698 = vmatpush.bf16.msra.mxu0 %v6203
          %7699 = vmatpush.bf16.msra.mxu0 %v6187
          %7700 = vmatpush.bf16.msra.mxu0 %v6171
          %7701 = vmatpush.bf16.msra.mxu0 %v6155
          %7702 = vmatpush.bf16.msra.mxu0 %v6139
          %7703 = vmatpush.bf16.msra.mxu0 %v6123
          %7704 = vmatpush.bf16.msra.mxu0 %v6107
          %7705 = vmatmul.bf16.gmra.mxu0 %v3910
          %v7706 = vpop.f32.mrf.mxu0
          %v7707 = vadd.f32 %v7679, %v7706
          %v7708 = vpop.f32.mrf.mxu0
          %v7709 = vadd.f32 %v7681, %v7708
          %7710 = vmatmul.bf16.gmra.mxu0 %v3914
          %v7711 = vpop.f32.mrf.mxu0
          %v7712 = vadd.f32 %v7684, %v7711
          %v7713 = vpop.f32.mrf.mxu0
          %v7714 = vadd.f32 %v7686, %v7713
          %7715 = vmatmul.bf16.gmra.mxu0 %v3918
          %v7716 = vpop.f32.mrf.mxu0
          %v7717 = vadd.f32 %v7689, %v7716
          %v7718 = vpop.f32.mrf.mxu0
          %v7719 = vadd.f32 %v7691, %v7718
          %7720 = vmatmul.bf16.gmra.mxu0 %v3922
          %v7721 = vpop.f32.mrf.mxu0
          %v7722 = vadd.f32 %v7694, %v7721
          %v7723 = vpop.f32.mrf.mxu0
          %7724 = vdwg.mxu0
          %7725 = vmatpush.bf16.msra.mxu0 %v6347
          %7726 = vmatpush.bf16.msra.mxu0 %v6331
          %7727 = vmatpush.bf16.msra.mxu0 %v6315
          %7728 = vmatpush.bf16.msra.mxu0 %v6299
          %7729 = vmatpush.bf16.msra.mxu0 %v6283
          %7730 = vmatpush.bf16.msra.mxu0 %v6267
          %7731 = vmatpush.bf16.msra.mxu0 %v6251
          %7732 = vmatpush.bf16.msra.mxu0 %v6235
          %7733 = vmatmul.bf16.gmra.mxu0 %v3911
          %v7734 = vpop.f32.mrf.mxu0
          %v7735 = vadd.f32 %v7707, %v7734
          %v7736 = vpop.f32.mrf.mxu0
          %v7737 = vadd.f32 %v7709, %v7736
          %7738 = vmatmul.bf16.gmra.mxu0 %v3915
          %v7739 = vpop.f32.mrf.mxu0
          %v7740 = vadd.f32 %v7712, %v7739
          %v7741 = vpop.f32.mrf.mxu0
          %v7742 = vadd.f32 %v7714, %v7741
          %7743 = vmatmul.bf16.gmra.mxu0 %v3919
          %v7744 = vpop.f32.mrf.mxu0
          %v7745 = vadd.f32 %v7717, %v7744
          %v7746 = vpop.f32.mrf.mxu0
          %v7747 = vadd.f32 %v7719, %v7746
          %7748 = vmatmul.bf16.gmra.mxu0 %v3923
          %v7749 = vpop.f32.mrf.mxu0
          %v7750 = vadd.f32 %v7722, %v7749
          %v7751 = vpop.f32.mrf.mxu0
          %7752 = vdwg.mxu0
          %7753 = vmatpush.bf16.msra.mxu0 %v6475
          %7754 = vmatpush.bf16.msra.mxu0 %v6459
          %7755 = vmatpush.bf16.msra.mxu0 %v6443
          %7756 = vmatpush.bf16.msra.mxu0 %v6427
          %7757 = vmatpush.bf16.msra.mxu0 %v6411
          %7758 = vmatpush.bf16.msra.mxu0 %v6395
          %7759 = vmatpush.bf16.msra.mxu0 %v6379
          %7760 = vmatpush.bf16.msra.mxu0 %v6363
          %7761 = vmatmul.bf16.gmra.mxu0 %v3912
          %v7762 = vpop.f32.mrf.mxu0
          %v7763 = vadd.f32 %v7735, %v7762
          %v7764 = vpop.f32.mrf.mxu0
          %v7765 = vadd.f32 %v7737, %v7764
          %7766 = vmatmul.bf16.gmra.mxu0 %v3916
          %v7767 = vpop.f32.mrf.mxu0
          %v7768 = vadd.f32 %v7740, %v7767
          %v7769 = vpop.f32.mrf.mxu0
          %v7770 = vadd.f32 %v7742, %v7769
          %7771 = vmatmul.bf16.gmra.mxu0 %v3920
          %v7772 = vpop.f32.mrf.mxu0
          %v7773 = vadd.f32 %v7745, %v7772
          %v7774 = vpop.f32.mrf.mxu0
          %v7775 = vadd.f32 %v7747, %v7774
          %7776 = vmatmul.bf16.gmra.mxu0 %v3924
          %v7777 = vpop.f32.mrf.mxu0
          %v7778 = vadd.f32 %v7750, %v7777
          %v7779 = vpop.f32.mrf.mxu0
          %7780 = vdwg.mxu0
          %7781 = vmatpush.bf16.msra.mxu0 %v6092
          %7782 = vmatpush.bf16.msra.mxu0 %v6076
          %7783 = vmatpush.bf16.msra.mxu0 %v6060
          %7784 = vmatpush.bf16.msra.mxu0 %v6044
          %7785 = vmatpush.bf16.msra.mxu0 %v6028
          %7786 = vmatpush.bf16.msra.mxu0 %v6012
          %7787 = vmatpush.bf16.msra.mxu0 %v5996
          %7788 = vmatpush.bf16.msra.mxu0 %v5980
          %7789 = vmatmul.bf16.gmra.mxu0 %v3909
          %v7790 = vpop.f32.mrf.mxu0
          %v7791 = vadd.f32 0.0, %v7790
          %v7792 = vpop.f32.mrf.mxu0
          %v7793 = vadd.f32 0.0, %v7792
          %7794 = vmatmul.bf16.gmra.mxu0 %v3913
          %v7795 = vpop.f32.mrf.mxu0
          %v7796 = vadd.f32 0.0, %v7795
          %v7797 = vpop.f32.mrf.mxu0
          %v7798 = vadd.f32 0.0, %v7797
          %7799 = vmatmul.bf16.gmra.mxu0 %v3917
          %v7800 = vpop.f32.mrf.mxu0
          %v7801 = vadd.f32 0.0, %v7800
          %v7802 = vpop.f32.mrf.mxu0
          %v7803 = vadd.f32 0.0, %v7802
          %7804 = vmatmul.bf16.gmra.mxu0 %v3921
          %v7805 = vpop.f32.mrf.mxu0
          %v7806 = vadd.f32 0.0, %v7805
          %v7807 = vpop.f32.mrf.mxu0
          %7808 = vdwg.mxu0
          %7809 = vmatpush.bf16.msra.mxu0 %v6220
          %7810 = vmatpush.bf16.msra.mxu0 %v6204
          %7811 = vmatpush.bf16.msra.mxu0 %v6188
          %7812 = vmatpush.bf16.msra.mxu0 %v6172
          %7813 = vmatpush.bf16.msra.mxu0 %v6156
          %7814 = vmatpush.bf16.msra.mxu0 %v6140
          %7815 = vmatpush.bf16.msra.mxu0 %v6124
          %7816 = vmatpush.bf16.msra.mxu0 %v6108
          %7817 = vmatmul.bf16.gmra.mxu0 %v3910
          %v7818 = vpop.f32.mrf.mxu0
          %v7819 = vadd.f32 %v7791, %v7818
          %v7820 = vpop.f32.mrf.mxu0
          %v7821 = vadd.f32 %v7793, %v7820
          %7822 = vmatmul.bf16.gmra.mxu0 %v3914
          %v7823 = vpop.f32.mrf.mxu0
          %v7824 = vadd.f32 %v7796, %v7823
          %v7825 = vpop.f32.mrf.mxu0
          %v7826 = vadd.f32 %v7798, %v7825
          %7827 = vmatmul.bf16.gmra.mxu0 %v3918
          %v7828 = vpop.f32.mrf.mxu0
          %v7829 = vadd.f32 %v7801, %v7828
          %v7830 = vpop.f32.mrf.mxu0
          %v7831 = vadd.f32 %v7803, %v7830
          %7832 = vmatmul.bf16.gmra.mxu0 %v3922
          %v7833 = vpop.f32.mrf.mxu0
          %v7834 = vadd.f32 %v7806, %v7833
          %v7835 = vpop.f32.mrf.mxu0
          %7836 = vdwg.mxu0
          %7837 = vmatpush.bf16.msra.mxu0 %v6348
          %7838 = vmatpush.bf16.msra.mxu0 %v6332
          %7839 = vmatpush.bf16.msra.mxu0 %v6316
          %7840 = vmatpush.bf16.msra.mxu0 %v6300
          %7841 = vmatpush.bf16.msra.mxu0 %v6284
          %7842 = vmatpush.bf16.msra.mxu0 %v6268
          %7843 = vmatpush.bf16.msra.mxu0 %v6252
          %7844 = vmatpush.bf16.msra.mxu0 %v6236
          %7845 = vmatmul.bf16.gmra.mxu0 %v3911
          %v7846 = vpop.f32.mrf.mxu0
          %v7847 = vadd.f32 %v7819, %v7846
          %v7848 = vpop.f32.mrf.mxu0
          %v7849 = vadd.f32 %v7821, %v7848
          %7850 = vmatmul.bf16.gmra.mxu0 %v3915
          %v7851 = vpop.f32.mrf.mxu0
          %v7852 = vadd.f32 %v7824, %v7851
          %v7853 = vpop.f32.mrf.mxu0
          %v7854 = vadd.f32 %v7826, %v7853
          %7855 = vmatmul.bf16.gmra.mxu0 %v3919
          %v7856 = vpop.f32.mrf.mxu0
          %v7857 = vadd.f32 %v7829, %v7856
          %v7858 = vpop.f32.mrf.mxu0
          %v7859 = vadd.f32 %v7831, %v7858
          %7860 = vmatmul.bf16.gmra.mxu0 %v3923
          %v7861 = vpop.f32.mrf.mxu0
          %v7862 = vadd.f32 %v7834, %v7861
          %v7863 = vpop.f32.mrf.mxu0
          %7864 = vdwg.mxu0
          %7865 = vmatpush.bf16.msra.mxu0 %v6476
          %7866 = vmatpush.bf16.msra.mxu0 %v6460
          %7867 = vmatpush.bf16.msra.mxu0 %v6444
          %7868 = vmatpush.bf16.msra.mxu0 %v6428
          %7869 = vmatpush.bf16.msra.mxu0 %v6412
          %7870 = vmatpush.bf16.msra.mxu0 %v6396
          %7871 = vmatpush.bf16.msra.mxu0 %v6380
          %7872 = vmatpush.bf16.msra.mxu0 %v6364
          %7873 = vmatmul.bf16.gmra.mxu0 %v3912
          %v7874 = vpop.f32.mrf.mxu0
          %v7875 = vadd.f32 %v7847, %v7874
          %v7876 = vpop.f32.mrf.mxu0
          %v7877 = vadd.f32 %v7849, %v7876
          %7878 = vmatmul.bf16.gmra.mxu0 %v3916
          %v7879 = vpop.f32.mrf.mxu0
          %v7880 = vadd.f32 %v7852, %v7879
          %v7881 = vpop.f32.mrf.mxu0
          %v7882 = vadd.f32 %v7854, %v7881
          %7883 = vmatmul.bf16.gmra.mxu0 %v3920
          %v7884 = vpop.f32.mrf.mxu0
          %v7885 = vadd.f32 %v7857, %v7884
          %v7886 = vpop.f32.mrf.mxu0
          %v7887 = vadd.f32 %v7859, %v7886
          %7888 = vmatmul.bf16.gmra.mxu0 %v3924
          %v7889 = vpop.f32.mrf.mxu0
          %v7890 = vadd.f32 %v7862, %v7889
          %v7891 = vpop.f32.mrf.mxu0
          %7892 = vdwg.mxu0
          %7893 = vmatpush.bf16.msra.mxu0 %v6093
          %7894 = vmatpush.bf16.msra.mxu0 %v6077
          %7895 = vmatpush.bf16.msra.mxu0 %v6061
          %7896 = vmatpush.bf16.msra.mxu0 %v6045
          %7897 = vmatpush.bf16.msra.mxu0 %v6029
          %7898 = vmatpush.bf16.msra.mxu0 %v6013
          %7899 = vmatpush.bf16.msra.mxu0 %v5997
          %7900 = vmatpush.bf16.msra.mxu0 %v5981
          %7901 = vmatmul.bf16.gmra.mxu0 %v3909
          %v7902 = vpop.f32.mrf.mxu0
          %v7903 = vadd.f32 0.0, %v7902
          %v7904 = vpop.f32.mrf.mxu0
          %v7905 = vadd.f32 0.0, %v7904
          %7906 = vmatmul.bf16.gmra.mxu0 %v3913
          %v7907 = vpop.f32.mrf.mxu0
          %v7908 = vadd.f32 0.0, %v7907
          %v7909 = vpop.f32.mrf.mxu0
          %v7910 = vadd.f32 0.0, %v7909
          %7911 = vmatmul.bf16.gmra.mxu0 %v3917
          %v7912 = vpop.f32.mrf.mxu0
          %v7913 = vadd.f32 0.0, %v7912
          %v7914 = vpop.f32.mrf.mxu0
          %v7915 = vadd.f32 0.0, %v7914
          %7916 = vmatmul.bf16.gmra.mxu0 %v3921
          %v7917 = vpop.f32.mrf.mxu0
          %v7918 = vadd.f32 0.0, %v7917
          %v7919 = vpop.f32.mrf.mxu0
          %7920 = vdwg.mxu0
          %7921 = vmatpush.bf16.msra.mxu0 %v6221
          %7922 = vmatpush.bf16.msra.mxu0 %v6205
          %7923 = vmatpush.bf16.msra.mxu0 %v6189
          %7924 = vmatpush.bf16.msra.mxu0 %v6173
          %7925 = vmatpush.bf16.msra.mxu0 %v6157
          %7926 = vmatpush.bf16.msra.mxu0 %v6141
          %7927 = vmatpush.bf16.msra.mxu0 %v6125
          %7928 = vmatpush.bf16.msra.mxu0 %v6109
          %7929 = vmatmul.bf16.gmra.mxu0 %v3910
          %v7930 = vpop.f32.mrf.mxu0
          %v7931 = vadd.f32 %v7903, %v7930
          %v7932 = vpop.f32.mrf.mxu0
          %v7933 = vadd.f32 %v7905, %v7932
          %7934 = vmatmul.bf16.gmra.mxu0 %v3914
          %v7935 = vpop.f32.mrf.mxu0
          %v7936 = vadd.f32 %v7908, %v7935
          %v7937 = vpop.f32.mrf.mxu0
          %v7938 = vadd.f32 %v7910, %v7937
          %7939 = vmatmul.bf16.gmra.mxu0 %v3918
          %v7940 = vpop.f32.mrf.mxu0
          %v7941 = vadd.f32 %v7913, %v7940
          %v7942 = vpop.f32.mrf.mxu0
          %v7943 = vadd.f32 %v7915, %v7942
          %7944 = vmatmul.bf16.gmra.mxu0 %v3922
          %v7945 = vpop.f32.mrf.mxu0
          %v7946 = vadd.f32 %v7918, %v7945
          %v7947 = vpop.f32.mrf.mxu0
          %7948 = vdwg.mxu0
          %7949 = vmatpush.bf16.msra.mxu0 %v6349
          %7950 = vmatpush.bf16.msra.mxu0 %v6333
          %7951 = vmatpush.bf16.msra.mxu0 %v6317
          %7952 = vmatpush.bf16.msra.mxu0 %v6301
          %7953 = vmatpush.bf16.msra.mxu0 %v6285
          %7954 = vmatpush.bf16.msra.mxu0 %v6269
          %7955 = vmatpush.bf16.msra.mxu0 %v6253
          %7956 = vmatpush.bf16.msra.mxu0 %v6237
          %7957 = vmatmul.bf16.gmra.mxu0 %v3911
          %v7958 = vpop.f32.mrf.mxu0
          %v7959 = vadd.f32 %v7931, %v7958
          %v7960 = vpop.f32.mrf.mxu0
          %v7961 = vadd.f32 %v7933, %v7960
          %7962 = vmatmul.bf16.gmra.mxu0 %v3915
          %v7963 = vpop.f32.mrf.mxu0
          %v7964 = vadd.f32 %v7936, %v7963
          %v7965 = vpop.f32.mrf.mxu0
          %v7966 = vadd.f32 %v7938, %v7965
          %7967 = vmatmul.bf16.gmra.mxu0 %v3919
          %v7968 = vpop.f32.mrf.mxu0
          %v7969 = vadd.f32 %v7941, %v7968
          %v7970 = vpop.f32.mrf.mxu0
          %v7971 = vadd.f32 %v7943, %v7970
          %7972 = vmatmul.bf16.gmra.mxu0 %v3923
          %v7973 = vpop.f32.mrf.mxu0
          %v7974 = vadd.f32 %v7946, %v7973
          %v7975 = vpop.f32.mrf.mxu0
          %7976 = vdwg.mxu0
          %7977 = vmatpush.bf16.msra.mxu0 %v6477
          %7978 = vmatpush.bf16.msra.mxu0 %v6461
          %7979 = vmatpush.bf16.msra.mxu0 %v6445
          %7980 = vmatpush.bf16.msra.mxu0 %v6429
          %7981 = vmatpush.bf16.msra.mxu0 %v6413
          %7982 = vmatpush.bf16.msra.mxu0 %v6397
          %7983 = vmatpush.bf16.msra.mxu0 %v6381
          %7984 = vmatpush.bf16.msra.mxu0 %v6365
          %7985 = vmatmul.bf16.gmra.mxu0 %v3912
          %v7986 = vpop.f32.mrf.mxu0
          %v7987 = vadd.f32 %v7959, %v7986
          %v7988 = vpop.f32.mrf.mxu0
          %v7989 = vadd.f32 %v7961, %v7988
          %7990 = vmatmul.bf16.gmra.mxu0 %v3916
          %v7991 = vpop.f32.mrf.mxu0
          %v7992 = vadd.f32 %v7964, %v7991
          %v7993 = vpop.f32.mrf.mxu0
          %v7994 = vadd.f32 %v7966, %v7993
          %7995 = vmatmul.bf16.gmra.mxu0 %v3920
          %v7996 = vpop.f32.mrf.mxu0
          %v7997 = vadd.f32 %v7969, %v7996
          %v7998 = vpop.f32.mrf.mxu0
          %v7999 = vadd.f32 %v7971, %v7998
          %8000 = vmatmul.bf16.gmra.mxu0 %v3924
          %v8001 = vpop.f32.mrf.mxu0
          %v8002 = vadd.f32 %v7974, %v8001
          %v8003 = vpop.f32.mrf.mxu0
          %8004 = vdwg.mxu0
          %8005 = vmatpush.bf16.msra.mxu0 %v6094
          %8006 = vmatpush.bf16.msra.mxu0 %v6078
          %8007 = vmatpush.bf16.msra.mxu0 %v6062
          %8008 = vmatpush.bf16.msra.mxu0 %v6046
          %8009 = vmatpush.bf16.msra.mxu0 %v6030
          %8010 = vmatpush.bf16.msra.mxu0 %v6014
          %8011 = vmatpush.bf16.msra.mxu0 %v5998
          %8012 = vmatpush.bf16.msra.mxu0 %v5982
          %8013 = vmatmul.bf16.gmra.mxu0 %v3909
          %v8014 = vpop.f32.mrf.mxu0
          %v8015 = vadd.f32 0.0, %v8014
          %v8016 = vpop.f32.mrf.mxu0
          %v8017 = vadd.f32 0.0, %v8016
          %8018 = vmatmul.bf16.gmra.mxu0 %v3913
          %v8019 = vpop.f32.mrf.mxu0
          %v8020 = vadd.f32 0.0, %v8019
          %v8021 = vpop.f32.mrf.mxu0
          %v8022 = vadd.f32 0.0, %v8021
          %8023 = vmatmul.bf16.gmra.mxu0 %v3917
          %v8024 = vpop.f32.mrf.mxu0
          %v8025 = vadd.f32 0.0, %v8024
          %v8026 = vpop.f32.mrf.mxu0
          %v8027 = vadd.f32 0.0, %v8026
          %8028 = vmatmul.bf16.gmra.mxu0 %v3921
          %v8029 = vpop.f32.mrf.mxu0
          %v8030 = vadd.f32 0.0, %v8029
          %v8031 = vpop.f32.mrf.mxu0
          %8032 = vdwg.mxu0
          %8033 = vmatpush.bf16.msra.mxu0 %v6222
          %8034 = vmatpush.bf16.msra.mxu0 %v6206
          %8035 = vmatpush.bf16.msra.mxu0 %v6190
          %8036 = vmatpush.bf16.msra.mxu0 %v6174
          %8037 = vmatpush.bf16.msra.mxu0 %v6158
          %8038 = vmatpush.bf16.msra.mxu0 %v6142
          %8039 = vmatpush.bf16.msra.mxu0 %v6126
          %8040 = vmatpush.bf16.msra.mxu0 %v6110
          %8041 = vmatmul.bf16.gmra.mxu0 %v3910
          %v8042 = vpop.f32.mrf.mxu0
          %v8043 = vadd.f32 %v8015, %v8042
          %v8044 = vpop.f32.mrf.mxu0
          %v8045 = vadd.f32 %v8017, %v8044
          %8046 = vmatmul.bf16.gmra.mxu0 %v3914
          %v8047 = vpop.f32.mrf.mxu0
          %v8048 = vadd.f32 %v8020, %v8047
          %v8049 = vpop.f32.mrf.mxu0
          %v8050 = vadd.f32 %v8022, %v8049
          %8051 = vmatmul.bf16.gmra.mxu0 %v3918
          %v8052 = vpop.f32.mrf.mxu0
          %v8053 = vadd.f32 %v8025, %v8052
          %v8054 = vpop.f32.mrf.mxu0
          %v8055 = vadd.f32 %v8027, %v8054
          %8056 = vmatmul.bf16.gmra.mxu0 %v3922
          %v8057 = vpop.f32.mrf.mxu0
          %v8058 = vadd.f32 %v8030, %v8057
          %v8059 = vpop.f32.mrf.mxu0
          %8060 = vdwg.mxu0
          %8061 = vmatpush.bf16.msra.mxu0 %v6350
          %8062 = vmatpush.bf16.msra.mxu0 %v6334
          %8063 = vmatpush.bf16.msra.mxu0 %v6318
          %8064 = vmatpush.bf16.msra.mxu0 %v6302
          %8065 = vmatpush.bf16.msra.mxu0 %v6286
          %8066 = vmatpush.bf16.msra.mxu0 %v6270
          %8067 = vmatpush.bf16.msra.mxu0 %v6254
          %8068 = vmatpush.bf16.msra.mxu0 %v6238
          %8069 = vmatmul.bf16.gmra.mxu0 %v3911
          %v8070 = vpop.f32.mrf.mxu0
          %v8071 = vadd.f32 %v8043, %v8070
          %v8072 = vpop.f32.mrf.mxu0
          %v8073 = vadd.f32 %v8045, %v8072
          %8074 = vmatmul.bf16.gmra.mxu0 %v3915
          %v8075 = vpop.f32.mrf.mxu0
          %v8076 = vadd.f32 %v8048, %v8075
          %v8077 = vpop.f32.mrf.mxu0
          %v8078 = vadd.f32 %v8050, %v8077
          %8079 = vmatmul.bf16.gmra.mxu0 %v3919
          %v8080 = vpop.f32.mrf.mxu0
          %v8081 = vadd.f32 %v8053, %v8080
          %v8082 = vpop.f32.mrf.mxu0
          %v8083 = vadd.f32 %v8055, %v8082
          %8084 = vmatmul.bf16.gmra.mxu0 %v3923
          %v8085 = vpop.f32.mrf.mxu0
          %v8086 = vadd.f32 %v8058, %v8085
          %v8087 = vpop.f32.mrf.mxu0
          %8088 = vdwg.mxu0
          %8089 = vmatpush.bf16.msra.mxu0 %v6478
          %8090 = vmatpush.bf16.msra.mxu0 %v6462
          %8091 = vmatpush.bf16.msra.mxu0 %v6446
          %8092 = vmatpush.bf16.msra.mxu0 %v6430
          %8093 = vmatpush.bf16.msra.mxu0 %v6414
          %8094 = vmatpush.bf16.msra.mxu0 %v6398
          %8095 = vmatpush.bf16.msra.mxu0 %v6382
          %8096 = vmatpush.bf16.msra.mxu0 %v6366
          %8097 = vmatmul.bf16.gmra.mxu0 %v3912
          %v8098 = vpop.f32.mrf.mxu0
          %v8099 = vadd.f32 %v8071, %v8098
          %v8100 = vpop.f32.mrf.mxu0
          %v8101 = vadd.f32 %v8073, %v8100
          %8102 = vmatmul.bf16.gmra.mxu0 %v3916
          %v8103 = vpop.f32.mrf.mxu0
          %v8104 = vadd.f32 %v8076, %v8103
          %v8105 = vpop.f32.mrf.mxu0
          %v8106 = vadd.f32 %v8078, %v8105
          %8107 = vmatmul.bf16.gmra.mxu0 %v3920
          %v8108 = vpop.f32.mrf.mxu0
          %v8109 = vadd.f32 %v8081, %v8108
          %v8110 = vpop.f32.mrf.mxu0
          %v8111 = vadd.f32 %v8083, %v8110
          %8112 = vmatmul.bf16.gmra.mxu0 %v3924
          %v8113 = vpop.f32.mrf.mxu0
          %v8114 = vadd.f32 %v8086, %v8113
          %v8115 = vpop.f32.mrf.mxu0
          %8116 = vdwg.mxu0
          %8117 = vmatpush.bf16.msra.mxu0 %v6095
          %8118 = vmatpush.bf16.msra.mxu0 %v6079
          %8119 = vmatpush.bf16.msra.mxu0 %v6063
          %8120 = vmatpush.bf16.msra.mxu0 %v6047
          %8121 = vmatpush.bf16.msra.mxu0 %v6031
          %8122 = vmatpush.bf16.msra.mxu0 %v6015
          %8123 = vmatpush.bf16.msra.mxu0 %v5999
          %8124 = vmatpush.bf16.msra.mxu0 %v5983
          %8125 = vmatmul.bf16.gmra.mxu0 %v3909
          %v8126 = vpop.f32.mrf.mxu0
          %v8127 = vadd.f32 0.0, %v8126
          %v8128 = vpop.f32.mrf.mxu0
          %v8129 = vadd.f32 0.0, %v8128
          %8130 = vmatmul.bf16.gmra.mxu0 %v3913
          %v8131 = vpop.f32.mrf.mxu0
          %v8132 = vadd.f32 0.0, %v8131
          %v8133 = vpop.f32.mrf.mxu0
          %v8134 = vadd.f32 0.0, %v8133
          %8135 = vmatmul.bf16.gmra.mxu0 %v3917
          %v8136 = vpop.f32.mrf.mxu0
          %v8137 = vadd.f32 0.0, %v8136
          %v8138 = vpop.f32.mrf.mxu0
          %v8139 = vadd.f32 0.0, %v8138
          %8140 = vmatmul.bf16.gmra.mxu0 %v3921
          %v8141 = vpop.f32.mrf.mxu0
          %v8142 = vadd.f32 0.0, %v8141
          %v8143 = vpop.f32.mrf.mxu0
          %8144 = vdwg.mxu0
          %8145 = vmatpush.bf16.msra.mxu0 %v6223
          %8146 = vmatpush.bf16.msra.mxu0 %v6207
          %8147 = vmatpush.bf16.msra.mxu0 %v6191
          %8148 = vmatpush.bf16.msra.mxu0 %v6175
          %8149 = vmatpush.bf16.msra.mxu0 %v6159
          %8150 = vmatpush.bf16.msra.mxu0 %v6143
          %8151 = vmatpush.bf16.msra.mxu0 %v6127
          %8152 = vmatpush.bf16.msra.mxu0 %v6111
          %8153 = vmatmul.bf16.gmra.mxu0 %v3910
          %v8154 = vpop.f32.mrf.mxu0
          %v8155 = vadd.f32 %v8127, %v8154
          %v8156 = vpop.f32.mrf.mxu0
          %v8157 = vadd.f32 %v8129, %v8156
          %8158 = vmatmul.bf16.gmra.mxu0 %v3914
          %v8159 = vpop.f32.mrf.mxu0
          %v8160 = vadd.f32 %v8132, %v8159
          %v8161 = vpop.f32.mrf.mxu0
          %v8162 = vadd.f32 %v8134, %v8161
          %8163 = vmatmul.bf16.gmra.mxu0 %v3918
          %v8164 = vpop.f32.mrf.mxu0
          %v8165 = vadd.f32 %v8137, %v8164
          %v8166 = vpop.f32.mrf.mxu0
          %v8167 = vadd.f32 %v8139, %v8166
          %8168 = vmatmul.bf16.gmra.mxu0 %v3922
          %v8169 = vpop.f32.mrf.mxu0
          %v8170 = vadd.f32 %v8142, %v8169
          %v8171 = vpop.f32.mrf.mxu0
          %8172 = vdwg.mxu0
          %8173 = vmatpush.bf16.msra.mxu0 %v6351
          %8174 = vmatpush.bf16.msra.mxu0 %v6335
          %8175 = vmatpush.bf16.msra.mxu0 %v6319
          %8176 = vmatpush.bf16.msra.mxu0 %v6303
          %8177 = vmatpush.bf16.msra.mxu0 %v6287
          %8178 = vmatpush.bf16.msra.mxu0 %v6271
          %8179 = vmatpush.bf16.msra.mxu0 %v6255
          %8180 = vmatpush.bf16.msra.mxu0 %v6239
          %8181 = vmatmul.bf16.gmra.mxu0 %v3911
          %v8182 = vpop.f32.mrf.mxu0
          %v8183 = vadd.f32 %v8155, %v8182
          %v8184 = vpop.f32.mrf.mxu0
          %v8185 = vadd.f32 %v8157, %v8184
          %8186 = vmatmul.bf16.gmra.mxu0 %v3915
          %v8187 = vpop.f32.mrf.mxu0
          %v8188 = vadd.f32 %v8160, %v8187
          %v8189 = vpop.f32.mrf.mxu0
          %v8190 = vadd.f32 %v8162, %v8189
          %8191 = vmatmul.bf16.gmra.mxu0 %v3919
          %v8192 = vpop.f32.mrf.mxu0
          %v8193 = vadd.f32 %v8165, %v8192
          %v8194 = vpop.f32.mrf.mxu0
          %v8195 = vadd.f32 %v8167, %v8194
          %8196 = vmatmul.bf16.gmra.mxu0 %v3923
          %v8197 = vpop.f32.mrf.mxu0
          %v8198 = vadd.f32 %v8170, %v8197
          %v8199 = vpop.f32.mrf.mxu0
          %8200 = vdwg.mxu0
          %8201 = vmatpush.bf16.msra.mxu0 %v6479
          %8202 = vmatpush.bf16.msra.mxu0 %v6463
          %8203 = vmatpush.bf16.msra.mxu0 %v6447
          %8204 = vmatpush.bf16.msra.mxu0 %v6431
          %8205 = vmatpush.bf16.msra.mxu0 %v6415
          %8206 = vmatpush.bf16.msra.mxu0 %v6399
          %8207 = vmatpush.bf16.msra.mxu0 %v6383
          %8208 = vmatpush.bf16.msra.mxu0 %v6367
          %8209 = vmatmul.bf16.gmra.mxu0 %v3912
          %v8210 = vpop.f32.mrf.mxu0
          %v8211 = vadd.f32 %v8183, %v8210
          %v8212 = vpop.f32.mrf.mxu0
          %v8213 = vadd.f32 %v8185, %v8212
          %8214 = vmatmul.bf16.gmra.mxu0 %v3916
          %v8215 = vpop.f32.mrf.mxu0
          %v8216 = vadd.f32 %v8188, %v8215
          %v8217 = vpop.f32.mrf.mxu0
          %v8218 = vadd.f32 %v8190, %v8217
          %8219 = vmatmul.bf16.gmra.mxu0 %v3920
          %v8220 = vpop.f32.mrf.mxu0
          %v8221 = vadd.f32 %v8193, %v8220
          %v8222 = vpop.f32.mrf.mxu0
          %v8223 = vadd.f32 %v8195, %v8222
          %8224 = vmatmul.bf16.gmra.mxu0 %v3924
          %v8225 = vpop.f32.mrf.mxu0
          %v8226 = vadd.f32 %v8198, %v8225
          %v8227 = vpop.f32.mrf.mxu0
          %8228 = vdwg.mxu0
          %8229 = vmatpush.bf16.msra.mxu0 %v6096
          %8230 = vmatpush.bf16.msra.mxu0 %v6080
          %8231 = vmatpush.bf16.msra.mxu0 %v6064
          %8232 = vmatpush.bf16.msra.mxu0 %v6048
          %8233 = vmatpush.bf16.msra.mxu0 %v6032
          %8234 = vmatpush.bf16.msra.mxu0 %v6016
          %8235 = vmatpush.bf16.msra.mxu0 %v6000
          %8236 = vmatpush.bf16.msra.mxu0 %v5984
          %8237 = vmatmul.bf16.gmra.mxu0 %v3909
          %v8238 = vpop.f32.mrf.mxu0
          %v8239 = vadd.f32 0.0, %v8238
          %v8240 = vpop.f32.mrf.mxu0
          %v8241 = vadd.f32 0.0, %v8240
          %8242 = vmatmul.bf16.gmra.mxu0 %v3913
          %v8243 = vpop.f32.mrf.mxu0
          %v8244 = vadd.f32 0.0, %v8243
          %v8245 = vpop.f32.mrf.mxu0
          %v8246 = vadd.f32 0.0, %v8245
          %8247 = vmatmul.bf16.gmra.mxu0 %v3917
          %v8248 = vpop.f32.mrf.mxu0
          %v8249 = vadd.f32 0.0, %v8248
          %v8250 = vpop.f32.mrf.mxu0
          %v8251 = vadd.f32 0.0, %v8250
          %8252 = vmatmul.bf16.gmra.mxu0 %v3921
          %v8253 = vpop.f32.mrf.mxu0
          %v8254 = vadd.f32 0.0, %v8253
          %v8255 = vpop.f32.mrf.mxu0
          %8256 = vdwg.mxu0
          %8257 = vmatpush.bf16.msra.mxu0 %v6224
          %8258 = vmatpush.bf16.msra.mxu0 %v6208
          %8259 = vmatpush.bf16.msra.mxu0 %v6192
          %8260 = vmatpush.bf16.msra.mxu0 %v6176
          %8261 = vmatpush.bf16.msra.mxu0 %v6160
          %8262 = vmatpush.bf16.msra.mxu0 %v6144
          %8263 = vmatpush.bf16.msra.mxu0 %v6128
          %8264 = vmatpush.bf16.msra.mxu0 %v6112
          %8265 = vmatmul.bf16.gmra.mxu0 %v3910
          %v8266 = vpop.f32.mrf.mxu0
          %v8267 = vadd.f32 %v8239, %v8266
          %v8268 = vpop.f32.mrf.mxu0
          %v8269 = vadd.f32 %v8241, %v8268
          %8270 = vmatmul.bf16.gmra.mxu0 %v3914
          %v8271 = vpop.f32.mrf.mxu0
          %v8272 = vadd.f32 %v8244, %v8271
          %v8273 = vpop.f32.mrf.mxu0
          %v8274 = vadd.f32 %v8246, %v8273
          %8275 = vmatmul.bf16.gmra.mxu0 %v3918
          %v8276 = vpop.f32.mrf.mxu0
          %v8277 = vadd.f32 %v8249, %v8276
          %v8278 = vpop.f32.mrf.mxu0
          %v8279 = vadd.f32 %v8251, %v8278
          %8280 = vmatmul.bf16.gmra.mxu0 %v3922
          %v8281 = vpop.f32.mrf.mxu0
          %v8282 = vadd.f32 %v8254, %v8281
          %v8283 = vpop.f32.mrf.mxu0
          %8284 = vdwg.mxu0
          %8285 = vmatpush.bf16.msra.mxu0 %v6352
          %8286 = vmatpush.bf16.msra.mxu0 %v6336
          %8287 = vmatpush.bf16.msra.mxu0 %v6320
          %8288 = vmatpush.bf16.msra.mxu0 %v6304
          %8289 = vmatpush.bf16.msra.mxu0 %v6288
          %8290 = vmatpush.bf16.msra.mxu0 %v6272
          %8291 = vmatpush.bf16.msra.mxu0 %v6256
          %8292 = vmatpush.bf16.msra.mxu0 %v6240
          %8293 = vmatmul.bf16.gmra.mxu0 %v3911
          %v8294 = vpop.f32.mrf.mxu0
          %v8295 = vadd.f32 %v8267, %v8294
          %v8296 = vpop.f32.mrf.mxu0
          %v8297 = vadd.f32 %v8269, %v8296
          %8298 = vmatmul.bf16.gmra.mxu0 %v3915
          %v8299 = vpop.f32.mrf.mxu0
          %v8300 = vadd.f32 %v8272, %v8299
          %v8301 = vpop.f32.mrf.mxu0
          %v8302 = vadd.f32 %v8274, %v8301
          %8303 = vmatmul.bf16.gmra.mxu0 %v3919
          %v8304 = vpop.f32.mrf.mxu0
          %v8305 = vadd.f32 %v8277, %v8304
          %v8306 = vpop.f32.mrf.mxu0
          %v8307 = vadd.f32 %v8279, %v8306
          %8308 = vmatmul.bf16.gmra.mxu0 %v3923
          %v8309 = vpop.f32.mrf.mxu0
          %v8310 = vadd.f32 %v8282, %v8309
          %v8311 = vpop.f32.mrf.mxu0
          %8312 = vdwg.mxu0
          %8313 = vmatpush.bf16.msra.mxu0 %v6480
          %8314 = vmatpush.bf16.msra.mxu0 %v6464
          %8315 = vmatpush.bf16.msra.mxu0 %v6448
          %8316 = vmatpush.bf16.msra.mxu0 %v6432
          %8317 = vmatpush.bf16.msra.mxu0 %v6416
          %8318 = vmatpush.bf16.msra.mxu0 %v6400
          %8319 = vmatpush.bf16.msra.mxu0 %v6384
          %8320 = vmatpush.bf16.msra.mxu0 %v6368
          %8321 = vmatmul.bf16.gmra.mxu0 %v3912
          %v8322 = vpop.f32.mrf.mxu0
          %v8323 = vadd.f32 %v8295, %v8322
          %v8324 = vpop.f32.mrf.mxu0
          %v8325 = vadd.f32 %v8297, %v8324
          %8326 = vmatmul.bf16.gmra.mxu0 %v3916
          %v8327 = vpop.f32.mrf.mxu0
          %v8328 = vadd.f32 %v8300, %v8327
          %v8329 = vpop.f32.mrf.mxu0
          %v8330 = vadd.f32 %v8302, %v8329
          %8331 = vmatmul.bf16.gmra.mxu0 %v3920
          %v8332 = vpop.f32.mrf.mxu0
          %v8333 = vadd.f32 %v8305, %v8332
          %v8334 = vpop.f32.mrf.mxu0
          %v8335 = vadd.f32 %v8307, %v8334
          %8336 = vmatmul.bf16.gmra.mxu0 %v3924
          %v8337 = vpop.f32.mrf.mxu0
          %v8338 = vadd.f32 %v8310, %v8337
          %v8339 = vpop.f32.mrf.mxu0
          %8340 = vdwg.mxu0
          %8341 = vmatpush.bf16.msra.mxu0 %v6097
          %8342 = vmatpush.bf16.msra.mxu0 %v6081
          %8343 = vmatpush.bf16.msra.mxu0 %v6065
          %8344 = vmatpush.bf16.msra.mxu0 %v6049
          %8345 = vmatpush.bf16.msra.mxu0 %v6033
          %8346 = vmatpush.bf16.msra.mxu0 %v6017
          %8347 = vmatpush.bf16.msra.mxu0 %v6001
          %8348 = vmatpush.bf16.msra.mxu0 %v5985
          %8349 = vmatmul.bf16.gmra.mxu0 %v3909
          %v8350 = vpop.f32.mrf.mxu0
          %v8351 = vadd.f32 0.0, %v8350
          %v8352 = vpop.f32.mrf.mxu0
          %v8353 = vadd.f32 0.0, %v8352
          %8354 = vmatmul.bf16.gmra.mxu0 %v3913
          %v8355 = vpop.f32.mrf.mxu0
          %v8356 = vadd.f32 0.0, %v8355
          %v8357 = vpop.f32.mrf.mxu0
          %v8358 = vadd.f32 0.0, %v8357
          %8359 = vmatmul.bf16.gmra.mxu0 %v3917
          %v8360 = vpop.f32.mrf.mxu0
          %v8361 = vadd.f32 0.0, %v8360
          %v8362 = vpop.f32.mrf.mxu0
          %v8363 = vadd.f32 0.0, %v8362
          %8364 = vmatmul.bf16.gmra.mxu0 %v3921
          %v8365 = vpop.f32.mrf.mxu0
          %v8366 = vadd.f32 0.0, %v8365
          %v8367 = vpop.f32.mrf.mxu0
          %8368 = vdwg.mxu0
          %8369 = vmatpush.bf16.msra.mxu0 %v6225
          %8370 = vmatpush.bf16.msra.mxu0 %v6209
          %8371 = vmatpush.bf16.msra.mxu0 %v6193
          %8372 = vmatpush.bf16.msra.mxu0 %v6177
          %8373 = vmatpush.bf16.msra.mxu0 %v6161
          %8374 = vmatpush.bf16.msra.mxu0 %v6145
          %8375 = vmatpush.bf16.msra.mxu0 %v6129
          %8376 = vmatpush.bf16.msra.mxu0 %v6113
          %8377 = vmatmul.bf16.gmra.mxu0 %v3910
          %v8378 = vpop.f32.mrf.mxu0
          %v8379 = vadd.f32 %v8351, %v8378
          %v8380 = vpop.f32.mrf.mxu0
          %v8381 = vadd.f32 %v8353, %v8380
          %8382 = vmatmul.bf16.gmra.mxu0 %v3914
          %v8383 = vpop.f32.mrf.mxu0
          %v8384 = vadd.f32 %v8356, %v8383
          %v8385 = vpop.f32.mrf.mxu0
          %v8386 = vadd.f32 %v8358, %v8385
          %8387 = vmatmul.bf16.gmra.mxu0 %v3918
          %v8388 = vpop.f32.mrf.mxu0
          %v8389 = vadd.f32 %v8361, %v8388
          %v8390 = vpop.f32.mrf.mxu0
          %v8391 = vadd.f32 %v8363, %v8390
          %8392 = vmatmul.bf16.gmra.mxu0 %v3922
          %v8393 = vpop.f32.mrf.mxu0
          %v8394 = vadd.f32 %v8366, %v8393
          %v8395 = vpop.f32.mrf.mxu0
          %8396 = vdwg.mxu0
          %8397 = vmatpush.bf16.msra.mxu0 %v6353
          %8398 = vmatpush.bf16.msra.mxu0 %v6337
          %8399 = vmatpush.bf16.msra.mxu0 %v6321
          %8400 = vmatpush.bf16.msra.mxu0 %v6305
          %8401 = vmatpush.bf16.msra.mxu0 %v6289
          %8402 = vmatpush.bf16.msra.mxu0 %v6273
          %8403 = vmatpush.bf16.msra.mxu0 %v6257
          %8404 = vmatpush.bf16.msra.mxu0 %v6241
          %8405 = vmatmul.bf16.gmra.mxu0 %v3911
          %v8406 = vpop.f32.mrf.mxu0
          %v8407 = vadd.f32 %v8379, %v8406
          %v8408 = vpop.f32.mrf.mxu0
          %v8409 = vadd.f32 %v8381, %v8408
          %8410 = vmatmul.bf16.gmra.mxu0 %v3915
          %v8411 = vpop.f32.mrf.mxu0
          %v8412 = vadd.f32 %v8384, %v8411
          %v8413 = vpop.f32.mrf.mxu0
          %v8414 = vadd.f32 %v8386, %v8413
          %8415 = vmatmul.bf16.gmra.mxu0 %v3919
          %v8416 = vpop.f32.mrf.mxu0
          %v8417 = vadd.f32 %v8389, %v8416
          %v8418 = vpop.f32.mrf.mxu0
          %v8419 = vadd.f32 %v8391, %v8418
          %8420 = vmatmul.bf16.gmra.mxu0 %v3923
          %v8421 = vpop.f32.mrf.mxu0
          %v8422 = vadd.f32 %v8394, %v8421
          %v8423 = vpop.f32.mrf.mxu0
          %8424 = vdwg.mxu0
          %8425 = vmatpush.bf16.msra.mxu0 %v6481
          %8426 = vmatpush.bf16.msra.mxu0 %v6465
          %8427 = vmatpush.bf16.msra.mxu0 %v6449
          %8428 = vmatpush.bf16.msra.mxu0 %v6433
          %8429 = vmatpush.bf16.msra.mxu0 %v6417
          %8430 = vmatpush.bf16.msra.mxu0 %v6401
          %8431 = vmatpush.bf16.msra.mxu0 %v6385
          %8432 = vmatpush.bf16.msra.mxu0 %v6369
          %8433 = vmatmul.bf16.gmra.mxu0 %v3912
          %v8434 = vpop.f32.mrf.mxu0
          %v8435 = vadd.f32 %v8407, %v8434
          %v8436 = vpop.f32.mrf.mxu0
          %v8437 = vadd.f32 %v8409, %v8436
          %8438 = vmatmul.bf16.gmra.mxu0 %v3916
          %v8439 = vpop.f32.mrf.mxu0
          %v8440 = vadd.f32 %v8412, %v8439
          %v8441 = vpop.f32.mrf.mxu0
          %v8442 = vadd.f32 %v8414, %v8441
          %8443 = vmatmul.bf16.gmra.mxu0 %v3920
          %v8444 = vpop.f32.mrf.mxu0
          %v8445 = vadd.f32 %v8417, %v8444
          %v8446 = vpop.f32.mrf.mxu0
          %v8447 = vadd.f32 %v8419, %v8446
          %8448 = vmatmul.bf16.gmra.mxu0 %v3924
          %v8449 = vpop.f32.mrf.mxu0
          %v8450 = vadd.f32 %v8422, %v8449
          %v8451 = vpop.f32.mrf.mxu0
          %8452 = vdwg.mxu0
          %8453 = vmatpush.bf16.msra.mxu0 %v6098
          %8454 = vmatpush.bf16.msra.mxu0 %v6082
          %8455 = vmatpush.bf16.msra.mxu0 %v6066
          %8456 = vmatpush.bf16.msra.mxu0 %v6050
          %8457 = vmatpush.bf16.msra.mxu0 %v6034
          %8458 = vmatpush.bf16.msra.mxu0 %v6018
          %8459 = vmatpush.bf16.msra.mxu0 %v6002
          %8460 = vmatpush.bf16.msra.mxu0 %v5986
          %8461 = vmatmul.bf16.gmra.mxu0 %v3909
          %v8462 = vpop.f32.mrf.mxu0
          %v8463 = vadd.f32 0.0, %v8462
          %v8464 = vpop.f32.mrf.mxu0
          %v8465 = vadd.f32 0.0, %v8464
          %8466 = vmatmul.bf16.gmra.mxu0 %v3913
          %v8467 = vpop.f32.mrf.mxu0
          %v8468 = vadd.f32 0.0, %v8467
          %v8469 = vpop.f32.mrf.mxu0
          %v8470 = vadd.f32 0.0, %v8469
          %8471 = vmatmul.bf16.gmra.mxu0 %v3917
          %v8472 = vpop.f32.mrf.mxu0
          %v8473 = vadd.f32 0.0, %v8472
          %v8474 = vpop.f32.mrf.mxu0
          %v8475 = vadd.f32 0.0, %v8474
          %8476 = vmatmul.bf16.gmra.mxu0 %v3921
          %v8477 = vpop.f32.mrf.mxu0
          %v8478 = vadd.f32 0.0, %v8477
          %v8479 = vpop.f32.mrf.mxu0
          %8480 = vdwg.mxu0
          %8481 = vmatpush.bf16.msra.mxu0 %v6226
          %8482 = vmatpush.bf16.msra.mxu0 %v6210
          %8483 = vmatpush.bf16.msra.mxu0 %v6194
          %8484 = vmatpush.bf16.msra.mxu0 %v6178
          %8485 = vmatpush.bf16.msra.mxu0 %v6162
          %8486 = vmatpush.bf16.msra.mxu0 %v6146
          %8487 = vmatpush.bf16.msra.mxu0 %v6130
          %8488 = vmatpush.bf16.msra.mxu0 %v6114
          %8489 = vmatmul.bf16.gmra.mxu0 %v3910
          %v8490 = vpop.f32.mrf.mxu0
          %v8491 = vadd.f32 %v8463, %v8490
          %v8492 = vpop.f32.mrf.mxu0
          %v8493 = vadd.f32 %v8465, %v8492
          %8494 = vmatmul.bf16.gmra.mxu0 %v3914
          %v8495 = vpop.f32.mrf.mxu0
          %v8496 = vadd.f32 %v8468, %v8495
          %v8497 = vpop.f32.mrf.mxu0
          %v8498 = vadd.f32 %v8470, %v8497
          %8499 = vmatmul.bf16.gmra.mxu0 %v3918
          %v8500 = vpop.f32.mrf.mxu0
          %v8501 = vadd.f32 %v8473, %v8500
          %v8502 = vpop.f32.mrf.mxu0
          %v8503 = vadd.f32 %v8475, %v8502
          %8504 = vmatmul.bf16.gmra.mxu0 %v3922
          %v8505 = vpop.f32.mrf.mxu0
          %v8506 = vadd.f32 %v8478, %v8505
          %v8507 = vpop.f32.mrf.mxu0
          %8508 = vdwg.mxu0
          %8509 = vmatpush.bf16.msra.mxu0 %v6354
          %8510 = vmatpush.bf16.msra.mxu0 %v6338
          %8511 = vmatpush.bf16.msra.mxu0 %v6322
          %8512 = vmatpush.bf16.msra.mxu0 %v6306
          %8513 = vmatpush.bf16.msra.mxu0 %v6290
          %8514 = vmatpush.bf16.msra.mxu0 %v6274
          %8515 = vmatpush.bf16.msra.mxu0 %v6258
          %8516 = vmatpush.bf16.msra.mxu0 %v6242
          %8517 = vmatmul.bf16.gmra.mxu0 %v3911
          %v8518 = vpop.f32.mrf.mxu0
          %v8519 = vadd.f32 %v8491, %v8518
          %v8520 = vpop.f32.mrf.mxu0
          %v8521 = vadd.f32 %v8493, %v8520
          %8522 = vmatmul.bf16.gmra.mxu0 %v3915
          %v8523 = vpop.f32.mrf.mxu0
          %v8524 = vadd.f32 %v8496, %v8523
          %v8525 = vpop.f32.mrf.mxu0
          %v8526 = vadd.f32 %v8498, %v8525
          %8527 = vmatmul.bf16.gmra.mxu0 %v3919
          %v8528 = vpop.f32.mrf.mxu0
          %v8529 = vadd.f32 %v8501, %v8528
          %v8530 = vpop.f32.mrf.mxu0
          %v8531 = vadd.f32 %v8503, %v8530
          %8532 = vmatmul.bf16.gmra.mxu0 %v3923
          %v8533 = vpop.f32.mrf.mxu0
          %v8534 = vadd.f32 %v8506, %v8533
          %v8535 = vpop.f32.mrf.mxu0
          %8536 = vdwg.mxu0
          %8537 = vmatpush.bf16.msra.mxu0 %v6482
          %8538 = vmatpush.bf16.msra.mxu0 %v6466
          %8539 = vmatpush.bf16.msra.mxu0 %v6450
          %8540 = vmatpush.bf16.msra.mxu0 %v6434
          %8541 = vmatpush.bf16.msra.mxu0 %v6418
          %8542 = vmatpush.bf16.msra.mxu0 %v6402
          %8543 = vmatpush.bf16.msra.mxu0 %v6386
          %8544 = vmatpush.bf16.msra.mxu0 %v6370
          %8545 = vmatmul.bf16.gmra.mxu0 %v3912
          %v8546 = vpop.f32.mrf.mxu0
          %v8547 = vadd.f32 %v8519, %v8546
          %v8548 = vpop.f32.mrf.mxu0
          %v8549 = vadd.f32 %v8521, %v8548
          %8550 = vmatmul.bf16.gmra.mxu0 %v3916
          %v8551 = vpop.f32.mrf.mxu0
          %v8552 = vadd.f32 %v8524, %v8551
          %v8553 = vpop.f32.mrf.mxu0
          %v8554 = vadd.f32 %v8526, %v8553
          %8555 = vmatmul.bf16.gmra.mxu0 %v3920
          %v8556 = vpop.f32.mrf.mxu0
          %v8557 = vadd.f32 %v8529, %v8556
          %v8558 = vpop.f32.mrf.mxu0
          %v8559 = vadd.f32 %v8531, %v8558
          %8560 = vmatmul.bf16.gmra.mxu0 %v3924
          %v8561 = vpop.f32.mrf.mxu0
          %v8562 = vadd.f32 %v8534, %v8561
          %v8563 = vpop.f32.mrf.mxu0
          %8564 = vdwg.mxu0
          %8565 = vmatpush.bf16.msra.mxu0 %v6099
          %8566 = vmatpush.bf16.msra.mxu0 %v6083
          %8567 = vmatpush.bf16.msra.mxu0 %v6067
          %8568 = vmatpush.bf16.msra.mxu0 %v6051
          %8569 = vmatpush.bf16.msra.mxu0 %v6035
          %8570 = vmatpush.bf16.msra.mxu0 %v6019
          %8571 = vmatpush.bf16.msra.mxu0 %v6003
          %8572 = vmatpush.bf16.msra.mxu0 %v5987
          %8573 = vmatmul.bf16.gmra.mxu0 %v3909
          %v8574 = vpop.f32.mrf.mxu0
          %v8575 = vadd.f32 0.0, %v8574
          %v8576 = vpop.f32.mrf.mxu0
          %v8577 = vadd.f32 0.0, %v8576
          %8578 = vmatmul.bf16.gmra.mxu0 %v3913
          %v8579 = vpop.f32.mrf.mxu0
          %v8580 = vadd.f32 0.0, %v8579
          %v8581 = vpop.f32.mrf.mxu0
          %v8582 = vadd.f32 0.0, %v8581
          %8583 = vmatmul.bf16.gmra.mxu0 %v3917
          %v8584 = vpop.f32.mrf.mxu0
          %v8585 = vadd.f32 0.0, %v8584
          %v8586 = vpop.f32.mrf.mxu0
          %v8587 = vadd.f32 0.0, %v8586
          %8588 = vmatmul.bf16.gmra.mxu0 %v3921
          %v8589 = vpop.f32.mrf.mxu0
          %v8590 = vadd.f32 0.0, %v8589
          %v8591 = vpop.f32.mrf.mxu0
          %8592 = vdwg.mxu0
          %8593 = vmatpush.bf16.msra.mxu0 %v6227
          %8594 = vmatpush.bf16.msra.mxu0 %v6211
          %8595 = vmatpush.bf16.msra.mxu0 %v6195
          %8596 = vmatpush.bf16.msra.mxu0 %v6179
          %8597 = vmatpush.bf16.msra.mxu0 %v6163
          %8598 = vmatpush.bf16.msra.mxu0 %v6147
          %8599 = vmatpush.bf16.msra.mxu0 %v6131
          %8600 = vmatpush.bf16.msra.mxu0 %v6115
          %8601 = vmatmul.bf16.gmra.mxu0 %v3910
          %v8602 = vpop.f32.mrf.mxu0
          %v8603 = vadd.f32 %v8575, %v8602
          %v8604 = vpop.f32.mrf.mxu0
          %v8605 = vadd.f32 %v8577, %v8604
          %8606 = vmatmul.bf16.gmra.mxu0 %v3914
          %v8607 = vpop.f32.mrf.mxu0
          %v8608 = vadd.f32 %v8580, %v8607
          %v8609 = vpop.f32.mrf.mxu0
          %v8610 = vadd.f32 %v8582, %v8609
          %8611 = vmatmul.bf16.gmra.mxu0 %v3918
          %v8612 = vpop.f32.mrf.mxu0
          %v8613 = vadd.f32 %v8585, %v8612
          %v8614 = vpop.f32.mrf.mxu0
          %v8615 = vadd.f32 %v8587, %v8614
          %8616 = vmatmul.bf16.gmra.mxu0 %v3922
          %v8617 = vpop.f32.mrf.mxu0
          %v8618 = vadd.f32 %v8590, %v8617
          %v8619 = vpop.f32.mrf.mxu0
          %8620 = vdwg.mxu0
          %8621 = vmatpush.bf16.msra.mxu0 %v6355
          %8622 = vmatpush.bf16.msra.mxu0 %v6339
          %8623 = vmatpush.bf16.msra.mxu0 %v6323
          %8624 = vmatpush.bf16.msra.mxu0 %v6307
          %8625 = vmatpush.bf16.msra.mxu0 %v6291
          %8626 = vmatpush.bf16.msra.mxu0 %v6275
          %8627 = vmatpush.bf16.msra.mxu0 %v6259
          %8628 = vmatpush.bf16.msra.mxu0 %v6243
          %8629 = vmatmul.bf16.gmra.mxu0 %v3911
          %v8630 = vpop.f32.mrf.mxu0
          %v8631 = vadd.f32 %v8603, %v8630
          %v8632 = vpop.f32.mrf.mxu0
          %v8633 = vadd.f32 %v8605, %v8632
          %8634 = vmatmul.bf16.gmra.mxu0 %v3915
          %v8635 = vpop.f32.mrf.mxu0
          %v8636 = vadd.f32 %v8608, %v8635
          %v8637 = vpop.f32.mrf.mxu0
          %v8638 = vadd.f32 %v8610, %v8637
          %8639 = vmatmul.bf16.gmra.mxu0 %v3919
          %v8640 = vpop.f32.mrf.mxu0
          %v8641 = vadd.f32 %v8613, %v8640
          %v8642 = vpop.f32.mrf.mxu0
          %v8643 = vadd.f32 %v8615, %v8642
          %8644 = vmatmul.bf16.gmra.mxu0 %v3923
          %v8645 = vpop.f32.mrf.mxu0
          %v8646 = vadd.f32 %v8618, %v8645
          %v8647 = vpop.f32.mrf.mxu0
          %8648 = vdwg.mxu0
          %8649 = vmatpush.bf16.msra.mxu0 %v6483
          %8650 = vmatpush.bf16.msra.mxu0 %v6467
          %8651 = vmatpush.bf16.msra.mxu0 %v6451
          %8652 = vmatpush.bf16.msra.mxu0 %v6435
          %8653 = vmatpush.bf16.msra.mxu0 %v6419
          %8654 = vmatpush.bf16.msra.mxu0 %v6403
          %8655 = vmatpush.bf16.msra.mxu0 %v6387
          %8656 = vmatpush.bf16.msra.mxu0 %v6371
          %8657 = vmatmul.bf16.gmra.mxu0 %v3912
          %v8658 = vpop.f32.mrf.mxu0
          %v8659 = vadd.f32 %v8631, %v8658
          %v8660 = vpop.f32.mrf.mxu0
          %v8661 = vadd.f32 %v8633, %v8660
          %8662 = vmatmul.bf16.gmra.mxu0 %v3916
          %v8663 = vpop.f32.mrf.mxu0
          %v8664 = vadd.f32 %v8636, %v8663
          %v8665 = vpop.f32.mrf.mxu0
          %v8666 = vadd.f32 %v8638, %v8665
          %8667 = vmatmul.bf16.gmra.mxu0 %v3920
          %v8668 = vpop.f32.mrf.mxu0
          %v8669 = vadd.f32 %v8641, %v8668
          %v8670 = vpop.f32.mrf.mxu0
          %v8671 = vadd.f32 %v8643, %v8670
          %8672 = vmatmul.bf16.gmra.mxu0 %v3924
          %v8673 = vpop.f32.mrf.mxu0
          %v8674 = vadd.f32 %v8646, %v8673
          %v8675 = vpop.f32.mrf.mxu0
          %8676 = vdwg.mxu0
          %8677 = vmatpush.bf16.msra.mxu0 %v6100
          %8678 = vmatpush.bf16.msra.mxu0 %v6084
          %8679 = vmatpush.bf16.msra.mxu0 %v6068
          %8680 = vmatpush.bf16.msra.mxu0 %v6052
          %8681 = vmatpush.bf16.msra.mxu0 %v6036
          %8682 = vmatpush.bf16.msra.mxu0 %v6020
          %8683 = vmatpush.bf16.msra.mxu0 %v6004
          %8684 = vmatpush.bf16.msra.mxu0 %v5988
          %8685 = vmatmul.bf16.gmra.mxu0 %v3909
          %v8686 = vpop.f32.mrf.mxu0
          %v8687 = vadd.f32 0.0, %v8686
          %v8688 = vpop.f32.mrf.mxu0
          %v8689 = vadd.f32 0.0, %v8688
          %8690 = vmatmul.bf16.gmra.mxu0 %v3913
          %v8691 = vpop.f32.mrf.mxu0
          %v8692 = vadd.f32 0.0, %v8691
          %v8693 = vpop.f32.mrf.mxu0
          %v8694 = vadd.f32 0.0, %v8693
          %8695 = vmatmul.bf16.gmra.mxu0 %v3917
          %v8696 = vpop.f32.mrf.mxu0
          %v8697 = vadd.f32 0.0, %v8696
          %v8698 = vpop.f32.mrf.mxu0
          %v8699 = vadd.f32 0.0, %v8698
          %8700 = vmatmul.bf16.gmra.mxu0 %v3921
          %v8701 = vpop.f32.mrf.mxu0
          %v8702 = vadd.f32 0.0, %v8701
          %v8703 = vpop.f32.mrf.mxu0
          %8704 = vdwg.mxu0
          %8705 = vmatpush.bf16.msra.mxu0 %v6228
          %8706 = vmatpush.bf16.msra.mxu0 %v6212
          %8707 = vmatpush.bf16.msra.mxu0 %v6196
          %8708 = vmatpush.bf16.msra.mxu0 %v6180
          %8709 = vmatpush.bf16.msra.mxu0 %v6164
          %8710 = vmatpush.bf16.msra.mxu0 %v6148
          %8711 = vmatpush.bf16.msra.mxu0 %v6132
          %8712 = vmatpush.bf16.msra.mxu0 %v6116
          %8713 = vmatmul.bf16.gmra.mxu0 %v3910
          %v8714 = vpop.f32.mrf.mxu0
          %v8715 = vadd.f32 %v8687, %v8714
          %v8716 = vpop.f32.mrf.mxu0
          %v8717 = vadd.f32 %v8689, %v8716
          %8718 = vmatmul.bf16.gmra.mxu0 %v3914
          %v8719 = vpop.f32.mrf.mxu0
          %v8720 = vadd.f32 %v8692, %v8719
          %v8721 = vpop.f32.mrf.mxu0
          %v8722 = vadd.f32 %v8694, %v8721
          %8723 = vmatmul.bf16.gmra.mxu0 %v3918
          %v8724 = vpop.f32.mrf.mxu0
          %v8725 = vadd.f32 %v8697, %v8724
          %v8726 = vpop.f32.mrf.mxu0
          %v8727 = vadd.f32 %v8699, %v8726
          %8728 = vmatmul.bf16.gmra.mxu0 %v3922
          %v8729 = vpop.f32.mrf.mxu0
          %v8730 = vadd.f32 %v8702, %v8729
          %v8731 = vpop.f32.mrf.mxu0
          %8732 = vdwg.mxu0
          %8733 = vmatpush.bf16.msra.mxu0 %v6356
          %8734 = vmatpush.bf16.msra.mxu0 %v6340
          %8735 = vmatpush.bf16.msra.mxu0 %v6324
          %8736 = vmatpush.bf16.msra.mxu0 %v6308
          %8737 = vmatpush.bf16.msra.mxu0 %v6292
          %8738 = vmatpush.bf16.msra.mxu0 %v6276
          %8739 = vmatpush.bf16.msra.mxu0 %v6260
          %8740 = vmatpush.bf16.msra.mxu0 %v6244
          %8741 = vmatmul.bf16.gmra.mxu0 %v3911
          %v8742 = vpop.f32.mrf.mxu0
          %v8743 = vadd.f32 %v8715, %v8742
          %v8744 = vpop.f32.mrf.mxu0
          %v8745 = vadd.f32 %v8717, %v8744
          %8746 = vmatmul.bf16.gmra.mxu0 %v3915
          %v8747 = vpop.f32.mrf.mxu0
          %v8748 = vadd.f32 %v8720, %v8747
          %v8749 = vpop.f32.mrf.mxu0
          %v8750 = vadd.f32 %v8722, %v8749
          %8751 = vmatmul.bf16.gmra.mxu0 %v3919
          %v8752 = vpop.f32.mrf.mxu0
          %v8753 = vadd.f32 %v8725, %v8752
          %v8754 = vpop.f32.mrf.mxu0
          %v8755 = vadd.f32 %v8727, %v8754
          %8756 = vmatmul.bf16.gmra.mxu0 %v3923
          %v8757 = vpop.f32.mrf.mxu0
          %v8758 = vadd.f32 %v8730, %v8757
          %v8759 = vpop.f32.mrf.mxu0
          %8760 = vdwg.mxu0
          %8761 = vmatpush.bf16.msra.mxu0 %v6484
          %8762 = vmatpush.bf16.msra.mxu0 %v6468
          %8763 = vmatpush.bf16.msra.mxu0 %v6452
          %8764 = vmatpush.bf16.msra.mxu0 %v6436
          %8765 = vmatpush.bf16.msra.mxu0 %v6420
          %8766 = vmatpush.bf16.msra.mxu0 %v6404
          %8767 = vmatpush.bf16.msra.mxu0 %v6388
          %8768 = vmatpush.bf16.msra.mxu0 %v6372
          %8769 = vmatmul.bf16.gmra.mxu0 %v3912
          %v8770 = vpop.f32.mrf.mxu0
          %v8771 = vadd.f32 %v8743, %v8770
          %v8772 = vpop.f32.mrf.mxu0
          %v8773 = vadd.f32 %v8745, %v8772
          %8774 = vmatmul.bf16.gmra.mxu0 %v3916
          %v8775 = vpop.f32.mrf.mxu0
          %v8776 = vadd.f32 %v8748, %v8775
          %v8777 = vpop.f32.mrf.mxu0
          %v8778 = vadd.f32 %v8750, %v8777
          %8779 = vmatmul.bf16.gmra.mxu0 %v3920
          %v8780 = vpop.f32.mrf.mxu0
          %v8781 = vadd.f32 %v8753, %v8780
          %v8782 = vpop.f32.mrf.mxu0
          %v8783 = vadd.f32 %v8755, %v8782
          %8784 = vmatmul.bf16.gmra.mxu0 %v3924
          %v8785 = vpop.f32.mrf.mxu0
          %v8786 = vadd.f32 %v8758, %v8785
          %v8787 = vpop.f32.mrf.mxu0
          %8788 = vdwg.mxu0
          %v8789 = vmul.f32 %v7091, %v3510
          %v8790 = vmul.f32 %v7203, %v3510
          %v8791 = vmul.f32 %v7315, %v3510
          %v8792 = vmul.f32 %v7427, %v3510
          %v8793 = vmul.f32 %v7539, %v3510
          %v8794 = vmul.f32 %v7651, %v3510
          %v8795 = vmul.f32 %v7763, %v3510
          %v8796 = vmul.f32 %v7875, %v3510
          %v8797 = vmul.f32 %v7987, %v3510
          %v8798 = vmul.f32 %v8099, %v3510
          %v8799 = vmul.f32 %v8211, %v3510
          %v8800 = vmul.f32 %v8323, %v3510
          %v8801 = vmul.f32 %v8435, %v3510
          %v8802 = vmul.f32 %v8547, %v3510
          %v8803 = vmul.f32 %v8659, %v3510
          %v8804 = vmul.f32 %v8771, %v3510
          %v8805 = vmul.f32 %v7093, %v3511
          %v8806 = vmul.f32 %v7205, %v3511
          %v8807 = vmul.f32 %v7317, %v3511
          %v8808 = vmul.f32 %v7429, %v3511
          %v8809 = vmul.f32 %v7541, %v3511
          %v8810 = vmul.f32 %v7653, %v3511
          %v8811 = vmul.f32 %v7765, %v3511
          %v8812 = vmul.f32 %v7877, %v3511
          %v8813 = vmul.f32 %v7989, %v3511
          %v8814 = vmul.f32 %v8101, %v3511
          %v8815 = vmul.f32 %v8213, %v3511
          %v8816 = vmul.f32 %v8325, %v3511
          %v8817 = vmul.f32 %v8437, %v3511
          %v8818 = vmul.f32 %v8549, %v3511
          %v8819 = vmul.f32 %v8661, %v3511
          %v8820 = vmul.f32 %v8773, %v3511
          %v8821 = vmul.f32 %v7096, %v3512
          %v8822 = vmul.f32 %v7208, %v3512
          %v8823 = vmul.f32 %v7320, %v3512
          %v8824 = vmul.f32 %v7432, %v3512
          %v8825 = vmul.f32 %v7544, %v3512
          %v8826 = vmul.f32 %v7656, %v3512
          %v8827 = vmul.f32 %v7768, %v3512
          %v8828 = vmul.f32 %v7880, %v3512
          %v8829 = vmul.f32 %v7992, %v3512
          %v8830 = vmul.f32 %v8104, %v3512
          %v8831 = vmul.f32 %v8216, %v3512
          %v8832 = vmul.f32 %v8328, %v3512
          %v8833 = vmul.f32 %v8440, %v3512
          %v8834 = vmul.f32 %v8552, %v3512
          %v8835 = vmul.f32 %v8664, %v3512
          %v8836 = vmul.f32 %v8776, %v3512
          %v8837 = vmul.f32 %v7098, %v3513
          %v8838 = vmul.f32 %v7210, %v3513
          %v8839 = vmul.f32 %v7322, %v3513
          %v8840 = vmul.f32 %v7434, %v3513
          %v8841 = vmul.f32 %v7546, %v3513
          %v8842 = vmul.f32 %v7658, %v3513
          %v8843 = vmul.f32 %v7770, %v3513
          %v8844 = vmul.f32 %v7882, %v3513
          %v8845 = vmul.f32 %v7994, %v3513
          %v8846 = vmul.f32 %v8106, %v3513
          %v8847 = vmul.f32 %v8218, %v3513
          %v8848 = vmul.f32 %v8330, %v3513
          %v8849 = vmul.f32 %v8442, %v3513
          %v8850 = vmul.f32 %v8554, %v3513
          %v8851 = vmul.f32 %v8666, %v3513
          %v8852 = vmul.f32 %v8778, %v3513
          %v8853 = vmul.f32 %v7101, %v3514
          %v8854 = vmul.f32 %v7213, %v3514
          %v8855 = vmul.f32 %v7325, %v3514
          %v8856 = vmul.f32 %v7437, %v3514
          %v8857 = vmul.f32 %v7549, %v3514
          %v8858 = vmul.f32 %v7661, %v3514
          %v8859 = vmul.f32 %v7773, %v3514
          %v8860 = vmul.f32 %v7885, %v3514
          %v8861 = vmul.f32 %v7997, %v3514
          %v8862 = vmul.f32 %v8109, %v3514
          %v8863 = vmul.f32 %v8221, %v3514
          %v8864 = vmul.f32 %v8333, %v3514
          %v8865 = vmul.f32 %v8445, %v3514
          %v8866 = vmul.f32 %v8557, %v3514
          %v8867 = vmul.f32 %v8669, %v3514
          %v8868 = vmul.f32 %v8781, %v3514
          %v8869 = vmul.f32 %v7103, %v3515
          %v8870 = vmul.f32 %v7215, %v3515
          %v8871 = vmul.f32 %v7327, %v3515
          %v8872 = vmul.f32 %v7439, %v3515
          %v8873 = vmul.f32 %v7551, %v3515
          %v8874 = vmul.f32 %v7663, %v3515
          %v8875 = vmul.f32 %v7775, %v3515
          %v8876 = vmul.f32 %v7887, %v3515
          %v8877 = vmul.f32 %v7999, %v3515
          %v8878 = vmul.f32 %v8111, %v3515
          %v8879 = vmul.f32 %v8223, %v3515
          %v8880 = vmul.f32 %v8335, %v3515
          %v8881 = vmul.f32 %v8447, %v3515
          %v8882 = vmul.f32 %v8559, %v3515
          %v8883 = vmul.f32 %v8671, %v3515
          %v8884 = vmul.f32 %v8783, %v3515
          %v8885 = vmul.f32 %v7106, %v3516
          %v8886 = vmul.f32 %v7218, %v3516
          %v8887 = vmul.f32 %v7330, %v3516
          %v8888 = vmul.f32 %v7442, %v3516
          %v8889 = vmul.f32 %v7554, %v3516
          %v8890 = vmul.f32 %v7666, %v3516
          %v8891 = vmul.f32 %v7778, %v3516
          %v8892 = vmul.f32 %v7890, %v3516
          %v8893 = vmul.f32 %v8002, %v3516
          %v8894 = vmul.f32 %v8114, %v3516
          %v8895 = vmul.f32 %v8226, %v3516
          %v8896 = vmul.f32 %v8338, %v3516
          %v8897 = vmul.f32 %v8450, %v3516
          %v8898 = vmul.f32 %v8562, %v3516
          %v8899 = vmul.f32 %v8674, %v3516
          %v8900 = vmul.f32 %v8786, %v3516
          %v8901 = vadd.f32 %v8789, %v8805
          %v8902 = vadd.f32 %v8901, %v8821
          %v8903 = vadd.f32 %v8902, %v8837
          %v8904 = vadd.f32 %v8903, %v8853
          %v8905 = vadd.f32 %v8904, %v8869
          %v8906 = vadd.f32 %v8905, %v8885
          %v8907 = vrot.slane %v8906, 4
          %v8908 = vadd.f32 %v8906, %v8907
          %v8909 = vrot.slane %v8908, 2
          %v8910 = vadd.f32 %v8908, %v8909
          %v8911 = vrot.slane %v8910, 1
          %v8912 = vadd.f32 %v8910, %v8911
          %v8913 = vadd.f32 %v8790, %v8806
          %v8914 = vadd.f32 %v8913, %v8822
          %v8915 = vadd.f32 %v8914, %v8838
          %v8916 = vadd.f32 %v8915, %v8854
          %v8917 = vadd.f32 %v8916, %v8870
          %v8918 = vadd.f32 %v8917, %v8886
          %v8919 = vrot.slane %v8918, 4
          %v8920 = vadd.f32 %v8918, %v8919
          %v8921 = vrot.slane %v8920, 2
          %v8922 = vadd.f32 %v8920, %v8921
          %v8923 = vrot.slane %v8922, 1
          %v8924 = vadd.f32 %v8922, %v8923
          %v8925 = vadd.f32 %v8791, %v8807
          %v8926 = vadd.f32 %v8925, %v8823
          %v8927 = vadd.f32 %v8926, %v8839
          %v8928 = vadd.f32 %v8927, %v8855
          %v8929 = vadd.f32 %v8928, %v8871
          %v8930 = vadd.f32 %v8929, %v8887
          %v8931 = vrot.slane %v8930, 4
          %v8932 = vadd.f32 %v8930, %v8931
          %v8933 = vrot.slane %v8932, 2
          %v8934 = vadd.f32 %v8932, %v8933
          %v8935 = vrot.slane %v8934, 1
          %v8936 = vadd.f32 %v8934, %v8935
          %v8937 = vadd.f32 %v8792, %v8808
          %v8938 = vadd.f32 %v8937, %v8824
          %v8939 = vadd.f32 %v8938, %v8840
          %v8940 = vadd.f32 %v8939, %v8856
          %v8941 = vadd.f32 %v8940, %v8872
          %v8942 = vadd.f32 %v8941, %v8888
          %v8943 = vrot.slane %v8942, 4
          %v8944 = vadd.f32 %v8942, %v8943
          %v8945 = vrot.slane %v8944, 2
          %v8946 = vadd.f32 %v8944, %v8945
          %v8947 = vrot.slane %v8946, 1
          %v8948 = vadd.f32 %v8946, %v8947
          %v8949 = vadd.f32 %v8793, %v8809
          %v8950 = vadd.f32 %v8949, %v8825
          %v8951 = vadd.f32 %v8950, %v8841
          %v8952 = vadd.f32 %v8951, %v8857
          %v8953 = vadd.f32 %v8952, %v8873
          %v8954 = vadd.f32 %v8953, %v8889
          %v8955 = vrot.slane %v8954, 4
          %v8956 = vadd.f32 %v8954, %v8955
          %v8957 = vrot.slane %v8956, 2
          %v8958 = vadd.f32 %v8956, %v8957
          %v8959 = vrot.slane %v8958, 1
          %v8960 = vadd.f32 %v8958, %v8959
          %v8961 = vadd.f32 %v8794, %v8810
          %v8962 = vadd.f32 %v8961, %v8826
          %v8963 = vadd.f32 %v8962, %v8842
          %v8964 = vadd.f32 %v8963, %v8858
          %v8965 = vadd.f32 %v8964, %v8874
          %v8966 = vadd.f32 %v8965, %v8890
          %v8967 = vrot.slane %v8966, 4
          %v8968 = vadd.f32 %v8966, %v8967
          %v8969 = vrot.slane %v8968, 2
          %v8970 = vadd.f32 %v8968, %v8969
          %v8971 = vrot.slane %v8970, 1
          %v8972 = vadd.f32 %v8970, %v8971
          %v8973 = vadd.f32 %v8795, %v8811
          %v8974 = vadd.f32 %v8973, %v8827
          %v8975 = vadd.f32 %v8974, %v8843
          %v8976 = vadd.f32 %v8975, %v8859
          %v8977 = vadd.f32 %v8976, %v8875
          %v8978 = vadd.f32 %v8977, %v8891
          %v8979 = vrot.slane %v8978, 4
          %v8980 = vadd.f32 %v8978, %v8979
          %v8981 = vrot.slane %v8980, 2
          %v8982 = vadd.f32 %v8980, %v8981
          %v8983 = vrot.slane %v8982, 1
          %v8984 = vadd.f32 %v8982, %v8983
          %v8985 = vadd.f32 %v8796, %v8812
          %v8986 = vadd.f32 %v8985, %v8828
          %v8987 = vadd.f32 %v8986, %v8844
          %v8988 = vadd.f32 %v8987, %v8860
          %v8989 = vadd.f32 %v8988, %v8876
          %v8990 = vadd.f32 %v8989, %v8892
          %v8991 = vrot.slane %v8990, 4
          %v8992 = vadd.f32 %v8990, %v8991
          %v8993 = vrot.slane %v8992, 2
          %v8994 = vadd.f32 %v8992, %v8993
          %v8995 = vrot.slane %v8994, 1
          %v8996 = vadd.f32 %v8994, %v8995
          %v8997 = vadd.f32 %v8797, %v8813
          %v8998 = vadd.f32 %v8997, %v8829
          %v8999 = vadd.f32 %v8998, %v8845
          %v9000 = vadd.f32 %v8999, %v8861
          %v9001 = vadd.f32 %v9000, %v8877
          %v9002 = vadd.f32 %v9001, %v8893
          %v9003 = vrot.slane %v9002, 4
          %v9004 = vadd.f32 %v9002, %v9003
          %v9005 = vrot.slane %v9004, 2
          %v9006 = vadd.f32 %v9004, %v9005
          %v9007 = vrot.slane %v9006, 1
          %v9008 = vadd.f32 %v9006, %v9007
          %v9009 = vadd.f32 %v8798, %v8814
          %v9010 = vadd.f32 %v9009, %v8830
          %v9011 = vadd.f32 %v9010, %v8846
          %v9012 = vadd.f32 %v9011, %v8862
          %v9013 = vadd.f32 %v9012, %v8878
          %v9014 = vadd.f32 %v9013, %v8894
          %v9015 = vrot.slane %v9014, 4
          %v9016 = vadd.f32 %v9014, %v9015
          %v9017 = vrot.slane %v9016, 2
          %v9018 = vadd.f32 %v9016, %v9017
          %v9019 = vrot.slane %v9018, 1
          %v9020 = vadd.f32 %v9018, %v9019
          %v9021 = vadd.f32 %v8799, %v8815
          %v9022 = vadd.f32 %v9021, %v8831
          %v9023 = vadd.f32 %v9022, %v8847
          %v9024 = vadd.f32 %v9023, %v8863
          %v9025 = vadd.f32 %v9024, %v8879
          %v9026 = vadd.f32 %v9025, %v8895
          %v9027 = vrot.slane %v9026, 4
          %v9028 = vadd.f32 %v9026, %v9027
          %v9029 = vrot.slane %v9028, 2
          %v9030 = vadd.f32 %v9028, %v9029
          %v9031 = vrot.slane %v9030, 1
          %v9032 = vadd.f32 %v9030, %v9031
          %v9033 = vadd.f32 %v8800, %v8816
          %v9034 = vadd.f32 %v9033, %v8832
          %v9035 = vadd.f32 %v9034, %v8848
          %v9036 = vadd.f32 %v9035, %v8864
          %v9037 = vadd.f32 %v9036, %v8880
          %v9038 = vadd.f32 %v9037, %v8896
          %v9039 = vrot.slane %v9038, 4
          %v9040 = vadd.f32 %v9038, %v9039
          %v9041 = vrot.slane %v9040, 2
          %v9042 = vadd.f32 %v9040, %v9041
          %v9043 = vrot.slane %v9042, 1
          %v9044 = vadd.f32 %v9042, %v9043
          %v9045 = vadd.f32 %v8801, %v8817
          %v9046 = vadd.f32 %v9045, %v8833
          %v9047 = vadd.f32 %v9046, %v8849
          %v9048 = vadd.f32 %v9047, %v8865
          %v9049 = vadd.f32 %v9048, %v8881
          %v9050 = vadd.f32 %v9049, %v8897
          %v9051 = vrot.slane %v9050, 4
          %v9052 = vadd.f32 %v9050, %v9051
          %v9053 = vrot.slane %v9052, 2
          %v9054 = vadd.f32 %v9052, %v9053
          %v9055 = vrot.slane %v9054, 1
          %v9056 = vadd.f32 %v9054, %v9055
          %v9057 = vadd.f32 %v8802, %v8818
          %v9058 = vadd.f32 %v9057, %v8834
          %v9059 = vadd.f32 %v9058, %v8850
          %v9060 = vadd.f32 %v9059, %v8866
          %v9061 = vadd.f32 %v9060, %v8882
          %v9062 = vadd.f32 %v9061, %v8898
          %v9063 = vrot.slane %v9062, 4
          %v9064 = vadd.f32 %v9062, %v9063
          %v9065 = vrot.slane %v9064, 2
          %v9066 = vadd.f32 %v9064, %v9065
          %v9067 = vrot.slane %v9066, 1
          %v9068 = vadd.f32 %v9066, %v9067
          %v9069 = vadd.f32 %v8803, %v8819
          %v9070 = vadd.f32 %v9069, %v8835
          %v9071 = vadd.f32 %v9070, %v8851
          %v9072 = vadd.f32 %v9071, %v8867
          %v9073 = vadd.f32 %v9072, %v8883
          %v9074 = vadd.f32 %v9073, %v8899
          %v9075 = vrot.slane %v9074, 4
          %v9076 = vadd.f32 %v9074, %v9075
          %v9077 = vrot.slane %v9076, 2
          %v9078 = vadd.f32 %v9076, %v9077
          %v9079 = vrot.slane %v9078, 1
          %v9080 = vadd.f32 %v9078, %v9079
          %v9081 = vadd.f32 %v8804, %v8820
          %v9082 = vadd.f32 %v9081, %v8836
          %v9083 = vadd.f32 %v9082, %v8852
          %v9084 = vadd.f32 %v9083, %v8868
          %v9085 = vadd.f32 %v9084, %v8884
          %v9086 = vadd.f32 %v9085, %v8900
          %v9087 = vrot.slane %v9086, 4
          %v9088 = vadd.f32 %v9086, %v9087
          %v9089 = vrot.slane %v9088, 2
          %v9090 = vadd.f32 %v9088, %v9089
          %v9091 = vrot.slane %v9090, 1
          %v9092 = vadd.f32 %v9090, %v9091
          %v9093 = vmul.f32 %v8912, 0.020408163
          %v9094 = vmul.f32 %v8924, 0.020408163
          %v9095 = vmul.f32 %v8936, 0.020408163
          %v9096 = vmul.f32 %v8948, 0.020408163
          %v9097 = vmul.f32 %v8960, 0.020408163
          %v9098 = vmul.f32 %v8972, 0.020408163
          %v9099 = vmul.f32 %v8984, 0.020408163
          %v9100 = vmul.f32 %v8996, 0.020408163
          %v9101 = vmul.f32 %v9008, 0.020408163
          %v9102 = vmul.f32 %v9020, 0.020408163
          %v9103 = vmul.f32 %v9032, 0.020408163
          %v9104 = vmul.f32 %v9044, 0.020408163
          %v9105 = vmul.f32 %v9056, 0.020408163
          %v9106 = vmul.f32 %v9068, 0.020408163
          %v9107 = vmul.f32 %v9080, 0.020408163
          %v9108 = vmul.f32 %v9092, 0.020408163
          %v9109 = vsub.f32 %v7091, %v9093
          %v9110 = vsub.f32 %v7203, %v9094
          %v9111 = vsub.f32 %v7315, %v9095
          %v9112 = vsub.f32 %v7427, %v9096
          %v9113 = vsub.f32 %v7539, %v9097
          %v9114 = vsub.f32 %v7651, %v9098
          %v9115 = vsub.f32 %v7763, %v9099
          %v9116 = vsub.f32 %v7875, %v9100
          %v9117 = vsub.f32 %v7987, %v9101
          %v9118 = vsub.f32 %v8099, %v9102
          %v9119 = vsub.f32 %v8211, %v9103
          %v9120 = vsub.f32 %v8323, %v9104
          %v9121 = vsub.f32 %v8435, %v9105
          %v9122 = vsub.f32 %v8547, %v9106
          %v9123 = vsub.f32 %v8659, %v9107
          %v9124 = vsub.f32 %v8771, %v9108
          %v9125 = vsub.f32 %v7093, %v9093
          %v9126 = vsub.f32 %v7205, %v9094
          %v9127 = vsub.f32 %v7317, %v9095
          %v9128 = vsub.f32 %v7429, %v9096
          %v9129 = vsub.f32 %v7541, %v9097
          %v9130 = vsub.f32 %v7653, %v9098
          %v9131 = vsub.f32 %v7765, %v9099
          %v9132 = vsub.f32 %v7877, %v9100
          %v9133 = vsub.f32 %v7989, %v9101
          %v9134 = vsub.f32 %v8101, %v9102
          %v9135 = vsub.f32 %v8213, %v9103
          %v9136 = vsub.f32 %v8325, %v9104
          %v9137 = vsub.f32 %v8437, %v9105
          %v9138 = vsub.f32 %v8549, %v9106
          %v9139 = vsub.f32 %v8661, %v9107
          %v9140 = vsub.f32 %v8773, %v9108
          %v9141 = vsub.f32 %v7096, %v9093
          %v9142 = vsub.f32 %v7208, %v9094
          %v9143 = vsub.f32 %v7320, %v9095
          %v9144 = vsub.f32 %v7432, %v9096
          %v9145 = vsub.f32 %v7544, %v9097
          %v9146 = vsub.f32 %v7656, %v9098
          %v9147 = vsub.f32 %v7768, %v9099
          %v9148 = vsub.f32 %v7880, %v9100
          %v9149 = vsub.f32 %v7992, %v9101
          %v9150 = vsub.f32 %v8104, %v9102
          %v9151 = vsub.f32 %v8216, %v9103
          %v9152 = vsub.f32 %v8328, %v9104
          %v9153 = vsub.f32 %v8440, %v9105
          %v9154 = vsub.f32 %v8552, %v9106
          %v9155 = vsub.f32 %v8664, %v9107
          %v9156 = vsub.f32 %v8776, %v9108
          %v9157 = vsub.f32 %v7098, %v9093
          %v9158 = vsub.f32 %v7210, %v9094
          %v9159 = vsub.f32 %v7322, %v9095
          %v9160 = vsub.f32 %v7434, %v9096
          %v9161 = vsub.f32 %v7546, %v9097
          %v9162 = vsub.f32 %v7658, %v9098
          %v9163 = vsub.f32 %v7770, %v9099
          %v9164 = vsub.f32 %v7882, %v9100
          %v9165 = vsub.f32 %v7994, %v9101
          %v9166 = vsub.f32 %v8106, %v9102
          %v9167 = vsub.f32 %v8218, %v9103
          %v9168 = vsub.f32 %v8330, %v9104
          %v9169 = vsub.f32 %v8442, %v9105
          %v9170 = vsub.f32 %v8554, %v9106
          %v9171 = vsub.f32 %v8666, %v9107
          %v9172 = vsub.f32 %v8778, %v9108
          %v9173 = vsub.f32 %v7101, %v9093
          %v9174 = vsub.f32 %v7213, %v9094
          %v9175 = vsub.f32 %v7325, %v9095
          %v9176 = vsub.f32 %v7437, %v9096
          %v9177 = vsub.f32 %v7549, %v9097
          %v9178 = vsub.f32 %v7661, %v9098
          %v9179 = vsub.f32 %v7773, %v9099
          %v9180 = vsub.f32 %v7885, %v9100
          %v9181 = vsub.f32 %v7997, %v9101
          %v9182 = vsub.f32 %v8109, %v9102
          %v9183 = vsub.f32 %v8221, %v9103
          %v9184 = vsub.f32 %v8333, %v9104
          %v9185 = vsub.f32 %v8445, %v9105
          %v9186 = vsub.f32 %v8557, %v9106
          %v9187 = vsub.f32 %v8669, %v9107
          %v9188 = vsub.f32 %v8781, %v9108
          %v9189 = vsub.f32 %v7103, %v9093
          %v9190 = vsub.f32 %v7215, %v9094
          %v9191 = vsub.f32 %v7327, %v9095
          %v9192 = vsub.f32 %v7439, %v9096
          %v9193 = vsub.f32 %v7551, %v9097
          %v9194 = vsub.f32 %v7663, %v9098
          %v9195 = vsub.f32 %v7775, %v9099
          %v9196 = vsub.f32 %v7887, %v9100
          %v9197 = vsub.f32 %v7999, %v9101
          %v9198 = vsub.f32 %v8111, %v9102
          %v9199 = vsub.f32 %v8223, %v9103
          %v9200 = vsub.f32 %v8335, %v9104
          %v9201 = vsub.f32 %v8447, %v9105
          %v9202 = vsub.f32 %v8559, %v9106
          %v9203 = vsub.f32 %v8671, %v9107
          %v9204 = vsub.f32 %v8783, %v9108
          %v9205 = vsub.f32 %v7106, %v9093
          %v9206 = vsub.f32 %v7218, %v9094
          %v9207 = vsub.f32 %v7330, %v9095
          %v9208 = vsub.f32 %v7442, %v9096
          %v9209 = vsub.f32 %v7554, %v9097
          %v9210 = vsub.f32 %v7666, %v9098
          %v9211 = vsub.f32 %v7778, %v9099
          %v9212 = vsub.f32 %v7890, %v9100
          %v9213 = vsub.f32 %v8002, %v9101
          %v9214 = vsub.f32 %v8114, %v9102
          %v9215 = vsub.f32 %v8226, %v9103
          %v9216 = vsub.f32 %v8338, %v9104
          %v9217 = vsub.f32 %v8450, %v9105
          %v9218 = vsub.f32 %v8562, %v9106
          %v9219 = vsub.f32 %v8674, %v9107
          %v9220 = vsub.f32 %v8786, %v9108
          %v9221 = vmul.f32 %v9109, %v9109
          %v9222 = vmul.f32 %v9110, %v9110
          %v9223 = vmul.f32 %v9111, %v9111
          %v9224 = vmul.f32 %v9112, %v9112
          %v9225 = vmul.f32 %v9113, %v9113
          %v9226 = vmul.f32 %v9114, %v9114
          %v9227 = vmul.f32 %v9115, %v9115
          %v9228 = vmul.f32 %v9116, %v9116
          %v9229 = vmul.f32 %v9117, %v9117
          %v9230 = vmul.f32 %v9118, %v9118
          %v9231 = vmul.f32 %v9119, %v9119
          %v9232 = vmul.f32 %v9120, %v9120
          %v9233 = vmul.f32 %v9121, %v9121
          %v9234 = vmul.f32 %v9122, %v9122
          %v9235 = vmul.f32 %v9123, %v9123
          %v9236 = vmul.f32 %v9124, %v9124
          %v9237 = vmul.f32 %v9125, %v9125
          %v9238 = vmul.f32 %v9126, %v9126
          %v9239 = vmul.f32 %v9127, %v9127
          %v9240 = vmul.f32 %v9128, %v9128
          %v9241 = vmul.f32 %v9129, %v9129
          %v9242 = vmul.f32 %v9130, %v9130
          %v9243 = vmul.f32 %v9131, %v9131
          %v9244 = vmul.f32 %v9132, %v9132
          %v9245 = vmul.f32 %v9133, %v9133
          %v9246 = vmul.f32 %v9134, %v9134
          %v9247 = vmul.f32 %v9135, %v9135
          %v9248 = vmul.f32 %v9136, %v9136
          %v9249 = vmul.f32 %v9137, %v9137
          %v9250 = vmul.f32 %v9138, %v9138
          %v9251 = vmul.f32 %v9139, %v9139
          %v9252 = vmul.f32 %v9140, %v9140
          %v9253 = vmul.f32 %v9141, %v9141
          %v9254 = vmul.f32 %v9142, %v9142
          %v9255 = vmul.f32 %v9143, %v9143
          %v9256 = vmul.f32 %v9144, %v9144
          %v9257 = vmul.f32 %v9145, %v9145
          %v9258 = vmul.f32 %v9146, %v9146
          %v9259 = vmul.f32 %v9147, %v9147
          %v9260 = vmul.f32 %v9148, %v9148
          %v9261 = vmul.f32 %v9149, %v9149
          %v9262 = vmul.f32 %v9150, %v9150
          %v9263 = vmul.f32 %v9151, %v9151
          %v9264 = vmul.f32 %v9152, %v9152
          %v9265 = vmul.f32 %v9153, %v9153
          %v9266 = vmul.f32 %v9154, %v9154
          %v9267 = vmul.f32 %v9155, %v9155
          %v9268 = vmul.f32 %v9156, %v9156
          %v9269 = vmul.f32 %v9157, %v9157
          %v9270 = vmul.f32 %v9158, %v9158
          %v9271 = vmul.f32 %v9159, %v9159
          %v9272 = vmul.f32 %v9160, %v9160
          %v9273 = vmul.f32 %v9161, %v9161
          %v9274 = vmul.f32 %v9162, %v9162
          %v9275 = vmul.f32 %v9163, %v9163
          %v9276 = vmul.f32 %v9164, %v9164
          %v9277 = vmul.f32 %v9165, %v9165
          %v9278 = vmul.f32 %v9166, %v9166
          %v9279 = vmul.f32 %v9167, %v9167
          %v9280 = vmul.f32 %v9168, %v9168
          %v9281 = vmul.f32 %v9169, %v9169
          %v9282 = vmul.f32 %v9170, %v9170
          %v9283 = vmul.f32 %v9171, %v9171
          %v9284 = vmul.f32 %v9172, %v9172
          %v9285 = vmul.f32 %v9173, %v9173
          %v9286 = vmul.f32 %v9174, %v9174
          %v9287 = vmul.f32 %v9175, %v9175
          %v9288 = vmul.f32 %v9176, %v9176
          %v9289 = vmul.f32 %v9177, %v9177
          %v9290 = vmul.f32 %v9178, %v9178
          %v9291 = vmul.f32 %v9179, %v9179
          %v9292 = vmul.f32 %v9180, %v9180
          %v9293 = vmul.f32 %v9181, %v9181
          %v9294 = vmul.f32 %v9182, %v9182
          %v9295 = vmul.f32 %v9183, %v9183
          %v9296 = vmul.f32 %v9184, %v9184
          %v9297 = vmul.f32 %v9185, %v9185
          %v9298 = vmul.f32 %v9186, %v9186
          %v9299 = vmul.f32 %v9187, %v9187
          %v9300 = vmul.f32 %v9188, %v9188
          %v9301 = vmul.f32 %v9189, %v9189
          %v9302 = vmul.f32 %v9190, %v9190
          %v9303 = vmul.f32 %v9191, %v9191
          %v9304 = vmul.f32 %v9192, %v9192
          %v9305 = vmul.f32 %v9193, %v9193
          %v9306 = vmul.f32 %v9194, %v9194
          %v9307 = vmul.f32 %v9195, %v9195
          %v9308 = vmul.f32 %v9196, %v9196
          %v9309 = vmul.f32 %v9197, %v9197
          %v9310 = vmul.f32 %v9198, %v9198
          %v9311 = vmul.f32 %v9199, %v9199
          %v9312 = vmul.f32 %v9200, %v9200
          %v9313 = vmul.f32 %v9201, %v9201
          %v9314 = vmul.f32 %v9202, %v9202
          %v9315 = vmul.f32 %v9203, %v9203
          %v9316 = vmul.f32 %v9204, %v9204
          %v9317 = vmul.f32 %v9205, %v9205
          %v9318 = vmul.f32 %v9206, %v9206
          %v9319 = vmul.f32 %v9207, %v9207
          %v9320 = vmul.f32 %v9208, %v9208
          %v9321 = vmul.f32 %v9209, %v9209
          %v9322 = vmul.f32 %v9210, %v9210
          %v9323 = vmul.f32 %v9211, %v9211
          %v9324 = vmul.f32 %v9212, %v9212
          %v9325 = vmul.f32 %v9213, %v9213
          %v9326 = vmul.f32 %v9214, %v9214
          %v9327 = vmul.f32 %v9215, %v9215
          %v9328 = vmul.f32 %v9216, %v9216
          %v9329 = vmul.f32 %v9217, %v9217
          %v9330 = vmul.f32 %v9218, %v9218
          %v9331 = vmul.f32 %v9219, %v9219
          %v9332 = vmul.f32 %v9220, %v9220
          %v9333 = vmul.f32 %v9221, %v3510
          %v9334 = vmul.f32 %v9222, %v3510
          %v9335 = vmul.f32 %v9223, %v3510
          %v9336 = vmul.f32 %v9224, %v3510
          %v9337 = vmul.f32 %v9225, %v3510
          %v9338 = vmul.f32 %v9226, %v3510
          %v9339 = vmul.f32 %v9227, %v3510
          %v9340 = vmul.f32 %v9228, %v3510
          %v9341 = vmul.f32 %v9229, %v3510
          %v9342 = vmul.f32 %v9230, %v3510
          %v9343 = vmul.f32 %v9231, %v3510
          %v9344 = vmul.f32 %v9232, %v3510
          %v9345 = vmul.f32 %v9233, %v3510
          %v9346 = vmul.f32 %v9234, %v3510
          %v9347 = vmul.f32 %v9235, %v3510
          %v9348 = vmul.f32 %v9236, %v3510
          %v9349 = vmul.f32 %v9237, %v3511
          %v9350 = vmul.f32 %v9238, %v3511
          %v9351 = vmul.f32 %v9239, %v3511
          %v9352 = vmul.f32 %v9240, %v3511
          %v9353 = vmul.f32 %v9241, %v3511
          %v9354 = vmul.f32 %v9242, %v3511
          %v9355 = vmul.f32 %v9243, %v3511
          %v9356 = vmul.f32 %v9244, %v3511
          %v9357 = vmul.f32 %v9245, %v3511
          %v9358 = vmul.f32 %v9246, %v3511
          %v9359 = vmul.f32 %v9247, %v3511
          %v9360 = vmul.f32 %v9248, %v3511
          %v9361 = vmul.f32 %v9249, %v3511
          %v9362 = vmul.f32 %v9250, %v3511
          %v9363 = vmul.f32 %v9251, %v3511
          %v9364 = vmul.f32 %v9252, %v3511
          %v9365 = vmul.f32 %v9253, %v3512
          %v9366 = vmul.f32 %v9254, %v3512
          %v9367 = vmul.f32 %v9255, %v3512
          %v9368 = vmul.f32 %v9256, %v3512
          %v9369 = vmul.f32 %v9257, %v3512
          %v9370 = vmul.f32 %v9258, %v3512
          %v9371 = vmul.f32 %v9259, %v3512
          %v9372 = vmul.f32 %v9260, %v3512
          %v9373 = vmul.f32 %v9261, %v3512
          %v9374 = vmul.f32 %v9262, %v3512
          %v9375 = vmul.f32 %v9263, %v3512
          %v9376 = vmul.f32 %v9264, %v3512
          %v9377 = vmul.f32 %v9265, %v3512
          %v9378 = vmul.f32 %v9266, %v3512
          %v9379 = vmul.f32 %v9267, %v3512
          %v9380 = vmul.f32 %v9268, %v3512
          %v9381 = vmul.f32 %v9269, %v3513
          %v9382 = vmul.f32 %v9270, %v3513
          %v9383 = vmul.f32 %v9271, %v3513
          %v9384 = vmul.f32 %v9272, %v3513
          %v9385 = vmul.f32 %v9273, %v3513
          %v9386 = vmul.f32 %v9274, %v3513
          %v9387 = vmul.f32 %v9275, %v3513
          %v9388 = vmul.f32 %v9276, %v3513
          %v9389 = vmul.f32 %v9277, %v3513
          %v9390 = vmul.f32 %v9278, %v3513
          %v9391 = vmul.f32 %v9279, %v3513
          %v9392 = vmul.f32 %v9280, %v3513
          %v9393 = vmul.f32 %v9281, %v3513
          %v9394 = vmul.f32 %v9282, %v3513
          %v9395 = vmul.f32 %v9283, %v3513
          %v9396 = vmul.f32 %v9284, %v3513
          %v9397 = vmul.f32 %v9285, %v3514
          %v9398 = vmul.f32 %v9286, %v3514
          %v9399 = vmul.f32 %v9287, %v3514
          %v9400 = vmul.f32 %v9288, %v3514
          %v9401 = vmul.f32 %v9289, %v3514
          %v9402 = vmul.f32 %v9290, %v3514
          %v9403 = vmul.f32 %v9291, %v3514
          %v9404 = vmul.f32 %v9292, %v3514
          %v9405 = vmul.f32 %v9293, %v3514
          %v9406 = vmul.f32 %v9294, %v3514
          %v9407 = vmul.f32 %v9295, %v3514
          %v9408 = vmul.f32 %v9296, %v3514
          %v9409 = vmul.f32 %v9297, %v3514
          %v9410 = vmul.f32 %v9298, %v3514
          %v9411 = vmul.f32 %v9299, %v3514
          %v9412 = vmul.f32 %v9300, %v3514
          %v9413 = vmul.f32 %v9301, %v3515
          %v9414 = vmul.f32 %v9302, %v3515
          %v9415 = vmul.f32 %v9303, %v3515
          %v9416 = vmul.f32 %v9304, %v3515
          %v9417 = vmul.f32 %v9305, %v3515
          %v9418 = vmul.f32 %v9306, %v3515
          %v9419 = vmul.f32 %v9307, %v3515
          %v9420 = vmul.f32 %v9308, %v3515
          %v9421 = vmul.f32 %v9309, %v3515
          %v9422 = vmul.f32 %v9310, %v3515
          %v9423 = vmul.f32 %v9311, %v3515
          %v9424 = vmul.f32 %v9312, %v3515
          %v9425 = vmul.f32 %v9313, %v3515
          %v9426 = vmul.f32 %v9314, %v3515
          %v9427 = vmul.f32 %v9315, %v3515
          %v9428 = vmul.f32 %v9316, %v3515
          %v9429 = vmul.f32 %v9317, %v3516
          %v9430 = vmul.f32 %v9318, %v3516
          %v9431 = vmul.f32 %v9319, %v3516
          %v9432 = vmul.f32 %v9320, %v3516
          %v9433 = vmul.f32 %v9321, %v3516
          %v9434 = vmul.f32 %v9322, %v3516
          %v9435 = vmul.f32 %v9323, %v3516
          %v9436 = vmul.f32 %v9324, %v3516
          %v9437 = vmul.f32 %v9325, %v3516
          %v9438 = vmul.f32 %v9326, %v3516
          %v9439 = vmul.f32 %v9327, %v3516
          %v9440 = vmul.f32 %v9328, %v3516
          %v9441 = vmul.f32 %v9329, %v3516
          %v9442 = vmul.f32 %v9330, %v3516
          %v9443 = vmul.f32 %v9331, %v3516
          %v9444 = vmul.f32 %v9332, %v3516
          %v9445 = vadd.f32 %v9333, %v9349
          %v9446 = vadd.f32 %v9445, %v9365
          %v9447 = vadd.f32 %v9446, %v9381
          %v9448 = vadd.f32 %v9447, %v9397
          %v9449 = vadd.f32 %v9448, %v9413
          %v9450 = vadd.f32 %v9449, %v9429
          %v9451 = vrot.slane %v9450, 4
          %v9452 = vadd.f32 %v9450, %v9451
          %v9453 = vrot.slane %v9452, 2
          %v9454 = vadd.f32 %v9452, %v9453
          %v9455 = vrot.slane %v9454, 1
          %v9456 = vadd.f32 %v9454, %v9455
          %v9457 = vadd.f32 %v9334, %v9350
          %v9458 = vadd.f32 %v9457, %v9366
          %v9459 = vadd.f32 %v9458, %v9382
          %v9460 = vadd.f32 %v9459, %v9398
          %v9461 = vadd.f32 %v9460, %v9414
          %v9462 = vadd.f32 %v9461, %v9430
          %v9463 = vrot.slane %v9462, 4
          %v9464 = vadd.f32 %v9462, %v9463
          %v9465 = vrot.slane %v9464, 2
          %v9466 = vadd.f32 %v9464, %v9465
          %v9467 = vrot.slane %v9466, 1
          %v9468 = vadd.f32 %v9466, %v9467
          %v9469 = vadd.f32 %v9335, %v9351
          %v9470 = vadd.f32 %v9469, %v9367
          %v9471 = vadd.f32 %v9470, %v9383
          %v9472 = vadd.f32 %v9471, %v9399
          %v9473 = vadd.f32 %v9472, %v9415
          %v9474 = vadd.f32 %v9473, %v9431
          %v9475 = vrot.slane %v9474, 4
          %v9476 = vadd.f32 %v9474, %v9475
          %v9477 = vrot.slane %v9476, 2
          %v9478 = vadd.f32 %v9476, %v9477
          %v9479 = vrot.slane %v9478, 1
          %v9480 = vadd.f32 %v9478, %v9479
          %v9481 = vadd.f32 %v9336, %v9352
          %v9482 = vadd.f32 %v9481, %v9368
          %v9483 = vadd.f32 %v9482, %v9384
          %v9484 = vadd.f32 %v9483, %v9400
          %v9485 = vadd.f32 %v9484, %v9416
          %v9486 = vadd.f32 %v9485, %v9432
          %v9487 = vrot.slane %v9486, 4
          %v9488 = vadd.f32 %v9486, %v9487
          %v9489 = vrot.slane %v9488, 2
          %v9490 = vadd.f32 %v9488, %v9489
          %v9491 = vrot.slane %v9490, 1
          %v9492 = vadd.f32 %v9490, %v9491
          %v9493 = vadd.f32 %v9337, %v9353
          %v9494 = vadd.f32 %v9493, %v9369
          %v9495 = vadd.f32 %v9494, %v9385
          %v9496 = vadd.f32 %v9495, %v9401
          %v9497 = vadd.f32 %v9496, %v9417
          %v9498 = vadd.f32 %v9497, %v9433
          %v9499 = vrot.slane %v9498, 4
          %v9500 = vadd.f32 %v9498, %v9499
          %v9501 = vrot.slane %v9500, 2
          %v9502 = vadd.f32 %v9500, %v9501
          %v9503 = vrot.slane %v9502, 1
          %v9504 = vadd.f32 %v9502, %v9503
          %v9505 = vadd.f32 %v9338, %v9354
          %v9506 = vadd.f32 %v9505, %v9370
          %v9507 = vadd.f32 %v9506, %v9386
          %v9508 = vadd.f32 %v9507, %v9402
          %v9509 = vadd.f32 %v9508, %v9418
          %v9510 = vadd.f32 %v9509, %v9434
          %v9511 = vrot.slane %v9510, 4
          %v9512 = vadd.f32 %v9510, %v9511
          %v9513 = vrot.slane %v9512, 2
          %v9514 = vadd.f32 %v9512, %v9513
          %v9515 = vrot.slane %v9514, 1
          %v9516 = vadd.f32 %v9514, %v9515
          %v9517 = vadd.f32 %v9339, %v9355
          %v9518 = vadd.f32 %v9517, %v9371
          %v9519 = vadd.f32 %v9518, %v9387
          %v9520 = vadd.f32 %v9519, %v9403
          %v9521 = vadd.f32 %v9520, %v9419
          %v9522 = vadd.f32 %v9521, %v9435
          %v9523 = vrot.slane %v9522, 4
          %v9524 = vadd.f32 %v9522, %v9523
          %v9525 = vrot.slane %v9524, 2
          %v9526 = vadd.f32 %v9524, %v9525
          %v9527 = vrot.slane %v9526, 1
          %v9528 = vadd.f32 %v9526, %v9527
          %v9529 = vadd.f32 %v9340, %v9356
          %v9530 = vadd.f32 %v9529, %v9372
          %v9531 = vadd.f32 %v9530, %v9388
          %v9532 = vadd.f32 %v9531, %v9404
          %v9533 = vadd.f32 %v9532, %v9420
          %v9534 = vadd.f32 %v9533, %v9436
          %v9535 = vrot.slane %v9534, 4
          %v9536 = vadd.f32 %v9534, %v9535
          %v9537 = vrot.slane %v9536, 2
          %v9538 = vadd.f32 %v9536, %v9537
          %v9539 = vrot.slane %v9538, 1
          %v9540 = vadd.f32 %v9538, %v9539
          %v9541 = vadd.f32 %v9341, %v9357
          %v9542 = vadd.f32 %v9541, %v9373
          %v9543 = vadd.f32 %v9542, %v9389
          %v9544 = vadd.f32 %v9543, %v9405
          %v9545 = vadd.f32 %v9544, %v9421
          %v9546 = vadd.f32 %v9545, %v9437
          %v9547 = vrot.slane %v9546, 4
          %v9548 = vadd.f32 %v9546, %v9547
          %v9549 = vrot.slane %v9548, 2
          %v9550 = vadd.f32 %v9548, %v9549
          %v9551 = vrot.slane %v9550, 1
          %v9552 = vadd.f32 %v9550, %v9551
          %v9553 = vadd.f32 %v9342, %v9358
          %v9554 = vadd.f32 %v9553, %v9374
          %v9555 = vadd.f32 %v9554, %v9390
          %v9556 = vadd.f32 %v9555, %v9406
          %v9557 = vadd.f32 %v9556, %v9422
          %v9558 = vadd.f32 %v9557, %v9438
          %v9559 = vrot.slane %v9558, 4
          %v9560 = vadd.f32 %v9558, %v9559
          %v9561 = vrot.slane %v9560, 2
          %v9562 = vadd.f32 %v9560, %v9561
          %v9563 = vrot.slane %v9562, 1
          %v9564 = vadd.f32 %v9562, %v9563
          %v9565 = vadd.f32 %v9343, %v9359
          %v9566 = vadd.f32 %v9565, %v9375
          %v9567 = vadd.f32 %v9566, %v9391
          %v9568 = vadd.f32 %v9567, %v9407
          %v9569 = vadd.f32 %v9568, %v9423
          %v9570 = vadd.f32 %v9569, %v9439
          %v9571 = vrot.slane %v9570, 4
          %v9572 = vadd.f32 %v9570, %v9571
          %v9573 = vrot.slane %v9572, 2
          %v9574 = vadd.f32 %v9572, %v9573
          %v9575 = vrot.slane %v9574, 1
          %v9576 = vadd.f32 %v9574, %v9575
          %v9577 = vadd.f32 %v9344, %v9360
          %v9578 = vadd.f32 %v9577, %v9376
          %v9579 = vadd.f32 %v9578, %v9392
          %v9580 = vadd.f32 %v9579, %v9408
          %v9581 = vadd.f32 %v9580, %v9424
          %v9582 = vadd.f32 %v9581, %v9440
          %v9583 = vrot.slane %v9582, 4
          %v9584 = vadd.f32 %v9582, %v9583
          %v9585 = vrot.slane %v9584, 2
          %v9586 = vadd.f32 %v9584, %v9585
          %v9587 = vrot.slane %v9586, 1
          %v9588 = vadd.f32 %v9586, %v9587
          %v9589 = vadd.f32 %v9345, %v9361
          %v9590 = vadd.f32 %v9589, %v9377
          %v9591 = vadd.f32 %v9590, %v9393
          %v9592 = vadd.f32 %v9591, %v9409
          %v9593 = vadd.f32 %v9592, %v9425
          %v9594 = vadd.f32 %v9593, %v9441
          %v9595 = vrot.slane %v9594, 4
          %v9596 = vadd.f32 %v9594, %v9595
          %v9597 = vrot.slane %v9596, 2
          %v9598 = vadd.f32 %v9596, %v9597
          %v9599 = vrot.slane %v9598, 1
          %v9600 = vadd.f32 %v9598, %v9599
          %v9601 = vadd.f32 %v9346, %v9362
          %v9602 = vadd.f32 %v9601, %v9378
          %v9603 = vadd.f32 %v9602, %v9394
          %v9604 = vadd.f32 %v9603, %v9410
          %v9605 = vadd.f32 %v9604, %v9426
          %v9606 = vadd.f32 %v9605, %v9442
          %v9607 = vrot.slane %v9606, 4
          %v9608 = vadd.f32 %v9606, %v9607
          %v9609 = vrot.slane %v9608, 2
          %v9610 = vadd.f32 %v9608, %v9609
          %v9611 = vrot.slane %v9610, 1
          %v9612 = vadd.f32 %v9610, %v9611
          %v9613 = vadd.f32 %v9347, %v9363
          %v9614 = vadd.f32 %v9613, %v9379
          %v9615 = vadd.f32 %v9614, %v9395
          %v9616 = vadd.f32 %v9615, %v9411
          %v9617 = vadd.f32 %v9616, %v9427
          %v9618 = vadd.f32 %v9617, %v9443
          %v9619 = vrot.slane %v9618, 4
          %v9620 = vadd.f32 %v9618, %v9619
          %v9621 = vrot.slane %v9620, 2
          %v9622 = vadd.f32 %v9620, %v9621
          %v9623 = vrot.slane %v9622, 1
          %v9624 = vadd.f32 %v9622, %v9623
          %v9625 = vadd.f32 %v9348, %v9364
          %v9626 = vadd.f32 %v9625, %v9380
          %v9627 = vadd.f32 %v9626, %v9396
          %v9628 = vadd.f32 %v9627, %v9412
          %v9629 = vadd.f32 %v9628, %v9428
          %v9630 = vadd.f32 %v9629, %v9444
          %v9631 = vrot.slane %v9630, 4
          %v9632 = vadd.f32 %v9630, %v9631
          %v9633 = vrot.slane %v9632, 2
          %v9634 = vadd.f32 %v9632, %v9633
          %v9635 = vrot.slane %v9634, 1
          %v9636 = vadd.f32 %v9634, %v9635
          %v9637 = vmul.f32 %v9456, 0.020408163
          %v9638 = vmul.f32 %v9468, 0.020408163
          %v9639 = vmul.f32 %v9480, 0.020408163
          %v9640 = vmul.f32 %v9492, 0.020408163
          %v9641 = vmul.f32 %v9504, 0.020408163
          %v9642 = vmul.f32 %v9516, 0.020408163
          %v9643 = vmul.f32 %v9528, 0.020408163
          %v9644 = vmul.f32 %v9540, 0.020408163
          %v9645 = vmul.f32 %v9552, 0.020408163
          %v9646 = vmul.f32 %v9564, 0.020408163
          %v9647 = vmul.f32 %v9576, 0.020408163
          %v9648 = vmul.f32 %v9588, 0.020408163
          %v9649 = vmul.f32 %v9600, 0.020408163
          %v9650 = vmul.f32 %v9612, 0.020408163
          %v9651 = vmul.f32 %v9624, 0.020408163
          %v9652 = vmul.f32 %v9636, 0.020408163
          %v9653 = vadd.f32 %v9637, 1e-05
          %v9654 = vadd.f32 %v9638, 1e-05
          %v9655 = vadd.f32 %v9639, 1e-05
          %v9656 = vadd.f32 %v9640, 1e-05
          %v9657 = vadd.f32 %v9641, 1e-05
          %v9658 = vadd.f32 %v9642, 1e-05
          %v9659 = vadd.f32 %v9643, 1e-05
          %v9660 = vadd.f32 %v9644, 1e-05
          %v9661 = vadd.f32 %v9645, 1e-05
          %v9662 = vadd.f32 %v9646, 1e-05
          %v9663 = vadd.f32 %v9647, 1e-05
          %v9664 = vadd.f32 %v9648, 1e-05
          %v9665 = vadd.f32 %v9649, 1e-05
          %v9666 = vadd.f32 %v9650, 1e-05
          %v9667 = vadd.f32 %v9651, 1e-05
          %v9668 = vadd.f32 %v9652, 1e-05
          %v9669 = vrsqrt.pop %v9653
          %v9670 = vmul.f32 %v9669, %v9653
          %v9671 = vmul.f32 %v9670, %v9669
          %v9672 = vmul.f32 0.5, %v9671
          %v9673 = vsub.f32 1.5, %v9672
          %v9674 = vmul.f32 %v9669, %v9673
          %vm9675 = vweird.f32 %v9653
          %vm9676 = vweird.f32 %v9669
          %vm9677 = vmor %vm9675, %vm9676
          %v9678 = vsel %vm9677, %v9669, %v9674
          %v9679 = vrsqrt.pop %v9654
          %v9680 = vmul.f32 %v9679, %v9654
          %v9681 = vmul.f32 %v9680, %v9679
          %v9682 = vmul.f32 0.5, %v9681
          %v9683 = vsub.f32 1.5, %v9682
          %v9684 = vmul.f32 %v9679, %v9683
          %vm9685 = vweird.f32 %v9654
          %vm9686 = vweird.f32 %v9679
          %vm9687 = vmor %vm9685, %vm9686
          %v9688 = vsel %vm9687, %v9679, %v9684
          %v9689 = vrsqrt.pop %v9655
          %v9690 = vmul.f32 %v9689, %v9655
          %v9691 = vmul.f32 %v9690, %v9689
          %v9692 = vmul.f32 0.5, %v9691
          %v9693 = vsub.f32 1.5, %v9692
          %v9694 = vmul.f32 %v9689, %v9693
          %vm9695 = vweird.f32 %v9655
          %vm9696 = vweird.f32 %v9689
          %vm9697 = vmor %vm9695, %vm9696
          %v9698 = vsel %vm9697, %v9689, %v9694
          %v9699 = vrsqrt.pop %v9656
          %v9700 = vmul.f32 %v9699, %v9656
          %v9701 = vmul.f32 %v9700, %v9699
          %v9702 = vmul.f32 0.5, %v9701
          %v9703 = vsub.f32 1.5, %v9702
          %v9704 = vmul.f32 %v9699, %v9703
          %vm9705 = vweird.f32 %v9656
          %vm9706 = vweird.f32 %v9699
          %vm9707 = vmor %vm9705, %vm9706
          %v9708 = vsel %vm9707, %v9699, %v9704
          %v9709 = vrsqrt.pop %v9657
          %v9710 = vmul.f32 %v9709, %v9657
          %v9711 = vmul.f32 %v9710, %v9709
          %v9712 = vmul.f32 0.5, %v9711
          %v9713 = vsub.f32 1.5, %v9712
          %v9714 = vmul.f32 %v9709, %v9713
          %vm9715 = vweird.f32 %v9657
          %vm9716 = vweird.f32 %v9709
          %vm9717 = vmor %vm9715, %vm9716
          %v9718 = vsel %vm9717, %v9709, %v9714
          %v9719 = vrsqrt.pop %v9658
          %v9720 = vmul.f32 %v9719, %v9658
          %v9721 = vmul.f32 %v9720, %v9719
          %v9722 = vmul.f32 0.5, %v9721
          %v9723 = vsub.f32 1.5, %v9722
          %v9724 = vmul.f32 %v9719, %v9723
          %vm9725 = vweird.f32 %v9658
          %vm9726 = vweird.f32 %v9719
          %vm9727 = vmor %vm9725, %vm9726
          %v9728 = vsel %vm9727, %v9719, %v9724
          %v9729 = vrsqrt.pop %v9659
          %v9730 = vmul.f32 %v9729, %v9659
          %v9731 = vmul.f32 %v9730, %v9729
          %v9732 = vmul.f32 0.5, %v9731
          %v9733 = vsub.f32 1.5, %v9732
          %v9734 = vmul.f32 %v9729, %v9733
          %vm9735 = vweird.f32 %v9659
          %vm9736 = vweird.f32 %v9729
          %vm9737 = vmor %vm9735, %vm9736
          %v9738 = vsel %vm9737, %v9729, %v9734
          %v9739 = vrsqrt.pop %v9660
          %v9740 = vmul.f32 %v9739, %v9660
          %v9741 = vmul.f32 %v9740, %v9739
          %v9742 = vmul.f32 0.5, %v9741
          %v9743 = vsub.f32 1.5, %v9742
          %v9744 = vmul.f32 %v9739, %v9743
          %vm9745 = vweird.f32 %v9660
          %vm9746 = vweird.f32 %v9739
          %vm9747 = vmor %vm9745, %vm9746
          %v9748 = vsel %vm9747, %v9739, %v9744
          %v9749 = vrsqrt.pop %v9661
          %v9750 = vmul.f32 %v9749, %v9661
          %v9751 = vmul.f32 %v9750, %v9749
          %v9752 = vmul.f32 0.5, %v9751
          %v9753 = vsub.f32 1.5, %v9752
          %v9754 = vmul.f32 %v9749, %v9753
          %vm9755 = vweird.f32 %v9661
          %vm9756 = vweird.f32 %v9749
          %vm9757 = vmor %vm9755, %vm9756
          %v9758 = vsel %vm9757, %v9749, %v9754
          %v9759 = vrsqrt.pop %v9662
          %v9760 = vmul.f32 %v9759, %v9662
          %v9761 = vmul.f32 %v9760, %v9759
          %v9762 = vmul.f32 0.5, %v9761
          %v9763 = vsub.f32 1.5, %v9762
          %v9764 = vmul.f32 %v9759, %v9763
          %vm9765 = vweird.f32 %v9662
          %vm9766 = vweird.f32 %v9759
          %vm9767 = vmor %vm9765, %vm9766
          %v9768 = vsel %vm9767, %v9759, %v9764
          %v9769 = vrsqrt.pop %v9663
          %v9770 = vmul.f32 %v9769, %v9663
          %v9771 = vmul.f32 %v9770, %v9769
          %v9772 = vmul.f32 0.5, %v9771
          %v9773 = vsub.f32 1.5, %v9772
          %v9774 = vmul.f32 %v9769, %v9773
          %vm9775 = vweird.f32 %v9663
          %vm9776 = vweird.f32 %v9769
          %vm9777 = vmor %vm9775, %vm9776
          %v9778 = vsel %vm9777, %v9769, %v9774
          %v9779 = vrsqrt.pop %v9664
          %v9780 = vmul.f32 %v9779, %v9664
          %v9781 = vmul.f32 %v9780, %v9779
          %v9782 = vmul.f32 0.5, %v9781
          %v9783 = vsub.f32 1.5, %v9782
          %v9784 = vmul.f32 %v9779, %v9783
          %vm9785 = vweird.f32 %v9664
          %vm9786 = vweird.f32 %v9779
          %vm9787 = vmor %vm9785, %vm9786
          %v9788 = vsel %vm9787, %v9779, %v9784
          %v9789 = vrsqrt.pop %v9665
          %v9790 = vmul.f32 %v9789, %v9665
          %v9791 = vmul.f32 %v9790, %v9789
          %v9792 = vmul.f32 0.5, %v9791
          %v9793 = vsub.f32 1.5, %v9792
          %v9794 = vmul.f32 %v9789, %v9793
          %vm9795 = vweird.f32 %v9665
          %vm9796 = vweird.f32 %v9789
          %vm9797 = vmor %vm9795, %vm9796
          %v9798 = vsel %vm9797, %v9789, %v9794
          %v9799 = vrsqrt.pop %v9666
          %v9800 = vmul.f32 %v9799, %v9666
          %v9801 = vmul.f32 %v9800, %v9799
          %v9802 = vmul.f32 0.5, %v9801
          %v9803 = vsub.f32 1.5, %v9802
          %v9804 = vmul.f32 %v9799, %v9803
          %vm9805 = vweird.f32 %v9666
          %vm9806 = vweird.f32 %v9799
          %vm9807 = vmor %vm9805, %vm9806
          %v9808 = vsel %vm9807, %v9799, %v9804
          %v9809 = vrsqrt.pop %v9667
          %v9810 = vmul.f32 %v9809, %v9667
          %v9811 = vmul.f32 %v9810, %v9809
          %v9812 = vmul.f32 0.5, %v9811
          %v9813 = vsub.f32 1.5, %v9812
          %v9814 = vmul.f32 %v9809, %v9813
          %vm9815 = vweird.f32 %v9667
          %vm9816 = vweird.f32 %v9809
          %vm9817 = vmor %vm9815, %vm9816
          %v9818 = vsel %vm9817, %v9809, %v9814
          %v9819 = vrsqrt.pop %v9668
          %v9820 = vmul.f32 %v9819, %v9668
          %v9821 = vmul.f32 %v9820, %v9819
          %v9822 = vmul.f32 0.5, %v9821
          %v9823 = vsub.f32 1.5, %v9822
          %v9824 = vmul.f32 %v9819, %v9823
          %vm9825 = vweird.f32 %v9668
          %vm9826 = vweird.f32 %v9819
          %vm9827 = vmor %vm9825, %vm9826
          %v9828 = vsel %vm9827, %v9819, %v9824
          %v9829 = vmul.f32 %v9109, %v9678
          %v9830 = vmul.f32 %v9110, %v9688
          %v9831 = vmul.f32 %v9111, %v9698
          %v9832 = vmul.f32 %v9112, %v9708
          %v9833 = vmul.f32 %v9113, %v9718
          %v9834 = vmul.f32 %v9114, %v9728
          %v9835 = vmul.f32 %v9115, %v9738
          %v9836 = vmul.f32 %v9116, %v9748
          %v9837 = vmul.f32 %v9117, %v9758
          %v9838 = vmul.f32 %v9118, %v9768
          %v9839 = vmul.f32 %v9119, %v9778
          %v9840 = vmul.f32 %v9120, %v9788
          %v9841 = vmul.f32 %v9121, %v9798
          %v9842 = vmul.f32 %v9122, %v9808
          %v9843 = vmul.f32 %v9123, %v9818
          %v9844 = vmul.f32 %v9124, %v9828
          %v9845 = vmul.f32 %v9125, %v9678
          %v9846 = vmul.f32 %v9126, %v9688
          %v9847 = vmul.f32 %v9127, %v9698
          %v9848 = vmul.f32 %v9128, %v9708
          %v9849 = vmul.f32 %v9129, %v9718
          %v9850 = vmul.f32 %v9130, %v9728
          %v9851 = vmul.f32 %v9131, %v9738
          %v9852 = vmul.f32 %v9132, %v9748
          %v9853 = vmul.f32 %v9133, %v9758
          %v9854 = vmul.f32 %v9134, %v9768
          %v9855 = vmul.f32 %v9135, %v9778
          %v9856 = vmul.f32 %v9136, %v9788
          %v9857 = vmul.f32 %v9137, %v9798
          %v9858 = vmul.f32 %v9138, %v9808
          %v9859 = vmul.f32 %v9139, %v9818
          %v9860 = vmul.f32 %v9140, %v9828
          %v9861 = vmul.f32 %v9141, %v9678
          %v9862 = vmul.f32 %v9142, %v9688
          %v9863 = vmul.f32 %v9143, %v9698
          %v9864 = vmul.f32 %v9144, %v9708
          %v9865 = vmul.f32 %v9145, %v9718
          %v9866 = vmul.f32 %v9146, %v9728
          %v9867 = vmul.f32 %v9147, %v9738
          %v9868 = vmul.f32 %v9148, %v9748
          %v9869 = vmul.f32 %v9149, %v9758
          %v9870 = vmul.f32 %v9150, %v9768
          %v9871 = vmul.f32 %v9151, %v9778
          %v9872 = vmul.f32 %v9152, %v9788
          %v9873 = vmul.f32 %v9153, %v9798
          %v9874 = vmul.f32 %v9154, %v9808
          %v9875 = vmul.f32 %v9155, %v9818
          %v9876 = vmul.f32 %v9156, %v9828
          %v9877 = vmul.f32 %v9157, %v9678
          %v9878 = vmul.f32 %v9158, %v9688
          %v9879 = vmul.f32 %v9159, %v9698
          %v9880 = vmul.f32 %v9160, %v9708
          %v9881 = vmul.f32 %v9161, %v9718
          %v9882 = vmul.f32 %v9162, %v9728
          %v9883 = vmul.f32 %v9163, %v9738
          %v9884 = vmul.f32 %v9164, %v9748
          %v9885 = vmul.f32 %v9165, %v9758
          %v9886 = vmul.f32 %v9166, %v9768
          %v9887 = vmul.f32 %v9167, %v9778
          %v9888 = vmul.f32 %v9168, %v9788
          %v9889 = vmul.f32 %v9169, %v9798
          %v9890 = vmul.f32 %v9170, %v9808
          %v9891 = vmul.f32 %v9171, %v9818
          %v9892 = vmul.f32 %v9172, %v9828
          %v9893 = vmul.f32 %v9173, %v9678
          %v9894 = vmul.f32 %v9174, %v9688
          %v9895 = vmul.f32 %v9175, %v9698
          %v9896 = vmul.f32 %v9176, %v9708
          %v9897 = vmul.f32 %v9177, %v9718
          %v9898 = vmul.f32 %v9178, %v9728
          %v9899 = vmul.f32 %v9179, %v9738
          %v9900 = vmul.f32 %v9180, %v9748
          %v9901 = vmul.f32 %v9181, %v9758
          %v9902 = vmul.f32 %v9182, %v9768
          %v9903 = vmul.f32 %v9183, %v9778
          %v9904 = vmul.f32 %v9184, %v9788
          %v9905 = vmul.f32 %v9185, %v9798
          %v9906 = vmul.f32 %v9186, %v9808
          %v9907 = vmul.f32 %v9187, %v9818
          %v9908 = vmul.f32 %v9188, %v9828
          %v9909 = vmul.f32 %v9189, %v9678
          %v9910 = vmul.f32 %v9190, %v9688
          %v9911 = vmul.f32 %v9191, %v9698
          %v9912 = vmul.f32 %v9192, %v9708
          %v9913 = vmul.f32 %v9193, %v9718
          %v9914 = vmul.f32 %v9194, %v9728
          %v9915 = vmul.f32 %v9195, %v9738
          %v9916 = vmul.f32 %v9196, %v9748
          %v9917 = vmul.f32 %v9197, %v9758
          %v9918 = vmul.f32 %v9198, %v9768
          %v9919 = vmul.f32 %v9199, %v9778
          %v9920 = vmul.f32 %v9200, %v9788
          %v9921 = vmul.f32 %v9201, %v9798
          %v9922 = vmul.f32 %v9202, %v9808
          %v9923 = vmul.f32 %v9203, %v9818
          %v9924 = vmul.f32 %v9204, %v9828
          %v9925 = vmul.f32 %v9205, %v9678
          %v9926 = vmul.f32 %v9206, %v9688
          %v9927 = vmul.f32 %v9207, %v9698
          %v9928 = vmul.f32 %v9208, %v9708
          %v9929 = vmul.f32 %v9209, %v9718
          %v9930 = vmul.f32 %v9210, %v9728
          %v9931 = vmul.f32 %v9211, %v9738
          %v9932 = vmul.f32 %v9212, %v9748
          %v9933 = vmul.f32 %v9213, %v9758
          %v9934 = vmul.f32 %v9214, %v9768
          %v9935 = vmul.f32 %v9215, %v9778
          %v9936 = vmul.f32 %v9216, %v9788
          %v9937 = vmul.f32 %v9217, %v9798
          %v9938 = vmul.f32 %v9218, %v9808
          %v9939 = vmul.f32 %v9219, %v9818
          %v9940 = vmul.f32 %v9220, %v9828
          %v9941 = vld [vmem:[#allocation12] sm:$0xff]
          %v9942 = vld [vmem:[#allocation12 + $0x8] sm:$0xff]
          %v9945 = vperm.slane %v9941, 0
          %v9946 = vperm.slane %v9941, 1
          %v9947 = vperm.slane %v9941, 2
          %v9948 = vperm.slane %v9941, 3
          %v9949 = vperm.slane %v9941, 4
          %v9950 = vperm.slane %v9941, 5
          %v9951 = vperm.slane %v9941, 6
          %v9952 = vperm.slane %v9941, 7
          %v9953 = vperm.slane %v9942, 0
          %v9954 = vperm.slane %v9942, 1
          %v9955 = vperm.slane %v9942, 2
          %v9956 = vperm.slane %v9942, 3
          %v9957 = vperm.slane %v9942, 4
          %v9958 = vperm.slane %v9942, 5
          %v9959 = vperm.slane %v9942, 6
          %v9960 = vperm.slane %v9942, 7
          %v9977 = vmul.f32 %v9829, %v9945
          %v9978 = vmul.f32 %v9830, %v9946
          %v9979 = vmul.f32 %v9831, %v9947
          %v9980 = vmul.f32 %v9832, %v9948
          %v9981 = vmul.f32 %v9833, %v9949
          %v9982 = vmul.f32 %v9834, %v9950
          %v9983 = vmul.f32 %v9835, %v9951
          %v9984 = vmul.f32 %v9836, %v9952
          %v9985 = vmul.f32 %v9837, %v9953
          %v9986 = vmul.f32 %v9838, %v9954
          %v9987 = vmul.f32 %v9839, %v9955
          %v9988 = vmul.f32 %v9840, %v9956
          %v9989 = vmul.f32 %v9841, %v9957
          %v9990 = vmul.f32 %v9842, %v9958
          %v9991 = vmul.f32 %v9843, %v9959
          %v9992 = vmul.f32 %v9844, %v9960
          %v9993 = vmul.f32 %v9845, %v9945
          %v9994 = vmul.f32 %v9846, %v9946
          %v9995 = vmul.f32 %v9847, %v9947
          %v9996 = vmul.f32 %v9848, %v9948
          %v9997 = vmul.f32 %v9849, %v9949
          %v9998 = vmul.f32 %v9850, %v9950
          %v9999 = vmul.f32 %v9851, %v9951
          %v10000 = vmul.f32 %v9852, %v9952
          %v10001 = vmul.f32 %v9853, %v9953
          %v10002 = vmul.f32 %v9854, %v9954
          %v10003 = vmul.f32 %v9855, %v9955
          %v10004 = vmul.f32 %v9856, %v9956
          %v10005 = vmul.f32 %v9857, %v9957
          %v10006 = vmul.f32 %v9858, %v9958
          %v10007 = vmul.f32 %v9859, %v9959
          %v10008 = vmul.f32 %v9860, %v9960
          %v10009 = vmul.f32 %v9861, %v9945
          %v10010 = vmul.f32 %v9862, %v9946
          %v10011 = vmul.f32 %v9863, %v9947
          %v10012 = vmul.f32 %v9864, %v9948
          %v10013 = vmul.f32 %v9865, %v9949
          %v10014 = vmul.f32 %v9866, %v9950
          %v10015 = vmul.f32 %v9867, %v9951
          %v10016 = vmul.f32 %v9868, %v9952
          %v10017 = vmul.f32 %v9869, %v9953
          %v10018 = vmul.f32 %v9870, %v9954
          %v10019 = vmul.f32 %v9871, %v9955
          %v10020 = vmul.f32 %v9872, %v9956
          %v10021 = vmul.f32 %v9873, %v9957
          %v10022 = vmul.f32 %v9874, %v9958
          %v10023 = vmul.f32 %v9875, %v9959
          %v10024 = vmul.f32 %v9876, %v9960
          %v10025 = vmul.f32 %v9877, %v9945
          %v10026 = vmul.f32 %v9878, %v9946
          %v10027 = vmul.f32 %v9879, %v9947
          %v10028 = vmul.f32 %v9880, %v9948
          %v10029 = vmul.f32 %v9881, %v9949
          %v10030 = vmul.f32 %v9882, %v9950
          %v10031 = vmul.f32 %v9883, %v9951
          %v10032 = vmul.f32 %v9884, %v9952
          %v10033 = vmul.f32 %v9885, %v9953
          %v10034 = vmul.f32 %v9886, %v9954
          %v10035 = vmul.f32 %v9887, %v9955
          %v10036 = vmul.f32 %v9888, %v9956
          %v10037 = vmul.f32 %v9889, %v9957
          %v10038 = vmul.f32 %v9890, %v9958
          %v10039 = vmul.f32 %v9891, %v9959
          %v10040 = vmul.f32 %v9892, %v9960
          %v10041 = vmul.f32 %v9893, %v9945
          %v10042 = vmul.f32 %v9894, %v9946
          %v10043 = vmul.f32 %v9895, %v9947
          %v10044 = vmul.f32 %v9896, %v9948
          %v10045 = vmul.f32 %v9897, %v9949
          %v10046 = vmul.f32 %v9898, %v9950
          %v10047 = vmul.f32 %v9899, %v9951
          %v10048 = vmul.f32 %v9900, %v9952
          %v10049 = vmul.f32 %v9901, %v9953
          %v10050 = vmul.f32 %v9902, %v9954
          %v10051 = vmul.f32 %v9903, %v9955
          %v10052 = vmul.f32 %v9904, %v9956
          %v10053 = vmul.f32 %v9905, %v9957
          %v10054 = vmul.f32 %v9906, %v9958
          %v10055 = vmul.f32 %v9907, %v9959
          %v10056 = vmul.f32 %v9908, %v9960
          %v10057 = vmul.f32 %v9909, %v9945
          %v10058 = vmul.f32 %v9910, %v9946
          %v10059 = vmul.f32 %v9911, %v9947
          %v10060 = vmul.f32 %v9912, %v9948
          %v10061 = vmul.f32 %v9913, %v9949
          %v10062 = vmul.f32 %v9914, %v9950
          %v10063 = vmul.f32 %v9915, %v9951
          %v10064 = vmul.f32 %v9916, %v9952
          %v10065 = vmul.f32 %v9917, %v9953
          %v10066 = vmul.f32 %v9918, %v9954
          %v10067 = vmul.f32 %v9919, %v9955
          %v10068 = vmul.f32 %v9920, %v9956
          %v10069 = vmul.f32 %v9921, %v9957
          %v10070 = vmul.f32 %v9922, %v9958
          %v10071 = vmul.f32 %v9923, %v9959
          %v10072 = vmul.f32 %v9924, %v9960
          %v10073 = vmul.f32 %v9925, %v9945
          %v10074 = vmul.f32 %v9926, %v9946
          %v10075 = vmul.f32 %v9927, %v9947
          %v10076 = vmul.f32 %v9928, %v9948
          %v10077 = vmul.f32 %v9929, %v9949
          %v10078 = vmul.f32 %v9930, %v9950
          %v10079 = vmul.f32 %v9931, %v9951
          %v10080 = vmul.f32 %v9932, %v9952
          %v10081 = vmul.f32 %v9933, %v9953
          %v10082 = vmul.f32 %v9934, %v9954
          %v10083 = vmul.f32 %v9935, %v9955
          %v10084 = vmul.f32 %v9936, %v9956
          %v10085 = vmul.f32 %v9937, %v9957
          %v10086 = vmul.f32 %v9938, %v9958
          %v10087 = vmul.f32 %v9939, %v9959
          %v10088 = vmul.f32 %v9940, %v9960
          %v10089 = vld [vmem:[#allocation14] sm:$0xff]
          %v10090 = vld [vmem:[#allocation14 + $0x8] sm:$0xff]
          %v10093 = vperm.slane %v10089, 0
          %v10094 = vperm.slane %v10089, 1
          %v10095 = vperm.slane %v10089, 2
          %v10096 = vperm.slane %v10089, 3
          %v10097 = vperm.slane %v10089, 4
          %v10098 = vperm.slane %v10089, 5
          %v10099 = vperm.slane %v10089, 6
          %v10100 = vperm.slane %v10089, 7
          %v10101 = vperm.slane %v10090, 0
          %v10102 = vperm.slane %v10090, 1
          %v10103 = vperm.slane %v10090, 2
          %v10104 = vperm.slane %v10090, 3
          %v10105 = vperm.slane %v10090, 4
          %v10106 = vperm.slane %v10090, 5
          %v10107 = vperm.slane %v10090, 6
          %v10108 = vperm.slane %v10090, 7
          %v10125 = vadd.f32 %v9977, %v10093
          %v10126 = vadd.f32 %v9978, %v10094
          %v10127 = vadd.f32 %v9979, %v10095
          %v10128 = vadd.f32 %v9980, %v10096
          %v10129 = vadd.f32 %v9981, %v10097
          %v10130 = vadd.f32 %v9982, %v10098
          %v10131 = vadd.f32 %v9983, %v10099
          %v10132 = vadd.f32 %v9984, %v10100
          %v10133 = vadd.f32 %v9985, %v10101
          %v10134 = vadd.f32 %v9986, %v10102
          %v10135 = vadd.f32 %v9987, %v10103
          %v10136 = vadd.f32 %v9988, %v10104
          %v10137 = vadd.f32 %v9989, %v10105
          %v10138 = vadd.f32 %v9990, %v10106
          %v10139 = vadd.f32 %v9991, %v10107
          %v10140 = vadd.f32 %v9992, %v10108
          %v10141 = vadd.f32 %v9993, %v10093
          %v10142 = vadd.f32 %v9994, %v10094
          %v10143 = vadd.f32 %v9995, %v10095
          %v10144 = vadd.f32 %v9996, %v10096
          %v10145 = vadd.f32 %v9997, %v10097
          %v10146 = vadd.f32 %v9998, %v10098
          %v10147 = vadd.f32 %v9999, %v10099
          %v10148 = vadd.f32 %v10000, %v10100
          %v10149 = vadd.f32 %v10001, %v10101
          %v10150 = vadd.f32 %v10002, %v10102
          %v10151 = vadd.f32 %v10003, %v10103
          %v10152 = vadd.f32 %v10004, %v10104
          %v10153 = vadd.f32 %v10005, %v10105
          %v10154 = vadd.f32 %v10006, %v10106
          %v10155 = vadd.f32 %v10007, %v10107
          %v10156 = vadd.f32 %v10008, %v10108
          %v10157 = vadd.f32 %v10009, %v10093
          %v10158 = vadd.f32 %v10010, %v10094
          %v10159 = vadd.f32 %v10011, %v10095
          %v10160 = vadd.f32 %v10012, %v10096
          %v10161 = vadd.f32 %v10013, %v10097
          %v10162 = vadd.f32 %v10014, %v10098
          %v10163 = vadd.f32 %v10015, %v10099
          %v10164 = vadd.f32 %v10016, %v10100
          %v10165 = vadd.f32 %v10017, %v10101
          %v10166 = vadd.f32 %v10018, %v10102
          %v10167 = vadd.f32 %v10019, %v10103
          %v10168 = vadd.f32 %v10020, %v10104
          %v10169 = vadd.f32 %v10021, %v10105
          %v10170 = vadd.f32 %v10022, %v10106
          %v10171 = vadd.f32 %v10023, %v10107
          %v10172 = vadd.f32 %v10024, %v10108
          %v10173 = vadd.f32 %v10025, %v10093
          %v10174 = vadd.f32 %v10026, %v10094
          %v10175 = vadd.f32 %v10027, %v10095
          %v10176 = vadd.f32 %v10028, %v10096
          %v10177 = vadd.f32 %v10029, %v10097
          %v10178 = vadd.f32 %v10030, %v10098
          %v10179 = vadd.f32 %v10031, %v10099
          %v10180 = vadd.f32 %v10032, %v10100
          %v10181 = vadd.f32 %v10033, %v10101
          %v10182 = vadd.f32 %v10034, %v10102
          %v10183 = vadd.f32 %v10035, %v10103
          %v10184 = vadd.f32 %v10036, %v10104
          %v10185 = vadd.f32 %v10037, %v10105
          %v10186 = vadd.f32 %v10038, %v10106
          %v10187 = vadd.f32 %v10039, %v10107
          %v10188 = vadd.f32 %v10040, %v10108
          %v10189 = vadd.f32 %v10041, %v10093
          %v10190 = vadd.f32 %v10042, %v10094
          %v10191 = vadd.f32 %v10043, %v10095
          %v10192 = vadd.f32 %v10044, %v10096
          %v10193 = vadd.f32 %v10045, %v10097
          %v10194 = vadd.f32 %v10046, %v10098
          %v10195 = vadd.f32 %v10047, %v10099
          %v10196 = vadd.f32 %v10048, %v10100
          %v10197 = vadd.f32 %v10049, %v10101
          %v10198 = vadd.f32 %v10050, %v10102
          %v10199 = vadd.f32 %v10051, %v10103
          %v10200 = vadd.f32 %v10052, %v10104
          %v10201 = vadd.f32 %v10053, %v10105
          %v10202 = vadd.f32 %v10054, %v10106
          %v10203 = vadd.f32 %v10055, %v10107
          %v10204 = vadd.f32 %v10056, %v10108
          %v10205 = vadd.f32 %v10057, %v10093
          %v10206 = vadd.f32 %v10058, %v10094
          %v10207 = vadd.f32 %v10059, %v10095
          %v10208 = vadd.f32 %v10060, %v10096
          %v10209 = vadd.f32 %v10061, %v10097
          %v10210 = vadd.f32 %v10062, %v10098
          %v10211 = vadd.f32 %v10063, %v10099
          %v10212 = vadd.f32 %v10064, %v10100
          %v10213 = vadd.f32 %v10065, %v10101
          %v10214 = vadd.f32 %v10066, %v10102
          %v10215 = vadd.f32 %v10067, %v10103
          %v10216 = vadd.f32 %v10068, %v10104
          %v10217 = vadd.f32 %v10069, %v10105
          %v10218 = vadd.f32 %v10070, %v10106
          %v10219 = vadd.f32 %v10071, %v10107
          %v10220 = vadd.f32 %v10072, %v10108
          %v10221 = vadd.f32 %v10073, %v10093
          %v10222 = vadd.f32 %v10074, %v10094
          %v10223 = vadd.f32 %v10075, %v10095
          %v10224 = vadd.f32 %v10076, %v10096
          %v10225 = vadd.f32 %v10077, %v10097
          %v10226 = vadd.f32 %v10078, %v10098
          %v10227 = vadd.f32 %v10079, %v10099
          %v10228 = vadd.f32 %v10080, %v10100
          %v10229 = vadd.f32 %v10081, %v10101
          %v10230 = vadd.f32 %v10082, %v10102
          %v10231 = vadd.f32 %v10083, %v10103
          %v10232 = vadd.f32 %v10084, %v10104
          %v10233 = vadd.f32 %v10085, %v10105
          %v10234 = vadd.f32 %v10086, %v10106
          %v10235 = vadd.f32 %v10087, %v10107
          %v10236 = vadd.f32 %v10088, %v10108
          %10237 = vst [vmem:[#allocation15] sm:$0xff] %v10125
          %10238 = vst [vmem:[#allocation15 + $0x8] sm:$0xff] %v10126
          %10239 = vst [vmem:[#allocation15 + $0x10] sm:$0xff] %v10127
          %10240 = vst [vmem:[#allocation15 + $0x18] sm:$0xff] %v10128
          %10241 = vst [vmem:[#allocation15 + $0x20] sm:$0xff] %v10129
          %10242 = vst [vmem:[#allocation15 + $0x28] sm:$0xff] %v10130
          %10243 = vst [vmem:[#allocation15 + $0x30] sm:$0xff] %v10131
          %10244 = vst [vmem:[#allocation15 + $0x38] sm:$0xff] %v10132
          %10245 = vst [vmem:[#allocation15 + $0x40] sm:$0xff] %v10133
          %10246 = vst [vmem:[#allocation15 + $0x48] sm:$0xff] %v10134
          %10247 = vst [vmem:[#allocation15 + $0x50] sm:$0xff] %v10135
          %10248 = vst [vmem:[#allocation15 + $0x58] sm:$0xff] %v10136
          %10249 = vst [vmem:[#allocation15 + $0x60] sm:$0xff] %v10137
          %10250 = vst [vmem:[#allocation15 + $0x68] sm:$0xff] %v10138
          %10251 = vst [vmem:[#allocation15 + $0x70] sm:$0xff] %v10139
          %10252 = vst [vmem:[#allocation15 + $0x78] sm:$0xff] %v10140
          %10253 = vst [vmem:[#allocation15 + $0x80] sm:$0xff] %v10141
          %10254 = vst [vmem:[#allocation15 + $0x88] sm:$0xff] %v10142
          %10255 = vst [vmem:[#allocation15 + $0x90] sm:$0xff] %v10143
          %10256 = vst [vmem:[#allocation15 + $0x98] sm:$0xff] %v10144
          %10257 = vst [vmem:[#allocation15 + $0xa0] sm:$0xff] %v10145
          %10258 = vst [vmem:[#allocation15 + $0xa8] sm:$0xff] %v10146
          %10259 = vst [vmem:[#allocation15 + $0xb0] sm:$0xff] %v10147
          %10260 = vst [vmem:[#allocation15 + $0xb8] sm:$0xff] %v10148
          %10261 = vst [vmem:[#allocation15 + $0xc0] sm:$0xff] %v10149
          %10262 = vst [vmem:[#allocation15 + $0xc8] sm:$0xff] %v10150
          %10263 = vst [vmem:[#allocation15 + $0xd0] sm:$0xff] %v10151
          %10264 = vst [vmem:[#allocation15 + $0xd8] sm:$0xff] %v10152
          %10265 = vst [vmem:[#allocation15 + $0xe0] sm:$0xff] %v10153
          %10266 = vst [vmem:[#allocation15 + $0xe8] sm:$0xff] %v10154
          %10267 = vst [vmem:[#allocation15 + $0xf0] sm:$0xff] %v10155
          %10268 = vst [vmem:[#allocation15 + $0xf8] sm:$0xff] %v10156
          %10269 = vst [vmem:[#allocation15 + $0x100] sm:$0xff] %v10157
          %10270 = vst [vmem:[#allocation15 + $0x108] sm:$0xff] %v10158
          %10271 = vst [vmem:[#allocation15 + $0x110] sm:$0xff] %v10159
          %10272 = vst [vmem:[#allocation15 + $0x118] sm:$0xff] %v10160
          %10273 = vst [vmem:[#allocation15 + $0x120] sm:$0xff] %v10161
          %10274 = vst [vmem:[#allocation15 + $0x128] sm:$0xff] %v10162
          %10275 = vst [vmem:[#allocation15 + $0x130] sm:$0xff] %v10163
          %10276 = vst [vmem:[#allocation15 + $0x138] sm:$0xff] %v10164
          %10277 = vst [vmem:[#allocation15 + $0x140] sm:$0xff] %v10165
          %10278 = vst [vmem:[#allocation15 + $0x148] sm:$0xff] %v10166
          %10279 = vst [vmem:[#allocation15 + $0x150] sm:$0xff] %v10167
          %10280 = vst [vmem:[#allocation15 + $0x158] sm:$0xff] %v10168
          %10281 = vst [vmem:[#allocation15 + $0x160] sm:$0xff] %v10169
          %10282 = vst [vmem:[#allocation15 + $0x168] sm:$0xff] %v10170
          %10283 = vst [vmem:[#allocation15 + $0x170] sm:$0xff] %v10171
          %10284 = vst [vmem:[#allocation15 + $0x178] sm:$0xff] %v10172
          %10285 = vst [vmem:[#allocation15 + $0x180] sm:$0xff] %v10173
          %10286 = vst [vmem:[#allocation15 + $0x188] sm:$0xff] %v10174
          %10287 = vst [vmem:[#allocation15 + $0x190] sm:$0xff] %v10175
          %10288 = vst [vmem:[#allocation15 + $0x198] sm:$0xff] %v10176
          %10289 = vst [vmem:[#allocation15 + $0x1a0] sm:$0xff] %v10177
          %10290 = vst [vmem:[#allocation15 + $0x1a8] sm:$0xff] %v10178
          %10291 = vst [vmem:[#allocation15 + $0x1b0] sm:$0xff] %v10179
          %10292 = vst [vmem:[#allocation15 + $0x1b8] sm:$0xff] %v10180
          %10293 = vst [vmem:[#allocation15 + $0x1c0] sm:$0xff] %v10181
          %10294 = vst [vmem:[#allocation15 + $0x1c8] sm:$0xff] %v10182
          %10295 = vst [vmem:[#allocation15 + $0x1d0] sm:$0xff] %v10183
          %10296 = vst [vmem:[#allocation15 + $0x1d8] sm:$0xff] %v10184
          %10297 = vst [vmem:[#allocation15 + $0x1e0] sm:$0xff] %v10185
          %10298 = vst [vmem:[#allocation15 + $0x1e8] sm:$0xff] %v10186
          %10299 = vst [vmem:[#allocation15 + $0x1f0] sm:$0xff] %v10187
          %10300 = vst [vmem:[#allocation15 + $0x1f8] sm:$0xff] %v10188
          %10301 = vst [vmem:[#allocation15 + $0x200] sm:$0xff] %v10189
          %10302 = vst [vmem:[#allocation15 + $0x208] sm:$0xff] %v10190
          %10303 = vst [vmem:[#allocation15 + $0x210] sm:$0xff] %v10191
          %10304 = vst [vmem:[#allocation15 + $0x218] sm:$0xff] %v10192
          %10305 = vst [vmem:[#allocation15 + $0x220] sm:$0xff] %v10193
          %10306 = vst [vmem:[#allocation15 + $0x228] sm:$0xff] %v10194
          %10307 = vst [vmem:[#allocation15 + $0x230] sm:$0xff] %v10195
          %10308 = vst [vmem:[#allocation15 + $0x238] sm:$0xff] %v10196
          %10309 = vst [vmem:[#allocation15 + $0x240] sm:$0xff] %v10197
          %10310 = vst [vmem:[#allocation15 + $0x248] sm:$0xff] %v10198
          %10311 = vst [vmem:[#allocation15 + $0x250] sm:$0xff] %v10199
          %10312 = vst [vmem:[#allocation15 + $0x258] sm:$0xff] %v10200
          %10313 = vst [vmem:[#allocation15 + $0x260] sm:$0xff] %v10201
          %10314 = vst [vmem:[#allocation15 + $0x268] sm:$0xff] %v10202
          %10315 = vst [vmem:[#allocation15 + $0x270] sm:$0xff] %v10203
          %10316 = vst [vmem:[#allocation15 + $0x278] sm:$0xff] %v10204
          %10317 = vst [vmem:[#allocation15 + $0x280] sm:$0xff] %v10205
          %10318 = vst [vmem:[#allocation15 + $0x288] sm:$0xff] %v10206
          %10319 = vst [vmem:[#allocation15 + $0x290] sm:$0xff] %v10207
          %10320 = vst [vmem:[#allocation15 + $0x298] sm:$0xff] %v10208
          %10321 = vst [vmem:[#allocation15 + $0x2a0] sm:$0xff] %v10209
          %10322 = vst [vmem:[#allocation15 + $0x2a8] sm:$0xff] %v10210
          %10323 = vst [vmem:[#allocation15 + $0x2b0] sm:$0xff] %v10211
          %10324 = vst [vmem:[#allocation15 + $0x2b8] sm:$0xff] %v10212
          %10325 = vst [vmem:[#allocation15 + $0x2c0] sm:$0xff] %v10213
          %10326 = vst [vmem:[#allocation15 + $0x2c8] sm:$0xff] %v10214
          %10327 = vst [vmem:[#allocation15 + $0x2d0] sm:$0xff] %v10215
          %10328 = vst [vmem:[#allocation15 + $0x2d8] sm:$0xff] %v10216
          %10329 = vst [vmem:[#allocation15 + $0x2e0] sm:$0xff] %v10217
          %10330 = vst [vmem:[#allocation15 + $0x2e8] sm:$0xff] %v10218
          %10331 = vst [vmem:[#allocation15 + $0x2f0] sm:$0xff] %v10219
          %10332 = vst [vmem:[#allocation15 + $0x2f8] sm:$0xff] %v10220
          %10333 = vst [vmem:[#allocation15 + $0x300] sm:$0xff] %v10221
          %10334 = vst [vmem:[#allocation15 + $0x308] sm:$0xff] %v10222
          %10335 = vst [vmem:[#allocation15 + $0x310] sm:$0xff] %v10223
          %10336 = vst [vmem:[#allocation15 + $0x318] sm:$0xff] %v10224
          %10337 = vst [vmem:[#allocation15 + $0x320] sm:$0xff] %v10225
          %10338 = vst [vmem:[#allocation15 + $0x328] sm:$0xff] %v10226
          %10339 = vst [vmem:[#allocation15 + $0x330] sm:$0xff] %v10227
          %10340 = vst [vmem:[#allocation15 + $0x338] sm:$0xff] %v10228
          %10341 = vst [vmem:[#allocation15 + $0x340] sm:$0xff] %v10229
          %10342 = vst [vmem:[#allocation15 + $0x348] sm:$0xff] %v10230
          %10343 = vst [vmem:[#allocation15 + $0x350] sm:$0xff] %v10231
          %10344 = vst [vmem:[#allocation15 + $0x358] sm:$0xff] %v10232
          %10345 = vst [vmem:[#allocation15 + $0x360] sm:$0xff] %v10233
          %10346 = vst [vmem:[#allocation15 + $0x368] sm:$0xff] %v10234
          %10347 = vst [vmem:[#allocation15 + $0x370] sm:$0xff] %v10235
          %10348 = vst [vmem:[#allocation15 + $0x378] sm:$0xff] %v10236
        $region84: #{tpu_custom_call.1} parent=47 // pred_fallthru
          _
        // Predicated region
        $region85: #{tpu_custom_call.1} parent=47 // pred_check
          %p10349 = pneg %p197
        $region86: #{tpu_custom_call.1} parent=47 // pred_check_branch
          %10351 = sbr.rel (%p10349) target = $region88
        $region87: #{tpu_custom_call.1} parent=47 // pred_region
          %10353 = vsyncadd [#allocation5], 0
          %s10354 = sshll.u32 [#allocation15], 4
          %s10355 = int_to_ptr.vmem [resolvable:$true] %s10354
          %s10356 = sshll.u32 %s7, 4
          %s10357 = int_to_ptr.hbm [resolvable:$true] %s10356
          %10362 = dma.vmem_to_hbm [thread:$0]  %s10355, 14336, %s10357, [#allocation5], 2048, 2048, 128
        $region88: #{tpu_custom_call.1} parent=47 // pred_fallthru
          _
        // Predicated region
        $region89: #{tpu_custom_call.1} parent=47 // pred_check
          %p10363 = pneg %p197
        $region90: #{tpu_custom_call.1} parent=47 // pred_check_branch
          %10365 = sbr.rel (%p10363) target = $region92
        $region91: #{tpu_custom_call.1} parent=47 // pred_region
          %10367 = dma.done [#allocation5], 14336
        $region92: #{tpu_custom_call.1} parent=47 // pred_fallthru
          _
      $region48: #{tpu_custom_call.1} parent=5 // pred_fallthru
        _
      %p10368 = scmp.le.s32.totalorder 2, %s22
      // Predicated region
      $region93: #{tpu_custom_call.1} parent=5 // pred_check
        %p10369 = pneg %p10368
      $region94: #{tpu_custom_call.1} parent=5 // pred_check_branch
        %10371 = sbr.rel (%p10369) target = $region96
      $region95: #{tpu_custom_call.1} parent=5 // pred_region
        %s10372 = ssub.s32 %s22, 2
      $region96: #{tpu_custom_call.1} parent=5 // pred_fallthru
        _
    $region6: #{tpu_custom_call.1} parent=1 // loop_footer
      %s26 = sadd.s32 1, %s22
    $region7: #{tpu_custom_call.1} parent=1 // loop_footer_branch
      %21 = sbr.rel target = $region3
    $region8: #{tpu_custom_call.1} parent=1 // loop_exit
      _
    %10373 = vsyncpa [#allocation4], 1
    %s10374 = scalar_lea.sflag [#allocation4], 1
    %10375 = vsyncpa %s10374, 1
    %10376 = vsyncpa [#allocation7], 1
    %s10377 = scalar_lea.sflag [#allocation7], 1
    %10378 = vsyncpa %s10377, 1
    %10379 = vsyncpa [#allocation10], 1
    %10380 = vsyncpa [#allocation13], 1
    %10381 = vsyncpa [#allocation5], 1
    %s10382 = scalar_lea.sflag [#allocation5], 1
    %10383 = vsyncpa %s10382, 1

</llo_original>
